<compile_context>
chip_gen: v5e
topology: v5e:2x2
jax: 0.10.0
libtpu: 0.0.40
codegen_flags: <defaults>
</compile_context>

<pallas_src>
import functools
import numpy as np

import jax
import jax.numpy as jnp
from jax import lax
from jax.experimental import pallas as pl
from jax.experimental.pallas import tpu as pltpu


# --------------------------------------------------------------------------------------
# Small helpers
# --------------------------------------------------------------------------------------
def _mm_nt(a, b):
    """MXU matmul contracting the LAST dim of both operands: (M,K) x (N,K) -> (M,N)."""
    return lax.dot_general(a, b, (((1,), (1,)), ((), ())),
                           preferred_element_type=jnp.float32)


# --------------------------------------------------------------------------------------
# Fused kernel: whole ResnetBlockBigGANpp forward for one sample per grid step
# --------------------------------------------------------------------------------------
def _resblock_kernel(x_ref, temb_ref,
                     w0_ref, wd0_ref, wd1_ref, w1_ref, w2_ref,
                     g0_ref, be0_ref, g1_ref, be1_ref,
                     b0_ref, bd0_ref, bd1r_ref, bd1c_ref, b1_ref, b2_ref,
                     out_ref, nt_ref,
                     xpad_ref, patch_ref,
                     *, H, W, Cin, Cout, G0, G1, eps, skip_scale):
    HW = H * W
    f32 = jnp.float32

    x = x_ref[0].astype(f32)       # (H, W, Cin)
    temb = temb_ref[0].astype(f32)  # (H, W, Cin)

    def silu(v):
        return v * jax.nn.sigmoid(v)

    def group_norm_silu(v, gamma, beta, G):
        """GroupNorm (biased var) + SiLU on a channels-last tensor v = (..., C).

        Per-channel sum / sum-of-squares are computed with full-tensor reductions once;
        the per-group combination only touches the tiny (1, C) stat vectors.
        """
        C = v.shape[-1]
        cg = C // G
        n_red = 1
        for a in range(v.ndim - 1):
            n_red *= v.shape[a]
        s = v
        ss = v * v
        for ax in range(v.ndim - 1):                      # single-axis reduces, in order
            s = jnp.sum(s, axis=ax, keepdims=True)
            ss = jnp.sum(ss, axis=ax, keepdims=True)
        ch = lax.broadcasted_iota(jnp.int32, s.shape, v.ndim - 1)
        mean_b = jnp.zeros(s.shape, f32)
        var_b = jnp.zeros(s.shape, f32)
        denom = float(cg * n_red)
        for g in range(G):                                # static & tiny (<=32)
            sl = (Ellipsis, slice(g * cg, (g + 1) * cg))
            m = jnp.sum(s[sl]) / denom
            m2 = jnp.sum(ss[sl]) / denom
            # E[x^2]-m^2 can go slightly negative from cancellation; clamp before +eps.
            var = jnp.maximum(m2 - m * m, 0.0)
            in_g = (ch >= g * cg) & (ch < (g + 1) * cg)
            mean_b = jnp.where(in_g, m, mean_b)
            var_b = jnp.where(in_g, var, var_b)
        y = (v - mean_b) * lax.rsqrt(var_b + eps) * gamma + beta
        return silu(y)

    def im2col(v, C):
        """v: (H, W, C) -> (HW, 9*C) patch matrix (zero halo), built in VMEM scratch."""
        xpad_ref[...] = jnp.zeros_like(xpad_ref)
        xpad_ref[1:H + 1, 1:W + 1, 0:C] = v
        for dy in range(3):
            for dx in range(3):
                t = dy * 3 + dx
                tap = xpad_ref[dy:dy + H, dx:dx + W, 0:C]           # (H, W, C)
                patch_ref[:, t * C:(t + 1) * C] = tap.reshape(HW, C)
        return patch_ref[:, 0:9 * C]                                # (HW, 9*C)

    # ---- main path: h = Conv_0(SiLU(GroupNorm_0(x))) --------------------------------
    h0 = group_norm_silu(x, g0_ref[...], be0_ref[...], G0)          # (H, W, Cin)
    p0 = im2col(h0, Cin)                                            # (HW, 9*Cin)
    h = _mm_nt(p0, w0_ref[...].astype(f32)) + b0_ref[...].astype(f32)   # (HW, Cout)

    # ---- temb path: new_temb = Dense_1(SiLU(Dense_0(SiLU(temb)))) --------------------
    pt = im2col(silu(temb), Cin)                                    # (HW, 9*Cin)
    a = silu(_mm_nt(pt, wd0_ref[...].astype(f32)) + bd0_ref[...].astype(f32))  # (HW, Cout)
    wd1 = wd1_ref[...].astype(f32)                                  # (Cout_o, Cout_i)
    nt_cl = _mm_nt(a, wd1) + bd1r_ref[...].astype(f32)              # (HW, Cout): feeds h
    nt_cf = _mm_nt(wd1, a) + bd1c_ref[...].astype(f32)              # (Cout, HW): lane-dense store
    nt_ref[0] = nt_cf.astype(nt_ref.dtype)

    # ---- h += new_temb ; h = SiLU(GroupNorm_1(h)) ; Dropout(eval)=id ; h = Conv_1(h) --
    h = h + nt_cl
    h = group_norm_silu(h, g1_ref[...], be1_ref[...], G1)           # (HW, Cout)
    # TODO(synk): Dropout_0 runs in eval/inference mode -> identity (no RNG mask).
    p1 = im2col(h.reshape(H, W, Cout), Cout)                        # (HW, 9*Cout)
    h_cf = _mm_nt(w1_ref[...].astype(f32), p1) + b1_ref[...].astype(f32)   # (Cout, HW)

    # ---- shortcut x = Conv_2(x) (1x1) and fused (x + h) / sqrt(2) --------------------
    xf = x.reshape(HW, Cin)
    xs_cf = _mm_nt(w2_ref[...].astype(f32), xf) + b2_ref[...].astype(f32)  # (Cout, HW)
    out_ref[0] = ((xs_cf + h_cf) * skip_scale).astype(out_ref.dtype)


# --------------------------------------------------------------------------------------
# Wrapper: one pallas_call, grid over batch
# --------------------------------------------------------------------------------------
def resnet_block_biggan_pp(prepared, x_nchw, temb_nchw):
    N, Cin, H, W = x_nchw.shape
    Cout = prepared["w0"].shape[0]
    HW = H * W
    Cmax = max(Cin, Cout)
    G0 = min(Cin // 4, 32)
    G1 = min(Cout // 4, 32)

    # Single tiny layout change for the inputs; every intermediate stays in VMEM.
    x = jnp.transpose(x_nchw, (0, 2, 3, 1))        # NHWC
    temb = jnp.transpose(temb_nchw, (0, 2, 3, 1))  # NHWC

    kern = functools.partial(
        _resblock_kernel, H=H, W=W, Cin=Cin, Cout=Cout, G0=G0, G1=G1,
        eps=1e-6, skip_scale=float(1.0 / np.sqrt(2.0)))

    def full_spec(a):
        nd = a.ndim
        return pl.BlockSpec(a.shape, lambda n, _nd=nd: (0,) * _nd)

    ins = [x, temb,
           prepared["w0"], prepared["wd0"], prepared["wd1"], prepared["w1"], prepared["w2"],
           prepared["g0"], prepared["be0"], prepared["g1"], prepared["be1"],
           prepared["b0"], prepared["bd0"], prepared["bd1r"], prepared["bd1c"],
           prepared["b1c"], prepared["b2c"]]

    in_specs = ([pl.BlockSpec((1, H, W, Cin), lambda n: (n, 0, 0, 0)),
                 pl.BlockSpec((1, H, W, Cin), lambda n: (n, 0, 0, 0))]
                + [full_spec(a) for a in ins[2:]])

    out, nt = pl.pallas_call(
        kern,
        out_shape=(jax.ShapeDtypeStruct((N, Cout, HW), x_nchw.dtype),
                   jax.ShapeDtypeStruct((N, Cout, HW), x_nchw.dtype)),
        grid=(N,),
        in_specs=in_specs,
        out_specs=(pl.BlockSpec((1, Cout, HW), lambda n: (n, 0, 0)),
                   pl.BlockSpec((1, Cout, HW), lambda n: (n, 0, 0))),
        scratch_shapes=[pltpu.VMEM((H + 2, W + 2, Cmax), jnp.float32),   # padded image
                        pltpu.VMEM((HW, 9 * Cmax), jnp.float32)],        # im2col patches
        compiler_params=pltpu.CompilerParams(
            dimension_semantics=("parallel",),
            vmem_limit_bytes=32 * 1024 * 1024),
    )(*ins)

    # (N, Cout, HW) -> NCHW is a free reshape (contiguous split of the lane-dense dim).
    return out.reshape(N, Cout, H, W), nt.reshape(N, Cout, H, W)


# --------------------------------------------------------------------------------------
# One-time parameter preparation (weight transposes hoisted out of the forward path)
# --------------------------------------------------------------------------------------
def prepare_params(params):
    def mat3x3(w):  # (O, I, 3, 3) -> (O, 9*I), column index = (3*dy + dx)*I + i
        O, I = w.shape[0], w.shape[1]
        return jnp.transpose(w, (0, 2, 3, 1)).reshape(O, 9 * I)

    Cout, Cin = params["conv0_w"].shape[0], params["conv0_w"].shape[1]
    return dict(
        w0=mat3x3(params["conv0_w"]), b0=params["conv0_b"].reshape(1, Cout),
        wd0=mat3x3(params["dense0_w"]), bd0=params["dense0_b"].reshape(1, Cout),
        wd1=params["dense1_w"],                                  # (O, I) 1x1
        bd1r=params["dense1_b"].reshape(1, Cout),
        bd1c=params["dense1_b"].reshape(Cout, 1),
        w1=mat3x3(params["conv1_w"]), b1c=params["conv1_b"].reshape(Cout, 1),
        w2=params["conv2_w"],                                    # (O, I) 1x1 shortcut
        b2c=params["conv2_b"].reshape(Cout, 1),
        g0=params["gn0_gamma"].reshape(1, Cin), be0=params["gn0_beta"].reshape(1, Cin),
        g1=params["gn1_gamma"].reshape(1, Cout), be1=params["gn1_beta"].reshape(1, Cout),
    )


# --------------------------------------------------------------------------------------
# Deterministic synthetic parameters (PyTorch layouts: OIHW convs, (O,I) 1x1 convs)
# --------------------------------------------------------------------------------------
def init_params(key, in_ch, out_ch):
    ks = jax.random.split(key, 14)
    nrm = lambda k, shp, s=0.1: (s * jax.random.normal(k, shp)).astype(jnp.float32)
    return dict(
        gn0_gamma=1.0 + nrm(ks[0], (in_ch,)),
        gn0_beta=nrm(ks[1], (in_ch,)),
        conv0_w=nrm(ks[2], (out_ch, in_ch, 3, 3)),
        conv0_b=nrm(ks[3], (out_ch,), 0.05),
        dense0_w=nrm(ks[4], (out_ch, in_ch, 3, 3)),
        dense0_b=nrm(ks[5], (out_ch,), 0.05),
        dense1_w=nrm(ks[6], (out_ch, out_ch)),          # (O, I) 1x1
        dense1_b=nrm(ks[7], (out_ch,), 0.05),
        gn1_gamma=1.0 + nrm(ks[8], (out_ch,)),
        gn1_beta=nrm(ks[9], (out_ch,)),
        conv1_w=nrm(ks[10], (out_ch, out_ch, 3, 3)),    # init_scale=0.0 in ref; synthetic here
        conv1_b=nrm(ks[11], (out_ch,), 0.05),
        conv2_w=nrm(ks[12], (out_ch, in_ch)),           # (O, I) 1x1 shortcut
        conv2_b=nrm(ks[13], (out_ch,), 0.05),
    )


# --------------------------------------------------------------------------------------
# Pure-JAX reference (mirrors the PyTorch forward) for the correctness check
# --------------------------------------------------------------------------------------
def reference_forward(params, x, temb, in_ch, out_ch):
    G0, G1 = min(in_ch // 4, 32), min(out_ch // 4, 32)
    act = lambda t: t * jax.nn.sigmoid(t)

    def gn(v, G, gamma, beta):
        N, C, H, W = v.shape
        vg = v.reshape(N, G, -1)
        m = vg.mean(axis=2, keepdims=True)
        var = vg.var(axis=2, keepdims=True)
        vn = ((vg - m) / jnp.sqrt(var + 1e-6)).reshape(N, C, H, W)
        return vn * gamma.reshape(1, C, 1, 1) + beta.reshape(1, C, 1, 1)

    def conv(v, w, b, pad):
        y = lax.conv_general_dilated(v, w, (1, 1), ((pad, pad), (pad, pad)),
                                     dimension_numbers=("NCHW", "OIHW", "NCHW"))
        return y + b.reshape(1, -1, 1, 1)

    h = act(gn(x, G0, params["gn0_gamma"], params["gn0_beta"]))
    h = conv(h, params["conv0_w"], params["conv0_b"], 1)
    nt = conv(act(temb), params["dense0_w"], params["dense0_b"], 1)
    nt = conv(act(nt), params["dense1_w"].reshape(out_ch, out_ch, 1, 1),
              params["dense1_b"], 0)
    h = h + nt
    h = act(gn(h, G1, params["gn1_gamma"], params["gn1_beta"]))
    h = conv(h, params["conv1_w"], params["conv1_b"], 1)
    xs = conv(x, params["conv2_w"].reshape(out_ch, in_ch, 1, 1), params["conv2_b"], 0)
    return (xs + h) / np.sqrt(2.0), nt


# --------------------------------------------------------------------------------------
if __name__ == "__main__":
    N, IN_CH, OUT_CH, H, W = 2, 4, 8, 16, 16
    key = jax.random.PRNGKey(0)
    kx, kt, kp = jax.random.split(key, 3)
    x = jax.random.normal(kx, (N, IN_CH, H, W), jnp.float32)      # NCHW like PyTorch
    temb = jax.random.normal(kt, (N, IN_CH, H, W), jnp.float32)   # spatial temb map
    params = init_params(kp, IN_CH, OUT_CH)
    prepared = prepare_params(params)   # hoisted: done once, not per forward

    out, new_temb = resnet_block_biggan_pp(prepared, x, temb)
    out = jax.block_until_ready(out)
    new_temb = jax.block_until_ready(new_temb)

    ref_out, ref_nt = reference_forward(params, x, temb, IN_CH, OUT_CH)
    np.testing.assert_allclose(np.asarray(out), np.asarray(ref_out), rtol=2e-4, atol=2e-4)
    np.testing.assert_allclose(np.asarray(new_temb), np.asarray(ref_nt), rtol=2e-4, atol=2e-4)

    print("KERNEL_OK")
</pallas_src>

<mosaic_0001>
module attributes {stable_mosaic.version = 11 : i64} {
  func.func @_resblock_kernel(%arg0: i32, %arg1: memref<1x16x16x4xf32, #tpu.memory_space<vmem>>, %arg2: memref<1x16x16x4xf32, #tpu.memory_space<vmem>>, %arg3: memref<8x36xf32, #tpu.memory_space<vmem>>, %arg4: memref<8x36xf32, #tpu.memory_space<vmem>>, %arg5: memref<8x8xf32, #tpu.memory_space<vmem>>, %arg6: memref<8x72xf32, #tpu.memory_space<vmem>>, %arg7: memref<8x4xf32, #tpu.memory_space<vmem>>, %arg8: memref<1x4xf32, #tpu.memory_space<vmem>>, %arg9: memref<1x4xf32, #tpu.memory_space<vmem>>, %arg10: memref<1x8xf32, #tpu.memory_space<vmem>>, %arg11: memref<1x8xf32, #tpu.memory_space<vmem>>, %arg12: memref<1x8xf32, #tpu.memory_space<vmem>>, %arg13: memref<1x8xf32, #tpu.memory_space<vmem>>, %arg14: memref<1x8xf32, #tpu.memory_space<vmem>>, %arg15: memref<8x1xf32, #tpu.memory_space<vmem>>, %arg16: memref<8x1xf32, #tpu.memory_space<vmem>>, %arg17: memref<8x1xf32, #tpu.memory_space<vmem>>, %arg18: memref<1x8x256xf32, #tpu.memory_space<vmem>>, %arg19: memref<1x8x256xf32, #tpu.memory_space<vmem>>, %arg20: memref<18x18x8xf32, #tpu.memory_space<vmem>>, %arg21: memref<256x72xf32, #tpu.memory_space<vmem>>) attributes {dimension_semantics = [#tpu.dimension_semantics<parallel>], iteration_bounds = array<i64: 2>, scalar_prefetch = 0 : i64, scratch_operands = 2 : i64, tpu.core_type = #tpu.core_type<tc>, window_params = [{transform_indices = @transform_0, window_bounds = array<i64: 1, 16, 16, 4>}, {transform_indices = @transform_1, window_bounds = array<i64: 1, 16, 16, 4>}, {pipeline_mode = #tpu.pipeline_mode<synchronous>, transform_indices = @transform_2, window_bounds = array<i64: 8, 36>}, {pipeline_mode = #tpu.pipeline_mode<synchronous>, transform_indices = @transform_3, window_bounds = array<i64: 8, 36>}, {pipeline_mode = #tpu.pipeline_mode<synchronous>, transform_indices = @transform_4, window_bounds = array<i64: 8, 8>}, {pipeline_mode = #tpu.pipeline_mode<synchronous>, transform_indices = @transform_5, window_bounds = array<i64: 8, 72>}, {pipeline_mode = #tpu.pipeline_mode<synchronous>, transform_indices = @transform_6, window_bounds = array<i64: 8, 4>}, {pipeline_mode = #tpu.pipeline_mode<synchronous>, transform_indices = @transform_7, window_bounds = array<i64: 1, 4>}, {pipeline_mode = #tpu.pipeline_mode<synchronous>, transform_indices = @transform_8, window_bounds = array<i64: 1, 4>}, {pipeline_mode = #tpu.pipeline_mode<synchronous>, transform_indices = @transform_9, window_bounds = array<i64: 1, 8>}, {pipeline_mode = #tpu.pipeline_mode<synchronous>, transform_indices = @transform_10, window_bounds = array<i64: 1, 8>}, {pipeline_mode = #tpu.pipeline_mode<synchronous>, transform_indices = @transform_11, window_bounds = array<i64: 1, 8>}, {pipeline_mode = #tpu.pipeline_mode<synchronous>, transform_indices = @transform_12, window_bounds = array<i64: 1, 8>}, {pipeline_mode = #tpu.pipeline_mode<synchronous>, transform_indices = @transform_13, window_bounds = array<i64: 1, 8>}, {pipeline_mode = #tpu.pipeline_mode<synchronous>, transform_indices = @transform_14, window_bounds = array<i64: 8, 1>}, {pipeline_mode = #tpu.pipeline_mode<synchronous>, transform_indices = @transform_15, window_bounds = array<i64: 8, 1>}, {pipeline_mode = #tpu.pipeline_mode<synchronous>, transform_indices = @transform_16, window_bounds = array<i64: 8, 1>}, {transform_indices = @transform_17, window_bounds = array<i64: 1, 8, 256>}, {transform_indices = @transform_18, window_bounds = array<i64: 1, 8, 256>}]} {
    %c0 = arith.constant 0 : index
    %c0_0 = arith.constant 0 : index
    %c0_1 = arith.constant 0 : index
    %c0_2 = arith.constant 0 : index
    %0 = vector.load %arg1[%c0, %c0_0, %c0_1, %c0_2] : memref<1x16x16x4xf32, #tpu.memory_space<vmem>>, vector<1x16x16x4xf32>
    %1 = vector.shape_cast %0 : vector<1x16x16x4xf32> to vector<16x16x4xf32>
    %c0_3 = arith.constant 0 : index
    %c0_4 = arith.constant 0 : index
    %c0_5 = arith.constant 0 : index
    %c0_6 = arith.constant 0 : index
    %2 = vector.load %arg2[%c0_3, %c0_4, %c0_5, %c0_6] : memref<1x16x16x4xf32, #tpu.memory_space<vmem>>, vector<1x16x16x4xf32>
    %3 = vector.shape_cast %2 : vector<1x16x16x4xf32> to vector<16x16x4xf32>
    %c0_7 = arith.constant 0 : index
    %c0_8 = arith.constant 0 : index
    %4 = vector.load %arg8[%c0_7, %c0_8] : memref<1x4xf32, #tpu.memory_space<vmem>>, vector<1x4xf32>
    %c0_9 = arith.constant 0 : index
    %c0_10 = arith.constant 0 : index
    %5 = vector.load %arg9[%c0_9, %c0_10] : memref<1x4xf32, #tpu.memory_space<vmem>>, vector<1x4xf32>
    %6 = arith.mulf %1, %1 : vector<16x16x4xf32>
    %cst = arith.constant dense<0.000000e+00> : vector<16x4xf32>
    %7 = vector.multi_reduction <add>, %1, %cst [0] : vector<16x16x4xf32> to vector<16x4xf32>
    %8 = vector.shape_cast %7 : vector<16x4xf32> to vector<1x16x4xf32>
    %cst_11 = arith.constant dense<0.000000e+00> : vector<16x4xf32>
    %9 = vector.multi_reduction <add>, %6, %cst_11 [0] : vector<16x16x4xf32> to vector<16x4xf32>
    %10 = vector.shape_cast %9 : vector<16x4xf32> to vector<1x16x4xf32>
    %cst_12 = arith.constant dense<0.000000e+00> : vector<1x4xf32>
    %11 = vector.multi_reduction <add>, %8, %cst_12 [1] : vector<1x16x4xf32> to vector<1x4xf32>
    %12 = vector.shape_cast %11 : vector<1x4xf32> to vector<1x1x4xf32>
    %cst_13 = arith.constant dense<0.000000e+00> : vector<1x4xf32>
    %13 = vector.multi_reduction <add>, %10, %cst_13 [1] : vector<1x16x4xf32> to vector<1x4xf32>
    %14 = vector.shape_cast %13 : vector<1x4xf32> to vector<1x1x4xf32>
    %15 = tpu.iota {dimensions = array<i32: 2>} : vector<1x1x4xi32>
    %cst_14 = arith.constant 0.000000e+00 : f32
    %16 = vector.broadcast %cst_14 : f32 to vector<1x1x4xf32>
    %cst_15 = arith.constant 0.000000e+00 : f32
    %17 = vector.broadcast %cst_15 : f32 to vector<1x1x4xf32>
    %18 = vector.shape_cast %12 : vector<1x1x4xf32> to vector<1x1x1x4xf32>
    %cst_16 = arith.constant dense<0.000000e+00> : vector<1xf32>
    %19 = vector.multi_reduction <add>, %18, %cst_16 [1, 2, 3] : vector<1x1x1x4xf32> to vector<1xf32>
    %20 = vector.shape_cast %19 : vector<1xf32> to vector<1x1x1x1xf32>
    %21 = vector.extract %20[0, 0, 0, 0] : f32 from vector<1x1x1x1xf32>
    %cst_17 = arith.constant 1.024000e+03 : f32
    %22 = arith.divf %21, %cst_17 : f32
    %23 = vector.shape_cast %14 : vector<1x1x4xf32> to vector<1x1x1x4xf32>
    %cst_18 = arith.constant dense<0.000000e+00> : vector<1xf32>
    %24 = vector.multi_reduction <add>, %23, %cst_18 [1, 2, 3] : vector<1x1x1x4xf32> to vector<1xf32>
    %25 = vector.shape_cast %24 : vector<1xf32> to vector<1x1x1x1xf32>
    %26 = vector.extract %25[0, 0, 0, 0] : f32 from vector<1x1x1x1xf32>
    %cst_19 = arith.constant 1.024000e+03 : f32
    %27 = arith.divf %26, %cst_19 : f32
    %28 = arith.mulf %22, %22 : f32
    %29 = arith.subf %27, %28 : f32
    %cst_20 = arith.constant 0.000000e+00 : f32
    %30 = arith.maximumf %29, %cst_20 : f32
    %c0_i32 = arith.constant 0 : i32
    %31 = vector.broadcast %c0_i32 : i32 to vector<1x1x4xi32>
    %32 = arith.cmpi sge, %15, %31 : vector<1x1x4xi32>
    %c4_i32 = arith.constant 4 : i32
    %33 = vector.broadcast %c4_i32 : i32 to vector<1x1x4xi32>
    %34 = arith.cmpi slt, %15, %33 : vector<1x1x4xi32>
    %35 = arith.andi %32, %34 : vector<1x1x4xi1>
    %36 = vector.broadcast %22 : f32 to vector<1x1x4xf32>
    %37 = arith.select %35, %36, %16 : vector<1x1x4xi1>, vector<1x1x4xf32>
    %38 = vector.broadcast %30 : f32 to vector<1x1x4xf32>
    %39 = arith.select %35, %38, %17 : vector<1x1x4xi1>, vector<1x1x4xf32>
    %40 = vector.broadcast %37 : vector<1x1x4xf32> to vector<16x16x4xf32>
    %41 = arith.subf %1, %40 : vector<16x16x4xf32>
    %cst_21 = arith.constant 9.99999997E-7 : f32
    %42 = vector.broadcast %cst_21 : f32 to vector<1x1x4xf32>
    %43 = arith.addf %39, %42 : vector<1x1x4xf32>
    %44 = math.rsqrt %43 : vector<1x1x4xf32>
    %45 = vector.broadcast %44 : vector<1x1x4xf32> to vector<16x16x4xf32>
    %46 = arith.mulf %41, %45 : vector<16x16x4xf32>
    %47 = vector.shape_cast %4 : vector<1x4xf32> to vector<1x1x4xf32>
    %48 = vector.broadcast %47 : vector<1x1x4xf32> to vector<16x16x4xf32>
    %49 = arith.mulf %46, %48 : vector<16x16x4xf32>
    %50 = vector.shape_cast %5 : vector<1x4xf32> to vector<1x1x4xf32>
    %51 = vector.broadcast %50 : vector<1x1x4xf32> to vector<16x16x4xf32>
    %52 = arith.addf %49, %51 : vector<16x16x4xf32>
    %53 = arith.negf %52 : vector<16x16x4xf32>
    %54 = math.exp %53 : vector<16x16x4xf32>
    %cst_22 = arith.constant 1.000000e+00 : f32
    %55 = vector.broadcast %cst_22 : f32 to vector<16x16x4xf32>
    %56 = arith.addf %55, %54 : vector<16x16x4xf32>
    %57 = arith.divf %55, %56 : vector<16x16x4xf32>
    %58 = arith.mulf %52, %57 : vector<16x16x4xf32>
    %cst_23 = arith.constant 0.000000e+00 : f32
    %59 = vector.broadcast %cst_23 : f32 to vector<18x18x8xf32>
    %c0_24 = arith.constant 0 : index
    %c0_25 = arith.constant 0 : index
    %c0_26 = arith.constant 0 : index
    %60 = vector.load %arg20[%c0_24, %c0_25, %c0_26] : memref<18x18x8xf32, #tpu.memory_space<vmem>>, vector<18x18x8xf32>
    tpu.vector_store %arg20[%c0_24, %c0_25, %c0_26], %59 {strides = array<i32>} : memref<18x18x8xf32, #tpu.memory_space<vmem>>, vector<18x18x8xf32>,
    %c1 = arith.constant 1 : index
    %c1_27 = arith.constant 1 : index
    %c0_28 = arith.constant 0 : index
    %61 = vector.load %arg20[%c1, %c1_27, %c0_28] : memref<18x18x8xf32, #tpu.memory_space<vmem>>, vector<16x16x4xf32>
    tpu.vector_store %arg20[%c1, %c1_27, %c0_28], %58 {strides = array<i32>} : memref<18x18x8xf32, #tpu.memory_space<vmem>>, vector<16x16x4xf32>,
    %c0_29 = arith.constant 0 : index
    %c0_30 = arith.constant 0 : index
    %c0_31 = arith.constant 0 : index
    %62 = vector.load %arg20[%c0_29, %c0_30, %c0_31] : memref<18x18x8xf32, #tpu.memory_space<vmem>>, vector<16x16x4xf32>
    %63 = vector.shape_cast %62 : vector<16x16x4xf32> to vector<256x4xf32>
    %c0_32 = arith.constant 0 : index
    %c0_33 = arith.constant 0 : index
    %64 = vector.load %arg21[%c0_32, %c0_33] : memref<256x72xf32, #tpu.memory_space<vmem>>, vector<256x4xf32>
    tpu.vector_store %arg21[%c0_32, %c0_33], %63 {strides = array<i32>} : memref<256x72xf32, #tpu.memory_space<vmem>>, vector<256x4xf32>,
    %c0_34 = arith.constant 0 : index
    %c1_35 = arith.constant 1 : index
    %c0_36 = arith.constant 0 : index
    %65 = vector.load %arg20[%c0_34, %c1_35, %c0_36] : memref<18x18x8xf32, #tpu.memory_space<vmem>>, vector<16x16x4xf32>
    %66 = vector.shape_cast %65 : vector<16x16x4xf32> to vector<256x4xf32>
    %c0_37 = arith.constant 0 : index
    %c4 = arith.constant 4 : index
    %67 = vector.load %arg21[%c0_37, %c4] : memref<256x72xf32, #tpu.memory_space<vmem>>, vector<256x4xf32>
    tpu.vector_store %arg21[%c0_37, %c4], %66 {strides = array<i32>} : memref<256x72xf32, #tpu.memory_space<vmem>>, vector<256x4xf32>,
    %c0_38 = arith.constant 0 : index
    %c2 = arith.constant 2 : index
    %c0_39 = arith.constant 0 : index
    %68 = vector.load %arg20[%c0_38, %c2, %c0_39] : memref<18x18x8xf32, #tpu.memory_space<vmem>>, vector<16x16x4xf32>
    %69 = vector.shape_cast %68 : vector<16x16x4xf32> to vector<256x4xf32>
    %c0_40 = arith.constant 0 : index
    %c8 = arith.constant 8 : index
    %70 = vector.load %arg21[%c0_40, %c8] : memref<256x72xf32, #tpu.memory_space<vmem>>, vector<256x4xf32>
    tpu.vector_store %arg21[%c0_40, %c8], %69 {strides = array<i32>} : memref<256x72xf32, #tpu.memory_space<vmem>>, vector<256x4xf32>,
    %c1_41 = arith.constant 1 : index
    %c0_42 = arith.constant 0 : index
    %c0_43 = arith.constant 0 : index
    %71 = vector.load %arg20[%c1_41, %c0_42, %c0_43] : memref<18x18x8xf32, #tpu.memory_space<vmem>>, vector<16x16x4xf32>
    %72 = vector.shape_cast %71 : vector<16x16x4xf32> to vector<256x4xf32>
    %c0_44 = arith.constant 0 : index
    %c12 = arith.constant 12 : index
    %73 = vector.load %arg21[%c0_44, %c12] : memref<256x72xf32, #tpu.memory_space<vmem>>, vector<256x4xf32>
    tpu.vector_store %arg21[%c0_44, %c12], %72 {strides = array<i32>} : memref<256x72xf32, #tpu.memory_space<vmem>>, vector<256x4xf32>,
    %c1_45 = arith.constant 1 : index
    %c1_46 = arith.constant 1 : index
    %c0_47 = arith.constant 0 : index
    %74 = vector.load %arg20[%c1_45, %c1_46, %c0_47] : memref<18x18x8xf32, #tpu.memory_space<vmem>>, vector<16x16x4xf32>
    %75 = vector.shape_cast %74 : vector<16x16x4xf32> to vector<256x4xf32>
    %c0_48 = arith.constant 0 : index
    %c16 = arith.constant 16 : index
    %76 = vector.load %arg21[%c0_48, %c16] : memref<256x72xf32, #tpu.memory_space<vmem>>, vector<256x4xf32>
    tpu.vector_store %arg21[%c0_48, %c16], %75 {strides = array<i32>} : memref<256x72xf32, #tpu.memory_space<vmem>>, vector<256x4xf32>,
    %c1_49 = arith.constant 1 : index
    %c2_50 = arith.constant 2 : index
    %c0_51 = arith.constant 0 : index
    %77 = vector.load %arg20[%c1_49, %c2_50, %c0_51] : memref<18x18x8xf32, #tpu.memory_space<vmem>>, vector<16x16x4xf32>
    %78 = vector.shape_cast %77 : vector<16x16x4xf32> to vector<256x4xf32>
    %c0_52 = arith.constant 0 : index
    %c20 = arith.constant 20 : index
    %79 = vector.load %arg21[%c0_52, %c20] : memref<256x72xf32, #tpu.memory_space<vmem>>, vector<256x4xf32>
    tpu.vector_store %arg21[%c0_52, %c20], %78 {strides = array<i32>} : memref<256x72xf32, #tpu.memory_space<vmem>>, vector<256x4xf32>,
    %c2_53 = arith.constant 2 : index
    %c0_54 = arith.constant 0 : index
    %c0_55 = arith.constant 0 : index
    %80 = vector.load %arg20[%c2_53, %c0_54, %c0_55] : memref<18x18x8xf32, #tpu.memory_space<vmem>>, vector<16x16x4xf32>
    %81 = vector.shape_cast %80 : vector<16x16x4xf32> to vector<256x4xf32>
    %c0_56 = arith.constant 0 : index
    %c24 = arith.constant 24 : index
    %82 = vector.load %arg21[%c0_56, %c24] : memref<256x72xf32, #tpu.memory_space<vmem>>, vector<256x4xf32>
    tpu.vector_store %arg21[%c0_56, %c24], %81 {strides = array<i32>} : memref<256x72xf32, #tpu.memory_space<vmem>>, vector<256x4xf32>,
    %c2_57 = arith.constant 2 : index
    %c1_58 = arith.constant 1 : index
    %c0_59 = arith.constant 0 : index
    %83 = vector.load %arg20[%c2_57, %c1_58, %c0_59] : memref<18x18x8xf32, #tpu.memory_space<vmem>>, vector<16x16x4xf32>
    %84 = vector.shape_cast %83 : vector<16x16x4xf32> to vector<256x4xf32>
    %c0_60 = arith.constant 0 : index
    %c28 = arith.constant 28 : index
    %85 = vector.load %arg21[%c0_60, %c28] : memref<256x72xf32, #tpu.memory_space<vmem>>, vector<256x4xf32>
    tpu.vector_store %arg21[%c0_60, %c28], %84 {strides = array<i32>} : memref<256x72xf32, #tpu.memory_space<vmem>>, vector<256x4xf32>,
    %c2_61 = arith.constant 2 : index
    %c2_62 = arith.constant 2 : index
    %c0_63 = arith.constant 0 : index
    %86 = vector.load %arg20[%c2_61, %c2_62, %c0_63] : memref<18x18x8xf32, #tpu.memory_space<vmem>>, vector<16x16x4xf32>
    %87 = vector.shape_cast %86 : vector<16x16x4xf32> to vector<256x4xf32>
    %c0_64 = arith.constant 0 : index
    %c32 = arith.constant 32 : index
    %88 = vector.load %arg21[%c0_64, %c32] : memref<256x72xf32, #tpu.memory_space<vmem>>, vector<256x4xf32>
    tpu.vector_store %arg21[%c0_64, %c32], %87 {strides = array<i32>} : memref<256x72xf32, #tpu.memory_space<vmem>>, vector<256x4xf32>,
    %c0_65 = arith.constant 0 : index
    %c0_66 = arith.constant 0 : index
    %89 = vector.load %arg21[%c0_65, %c0_66] : memref<256x72xf32, #tpu.memory_space<vmem>>, vector<256x36xf32>
    %c0_67 = arith.constant 0 : index
    %c0_68 = arith.constant 0 : index
    %90 = vector.load %arg3[%c0_67, %c0_68] : memref<8x36xf32, #tpu.memory_space<vmem>>, vector<8x36xf32>
    %cst_69 = arith.constant dense<0.000000e+00> : vector<256x8xf32>
    %91 = tpu.matmul %89, %90, %cst_69 {dimension_numbers = #tpu.dot_dimension_numbers<[1], [1], [0], [0], [0, 0, 1, 0], [], []>} : vector<256x36xf32>, vector<8x36xf32>, vector<256x8xf32> -> vector<256x8xf32>
    %c0_70 = arith.constant 0 : index
    %c0_71 = arith.constant 0 : index
    %92 = vector.load %arg12[%c0_70, %c0_71] : memref<1x8xf32, #tpu.memory_space<vmem>>, vector<1x8xf32>
    %93 = vector.broadcast %92 : vector<1x8xf32> to vector<256x8xf32>
    %94 = arith.addf %91, %93 : vector<256x8xf32>
    %95 = arith.negf %3 : vector<16x16x4xf32>
    %96 = math.exp %95 : vector<16x16x4xf32>
    %cst_72 = arith.constant 1.000000e+00 : f32
    %97 = vector.broadcast %cst_72 : f32 to vector<16x16x4xf32>
    %98 = arith.addf %97, %96 : vector<16x16x4xf32>
    %99 = arith.divf %97, %98 : vector<16x16x4xf32>
    %100 = arith.mulf %3, %99 : vector<16x16x4xf32>
    %cst_73 = arith.constant 0.000000e+00 : f32
    %101 = vector.broadcast %cst_73 : f32 to vector<18x18x8xf32>
    %c0_74 = arith.constant 0 : index
    %c0_75 = arith.constant 0 : index
    %c0_76 = arith.constant 0 : index
    %102 = vector.load %arg20[%c0_74, %c0_75, %c0_76] : memref<18x18x8xf32, #tpu.memory_space<vmem>>, vector<18x18x8xf32>
    tpu.vector_store %arg20[%c0_74, %c0_75, %c0_76], %101 {strides = array<i32>} : memref<18x18x8xf32, #tpu.memory_space<vmem>>, vector<18x18x8xf32>,
    %c1_77 = arith.constant 1 : index
    %c1_78 = arith.constant 1 : index
    %c0_79 = arith.constant 0 : index
    %103 = vector.load %arg20[%c1_77, %c1_78, %c0_79] : memref<18x18x8xf32, #tpu.memory_space<vmem>>, vector<16x16x4xf32>
    tpu.vector_store %arg20[%c1_77, %c1_78, %c0_79], %100 {strides = array<i32>} : memref<18x18x8xf32, #tpu.memory_space<vmem>>, vector<16x16x4xf32>,
    %c0_80 = arith.constant 0 : index
    %c0_81 = arith.constant 0 : index
    %c0_82 = arith.constant 0 : index
    %104 = vector.load %arg20[%c0_80, %c0_81, %c0_82] : memref<18x18x8xf32, #tpu.memory_space<vmem>>, vector<16x16x4xf32>
    %105 = vector.shape_cast %104 : vector<16x16x4xf32> to vector<256x4xf32>
    %c0_83 = arith.constant 0 : index
    %c0_84 = arith.constant 0 : index
    %106 = vector.load %arg21[%c0_83, %c0_84] : memref<256x72xf32, #tpu.memory_space<vmem>>, vector<256x4xf32>
    tpu.vector_store %arg21[%c0_83, %c0_84], %105 {strides = array<i32>} : memref<256x72xf32, #tpu.memory_space<vmem>>, vector<256x4xf32>,
    %c0_85 = arith.constant 0 : index
    %c1_86 = arith.constant 1 : index
    %c0_87 = arith.constant 0 : index
    %107 = vector.load %arg20[%c0_85, %c1_86, %c0_87] : memref<18x18x8xf32, #tpu.memory_space<vmem>>, vector<16x16x4xf32>
    %108 = vector.shape_cast %107 : vector<16x16x4xf32> to vector<256x4xf32>
    %c0_88 = arith.constant 0 : index
    %c4_89 = arith.constant 4 : index
    %109 = vector.load %arg21[%c0_88, %c4_89] : memref<256x72xf32, #tpu.memory_space<vmem>>, vector<256x4xf32>
    tpu.vector_store %arg21[%c0_88, %c4_89], %108 {strides = array<i32>} : memref<256x72xf32, #tpu.memory_space<vmem>>, vector<256x4xf32>,
    %c0_90 = arith.constant 0 : index
    %c2_91 = arith.constant 2 : index
    %c0_92 = arith.constant 0 : index
    %110 = vector.load %arg20[%c0_90, %c2_91, %c0_92] : memref<18x18x8xf32, #tpu.memory_space<vmem>>, vector<16x16x4xf32>
    %111 = vector.shape_cast %110 : vector<16x16x4xf32> to vector<256x4xf32>
    %c0_93 = arith.constant 0 : index
    %c8_94 = arith.constant 8 : index
    %112 = vector.load %arg21[%c0_93, %c8_94] : memref<256x72xf32, #tpu.memory_space<vmem>>, vector<256x4xf32>
    tpu.vector_store %arg21[%c0_93, %c8_94], %111 {strides = array<i32>} : memref<256x72xf32, #tpu.memory_space<vmem>>, vector<256x4xf32>,
    %c1_95 = arith.constant 1 : index
    %c0_96 = arith.constant 0 : index
    %c0_97 = arith.constant 0 : index
    %113 = vector.load %arg20[%c1_95, %c0_96, %c0_97] : memref<18x18x8xf32, #tpu.memory_space<vmem>>, vector<16x16x4xf32>
    %114 = vector.shape_cast %113 : vector<16x16x4xf32> to vector<256x4xf32>
    %c0_98 = arith.constant 0 : index
    %c12_99 = arith.constant 12 : index
    %115 = vector.load %arg21[%c0_98, %c12_99] : memref<256x72xf32, #tpu.memory_space<vmem>>, vector<256x4xf32>
    tpu.vector_store %arg21[%c0_98, %c12_99], %114 {strides = array<i32>} : memref<256x72xf32, #tpu.memory_space<vmem>>, vector<256x4xf32>,
    %c1_100 = arith.constant 1 : index
    %c1_101 = arith.constant 1 : index
    %c0_102 = arith.constant 0 : index
    %116 = vector.load %arg20[%c1_100, %c1_101, %c0_102] : memref<18x18x8xf32, #tpu.memory_space<vmem>>, vector<16x16x4xf32>
    %117 = vector.shape_cast %116 : vector<16x16x4xf32> to vector<256x4xf32>
    %c0_103 = arith.constant 0 : index
    %c16_104 = arith.constant 16 : index
    %118 = vector.load %arg21[%c0_103, %c16_104] : memref<256x72xf32, #tpu.memory_space<vmem>>, vector<256x4xf32>
    tpu.vector_store %arg21[%c0_103, %c16_104], %117 {strides = array<i32>} : memref<256x72xf32, #tpu.memory_space<vmem>>, vector<256x4xf32>,
    %c1_105 = arith.constant 1 : index
    %c2_106 = arith.constant 2 : index
    %c0_107 = arith.constant 0 : index
    %119 = vector.load %arg20[%c1_105, %c2_106, %c0_107] : memref<18x18x8xf32, #tpu.memory_space<vmem>>, vector<16x16x4xf32>
    %120 = vector.shape_cast %119 : vector<16x16x4xf32> to vector<256x4xf32>
    %c0_108 = arith.constant 0 : index
    %c20_109 = arith.constant 20 : index
    %121 = vector.load %arg21[%c0_108, %c20_109] : memref<256x72xf32, #tpu.memory_space<vmem>>, vector<256x4xf32>
    tpu.vector_store %arg21[%c0_108, %c20_109], %120 {strides = array<i32>} : memref<256x72xf32, #tpu.memory_space<vmem>>, vector<256x4xf32>,
    %c2_110 = arith.constant 2 : index
    %c0_111 = arith.constant 0 : index
    %c0_112 = arith.constant 0 : index
    %122 = vector.load %arg20[%c2_110, %c0_111, %c0_112] : memref<18x18x8xf32, #tpu.memory_space<vmem>>, vector<16x16x4xf32>
    %123 = vector.shape_cast %122 : vector<16x16x4xf32> to vector<256x4xf32>
    %c0_113 = arith.constant 0 : index
    %c24_114 = arith.constant 24 : index
    %124 = vector.load %arg21[%c0_113, %c24_114] : memref<256x72xf32, #tpu.memory_space<vmem>>, vector<256x4xf32>
    tpu.vector_store %arg21[%c0_113, %c24_114], %123 {strides = array<i32>} : memref<256x72xf32, #tpu.memory_space<vmem>>, vector<256x4xf32>,
    %c2_115 = arith.constant 2 : index
    %c1_116 = arith.constant 1 : index
    %c0_117 = arith.constant 0 : index
    %125 = vector.load %arg20[%c2_115, %c1_116, %c0_117] : memref<18x18x8xf32, #tpu.memory_space<vmem>>, vector<16x16x4xf32>
    %126 = vector.shape_cast %125 : vector<16x16x4xf32> to vector<256x4xf32>
    %c0_118 = arith.constant 0 : index
    %c28_119 = arith.constant 28 : index
    %127 = vector.load %arg21[%c0_118, %c28_119] : memref<256x72xf32, #tpu.memory_space<vmem>>, vector<256x4xf32>
    tpu.vector_store %arg21[%c0_118, %c28_119], %126 {strides = array<i32>} : memref<256x72xf32, #tpu.memory_space<vmem>>, vector<256x4xf32>,
    %c2_120 = arith.constant 2 : index
    %c2_121 = arith.constant 2 : index
    %c0_122 = arith.constant 0 : index
    %128 = vector.load %arg20[%c2_120, %c2_121, %c0_122] : memref<18x18x8xf32, #tpu.memory_space<vmem>>, vector<16x16x4xf32>
    %129 = vector.shape_cast %128 : vector<16x16x4xf32> to vector<256x4xf32>
    %c0_123 = arith.constant 0 : index
    %c32_124 = arith.constant 32 : index
    %130 = vector.load %arg21[%c0_123, %c32_124] : memref<256x72xf32, #tpu.memory_space<vmem>>, vector<256x4xf32>
    tpu.vector_store %arg21[%c0_123, %c32_124], %129 {strides = array<i32>} : memref<256x72xf32, #tpu.memory_space<vmem>>, vector<256x4xf32>,
    %c0_125 = arith.constant 0 : index
    %c0_126 = arith.constant 0 : index
    %131 = vector.load %arg21[%c0_125, %c0_126] : memref<256x72xf32, #tpu.memory_space<vmem>>, vector<256x36xf32>
    %c0_127 = arith.constant 0 : index
    %c0_128 = arith.constant 0 : index
    %132 = vector.load %arg4[%c0_127, %c0_128] : memref<8x36xf32, #tpu.memory_space<vmem>>, vector<8x36xf32>
    %cst_129 = arith.constant dense<0.000000e+00> : vector<256x8xf32>
    %133 = tpu.matmul %131, %132, %cst_129 {dimension_numbers = #tpu.dot_dimension_numbers<[1], [1], [0], [0], [0, 0, 1, 0], [], []>} : vector<256x36xf32>, vector<8x36xf32>, vector<256x8xf32> -> vector<256x8xf32>
    %c0_130 = arith.constant 0 : index
    %c0_131 = arith.constant 0 : index
    %134 = vector.load %arg13[%c0_130, %c0_131] : memref<1x8xf32, #tpu.memory_space<vmem>>, vector<1x8xf32>
    %135 = vector.broadcast %134 : vector<1x8xf32> to vector<256x8xf32>
    %136 = arith.addf %133, %135 : vector<256x8xf32>
    %137 = arith.negf %136 : vector<256x8xf32>
    %138 = math.exp %137 : vector<256x8xf32>
    %cst_132 = arith.constant 1.000000e+00 : f32
    %139 = vector.broadcast %cst_132 : f32 to vector<256x8xf32>
    %140 = arith.addf %139, %138 : vector<256x8xf32>
    %141 = arith.divf %139, %140 : vector<256x8xf32>
    %142 = arith.mulf %136, %141 : vector<256x8xf32>
    %c0_133 = arith.constant 0 : index
    %c0_134 = arith.constant 0 : index
    %143 = vector.load %arg5[%c0_133, %c0_134] : memref<8x8xf32, #tpu.memory_space<vmem>>, vector<8x8xf32>
    %cst_135 = arith.constant dense<0.000000e+00> : vector<256x8xf32>
    %144 = tpu.matmul %142, %143, %cst_135 {dimension_numbers = #tpu.dot_dimension_numbers<[1], [1], [0], [0], [0, 0, 1, 0], [], []>} : vector<256x8xf32>, vector<8x8xf32>, vector<256x8xf32> -> vector<256x8xf32>
    %c0_136 = arith.constant 0 : index
    %c0_137 = arith.constant 0 : index
    %145 = vector.load %arg14[%c0_136, %c0_137] : memref<1x8xf32, #tpu.memory_space<vmem>>, vector<1x8xf32>
    %146 = vector.broadcast %145 : vector<1x8xf32> to vector<256x8xf32>
    %147 = arith.addf %144, %146 : vector<256x8xf32>
    %cst_138 = arith.constant dense<0.000000e+00> : vector<8x256xf32>
    %148 = tpu.matmul %143, %142, %cst_138 {dimension_numbers = #tpu.dot_dimension_numbers<[1], [1], [0], [0], [0, 0, 1, 0], [], []>} : vector<8x8xf32>, vector<256x8xf32>, vector<8x256xf32> -> vector<8x256xf32>
    %c0_139 = arith.constant 0 : index
    %c0_140 = arith.constant 0 : index
    %149 = vector.load %arg15[%c0_139, %c0_140] : memref<8x1xf32, #tpu.memory_space<vmem>>, vector<8x1xf32>
    %150 = vector.broadcast %149 : vector<8x1xf32> to vector<8x256xf32>
    %151 = arith.addf %148, %150 : vector<8x256xf32>
    %c0_141 = arith.constant 0 : index
    %c0_142 = arith.constant 0 : index
    %c0_143 = arith.constant 0 : index
    %152 = vector.load %arg19[%c0_141, %c0_142, %c0_143] : memref<1x8x256xf32, #tpu.memory_space<vmem>>, vector<1x8x256xf32>
    %153 = vector.shape_cast %152 : vector<1x8x256xf32> to vector<8x256xf32>
    %154 = vector.shape_cast %151 : vector<8x256xf32> to vector<1x8x256xf32>
    tpu.vector_store %arg19[%c0_141, %c0_142, %c0_143], %154 {strides = array<i32>} : memref<1x8x256xf32, #tpu.memory_space<vmem>>, vector<1x8x256xf32>,
    %155 = arith.addf %94, %147 : vector<256x8xf32>
    %c0_144 = arith.constant 0 : index
    %c0_145 = arith.constant 0 : index
    %156 = vector.load %arg10[%c0_144, %c0_145] : memref<1x8xf32, #tpu.memory_space<vmem>>, vector<1x8xf32>
    %c0_146 = arith.constant 0 : index
    %c0_147 = arith.constant 0 : index
    %157 = vector.load %arg11[%c0_146, %c0_147] : memref<1x8xf32, #tpu.memory_space<vmem>>, vector<1x8xf32>
    %158 = arith.mulf %155, %155 : vector<256x8xf32>
    %cst_148 = arith.constant dense<0.000000e+00> : vector<8xf32>
    %159 = vector.multi_reduction <add>, %155, %cst_148 [0] : vector<256x8xf32> to vector<8xf32>
    %160 = vector.shape_cast %159 : vector<8xf32> to vector<1x8xf32>
    %cst_149 = arith.constant dense<0.000000e+00> : vector<8xf32>
    %161 = vector.multi_reduction <add>, %158, %cst_149 [0] : vector<256x8xf32> to vector<8xf32>
    %162 = vector.shape_cast %161 : vector<8xf32> to vector<1x8xf32>
    %163 = tpu.iota {dimensions = array<i32: 1>} : vector<1x8xi32>
    %cst_150 = arith.constant 0.000000e+00 : f32
    %164 = vector.broadcast %cst_150 : f32 to vector<1x8xf32>
    %cst_151 = arith.constant 0.000000e+00 : f32
    %165 = vector.broadcast %cst_151 : f32 to vector<1x8xf32>
    %166 = vector.extract_strided_slice %160 {offsets = [0, 0], sizes = [1, 4], strides = [1, 1]} : vector<1x8xf32> to vector<1x4xf32>
    %167 = vector.shape_cast %166 : vector<1x4xf32> to vector<1x1x4xf32>
    %cst_152 = arith.constant dense<0.000000e+00> : vector<1xf32>
    %168 = vector.multi_reduction <add>, %167, %cst_152 [1, 2] : vector<1x1x4xf32> to vector<1xf32>
    %169 = vector.shape_cast %168 : vector<1xf32> to vector<1x1x1xf32>
    %170 = vector.extract %169[0, 0, 0] : f32 from vector<1x1x1xf32>
    %cst_153 = arith.constant 1.024000e+03 : f32
    %171 = arith.divf %170, %cst_153 : f32
    %172 = vector.extract_strided_slice %162 {offsets = [0, 0], sizes = [1, 4], strides = [1, 1]} : vector<1x8xf32> to vector<1x4xf32>
    %173 = vector.shape_cast %172 : vector<1x4xf32> to vector<1x1x4xf32>
    %cst_154 = arith.constant dense<0.000000e+00> : vector<1xf32>
    %174 = vector.multi_reduction <add>, %173, %cst_154 [1, 2] : vector<1x1x4xf32> to vector<1xf32>
    %175 = vector.shape_cast %174 : vector<1xf32> to vector<1x1x1xf32>
    %176 = vector.extract %175[0, 0, 0] : f32 from vector<1x1x1xf32>
    %cst_155 = arith.constant 1.024000e+03 : f32
    %177 = arith.divf %176, %cst_155 : f32
    %178 = arith.mulf %171, %171 : f32
    %179 = arith.subf %177, %178 : f32
    %cst_156 = arith.constant 0.000000e+00 : f32
    %180 = arith.maximumf %179, %cst_156 : f32
    %c0_i32_157 = arith.constant 0 : i32
    %181 = vector.broadcast %c0_i32_157 : i32 to vector<1x8xi32>
    %182 = arith.cmpi sge, %163, %181 : vector<1x8xi32>
    %c4_i32_158 = arith.constant 4 : i32
    %183 = vector.broadcast %c4_i32_158 : i32 to vector<1x8xi32>
    %184 = arith.cmpi slt, %163, %183 : vector<1x8xi32>
    %185 = arith.andi %182, %184 : vector<1x8xi1>
    %186 = vector.broadcast %171 : f32 to vector<1x8xf32>
    %187 = arith.select %185, %186, %164 : vector<1x8xi1>, vector<1x8xf32>
    %188 = vector.broadcast %180 : f32 to vector<1x8xf32>
    %189 = arith.select %185, %188, %165 : vector<1x8xi1>, vector<1x8xf32>
    %190 = vector.extract_strided_slice %160 {offsets = [0, 4], sizes = [1, 4], strides = [1, 1]} : vector<1x8xf32> to vector<1x4xf32>
    %191 = vector.shape_cast %190 : vector<1x4xf32> to vector<1x1x4xf32>
    %cst_159 = arith.constant dense<0.000000e+00> : vector<1xf32>
    %192 = vector.multi_reduction <add>, %191, %cst_159 [1, 2] : vector<1x1x4xf32> to vector<1xf32>
    %193 = vector.shape_cast %192 : vector<1xf32> to vector<1x1x1xf32>
    %194 = vector.extract %193[0, 0, 0] : f32 from vector<1x1x1xf32>
    %cst_160 = arith.constant 1.024000e+03 : f32
    %195 = arith.divf %194, %cst_160 : f32
    %196 = vector.extract_strided_slice %162 {offsets = [0, 4], sizes = [1, 4], strides = [1, 1]} : vector<1x8xf32> to vector<1x4xf32>
    %197 = vector.shape_cast %196 : vector<1x4xf32> to vector<1x1x4xf32>
    %cst_161 = arith.constant dense<0.000000e+00> : vector<1xf32>
    %198 = vector.multi_reduction <add>, %197, %cst_161 [1, 2] : vector<1x1x4xf32> to vector<1xf32>
    %199 = vector.shape_cast %198 : vector<1xf32> to vector<1x1x1xf32>
    %200 = vector.extract %199[0, 0, 0] : f32 from vector<1x1x1xf32>
    %cst_162 = arith.constant 1.024000e+03 : f32
    %201 = arith.divf %200, %cst_162 : f32
    %202 = arith.mulf %195, %195 : f32
    %203 = arith.subf %201, %202 : f32
    %cst_163 = arith.constant 0.000000e+00 : f32
    %204 = arith.maximumf %203, %cst_163 : f32
    %c4_i32_164 = arith.constant 4 : i32
    %205 = vector.broadcast %c4_i32_164 : i32 to vector<1x8xi32>
    %206 = arith.cmpi sge, %163, %205 : vector<1x8xi32>
    %c8_i32 = arith.constant 8 : i32
    %207 = vector.broadcast %c8_i32 : i32 to vector<1x8xi32>
    %208 = arith.cmpi slt, %163, %207 : vector<1x8xi32>
    %209 = arith.andi %206, %208 : vector<1x8xi1>
    %210 = vector.broadcast %195 : f32 to vector<1x8xf32>
    %211 = arith.select %209, %210, %187 : vector<1x8xi1>, vector<1x8xf32>
    %212 = vector.broadcast %204 : f32 to vector<1x8xf32>
    %213 = arith.select %209, %212, %189 : vector<1x8xi1>, vector<1x8xf32>
    %214 = vector.broadcast %211 : vector<1x8xf32> to vector<256x8xf32>
    %215 = arith.subf %155, %214 : vector<256x8xf32>
    %cst_165 = arith.constant 9.99999997E-7 : f32
    %216 = vector.broadcast %cst_165 : f32 to vector<1x8xf32>
    %217 = arith.addf %213, %216 : vector<1x8xf32>
    %218 = math.rsqrt %217 : vector<1x8xf32>
    %219 = vector.broadcast %218 : vector<1x8xf32> to vector<256x8xf32>
    %220 = arith.mulf %215, %219 : vector<256x8xf32>
    %221 = vector.broadcast %156 : vector<1x8xf32> to vector<256x8xf32>
    %222 = arith.mulf %220, %221 : vector<256x8xf32>
    %223 = vector.broadcast %157 : vector<1x8xf32> to vector<256x8xf32>
    %224 = arith.addf %222, %223 : vector<256x8xf32>
    %225 = arith.negf %224 : vector<256x8xf32>
    %226 = math.exp %225 : vector<256x8xf32>
    %cst_166 = arith.constant 1.000000e+00 : f32
    %227 = vector.broadcast %cst_166 : f32 to vector<256x8xf32>
    %228 = arith.addf %227, %226 : vector<256x8xf32>
    %229 = arith.divf %227, %228 : vector<256x8xf32>
    %230 = arith.mulf %224, %229 : vector<256x8xf32>
    %231 = vector.shape_cast %230 : vector<256x8xf32> to vector<16x16x8xf32>
    %cst_167 = arith.constant 0.000000e+00 : f32
    %232 = vector.broadcast %cst_167 : f32 to vector<18x18x8xf32>
    %c0_168 = arith.constant 0 : index
    %c0_169 = arith.constant 0 : index
    %c0_170 = arith.constant 0 : index
    %233 = vector.load %arg20[%c0_168, %c0_169, %c0_170] : memref<18x18x8xf32, #tpu.memory_space<vmem>>, vector<18x18x8xf32>
    tpu.vector_store %arg20[%c0_168, %c0_169, %c0_170], %232 {strides = array<i32>} : memref<18x18x8xf32, #tpu.memory_space<vmem>>, vector<18x18x8xf32>,
    %c1_171 = arith.constant 1 : index
    %c1_172 = arith.constant 1 : index
    %c0_173 = arith.constant 0 : index
    %234 = vector.load %arg20[%c1_171, %c1_172, %c0_173] : memref<18x18x8xf32, #tpu.memory_space<vmem>>, vector<16x16x8xf32>
    tpu.vector_store %arg20[%c1_171, %c1_172, %c0_173], %231 {strides = array<i32>} : memref<18x18x8xf32, #tpu.memory_space<vmem>>, vector<16x16x8xf32>,
    %c0_174 = arith.constant 0 : index
    %c0_175 = arith.constant 0 : index
    %c0_176 = arith.constant 0 : index
    %235 = vector.load %arg20[%c0_174, %c0_175, %c0_176] : memref<18x18x8xf32, #tpu.memory_space<vmem>>, vector<16x16x8xf32>
    %236 = vector.shape_cast %235 : vector<16x16x8xf32> to vector<256x8xf32>
    %c0_177 = arith.constant 0 : index
    %c0_178 = arith.constant 0 : index
    %237 = vector.load %arg21[%c0_177, %c0_178] : memref<256x72xf32, #tpu.memory_space<vmem>>, vector<256x8xf32>
    tpu.vector_store %arg21[%c0_177, %c0_178], %236 {strides = array<i32>} : memref<256x72xf32, #tpu.memory_space<vmem>>, vector<256x8xf32>,
    %c0_179 = arith.constant 0 : index
    %c1_180 = arith.constant 1 : index
    %c0_181 = arith.constant 0 : index
    %238 = vector.load %arg20[%c0_179, %c1_180, %c0_181] : memref<18x18x8xf32, #tpu.memory_space<vmem>>, vector<16x16x8xf32>
    %239 = vector.shape_cast %238 : vector<16x16x8xf32> to vector<256x8xf32>
    %c0_182 = arith.constant 0 : index
    %c8_183 = arith.constant 8 : index
    %240 = vector.load %arg21[%c0_182, %c8_183] : memref<256x72xf32, #tpu.memory_space<vmem>>, vector<256x8xf32>
    tpu.vector_store %arg21[%c0_182, %c8_183], %239 {strides = array<i32>} : memref<256x72xf32, #tpu.memory_space<vmem>>, vector<256x8xf32>,
    %c0_184 = arith.constant 0 : index
    %c2_185 = arith.constant 2 : index
    %c0_186 = arith.constant 0 : index
    %241 = vector.load %arg20[%c0_184, %c2_185, %c0_186] : memref<18x18x8xf32, #tpu.memory_space<vmem>>, vector<16x16x8xf32>
    %242 = vector.shape_cast %241 : vector<16x16x8xf32> to vector<256x8xf32>
    %c0_187 = arith.constant 0 : index
    %c16_188 = arith.constant 16 : index
    %243 = vector.load %arg21[%c0_187, %c16_188] : memref<256x72xf32, #tpu.memory_space<vmem>>, vector<256x8xf32>
    tpu.vector_store %arg21[%c0_187, %c16_188], %242 {strides = array<i32>} : memref<256x72xf32, #tpu.memory_space<vmem>>, vector<256x8xf32>,
    %c1_189 = arith.constant 1 : index
    %c0_190 = arith.constant 0 : index
    %c0_191 = arith.constant 0 : index
    %244 = vector.load %arg20[%c1_189, %c0_190, %c0_191] : memref<18x18x8xf32, #tpu.memory_space<vmem>>, vector<16x16x8xf32>
    %245 = vector.shape_cast %244 : vector<16x16x8xf32> to vector<256x8xf32>
    %c0_192 = arith.constant 0 : index
    %c24_193 = arith.constant 24 : index
    %246 = vector.load %arg21[%c0_192, %c24_193] : memref<256x72xf32, #tpu.memory_space<vmem>>, vector<256x8xf32>
    tpu.vector_store %arg21[%c0_192, %c24_193], %245 {strides = array<i32>} : memref<256x72xf32, #tpu.memory_space<vmem>>, vector<256x8xf32>,
    %c1_194 = arith.constant 1 : index
    %c1_195 = arith.constant 1 : index
    %c0_196 = arith.constant 0 : index
    %247 = vector.load %arg20[%c1_194, %c1_195, %c0_196] : memref<18x18x8xf32, #tpu.memory_space<vmem>>, vector<16x16x8xf32>
    %248 = vector.shape_cast %247 : vector<16x16x8xf32> to vector<256x8xf32>
    %c0_197 = arith.constant 0 : index
    %c32_198 = arith.constant 32 : index
    %249 = vector.load %arg21[%c0_197, %c32_198] : memref<256x72xf32, #tpu.memory_space<vmem>>, vector<256x8xf32>
    tpu.vector_store %arg21[%c0_197, %c32_198], %248 {strides = array<i32>} : memref<256x72xf32, #tpu.memory_space<vmem>>, vector<256x8xf32>,
    %c1_199 = arith.constant 1 : index
    %c2_200 = arith.constant 2 : index
    %c0_201 = arith.constant 0 : index
    %250 = vector.load %arg20[%c1_199, %c2_200, %c0_201] : memref<18x18x8xf32, #tpu.memory_space<vmem>>, vector<16x16x8xf32>
    %251 = vector.shape_cast %250 : vector<16x16x8xf32> to vector<256x8xf32>
    %c0_202 = arith.constant 0 : index
    %c40 = arith.constant 40 : index
    %252 = vector.load %arg21[%c0_202, %c40] : memref<256x72xf32, #tpu.memory_space<vmem>>, vector<256x8xf32>
    tpu.vector_store %arg21[%c0_202, %c40], %251 {strides = array<i32>} : memref<256x72xf32, #tpu.memory_space<vmem>>, vector<256x8xf32>,
    %c2_203 = arith.constant 2 : index
    %c0_204 = arith.constant 0 : index
    %c0_205 = arith.constant 0 : index
    %253 = vector.load %arg20[%c2_203, %c0_204, %c0_205] : memref<18x18x8xf32, #tpu.memory_space<vmem>>, vector<16x16x8xf32>
    %254 = vector.shape_cast %253 : vector<16x16x8xf32> to vector<256x8xf32>
    %c0_206 = arith.constant 0 : index
    %c48 = arith.constant 48 : index
    %255 = vector.load %arg21[%c0_206, %c48] : memref<256x72xf32, #tpu.memory_space<vmem>>, vector<256x8xf32>
    tpu.vector_store %arg21[%c0_206, %c48], %254 {strides = array<i32>} : memref<256x72xf32, #tpu.memory_space<vmem>>, vector<256x8xf32>,
    %c2_207 = arith.constant 2 : index
    %c1_208 = arith.constant 1 : index
    %c0_209 = arith.constant 0 : index
    %256 = vector.load %arg20[%c2_207, %c1_208, %c0_209] : memref<18x18x8xf32, #tpu.memory_space<vmem>>, vector<16x16x8xf32>
    %257 = vector.shape_cast %256 : vector<16x16x8xf32> to vector<256x8xf32>
    %c0_210 = arith.constant 0 : index
    %c56 = arith.constant 56 : index
    %258 = vector.load %arg21[%c0_210, %c56] : memref<256x72xf32, #tpu.memory_space<vmem>>, vector<256x8xf32>
    tpu.vector_store %arg21[%c0_210, %c56], %257 {strides = array<i32>} : memref<256x72xf32, #tpu.memory_space<vmem>>, vector<256x8xf32>,
    %c2_211 = arith.constant 2 : index
    %c2_212 = arith.constant 2 : index
    %c0_213 = arith.constant 0 : index
    %259 = vector.load %arg20[%c2_211, %c2_212, %c0_213] : memref<18x18x8xf32, #tpu.memory_space<vmem>>, vector<16x16x8xf32>
    %260 = vector.shape_cast %259 : vector<16x16x8xf32> to vector<256x8xf32>
    %c0_214 = arith.constant 0 : index
    %c64 = arith.constant 64 : index
    %261 = vector.load %arg21[%c0_214, %c64] : memref<256x72xf32, #tpu.memory_space<vmem>>, vector<256x8xf32>
    tpu.vector_store %arg21[%c0_214, %c64], %260 {strides = array<i32>} : memref<256x72xf32, #tpu.memory_space<vmem>>, vector<256x8xf32>,
    %c0_215 = arith.constant 0 : index
    %c0_216 = arith.constant 0 : index
    %262 = vector.load %arg21[%c0_215, %c0_216] : memref<256x72xf32, #tpu.memory_space<vmem>>, vector<256x72xf32>
    %c0_217 = arith.constant 0 : index
    %c0_218 = arith.constant 0 : index
    %263 = vector.load %arg6[%c0_217, %c0_218] : memref<8x72xf32, #tpu.memory_space<vmem>>, vector<8x72xf32>
    %cst_219 = arith.constant dense<0.000000e+00> : vector<8x256xf32>
    %264 = tpu.matmul %263, %262, %cst_219 {dimension_numbers = #tpu.dot_dimension_numbers<[1], [1], [0], [0], [0, 0, 1, 0], [], []>} : vector<8x72xf32>, vector<256x72xf32>, vector<8x256xf32> -> vector<8x256xf32>
    %c0_220 = arith.constant 0 : index
    %c0_221 = arith.constant 0 : index
    %265 = vector.load %arg16[%c0_220, %c0_221] : memref<8x1xf32, #tpu.memory_space<vmem>>, vector<8x1xf32>
    %266 = vector.broadcast %265 : vector<8x1xf32> to vector<8x256xf32>
    %267 = arith.addf %264, %266 : vector<8x256xf32>
    %268 = vector.shape_cast %1 : vector<16x16x4xf32> to vector<256x4xf32>
    %c0_222 = arith.constant 0 : index
    %c0_223 = arith.constant 0 : index
    %269 = vector.load %arg7[%c0_222, %c0_223] : memref<8x4xf32, #tpu.memory_space<vmem>>, vector<8x4xf32>
    %cst_224 = arith.constant dense<0.000000e+00> : vector<8x256xf32>
    %270 = tpu.matmul %269, %268, %cst_224 {dimension_numbers = #tpu.dot_dimension_numbers<[1], [1], [0], [0], [0, 0, 1, 0], [], []>} : vector<8x4xf32>, vector<256x4xf32>, vector<8x256xf32> -> vector<8x256xf32>
    %c0_225 = arith.constant 0 : index
    %c0_226 = arith.constant 0 : index
    %271 = vector.load %arg17[%c0_225, %c0_226] : memref<8x1xf32, #tpu.memory_space<vmem>>, vector<8x1xf32>
    %272 = vector.broadcast %271 : vector<8x1xf32> to vector<8x256xf32>
    %273 = arith.addf %270, %272 : vector<8x256xf32>
    %274 = arith.addf %273, %267 : vector<8x256xf32>
    %cst_227 = arith.constant 0.707106769 : f32
    %275 = vector.broadcast %cst_227 : f32 to vector<8x256xf32>
    %276 = arith.mulf %274, %275 : vector<8x256xf32>
    %c0_228 = arith.constant 0 : index
    %c0_229 = arith.constant 0 : index
    %c0_230 = arith.constant 0 : index
    %277 = vector.load %arg18[%c0_228, %c0_229, %c0_230] : memref<1x8x256xf32, #tpu.memory_space<vmem>>, vector<1x8x256xf32>
    %278 = vector.shape_cast %277 : vector<1x8x256xf32> to vector<8x256xf32>
    %279 = vector.shape_cast %276 : vector<8x256xf32> to vector<1x8x256xf32>
    tpu.vector_store %arg18[%c0_228, %c0_229, %c0_230], %279 {strides = array<i32>} : memref<1x8x256xf32, #tpu.memory_space<vmem>>, vector<1x8x256xf32>,
    return
  }
  func.func @transform_0(%arg0: i32) -> (i32, i32, i32, i32) {
    %c0_i32 = arith.constant 0 : i32
    %c0_i32_0 = arith.constant 0 : i32
    %c0_i32_1 = arith.constant 0 : i32
    %c0_i32_2 = arith.constant 0 : i32
    return %arg0, %c0_i32, %c0_i32_0, %c0_i32_1 : i32, i32, i32, i32
  }
  func.func @transform_1(%arg0: i32) -> (i32, i32, i32, i32) {
    %c0_i32 = arith.constant 0 : i32
    %c0_i32_0 = arith.constant 0 : i32
    %c0_i32_1 = arith.constant 0 : i32
    %c0_i32_2 = arith.constant 0 : i32
    return %arg0, %c0_i32, %c0_i32_0, %c0_i32_1 : i32, i32, i32, i32
  }
  func.func @transform_2(%arg0: i32) -> (i32, i32) {
    %c0_i32 = arith.constant 0 : i32
    %c0_i32_0 = arith.constant 0 : i32
    %c0_i32_1 = arith.constant 0 : i32
    return %c0_i32, %c0_i32_0 : i32, i32
  }
  func.func @transform_3(%arg0: i32) -> (i32, i32) {
    %c0_i32 = arith.constant 0 : i32
    %c0_i32_0 = arith.constant 0 : i32
    %c0_i32_1 = arith.constant 0 : i32
    return %c0_i32, %c0_i32_0 : i32, i32
  }
  func.func @transform_4(%arg0: i32) -> (i32, i32) {
    %c0_i32 = arith.constant 0 : i32
    %c0_i32_0 = arith.constant 0 : i32
    %c0_i32_1 = arith.constant 0 : i32
    return %c0_i32, %c0_i32_0 : i32, i32
  }
  func.func @transform_5(%arg0: i32) -> (i32, i32) {
    %c0_i32 = arith.constant 0 : i32
    %c0_i32_0 = arith.constant 0 : i32
    %c0_i32_1 = arith.constant 0 : i32
    return %c0_i32, %c0_i32_0 : i32, i32
  }
  func.func @transform_6(%arg0: i32) -> (i32, i32) {
    %c0_i32 = arith.constant 0 : i32
    %c0_i32_0 = arith.constant 0 : i32
    %c0_i32_1 = arith.constant 0 : i32
    return %c0_i32, %c0_i32_0 : i32, i32
  }
  func.func @transform_7(%arg0: i32) -> (i32, i32) {
    %c0_i32 = arith.constant 0 : i32
    %c0_i32_0 = arith.constant 0 : i32
    %c0_i32_1 = arith.constant 0 : i32
    return %c0_i32, %c0_i32_0 : i32, i32
  }
  func.func @transform_8(%arg0: i32) -> (i32, i32) {
    %c0_i32 = arith.constant 0 : i32
    %c0_i32_0 = arith.constant 0 : i32
    %c0_i32_1 = arith.constant 0 : i32
    return %c0_i32, %c0_i32_0 : i32, i32
  }
  func.func @transform_9(%arg0: i32) -> (i32, i32) {
    %c0_i32 = arith.constant 0 : i32
    %c0_i32_0 = arith.constant 0 : i32
    %c0_i32_1 = arith.constant 0 : i32
    return %c0_i32, %c0_i32_0 : i32, i32
  }
  func.func @transform_10(%arg0: i32) -> (i32, i32) {
    %c0_i32 = arith.constant 0 : i32
    %c0_i32_0 = arith.constant 0 : i32
    %c0_i32_1 = arith.constant 0 : i32
    return %c0_i32, %c0_i32_0 : i32, i32
  }
  func.func @transform_11(%arg0: i32) -> (i32, i32) {
    %c0_i32 = arith.constant 0 : i32
    %c0_i32_0 = arith.constant 0 : i32
    %c0_i32_1 = arith.constant 0 : i32
    return %c0_i32, %c0_i32_0 : i32, i32
  }
  func.func @transform_12(%arg0: i32) -> (i32, i32) {
    %c0_i32 = arith.constant 0 : i32
    %c0_i32_0 = arith.constant 0 : i32
    %c0_i32_1 = arith.constant 0 : i32
    return %c0_i32, %c0_i32_0 : i32, i32
  }
  func.func @transform_13(%arg0: i32) -> (i32, i32) {
    %c0_i32 = arith.constant 0 : i32
    %c0_i32_0 = arith.constant 0 : i32
    %c0_i32_1 = arith.constant 0 : i32
    return %c0_i32, %c0_i32_0 : i32, i32
  }
  func.func @transform_14(%arg0: i32) -> (i32, i32) {
    %c0_i32 = arith.constant 0 : i32
    %c0_i32_0 = arith.constant 0 : i32
    %c0_i32_1 = arith.constant 0 : i32
    return %c0_i32, %c0_i32_0 : i32, i32
  }
  func.func @transform_15(%arg0: i32) -> (i32, i32) {
    %c0_i32 = arith.constant 0 : i32
    %c0_i32_0 = arith.constant 0 : i32
    %c0_i32_1 = arith.constant 0 : i32
    return %c0_i32, %c0_i32_0 : i32, i32
  }
  func.func @transform_16(%arg0: i32) -> (i32, i32) {
    %c0_i32 = arith.constant 0 : i32
    %c0_i32_0 = arith.constant 0 : i32
    %c0_i32_1 = arith.constant 0 : i32
    return %c0_i32, %c0_i32_0 : i32, i32
  }
  func.func @transform_17(%arg0: i32) -> (i32, i32, i32) {
    %c0_i32 = arith.constant 0 : i32
    %c0_i32_0 = arith.constant 0 : i32
    %c0_i32_1 = arith.constant 0 : i32
    return %arg0, %c0_i32, %c0_i32_0 : i32, i32, i32
  }
  func.func @transform_18(%arg0: i32) -> (i32, i32, i32) {
    %c0_i32 = arith.constant 0 : i32
    %c0_i32_0 = arith.constant 0 : i32
    %c0_i32_1 = arith.constant 0 : i32
    return %arg0, %c0_i32, %c0_i32_0 : i32, i32, i32
  }
}

</mosaic_0001>

<llo_original>
// kernel: tpu_custom_call.1
$region0: #{tpu_custom_call.1}
  #allocation0 [shape = 'u32[]', space=smem, size = 0x4, offset = 0x4, fixed_abs, tag = 'smem constant byte address 0x4 - core index']
  #allocation1 [shape = 'u32[72,128]{1,0:T(1,128)}', space=vmem, size = 0x9000, scoped, tag = 'internal scratch']
  #allocation2 [shape = 'f32[18,18,8]{2,1,0:T(8,128)}', space=vmem, size = 0x36000, scoped, tag = 'scratch operand']
  #allocation3 [shape = 'f32[256,72]{1,0:T(8,128)}', space=vmem, size = 0x20000, scoped, tag = 'scratch operand']
  %s0 = inlined_call_operand.vmem [shape: f32[2,16,16,4], index: 0, kind: input, shape index: {}]
  %s1 = inlined_call_operand.vmem [shape: f32[2,16,16,4], index: 1, kind: input, shape index: {}]
  %s2 = inlined_call_operand.vmem [shape: f32[8,36], index: 2, kind: input, shape index: {}]
  %s3 = inlined_call_operand.vmem [shape: f32[8,36], index: 3, kind: input, shape index: {}]
  %s4 = inlined_call_operand.vmem [shape: f32[8,8], index: 4, kind: input, shape index: {}]
  %s5 = inlined_call_operand.vmem [shape: f32[8,72], index: 5, kind: input, shape index: {}]
  %s6 = inlined_call_operand.vmem [shape: f32[8,4], index: 6, kind: input, shape index: {}]
  %s7 = inlined_call_operand.vmem [shape: f32[1,4], index: 7, kind: input, shape index: {}]
  %s8 = inlined_call_operand.vmem [shape: f32[1,4], index: 8, kind: input, shape index: {}]
  %s9 = inlined_call_operand.vmem [shape: f32[1,8], index: 9, kind: input, shape index: {}]
  %s10 = inlined_call_operand.vmem [shape: f32[1,8], index: 10, kind: input, shape index: {}]
  %s11 = inlined_call_operand.vmem [shape: f32[1,8], index: 11, kind: input, shape index: {}]
  %s12 = inlined_call_operand.vmem [shape: f32[1,8], index: 12, kind: input, shape index: {}]
  %s13 = inlined_call_operand.vmem [shape: f32[1,8], index: 13, kind: input, shape index: {}]
  %s14 = inlined_call_operand.vmem [shape: f32[8,1], index: 14, kind: input, shape index: {}]
  %s15 = inlined_call_operand.vmem [shape: f32[8,1], index: 15, kind: input, shape index: {}]
  %s16 = inlined_call_operand.vmem [shape: f32[8,1], index: 16, kind: input, shape index: {}]
  %s17 = inlined_call_operand.hbm [shape: f32[2,8,256], index: 17, kind: output, shape index: {0}]
  %s18 = inlined_call_operand.hbm [shape: f32[2,8,256], index: 18, kind: output, shape index: {1}]
  %19 = xla_tuple %s17, %s18
  %s20 = sld [smem:[#allocation0]]
  $region109: #{tpu_custom_call.1} parent=0
    _
  %s22 = ssub.s32 1, %s20
  %s23 = scalar_select 0, %s22, %s20
  $region1: #{tpu_custom_call.1} parent=0
    #allocation4 [shape = 'u8[16384]{0}', space=vmem, size = 0x4000, scoped, tag = 'output window, operand 0']
    #allocation5 [shape = 's32[2]{0}', space=sflag, size = 0x8, scoped, tag = 'scoped memory for tpu_custom_call.1']
    #allocation6 [shape = 'u8[16384]{0}', space=vmem, size = 0x4000, scoped, tag = 'output window, operand 1']
    #allocation7 [shape = 's32[2]{0}', space=sflag, size = 0x8, scoped, tag = 'scoped memory for tpu_custom_call.1']
    %24 = vsyncpa [#allocation5], 0
    %s25 = scalar_lea.sflag [#allocation5], 1
    %26 = vsyncpa %s25, 0
    %27 = vsyncpa [#allocation7], 0
    %s28 = scalar_lea.sflag [#allocation7], 1
    %29 = vsyncpa %s28, 0
    loop: start=0, step=1, limit=4
    $region2: #{tpu_custom_call.1} parent=1 // loop_pre_header
      _
    $region3: #{tpu_custom_call.1} parent=1 // loop_header
      %s31 = sphi 0, %s35
      %p32 = scmp.ge.s32.totalorder %s31, 4
      %s41 = sphi 0, %s43
      %s44 = sphi 0, %s41
      %s45 = sphi 0, %s44
      %s61 = sphi 0, %s45
      %s67 = sphi 0, %s69
      %s70 = sphi 0, %s67
      %s71 = sphi 0, %s70
      %s87 = sphi 0, %s71
      %s91 = sphi 0, %s91
      %s93 = sphi 0, %s91
      %s94 = sphi 0, %s93
      %s108 = sphi 0, %s94
      %s112 = sphi 0, %s112
      %s114 = sphi 0, %s112
      %s115 = sphi 0, %s114
      %s129 = sphi 0, %s115
      %s133 = sphi 0, %s133
      %s135 = sphi 0, %s133
      %s136 = sphi 0, %s135
      %s150 = sphi 0, %s136
      %s154 = sphi 0, %s154
      %s156 = sphi 0, %s154
      %s157 = sphi 0, %s156
      %s171 = sphi 0, %s157
      %s175 = sphi 0, %s175
      %s177 = sphi 0, %s175
      %s178 = sphi 0, %s177
      %s192 = sphi 0, %s178
      %s196 = sphi 0, %s196
      %s198 = sphi 0, %s196
      %s199 = sphi 0, %s198
      %s213 = sphi 0, %s199
      %s217 = sphi 0, %s217
      %s219 = sphi 0, %s217
      %s220 = sphi 0, %s219
      %s234 = sphi 0, %s220
      %s238 = sphi 0, %s238
      %s240 = sphi 0, %s238
      %s241 = sphi 0, %s240
      %s255 = sphi 0, %s241
      %s259 = sphi 0, %s259
      %s261 = sphi 0, %s259
      %s262 = sphi 0, %s261
      %s276 = sphi 0, %s262
      %s280 = sphi 0, %s280
      %s282 = sphi 0, %s280
      %s283 = sphi 0, %s282
      %s297 = sphi 0, %s283
      %s301 = sphi 0, %s301
      %s303 = sphi 0, %s301
      %s304 = sphi 0, %s303
      %s318 = sphi 0, %s304
      %s322 = sphi 0, %s322
      %s324 = sphi 0, %s322
      %s325 = sphi 0, %s324
      %s339 = sphi 0, %s325
      %s343 = sphi 0, %s343
      %s345 = sphi 0, %s343
      %s346 = sphi 0, %s345
      %s360 = sphi 0, %s346
      %s364 = sphi 0, %s364
      %s366 = sphi 0, %s364
      %s367 = sphi 0, %s366
      %s381 = sphi 0, %s367
      %s385 = sphi 0, %s385
      %s387 = sphi 0, %s385
      %s388 = sphi 0, %s387
      %s402 = sphi 0, %s388
      %s408 = sphi 0, %s410
      %s411 = sphi 0, %s408
      %s412 = sphi 0, %s411
      %s428 = sphi 0, %s412
      %s434 = sphi 0, %s436
      %s437 = sphi 0, %s434
      %s438 = sphi 0, %s437
      %s454 = sphi 0, %s438
    $region4: #{tpu_custom_call.1} parent=1 // loop_header_branch
      %34 = sbr.rel (%p32) target = $region8
    $region5: #{tpu_custom_call.1} parent=1 // loop_body
      %s36 = ssub.s32 %s31, 1
      %s37 = ssub.s32 %s31, 2
      %s38 = sadd.s32 %s31, 1
      %s39 = ssub.s32 %s31, %s38
      %p40 = scmp.eq.s32.totalorder %s39, 0
      %s42 = sadd.s32 %s41, 1
      %s43 = scalar_select %p40, %s41, %s42
      %p46 = pneg %p40
      %p47 = scmp.eq.s32.totalorder %s31, 1
      %p48 = por %p46, %p47
      %p49 = scmp.ne.s32.totalorder %s41, %s44
      %p50 = scmp.eq.s32.totalorder %s31, 0
      %p51 = por %p49, %p50
      %p52 = scmp.ne.s32.totalorder %s41, %s44
      %p53 = scmp.eq.s32.totalorder %s36, 1
      %p54 = por %p52, %p53
      %p55 = scmp.ne.s32.totalorder %s44, %s45
      %p56 = scmp.eq.s32.totalorder %s36, 0
      %p57 = por %p55, %p56
      %p58 = scmp.ne.s32.totalorder %s44, %s45
      %p59 = scmp.eq.s32.totalorder %s37, 1
      %p60 = por %p58, %p59
      %p62 = scmp.ne.s32.totalorder %s45, %s61
      %p63 = scmp.eq.s32.totalorder %s37, 0
      %p64 = por %p62, %p63
      %s65 = ssub.s32 %s31, %s38
      %p66 = scmp.eq.s32.totalorder %s65, 0
      %s68 = sadd.s32 %s67, 1
      %s69 = scalar_select %p66, %s67, %s68
      %p72 = pneg %p66
      %p73 = scmp.eq.s32.totalorder %s31, 1
      %p74 = por %p72, %p73
      %p75 = scmp.ne.s32.totalorder %s67, %s70
      %p76 = scmp.eq.s32.totalorder %s31, 0
      %p77 = por %p75, %p76
      %p78 = scmp.ne.s32.totalorder %s67, %s70
      %p79 = scmp.eq.s32.totalorder %s36, 1
      %p80 = por %p78, %p79
      %p81 = scmp.ne.s32.totalorder %s70, %s71
      %p82 = scmp.eq.s32.totalorder %s36, 0
      %p83 = por %p81, %p82
      %p84 = scmp.ne.s32.totalorder %s70, %s71
      %p85 = scmp.eq.s32.totalorder %s37, 1
      %p86 = por %p84, %p85
      %p88 = scmp.ne.s32.totalorder %s71, %s87
      %p89 = scmp.eq.s32.totalorder %s37, 0
      %p90 = por %p88, %p89
      %s92 = sadd.s32 %s91, 1
      %p95 = scmp.eq.s32.totalorder %s31, 1
      %p96 = scmp.ne.s32.totalorder %s91, %s93
      %p97 = scmp.eq.s32.totalorder %s31, 0
      %p98 = por %p96, %p97
      %p99 = scmp.ne.s32.totalorder %s91, %s93
      %p100 = scmp.eq.s32.totalorder %s36, 1
      %p101 = por %p99, %p100
      %p102 = scmp.ne.s32.totalorder %s93, %s94
      %p103 = scmp.eq.s32.totalorder %s36, 0
      %p104 = por %p102, %p103
      %p105 = scmp.ne.s32.totalorder %s93, %s94
      %p106 = scmp.eq.s32.totalorder %s37, 1
      %p107 = por %p105, %p106
      %p109 = scmp.ne.s32.totalorder %s94, %s108
      %p110 = scmp.eq.s32.totalorder %s37, 0
      %p111 = por %p109, %p110
      %s113 = sadd.s32 %s112, 1
      %p116 = scmp.eq.s32.totalorder %s31, 1
      %p117 = scmp.ne.s32.totalorder %s112, %s114
      %p118 = scmp.eq.s32.totalorder %s31, 0
      %p119 = por %p117, %p118
      %p120 = scmp.ne.s32.totalorder %s112, %s114
      %p121 = scmp.eq.s32.totalorder %s36, 1
      %p122 = por %p120, %p121
      %p123 = scmp.ne.s32.totalorder %s114, %s115
      %p124 = scmp.eq.s32.totalorder %s36, 0
      %p125 = por %p123, %p124
      %p126 = scmp.ne.s32.totalorder %s114, %s115
      %p127 = scmp.eq.s32.totalorder %s37, 1
      %p128 = por %p126, %p127
      %p130 = scmp.ne.s32.totalorder %s115, %s129
      %p131 = scmp.eq.s32.totalorder %s37, 0
      %p132 = por %p130, %p131
      %s134 = sadd.s32 %s133, 1
      %p137 = scmp.eq.s32.totalorder %s31, 1
      %p138 = scmp.ne.s32.totalorder %s133, %s135
      %p139 = scmp.eq.s32.totalorder %s31, 0
      %p140 = por %p138, %p139
      %p141 = scmp.ne.s32.totalorder %s133, %s135
      %p142 = scmp.eq.s32.totalorder %s36, 1
      %p143 = por %p141, %p142
      %p144 = scmp.ne.s32.totalorder %s135, %s136
      %p145 = scmp.eq.s32.totalorder %s36, 0
      %p146 = por %p144, %p145
      %p147 = scmp.ne.s32.totalorder %s135, %s136
      %p148 = scmp.eq.s32.totalorder %s37, 1
      %p149 = por %p147, %p148
      %p151 = scmp.ne.s32.totalorder %s136, %s150
      %p152 = scmp.eq.s32.totalorder %s37, 0
      %p153 = por %p151, %p152
      %s155 = sadd.s32 %s154, 1
      %p158 = scmp.eq.s32.totalorder %s31, 1
      %p159 = scmp.ne.s32.totalorder %s154, %s156
      %p160 = scmp.eq.s32.totalorder %s31, 0
      %p161 = por %p159, %p160
      %p162 = scmp.ne.s32.totalorder %s154, %s156
      %p163 = scmp.eq.s32.totalorder %s36, 1
      %p164 = por %p162, %p163
      %p165 = scmp.ne.s32.totalorder %s156, %s157
      %p166 = scmp.eq.s32.totalorder %s36, 0
      %p167 = por %p165, %p166
      %p168 = scmp.ne.s32.totalorder %s156, %s157
      %p169 = scmp.eq.s32.totalorder %s37, 1
      %p170 = por %p168, %p169
      %p172 = scmp.ne.s32.totalorder %s157, %s171
      %p173 = scmp.eq.s32.totalorder %s37, 0
      %p174 = por %p172, %p173
      %s176 = sadd.s32 %s175, 1
      %p179 = scmp.eq.s32.totalorder %s31, 1
      %p180 = scmp.ne.s32.totalorder %s175, %s177
      %p181 = scmp.eq.s32.totalorder %s31, 0
      %p182 = por %p180, %p181
      %p183 = scmp.ne.s32.totalorder %s175, %s177
      %p184 = scmp.eq.s32.totalorder %s36, 1
      %p185 = por %p183, %p184
      %p186 = scmp.ne.s32.totalorder %s177, %s178
      %p187 = scmp.eq.s32.totalorder %s36, 0
      %p188 = por %p186, %p187
      %p189 = scmp.ne.s32.totalorder %s177, %s178
      %p190 = scmp.eq.s32.totalorder %s37, 1
      %p191 = por %p189, %p190
      %p193 = scmp.ne.s32.totalorder %s178, %s192
      %p194 = scmp.eq.s32.totalorder %s37, 0
      %p195 = por %p193, %p194
      %s197 = sadd.s32 %s196, 1
      %p200 = scmp.eq.s32.totalorder %s31, 1
      %p201 = scmp.ne.s32.totalorder %s196, %s198
      %p202 = scmp.eq.s32.totalorder %s31, 0
      %p203 = por %p201, %p202
      %p204 = scmp.ne.s32.totalorder %s196, %s198
      %p205 = scmp.eq.s32.totalorder %s36, 1
      %p206 = por %p204, %p205
      %p207 = scmp.ne.s32.totalorder %s198, %s199
      %p208 = scmp.eq.s32.totalorder %s36, 0
      %p209 = por %p207, %p208
      %p210 = scmp.ne.s32.totalorder %s198, %s199
      %p211 = scmp.eq.s32.totalorder %s37, 1
      %p212 = por %p210, %p211
      %p214 = scmp.ne.s32.totalorder %s199, %s213
      %p215 = scmp.eq.s32.totalorder %s37, 0
      %p216 = por %p214, %p215
      %s218 = sadd.s32 %s217, 1
      %p221 = scmp.eq.s32.totalorder %s31, 1
      %p222 = scmp.ne.s32.totalorder %s217, %s219
      %p223 = scmp.eq.s32.totalorder %s31, 0
      %p224 = por %p222, %p223
      %p225 = scmp.ne.s32.totalorder %s217, %s219
      %p226 = scmp.eq.s32.totalorder %s36, 1
      %p227 = por %p225, %p226
      %p228 = scmp.ne.s32.totalorder %s219, %s220
      %p229 = scmp.eq.s32.totalorder %s36, 0
      %p230 = por %p228, %p229
      %p231 = scmp.ne.s32.totalorder %s219, %s220
      %p232 = scmp.eq.s32.totalorder %s37, 1
      %p233 = por %p231, %p232
      %p235 = scmp.ne.s32.totalorder %s220, %s234
      %p236 = scmp.eq.s32.totalorder %s37, 0
      %p237 = por %p235, %p236
      %s239 = sadd.s32 %s238, 1
      %p242 = scmp.eq.s32.totalorder %s31, 1
      %p243 = scmp.ne.s32.totalorder %s238, %s240
      %p244 = scmp.eq.s32.totalorder %s31, 0
      %p245 = por %p243, %p244
      %p246 = scmp.ne.s32.totalorder %s238, %s240
      %p247 = scmp.eq.s32.totalorder %s36, 1
      %p248 = por %p246, %p247
      %p249 = scmp.ne.s32.totalorder %s240, %s241
      %p250 = scmp.eq.s32.totalorder %s36, 0
      %p251 = por %p249, %p250
      %p252 = scmp.ne.s32.totalorder %s240, %s241
      %p253 = scmp.eq.s32.totalorder %s37, 1
      %p254 = por %p252, %p253
      %p256 = scmp.ne.s32.totalorder %s241, %s255
      %p257 = scmp.eq.s32.totalorder %s37, 0
      %p258 = por %p256, %p257
      %s260 = sadd.s32 %s259, 1
      %p263 = scmp.eq.s32.totalorder %s31, 1
      %p264 = scmp.ne.s32.totalorder %s259, %s261
      %p265 = scmp.eq.s32.totalorder %s31, 0
      %p266 = por %p264, %p265
      %p267 = scmp.ne.s32.totalorder %s259, %s261
      %p268 = scmp.eq.s32.totalorder %s36, 1
      %p269 = por %p267, %p268
      %p270 = scmp.ne.s32.totalorder %s261, %s262
      %p271 = scmp.eq.s32.totalorder %s36, 0
      %p272 = por %p270, %p271
      %p273 = scmp.ne.s32.totalorder %s261, %s262
      %p274 = scmp.eq.s32.totalorder %s37, 1
      %p275 = por %p273, %p274
      %p277 = scmp.ne.s32.totalorder %s262, %s276
      %p278 = scmp.eq.s32.totalorder %s37, 0
      %p279 = por %p277, %p278
      %s281 = sadd.s32 %s280, 1
      %p284 = scmp.eq.s32.totalorder %s31, 1
      %p285 = scmp.ne.s32.totalorder %s280, %s282
      %p286 = scmp.eq.s32.totalorder %s31, 0
      %p287 = por %p285, %p286
      %p288 = scmp.ne.s32.totalorder %s280, %s282
      %p289 = scmp.eq.s32.totalorder %s36, 1
      %p290 = por %p288, %p289
      %p291 = scmp.ne.s32.totalorder %s282, %s283
      %p292 = scmp.eq.s32.totalorder %s36, 0
      %p293 = por %p291, %p292
      %p294 = scmp.ne.s32.totalorder %s282, %s283
      %p295 = scmp.eq.s32.totalorder %s37, 1
      %p296 = por %p294, %p295
      %p298 = scmp.ne.s32.totalorder %s283, %s297
      %p299 = scmp.eq.s32.totalorder %s37, 0
      %p300 = por %p298, %p299
      %s302 = sadd.s32 %s301, 1
      %p305 = scmp.eq.s32.totalorder %s31, 1
      %p306 = scmp.ne.s32.totalorder %s301, %s303
      %p307 = scmp.eq.s32.totalorder %s31, 0
      %p308 = por %p306, %p307
      %p309 = scmp.ne.s32.totalorder %s301, %s303
      %p310 = scmp.eq.s32.totalorder %s36, 1
      %p311 = por %p309, %p310
      %p312 = scmp.ne.s32.totalorder %s303, %s304
      %p313 = scmp.eq.s32.totalorder %s36, 0
      %p314 = por %p312, %p313
      %p315 = scmp.ne.s32.totalorder %s303, %s304
      %p316 = scmp.eq.s32.totalorder %s37, 1
      %p317 = por %p315, %p316
      %p319 = scmp.ne.s32.totalorder %s304, %s318
      %p320 = scmp.eq.s32.totalorder %s37, 0
      %p321 = por %p319, %p320
      %s323 = sadd.s32 %s322, 1
      %p326 = scmp.eq.s32.totalorder %s31, 1
      %p327 = scmp.ne.s32.totalorder %s322, %s324
      %p328 = scmp.eq.s32.totalorder %s31, 0
      %p329 = por %p327, %p328
      %p330 = scmp.ne.s32.totalorder %s322, %s324
      %p331 = scmp.eq.s32.totalorder %s36, 1
      %p332 = por %p330, %p331
      %p333 = scmp.ne.s32.totalorder %s324, %s325
      %p334 = scmp.eq.s32.totalorder %s36, 0
      %p335 = por %p333, %p334
      %p336 = scmp.ne.s32.totalorder %s324, %s325
      %p337 = scmp.eq.s32.totalorder %s37, 1
      %p338 = por %p336, %p337
      %p340 = scmp.ne.s32.totalorder %s325, %s339
      %p341 = scmp.eq.s32.totalorder %s37, 0
      %p342 = por %p340, %p341
      %s344 = sadd.s32 %s343, 1
      %p347 = scmp.eq.s32.totalorder %s31, 1
      %p348 = scmp.ne.s32.totalorder %s343, %s345
      %p349 = scmp.eq.s32.totalorder %s31, 0
      %p350 = por %p348, %p349
      %p351 = scmp.ne.s32.totalorder %s343, %s345
      %p352 = scmp.eq.s32.totalorder %s36, 1
      %p353 = por %p351, %p352
      %p354 = scmp.ne.s32.totalorder %s345, %s346
      %p355 = scmp.eq.s32.totalorder %s36, 0
      %p356 = por %p354, %p355
      %p357 = scmp.ne.s32.totalorder %s345, %s346
      %p358 = scmp.eq.s32.totalorder %s37, 1
      %p359 = por %p357, %p358
      %p361 = scmp.ne.s32.totalorder %s346, %s360
      %p362 = scmp.eq.s32.totalorder %s37, 0
      %p363 = por %p361, %p362
      %s365 = sadd.s32 %s364, 1
      %p368 = scmp.eq.s32.totalorder %s31, 1
      %p369 = scmp.ne.s32.totalorder %s364, %s366
      %p370 = scmp.eq.s32.totalorder %s31, 0
      %p371 = por %p369, %p370
      %p372 = scmp.ne.s32.totalorder %s364, %s366
      %p373 = scmp.eq.s32.totalorder %s36, 1
      %p374 = por %p372, %p373
      %p375 = scmp.ne.s32.totalorder %s366, %s367
      %p376 = scmp.eq.s32.totalorder %s36, 0
      %p377 = por %p375, %p376
      %p378 = scmp.ne.s32.totalorder %s366, %s367
      %p379 = scmp.eq.s32.totalorder %s37, 1
      %p380 = por %p378, %p379
      %p382 = scmp.ne.s32.totalorder %s367, %s381
      %p383 = scmp.eq.s32.totalorder %s37, 0
      %p384 = por %p382, %p383
      %s386 = sadd.s32 %s385, 1
      %p389 = scmp.eq.s32.totalorder %s31, 1
      %p390 = scmp.ne.s32.totalorder %s385, %s387
      %p391 = scmp.eq.s32.totalorder %s31, 0
      %p392 = por %p390, %p391
      %p393 = scmp.ne.s32.totalorder %s385, %s387
      %p394 = scmp.eq.s32.totalorder %s36, 1
      %p395 = por %p393, %p394
      %p396 = scmp.ne.s32.totalorder %s387, %s388
      %p397 = scmp.eq.s32.totalorder %s36, 0
      %p398 = por %p396, %p397
      %p399 = scmp.ne.s32.totalorder %s387, %s388
      %p400 = scmp.eq.s32.totalorder %s37, 1
      %p401 = por %p399, %p400
      %p403 = scmp.ne.s32.totalorder %s388, %s402
      %p404 = scmp.eq.s32.totalorder %s37, 0
      %p405 = por %p403, %p404
      %s406 = ssub.s32 %s31, %s38
      %p407 = scmp.eq.s32.totalorder %s406, 0
      %s409 = sadd.s32 %s408, 1
      %s410 = scalar_select %p407, %s408, %s409
      %p413 = pneg %p407
      %p414 = scmp.eq.s32.totalorder %s31, 1
      %p415 = por %p413, %p414
      %p416 = scmp.ne.s32.totalorder %s408, %s411
      %p417 = scmp.eq.s32.totalorder %s31, 0
      %p418 = por %p416, %p417
      %p419 = scmp.ne.s32.totalorder %s408, %s411
      %p420 = scmp.eq.s32.totalorder %s36, 1
      %p421 = por %p419, %p420
      %p422 = scmp.ne.s32.totalorder %s411, %s412
      %p423 = scmp.eq.s32.totalorder %s36, 0
      %p424 = por %p422, %p423
      %p425 = scmp.ne.s32.totalorder %s411, %s412
      %p426 = scmp.eq.s32.totalorder %s37, 1
      %p427 = por %p425, %p426
      %p429 = scmp.ne.s32.totalorder %s412, %s428
      %p430 = scmp.eq.s32.totalorder %s37, 0
      %p431 = por %p429, %p430
      %s432 = ssub.s32 %s31, %s38
      %p433 = scmp.eq.s32.totalorder %s432, 0
      %s435 = sadd.s32 %s434, 1
      %s436 = scalar_select %p433, %s434, %s435
      %p439 = pneg %p433
      %p440 = scmp.eq.s32.totalorder %s31, 1
      %p441 = por %p439, %p440
      %p442 = scmp.ne.s32.totalorder %s434, %s437
      %p443 = scmp.eq.s32.totalorder %s31, 0
      %p444 = por %p442, %p443
      %p445 = scmp.ne.s32.totalorder %s434, %s437
      %p446 = scmp.eq.s32.totalorder %s36, 1
      %p447 = por %p445, %p446
      %p448 = scmp.ne.s32.totalorder %s437, %s438
      %p449 = scmp.eq.s32.totalorder %s36, 0
      %p450 = por %p448, %p449
      %p451 = scmp.ne.s32.totalorder %s437, %s438
      %p452 = scmp.eq.s32.totalorder %s37, 1
      %p453 = por %p451, %p452
      %p455 = scmp.ne.s32.totalorder %s438, %s454
      %p456 = scmp.eq.s32.totalorder %s37, 0
      %p457 = por %p455, %p456
      %p458 = scmp.le.s32.totalorder 1, %s31
      %p459 = scmp.lt.s32.totalorder %s31, 3
      %p460 = pnand %p458, %p459
      %p461 = pneg %p460
      // Predicated region
      $region9: #{tpu_custom_call.1} parent=5 // pred_check
        _
      $region10: #{tpu_custom_call.1} parent=5 // pred_check_branch
        %463 = sbr.rel (%p460) target = $region12
      $region11: #{tpu_custom_call.1} parent=5 // pred_region
        %s464 = ssub.s32 %s31, 1
        // Predicated region
        $region13: #{tpu_custom_call.1} parent=11 // pred_check
          %p465 = pneg %p104
        $region14: #{tpu_custom_call.1} parent=11 // pred_check_branch
          %467 = sbr.rel (%p465) target = $region16
        $region15: #{tpu_custom_call.1} parent=11 // pred_region
          _
        $region16: #{tpu_custom_call.1} parent=11 // pred_fallthru
          _
        // Predicated region
        $region17: #{tpu_custom_call.1} parent=11 // pred_check
          %p468 = pneg %p125
        $region18: #{tpu_custom_call.1} parent=11 // pred_check_branch
          %470 = sbr.rel (%p468) target = $region20
        $region19: #{tpu_custom_call.1} parent=11 // pred_region
          _
        $region20: #{tpu_custom_call.1} parent=11 // pred_fallthru
          _
        // Predicated region
        $region21: #{tpu_custom_call.1} parent=11 // pred_check
          %p471 = pneg %p146
        $region22: #{tpu_custom_call.1} parent=11 // pred_check_branch
          %473 = sbr.rel (%p471) target = $region24
        $region23: #{tpu_custom_call.1} parent=11 // pred_region
          _
        $region24: #{tpu_custom_call.1} parent=11 // pred_fallthru
          _
        // Predicated region
        $region25: #{tpu_custom_call.1} parent=11 // pred_check
          %p474 = pneg %p167
        $region26: #{tpu_custom_call.1} parent=11 // pred_check_branch
          %476 = sbr.rel (%p474) target = $region28
        $region27: #{tpu_custom_call.1} parent=11 // pred_region
          _
        $region28: #{tpu_custom_call.1} parent=11 // pred_fallthru
          _
        // Predicated region
        $region29: #{tpu_custom_call.1} parent=11 // pred_check
          %p477 = pneg %p188
        $region30: #{tpu_custom_call.1} parent=11 // pred_check_branch
          %479 = sbr.rel (%p477) target = $region32
        $region31: #{tpu_custom_call.1} parent=11 // pred_region
          _
        $region32: #{tpu_custom_call.1} parent=11 // pred_fallthru
          _
        // Predicated region
        $region33: #{tpu_custom_call.1} parent=11 // pred_check
          %p480 = pneg %p209
        $region34: #{tpu_custom_call.1} parent=11 // pred_check_branch
          %482 = sbr.rel (%p480) target = $region36
        $region35: #{tpu_custom_call.1} parent=11 // pred_region
          _
        $region36: #{tpu_custom_call.1} parent=11 // pred_fallthru
          _
        // Predicated region
        $region37: #{tpu_custom_call.1} parent=11 // pred_check
          %p483 = pneg %p230
        $region38: #{tpu_custom_call.1} parent=11 // pred_check_branch
          %485 = sbr.rel (%p483) target = $region40
        $region39: #{tpu_custom_call.1} parent=11 // pred_region
          _
        $region40: #{tpu_custom_call.1} parent=11 // pred_fallthru
          _
        // Predicated region
        $region41: #{tpu_custom_call.1} parent=11 // pred_check
          %p486 = pneg %p251
        $region42: #{tpu_custom_call.1} parent=11 // pred_check_branch
          %488 = sbr.rel (%p486) target = $region44
        $region43: #{tpu_custom_call.1} parent=11 // pred_region
          _
        $region44: #{tpu_custom_call.1} parent=11 // pred_fallthru
          _
        // Predicated region
        $region45: #{tpu_custom_call.1} parent=11 // pred_check
          %p489 = pneg %p272
        $region46: #{tpu_custom_call.1} parent=11 // pred_check_branch
          %491 = sbr.rel (%p489) target = $region48
        $region47: #{tpu_custom_call.1} parent=11 // pred_region
          _
        $region48: #{tpu_custom_call.1} parent=11 // pred_fallthru
          _
        // Predicated region
        $region49: #{tpu_custom_call.1} parent=11 // pred_check
          %p492 = pneg %p293
        $region50: #{tpu_custom_call.1} parent=11 // pred_check_branch
          %494 = sbr.rel (%p492) target = $region52
        $region51: #{tpu_custom_call.1} parent=11 // pred_region
          _
        $region52: #{tpu_custom_call.1} parent=11 // pred_fallthru
          _
        // Predicated region
        $region53: #{tpu_custom_call.1} parent=11 // pred_check
          %p495 = pneg %p314
        $region54: #{tpu_custom_call.1} parent=11 // pred_check_branch
          %497 = sbr.rel (%p495) target = $region56
        $region55: #{tpu_custom_call.1} parent=11 // pred_region
          _
        $region56: #{tpu_custom_call.1} parent=11 // pred_fallthru
          _
        // Predicated region
        $region57: #{tpu_custom_call.1} parent=11 // pred_check
          %p498 = pneg %p335
        $region58: #{tpu_custom_call.1} parent=11 // pred_check_branch
          %500 = sbr.rel (%p498) target = $region60
        $region59: #{tpu_custom_call.1} parent=11 // pred_region
          _
        $region60: #{tpu_custom_call.1} parent=11 // pred_fallthru
          _
        // Predicated region
        $region61: #{tpu_custom_call.1} parent=11 // pred_check
          %p501 = pneg %p356
        $region62: #{tpu_custom_call.1} parent=11 // pred_check_branch
          %503 = sbr.rel (%p501) target = $region64
        $region63: #{tpu_custom_call.1} parent=11 // pred_region
          _
        $region64: #{tpu_custom_call.1} parent=11 // pred_fallthru
          _
        // Predicated region
        $region65: #{tpu_custom_call.1} parent=11 // pred_check
          %p504 = pneg %p377
        $region66: #{tpu_custom_call.1} parent=11 // pred_check_branch
          %506 = sbr.rel (%p504) target = $region68
        $region67: #{tpu_custom_call.1} parent=11 // pred_region
          _
        $region68: #{tpu_custom_call.1} parent=11 // pred_fallthru
          _
        // Predicated region
        $region69: #{tpu_custom_call.1} parent=11 // pred_check
          %p507 = pneg %p398
        $region70: #{tpu_custom_call.1} parent=11 // pred_check_branch
          %509 = sbr.rel (%p507) target = $region72
        $region71: #{tpu_custom_call.1} parent=11 // pred_region
          _
        $region72: #{tpu_custom_call.1} parent=11 // pred_fallthru
          _
      $region12: #{tpu_custom_call.1} parent=5 // pred_fallthru
        _
      %p510 = scmp.lt.s32.totalorder %s31, 2
      // Predicated region
      $region73: #{tpu_custom_call.1} parent=5 // pred_check
        %p511 = pneg %p510
      $region74: #{tpu_custom_call.1} parent=5 // pred_check_branch
        %513 = sbr.rel (%p511) target = $region76
      $region75: #{tpu_custom_call.1} parent=5 // pred_region
        // Predicated region
        $region77: #{tpu_custom_call.1} parent=75 // pred_check
          %p514 = pneg %p51
        $region78: #{tpu_custom_call.1} parent=75 // pred_check_branch
          %516 = sbr.rel (%p514) target = $region80
        $region79: #{tpu_custom_call.1} parent=75 // pred_region
          %p517 = scmp.lt.s32.totalorder %s31, 1
          %s518 = scalar_select %p517, %s31, 1
          %s519 = smul.addr %s518, 32
          %s520 = smul.addr %s519, 8
          %s521 = scalar_lea.vmem %s0, %s520
        $region80: #{tpu_custom_call.1} parent=75 // pred_fallthru
          _
        // Predicated region
        $region81: #{tpu_custom_call.1} parent=75 // pred_check
          %p522 = pneg %p77
        $region82: #{tpu_custom_call.1} parent=75 // pred_check_branch
          %524 = sbr.rel (%p522) target = $region84
        $region83: #{tpu_custom_call.1} parent=75 // pred_region
          %p525 = scmp.lt.s32.totalorder %s31, 1
          %s526 = scalar_select %p525, %s31, 1
          %s527 = smul.addr %s526, 32
          %s528 = smul.addr %s527, 8
          %s529 = scalar_lea.vmem %s1, %s528
        $region84: #{tpu_custom_call.1} parent=75 // pred_fallthru
          _
      $region76: #{tpu_custom_call.1} parent=5 // pred_fallthru
        _
      %p530 = scmp.le.s32.totalorder 1, %s31
      %p531 = scmp.lt.s32.totalorder %s31, 3
      %p532 = pnand %p530, %p531
      %p533 = pneg %p532
      // Predicated region
      $region85: #{tpu_custom_call.1} parent=5 // pred_check
        _
      $region86: #{tpu_custom_call.1} parent=5 // pred_check_branch
        %535 = sbr.rel (%p532) target = $region88
      $region87: #{tpu_custom_call.1} parent=5 // pred_region
        %s536 = ssub.s32 %s31, 1
        %p537 = scmp.lt.s32.totalorder %s36, 1
        %s538 = scalar_select %p537, %s36, 1
        %s539 = smul.addr %s538, 32
        %s540 = smul.addr %s539, 8
        %s541 = scalar_lea.vmem %s0, %s540
        %p542 = pneg %p57
        %p543 = pneg %p54
        %p544 = scmp.lt.s32.totalorder %s36, 1
        %s545 = scalar_select %p544, %s36, 1
        %s546 = smul.addr %s545, 32
        %s547 = smul.addr %s546, 8
        %s548 = scalar_lea.vmem %s1, %s547
        %p549 = pneg %p83
        %p550 = pneg %p80
        %p551 = pneg %p104
        %p552 = pneg %p101
        %p553 = pneg %p125
        %p554 = pneg %p122
        %p555 = pneg %p146
        %p556 = pneg %p143
        %p557 = pneg %p167
        %p558 = pneg %p164
        %p559 = pneg %p188
        %p560 = pneg %p185
        %p561 = pneg %p209
        %p562 = pneg %p206
        %p563 = pneg %p230
        %p564 = pneg %p227
        %p565 = pneg %p251
        %p566 = pneg %p248
        %p567 = pneg %p272
        %p568 = pneg %p269
        %p569 = pneg %p293
        %p570 = pneg %p290
        %p571 = pneg %p314
        %p572 = pneg %p311
        %p573 = pneg %p335
        %p574 = pneg %p332
        %p575 = pneg %p356
        %p576 = pneg %p353
        %p577 = pneg %p377
        %p578 = pneg %p374
        %p579 = pneg %p398
        %p580 = pneg %p395
        %p581 = pneg %p424
        %p582 = pneg %p421
        %s583 = sand.u32 %s411, 1
        %s584 = scalar_lea.sflag [#allocation5], %s583
        %s585 = sand.u32 %s411, 1
        %s586 = smul.addr %s585, 16
        %s587 = scalar_lea.vmem [#allocation4], %s586
        %p588 = pneg %p450
        %p589 = pneg %p447
        %s590 = sand.u32 %s437, 1
        %s591 = scalar_lea.sflag [#allocation7], %s590
        %s592 = sand.u32 %s437, 1
        %s593 = smul.addr %s592, 16
        %s594 = scalar_lea.vmem [#allocation6], %s593
        %p595 = scmp.lt.s32.totalorder %s36, 1
        %s596 = scalar_select %p595, %s36, 1
        %s597 = smul.addr %s596, 32
        %s598 = smul.addr %s597, 8
        %s599 = scalar_lea.vmem %s0, %s598
        %p600 = scmp.lt.s32.totalorder %s36, 1
        %s601 = scalar_select %p600, %s36, 1
        %s602 = smul.addr %s601, 32
        %s603 = smul.addr %s602, 8
        %s604 = scalar_lea.vmem %s1, %s603
        %v605 = vld [vmem:[%s599] sm:$0xff]
        %v606 = vld [vmem:[%s599 + $0x8] sm:$0xff]
        %v607 = vld [vmem:[%s599 + $0x10] sm:$0xff]
        %v608 = vld [vmem:[%s599 + $0x18] sm:$0xff]
        %v609 = vld [vmem:[%s599 + $0x20] sm:$0xff]
        %v610 = vld [vmem:[%s599 + $0x28] sm:$0xff]
        %v611 = vld [vmem:[%s599 + $0x30] sm:$0xff]
        %v612 = vld [vmem:[%s599 + $0x38] sm:$0xff]
        %v613 = vld [vmem:[%s599 + $0x40] sm:$0xff]
        %v614 = vld [vmem:[%s599 + $0x48] sm:$0xff]
        %v615 = vld [vmem:[%s599 + $0x50] sm:$0xff]
        %v616 = vld [vmem:[%s599 + $0x58] sm:$0xff]
        %v617 = vld [vmem:[%s599 + $0x60] sm:$0xff]
        %v618 = vld [vmem:[%s599 + $0x68] sm:$0xff]
        %v619 = vld [vmem:[%s599 + $0x70] sm:$0xff]
        %v620 = vld [vmem:[%s599 + $0x78] sm:$0xff]
        %v621 = vld [vmem:[%s599 + $0x80] sm:$0xff]
        %v622 = vld [vmem:[%s599 + $0x88] sm:$0xff]
        %v623 = vld [vmem:[%s599 + $0x90] sm:$0xff]
        %v624 = vld [vmem:[%s599 + $0x98] sm:$0xff]
        %v625 = vld [vmem:[%s599 + $0xa0] sm:$0xff]
        %v626 = vld [vmem:[%s599 + $0xa8] sm:$0xff]
        %v627 = vld [vmem:[%s599 + $0xb0] sm:$0xff]
        %v628 = vld [vmem:[%s599 + $0xb8] sm:$0xff]
        %v629 = vld [vmem:[%s599 + $0xc0] sm:$0xff]
        %v630 = vld [vmem:[%s599 + $0xc8] sm:$0xff]
        %v631 = vld [vmem:[%s599 + $0xd0] sm:$0xff]
        %v632 = vld [vmem:[%s599 + $0xd8] sm:$0xff]
        %v633 = vld [vmem:[%s599 + $0xe0] sm:$0xff]
        %v634 = vld [vmem:[%s599 + $0xe8] sm:$0xff]
        %v635 = vld [vmem:[%s599 + $0xf0] sm:$0xff]
        %v636 = vld [vmem:[%s599 + $0xf8] sm:$0xff]
        %v637 = vld [vmem:[%s604] sm:$0xff]
        %v638 = vld [vmem:[%s604 + $0x8] sm:$0xff]
        %v639 = vld [vmem:[%s604 + $0x10] sm:$0xff]
        %v640 = vld [vmem:[%s604 + $0x18] sm:$0xff]
        %v641 = vld [vmem:[%s604 + $0x20] sm:$0xff]
        %v642 = vld [vmem:[%s604 + $0x28] sm:$0xff]
        %v643 = vld [vmem:[%s604 + $0x30] sm:$0xff]
        %v644 = vld [vmem:[%s604 + $0x38] sm:$0xff]
        %v645 = vld [vmem:[%s604 + $0x40] sm:$0xff]
        %v646 = vld [vmem:[%s604 + $0x48] sm:$0xff]
        %v647 = vld [vmem:[%s604 + $0x50] sm:$0xff]
        %v648 = vld [vmem:[%s604 + $0x58] sm:$0xff]
        %v649 = vld [vmem:[%s604 + $0x60] sm:$0xff]
        %v650 = vld [vmem:[%s604 + $0x68] sm:$0xff]
        %v651 = vld [vmem:[%s604 + $0x70] sm:$0xff]
        %v652 = vld [vmem:[%s604 + $0x78] sm:$0xff]
        %v653 = vld [vmem:[%s604 + $0x80] sm:$0xff]
        %v654 = vld [vmem:[%s604 + $0x88] sm:$0xff]
        %v655 = vld [vmem:[%s604 + $0x90] sm:$0xff]
        %v656 = vld [vmem:[%s604 + $0x98] sm:$0xff]
        %v657 = vld [vmem:[%s604 + $0xa0] sm:$0xff]
        %v658 = vld [vmem:[%s604 + $0xa8] sm:$0xff]
        %v659 = vld [vmem:[%s604 + $0xb0] sm:$0xff]
        %v660 = vld [vmem:[%s604 + $0xb8] sm:$0xff]
        %v661 = vld [vmem:[%s604 + $0xc0] sm:$0xff]
        %v662 = vld [vmem:[%s604 + $0xc8] sm:$0xff]
        %v663 = vld [vmem:[%s604 + $0xd0] sm:$0xff]
        %v664 = vld [vmem:[%s604 + $0xd8] sm:$0xff]
        %v665 = vld [vmem:[%s604 + $0xe0] sm:$0xff]
        %v666 = vld [vmem:[%s604 + $0xe8] sm:$0xff]
        %v667 = vld [vmem:[%s604 + $0xf0] sm:$0xff]
        %v668 = vld [vmem:[%s604 + $0xf8] sm:$0xff]
        %v669 = vld [vmem:[%s7] sm:$0x1]
        %v670 = vld [vmem:[%s8] sm:$0x1]
        %v671 = vmul.f32 %v605, %v605
        %v672 = vmul.f32 %v606, %v606
        %v673 = vmul.f32 %v607, %v607
        %v674 = vmul.f32 %v608, %v608
        %v675 = vmul.f32 %v609, %v609
        %v676 = vmul.f32 %v610, %v610
        %v677 = vmul.f32 %v611, %v611
        %v678 = vmul.f32 %v612, %v612
        %v679 = vmul.f32 %v613, %v613
        %v680 = vmul.f32 %v614, %v614
        %v681 = vmul.f32 %v615, %v615
        %v682 = vmul.f32 %v616, %v616
        %v683 = vmul.f32 %v617, %v617
        %v684 = vmul.f32 %v618, %v618
        %v685 = vmul.f32 %v619, %v619
        %v686 = vmul.f32 %v620, %v620
        %v687 = vmul.f32 %v621, %v621
        %v688 = vmul.f32 %v622, %v622
        %v689 = vmul.f32 %v623, %v623
        %v690 = vmul.f32 %v624, %v624
        %v691 = vmul.f32 %v625, %v625
        %v692 = vmul.f32 %v626, %v626
        %v693 = vmul.f32 %v627, %v627
        %v694 = vmul.f32 %v628, %v628
        %v695 = vmul.f32 %v629, %v629
        %v696 = vmul.f32 %v630, %v630
        %v697 = vmul.f32 %v631, %v631
        %v698 = vmul.f32 %v632, %v632
        %v699 = vmul.f32 %v633, %v633
        %v700 = vmul.f32 %v634, %v634
        %v701 = vmul.f32 %v635, %v635
        %v702 = vmul.f32 %v636, %v636
        %vm703 = vcmask 31744
        %v704 = vsel %vm703, %v605, 0.0
        %v705 = vsel %vm703, %v607, 0.0
        %v706 = vadd.f32 %v704, %v705
        %v707 = vsel %vm703, %v609, 0.0
        %v708 = vadd.f32 %v706, %v707
        %v709 = vsel %vm703, %v611, 0.0
        %v710 = vadd.f32 %v708, %v709
        %v711 = vsel %vm703, %v613, 0.0
        %v712 = vadd.f32 %v710, %v711
        %v713 = vsel %vm703, %v615, 0.0
        %v714 = vadd.f32 %v712, %v713
        %v715 = vsel %vm703, %v617, 0.0
        %v716 = vadd.f32 %v714, %v715
        %v717 = vsel %vm703, %v619, 0.0
        %v718 = vadd.f32 %v716, %v717
        %v719 = vsel %vm703, %v621, 0.0
        %v720 = vadd.f32 %v718, %v719
        %v721 = vsel %vm703, %v623, 0.0
        %v722 = vadd.f32 %v720, %v721
        %v723 = vsel %vm703, %v625, 0.0
        %v724 = vadd.f32 %v722, %v723
        %v725 = vsel %vm703, %v627, 0.0
        %v726 = vadd.f32 %v724, %v725
        %v727 = vsel %vm703, %v629, 0.0
        %v728 = vadd.f32 %v726, %v727
        %v729 = vsel %vm703, %v631, 0.0
        %v730 = vadd.f32 %v728, %v729
        %v731 = vsel %vm703, %v633, 0.0
        %v732 = vadd.f32 %v730, %v731
        %v733 = vsel %vm703, %v635, 0.0
        %v734 = vadd.f32 %v732, %v733
        %v735 = vsel %vm703, %v606, 0.0
        %v736 = vsel %vm703, %v608, 0.0
        %v737 = vadd.f32 %v735, %v736
        %v738 = vsel %vm703, %v610, 0.0
        %v739 = vadd.f32 %v737, %v738
        %v740 = vsel %vm703, %v612, 0.0
        %v741 = vadd.f32 %v739, %v740
        %v742 = vsel %vm703, %v614, 0.0
        %v743 = vadd.f32 %v741, %v742
        %v744 = vsel %vm703, %v616, 0.0
        %v745 = vadd.f32 %v743, %v744
        %v746 = vsel %vm703, %v618, 0.0
        %v747 = vadd.f32 %v745, %v746
        %v748 = vsel %vm703, %v620, 0.0
        %v749 = vadd.f32 %v747, %v748
        %v750 = vsel %vm703, %v622, 0.0
        %v751 = vadd.f32 %v749, %v750
        %v752 = vsel %vm703, %v624, 0.0
        %v753 = vadd.f32 %v751, %v752
        %v754 = vsel %vm703, %v626, 0.0
        %v755 = vadd.f32 %v753, %v754
        %v756 = vsel %vm703, %v628, 0.0
        %v757 = vadd.f32 %v755, %v756
        %v758 = vsel %vm703, %v630, 0.0
        %v759 = vadd.f32 %v757, %v758
        %v760 = vsel %vm703, %v632, 0.0
        %v761 = vadd.f32 %v759, %v760
        %v762 = vsel %vm703, %v634, 0.0
        %v763 = vadd.f32 %v761, %v762
        %v764 = vsel %vm703, %v636, 0.0
        %v765 = vadd.f32 %v763, %v764
        %v766 = vsel %vm703, %v671, 0.0
        %v767 = vsel %vm703, %v673, 0.0
        %v768 = vadd.f32 %v766, %v767
        %v769 = vsel %vm703, %v675, 0.0
        %v770 = vadd.f32 %v768, %v769
        %v771 = vsel %vm703, %v677, 0.0
        %v772 = vadd.f32 %v770, %v771
        %v773 = vsel %vm703, %v679, 0.0
        %v774 = vadd.f32 %v772, %v773
        %v775 = vsel %vm703, %v681, 0.0
        %v776 = vadd.f32 %v774, %v775
        %v777 = vsel %vm703, %v683, 0.0
        %v778 = vadd.f32 %v776, %v777
        %v779 = vsel %vm703, %v685, 0.0
        %v780 = vadd.f32 %v778, %v779
        %v781 = vsel %vm703, %v687, 0.0
        %v782 = vadd.f32 %v780, %v781
        %v783 = vsel %vm703, %v689, 0.0
        %v784 = vadd.f32 %v782, %v783
        %v785 = vsel %vm703, %v691, 0.0
        %v786 = vadd.f32 %v784, %v785
        %v787 = vsel %vm703, %v693, 0.0
        %v788 = vadd.f32 %v786, %v787
        %v789 = vsel %vm703, %v695, 0.0
        %v790 = vadd.f32 %v788, %v789
        %v791 = vsel %vm703, %v697, 0.0
        %v792 = vadd.f32 %v790, %v791
        %v793 = vsel %vm703, %v699, 0.0
        %v794 = vadd.f32 %v792, %v793
        %v795 = vsel %vm703, %v701, 0.0
        %v796 = vadd.f32 %v794, %v795
        %v797 = vsel %vm703, %v672, 0.0
        %v798 = vsel %vm703, %v674, 0.0
        %v799 = vadd.f32 %v797, %v798
        %v800 = vsel %vm703, %v676, 0.0
        %v801 = vadd.f32 %v799, %v800
        %v802 = vsel %vm703, %v678, 0.0
        %v803 = vadd.f32 %v801, %v802
        %v804 = vsel %vm703, %v680, 0.0
        %v805 = vadd.f32 %v803, %v804
        %v806 = vsel %vm703, %v682, 0.0
        %v807 = vadd.f32 %v805, %v806
        %v808 = vsel %vm703, %v684, 0.0
        %v809 = vadd.f32 %v807, %v808
        %v810 = vsel %vm703, %v686, 0.0
        %v811 = vadd.f32 %v809, %v810
        %v812 = vsel %vm703, %v688, 0.0
        %v813 = vadd.f32 %v811, %v812
        %v814 = vsel %vm703, %v690, 0.0
        %v815 = vadd.f32 %v813, %v814
        %v816 = vsel %vm703, %v692, 0.0
        %v817 = vadd.f32 %v815, %v816
        %v818 = vsel %vm703, %v694, 0.0
        %v819 = vadd.f32 %v817, %v818
        %v820 = vsel %vm703, %v696, 0.0
        %v821 = vadd.f32 %v819, %v820
        %v822 = vsel %vm703, %v698, 0.0
        %v823 = vadd.f32 %v821, %v822
        %v824 = vsel %vm703, %v700, 0.0
        %v825 = vadd.f32 %v823, %v824
        %v826 = vsel %vm703, %v702, 0.0
        %v827 = vadd.f32 %v825, %v826
        %v828 = vsel %vm703, %v734, 0.0
        %v829 = vsel %vm703, %v765, 0.0
        %v830 = vadd.f32 %v828, %v829
        %v831 = vrot.slane %v830, 4
        %v832 = vadd.f32 %v830, %v831
        %v833 = vrot.slane %v832, 2
        %v834 = vadd.f32 %v832, %v833
        %v835 = vrot.slane %v834, 1
        %v836 = vadd.f32 %v834, %v835
        %v837 = vsel %vm703, %v796, 0.0
        %v838 = vsel %vm703, %v827, 0.0
        %v839 = vadd.f32 %v837, %v838
        %v840 = vrot.slane %v839, 4
        %v841 = vadd.f32 %v839, %v840
        %v842 = vrot.slane %v841, 2
        %v843 = vadd.f32 %v841, %v842
        %v844 = vrot.slane %v843, 1
        %v845 = vadd.f32 %v843, %v844
        %v846 = vlaneseq
        %v847 = vand.u32 %v846, 127
        %vm848 = vcmask 24576
        %v849 = vsel %vm848, %v836, 0.0
        %850 = vadd.xlane.f32.xlu0 %v849
        %v851 = vpop.xlane.xlu0 %850
        %v852 = vrot.slane %v851, 4
        %v853 = vadd.f32 %v851, %v852
        %v854 = vrot.slane %v853, 2
        %v855 = vadd.f32 %v853, %v854
        %v856 = vrot.slane %v855, 1
        %v857 = vadd.f32 %v855, %v856
        %s858 = vtos %v857
        %v859 = vrcp.pop 1024.0
        %v860 = vmul.f32 1024.0, %v859
        %v861 = vsub.f32 1.0, %v860
        %v862 = vmul.f32 %v859, %v861
        %v863 = vadd.f32 %v859, %v862
        %vm864 = vweird.f32 %v859
        %v865 = vsel %vm864, %v859, %v863
        %s866 = vtos %v865
        %s867 = smul.f32 %s858, %s866
        %v868 = vsel %vm848, %v845, 0.0
        %869 = vadd.xlane.f32.xlu0 %v868
        %v870 = vpop.xlane.xlu0 %869
        %v871 = vrot.slane %v870, 4
        %v872 = vadd.f32 %v870, %v871
        %v873 = vrot.slane %v872, 2
        %v874 = vadd.f32 %v872, %v873
        %v875 = vrot.slane %v874, 1
        %v876 = vadd.f32 %v874, %v875
        %s877 = vtos %v876
        %v878 = vrcp.pop 1024.0
        %v879 = vmul.f32 1024.0, %v878
        %v880 = vsub.f32 1.0, %v879
        %v881 = vmul.f32 %v878, %v880
        %v882 = vadd.f32 %v878, %v881
        %vm883 = vweird.f32 %v878
        %v884 = vsel %vm883, %v878, %v882
        %s885 = vtos %v884
        %s886 = smul.f32 %s877, %s885
        %s887 = smul.f32 %s867, %s867
        %s888 = ssub.f32 %s886, %s887
        %s889 = smax.f32 %s888, 0.0
        %vm890 = vcmp.ge.s32.totalorder %v847, 0
        %vm891 = vcmp.lt.s32.totalorder %v847, 4
        %vm892 = vmand %vm890, %vm891
        %v893 = vstv %s867
        %v894 = vsel %vm892, %v893, 0.0
        %v895 = vstv %s889
        %v896 = vsel %vm892, %v895, 0.0
        %v897 = vsub.f32 %v605, %v894
        %v898 = vsub.f32 %v606, %v894
        %v899 = vsub.f32 %v607, %v894
        %v900 = vsub.f32 %v608, %v894
        %v901 = vsub.f32 %v609, %v894
        %v902 = vsub.f32 %v610, %v894
        %v903 = vsub.f32 %v611, %v894
        %v904 = vsub.f32 %v612, %v894
        %v905 = vsub.f32 %v613, %v894
        %v906 = vsub.f32 %v614, %v894
        %v907 = vsub.f32 %v615, %v894
        %v908 = vsub.f32 %v616, %v894
        %v909 = vsub.f32 %v617, %v894
        %v910 = vsub.f32 %v618, %v894
        %v911 = vsub.f32 %v619, %v894
        %v912 = vsub.f32 %v620, %v894
        %v913 = vsub.f32 %v621, %v894
        %v914 = vsub.f32 %v622, %v894
        %v915 = vsub.f32 %v623, %v894
        %v916 = vsub.f32 %v624, %v894
        %v917 = vsub.f32 %v625, %v894
        %v918 = vsub.f32 %v626, %v894
        %v919 = vsub.f32 %v627, %v894
        %v920 = vsub.f32 %v628, %v894
        %v921 = vsub.f32 %v629, %v894
        %v922 = vsub.f32 %v630, %v894
        %v923 = vsub.f32 %v631, %v894
        %v924 = vsub.f32 %v632, %v894
        %v925 = vsub.f32 %v633, %v894
        %v926 = vsub.f32 %v634, %v894
        %v927 = vsub.f32 %v635, %v894
        %v928 = vsub.f32 %v636, %v894
        %v929 = vadd.f32 %v896, 1e-06
        %v930 = vrsqrt.pop %v929
        %v931 = vmul.f32 %v930, %v929
        %v932 = vmul.f32 %v931, %v930
        %v933 = vmul.f32 0.5, %v932
        %v934 = vsub.f32 1.5, %v933
        %v935 = vmul.f32 %v930, %v934
        %vm936 = vweird.f32 %v929
        %vm937 = vweird.f32 %v930
        %vm938 = vmor %vm936, %vm937
        %v939 = vsel %vm938, %v930, %v935
        %v940 = vmul.f32 %v897, %v939
        %v941 = vmul.f32 %v898, %v939
        %v942 = vmul.f32 %v899, %v939
        %v943 = vmul.f32 %v900, %v939
        %v944 = vmul.f32 %v901, %v939
        %v945 = vmul.f32 %v902, %v939
        %v946 = vmul.f32 %v903, %v939
        %v947 = vmul.f32 %v904, %v939
        %v948 = vmul.f32 %v905, %v939
        %v949 = vmul.f32 %v906, %v939
        %v950 = vmul.f32 %v907, %v939
        %v951 = vmul.f32 %v908, %v939
        %v952 = vmul.f32 %v909, %v939
        %v953 = vmul.f32 %v910, %v939
        %v954 = vmul.f32 %v911, %v939
        %v955 = vmul.f32 %v912, %v939
        %v956 = vmul.f32 %v913, %v939
        %v957 = vmul.f32 %v914, %v939
        %v958 = vmul.f32 %v915, %v939
        %v959 = vmul.f32 %v916, %v939
        %v960 = vmul.f32 %v917, %v939
        %v961 = vmul.f32 %v918, %v939
        %v962 = vmul.f32 %v919, %v939
        %v963 = vmul.f32 %v920, %v939
        %v964 = vmul.f32 %v921, %v939
        %v965 = vmul.f32 %v922, %v939
        %v966 = vmul.f32 %v923, %v939
        %v967 = vmul.f32 %v924, %v939
        %v968 = vmul.f32 %v925, %v939
        %v969 = vmul.f32 %v926, %v939
        %v970 = vmul.f32 %v927, %v939
        %v971 = vmul.f32 %v928, %v939
        %v973 = vperm.slane %v669, 0
        %v975 = vmul.f32 %v940, %v973
        %v976 = vmul.f32 %v941, %v973
        %v977 = vmul.f32 %v942, %v973
        %v978 = vmul.f32 %v943, %v973
        %v979 = vmul.f32 %v944, %v973
        %v980 = vmul.f32 %v945, %v973
        %v981 = vmul.f32 %v946, %v973
        %v982 = vmul.f32 %v947, %v973
        %v983 = vmul.f32 %v948, %v973
        %v984 = vmul.f32 %v949, %v973
        %v985 = vmul.f32 %v950, %v973
        %v986 = vmul.f32 %v951, %v973
        %v987 = vmul.f32 %v952, %v973
        %v988 = vmul.f32 %v953, %v973
        %v989 = vmul.f32 %v954, %v973
        %v990 = vmul.f32 %v955, %v973
        %v991 = vmul.f32 %v956, %v973
        %v992 = vmul.f32 %v957, %v973
        %v993 = vmul.f32 %v958, %v973
        %v994 = vmul.f32 %v959, %v973
        %v995 = vmul.f32 %v960, %v973
        %v996 = vmul.f32 %v961, %v973
        %v997 = vmul.f32 %v962, %v973
        %v998 = vmul.f32 %v963, %v973
        %v999 = vmul.f32 %v964, %v973
        %v1000 = vmul.f32 %v965, %v973
        %v1001 = vmul.f32 %v966, %v973
        %v1002 = vmul.f32 %v967, %v973
        %v1003 = vmul.f32 %v968, %v973
        %v1004 = vmul.f32 %v969, %v973
        %v1005 = vmul.f32 %v970, %v973
        %v1006 = vmul.f32 %v971, %v973
        %v1008 = vperm.slane %v670, 0
        %v1010 = vadd.f32 %v975, %v1008
        %v1011 = vadd.f32 %v976, %v1008
        %v1012 = vadd.f32 %v977, %v1008
        %v1013 = vadd.f32 %v978, %v1008
        %v1014 = vadd.f32 %v979, %v1008
        %v1015 = vadd.f32 %v980, %v1008
        %v1016 = vadd.f32 %v981, %v1008
        %v1017 = vadd.f32 %v982, %v1008
        %v1018 = vadd.f32 %v983, %v1008
        %v1019 = vadd.f32 %v984, %v1008
        %v1020 = vadd.f32 %v985, %v1008
        %v1021 = vadd.f32 %v986, %v1008
        %v1022 = vadd.f32 %v987, %v1008
        %v1023 = vadd.f32 %v988, %v1008
        %v1024 = vadd.f32 %v989, %v1008
        %v1025 = vadd.f32 %v990, %v1008
        %v1026 = vadd.f32 %v991, %v1008
        %v1027 = vadd.f32 %v992, %v1008
        %v1028 = vadd.f32 %v993, %v1008
        %v1029 = vadd.f32 %v994, %v1008
        %v1030 = vadd.f32 %v995, %v1008
        %v1031 = vadd.f32 %v996, %v1008
        %v1032 = vadd.f32 %v997, %v1008
        %v1033 = vadd.f32 %v998, %v1008
        %v1034 = vadd.f32 %v999, %v1008
        %v1035 = vadd.f32 %v1000, %v1008
        %v1036 = vadd.f32 %v1001, %v1008
        %v1037 = vadd.f32 %v1002, %v1008
        %v1038 = vadd.f32 %v1003, %v1008
        %v1039 = vadd.f32 %v1004, %v1008
        %v1040 = vadd.f32 %v1005, %v1008
        %v1041 = vadd.f32 %v1006, %v1008
        %v1042 = vxor.u32 %v1010, 2147483648
        %v1043 = vxor.u32 %v1011, 2147483648
        %v1044 = vxor.u32 %v1012, 2147483648
        %v1045 = vxor.u32 %v1013, 2147483648
        %v1046 = vxor.u32 %v1014, 2147483648
        %v1047 = vxor.u32 %v1015, 2147483648
        %v1048 = vxor.u32 %v1016, 2147483648
        %v1049 = vxor.u32 %v1017, 2147483648
        %v1050 = vxor.u32 %v1018, 2147483648
        %v1051 = vxor.u32 %v1019, 2147483648
        %v1052 = vxor.u32 %v1020, 2147483648
        %v1053 = vxor.u32 %v1021, 2147483648
        %v1054 = vxor.u32 %v1022, 2147483648
        %v1055 = vxor.u32 %v1023, 2147483648
        %v1056 = vxor.u32 %v1024, 2147483648
        %v1057 = vxor.u32 %v1025, 2147483648
        %v1058 = vxor.u32 %v1026, 2147483648
        %v1059 = vxor.u32 %v1027, 2147483648
        %v1060 = vxor.u32 %v1028, 2147483648
        %v1061 = vxor.u32 %v1029, 2147483648
        %v1062 = vxor.u32 %v1030, 2147483648
        %v1063 = vxor.u32 %v1031, 2147483648
        %v1064 = vxor.u32 %v1032, 2147483648
        %v1065 = vxor.u32 %v1033, 2147483648
        %v1066 = vxor.u32 %v1034, 2147483648
        %v1067 = vxor.u32 %v1035, 2147483648
        %v1068 = vxor.u32 %v1036, 2147483648
        %v1069 = vxor.u32 %v1037, 2147483648
        %v1070 = vxor.u32 %v1038, 2147483648
        %v1071 = vxor.u32 %v1039, 2147483648
        %v1072 = vxor.u32 %v1040, 2147483648
        %v1073 = vxor.u32 %v1041, 2147483648
        %v1074 = vmul.f32 %v1042, 1.442695
        %v1075 = vpow.pop %v1074
        %v1076 = vmul.f32 %v1043, 1.442695
        %v1077 = vpow.pop %v1076
        %v1078 = vmul.f32 %v1044, 1.442695
        %v1079 = vpow.pop %v1078
        %v1080 = vmul.f32 %v1045, 1.442695
        %v1081 = vpow.pop %v1080
        %v1082 = vmul.f32 %v1046, 1.442695
        %v1083 = vpow.pop %v1082
        %v1084 = vmul.f32 %v1047, 1.442695
        %v1085 = vpow.pop %v1084
        %v1086 = vmul.f32 %v1048, 1.442695
        %v1087 = vpow.pop %v1086
        %v1088 = vmul.f32 %v1049, 1.442695
        %v1089 = vpow.pop %v1088
        %v1090 = vmul.f32 %v1050, 1.442695
        %v1091 = vpow.pop %v1090
        %v1092 = vmul.f32 %v1051, 1.442695
        %v1093 = vpow.pop %v1092
        %v1094 = vmul.f32 %v1052, 1.442695
        %v1095 = vpow.pop %v1094
        %v1096 = vmul.f32 %v1053, 1.442695
        %v1097 = vpow.pop %v1096
        %v1098 = vmul.f32 %v1054, 1.442695
        %v1099 = vpow.pop %v1098
        %v1100 = vmul.f32 %v1055, 1.442695
        %v1101 = vpow.pop %v1100
        %v1102 = vmul.f32 %v1056, 1.442695
        %v1103 = vpow.pop %v1102
        %v1104 = vmul.f32 %v1057, 1.442695
        %v1105 = vpow.pop %v1104
        %v1106 = vmul.f32 %v1058, 1.442695
        %v1107 = vpow.pop %v1106
        %v1108 = vmul.f32 %v1059, 1.442695
        %v1109 = vpow.pop %v1108
        %v1110 = vmul.f32 %v1060, 1.442695
        %v1111 = vpow.pop %v1110
        %v1112 = vmul.f32 %v1061, 1.442695
        %v1113 = vpow.pop %v1112
        %v1114 = vmul.f32 %v1062, 1.442695
        %v1115 = vpow.pop %v1114
        %v1116 = vmul.f32 %v1063, 1.442695
        %v1117 = vpow.pop %v1116
        %v1118 = vmul.f32 %v1064, 1.442695
        %v1119 = vpow.pop %v1118
        %v1120 = vmul.f32 %v1065, 1.442695
        %v1121 = vpow.pop %v1120
        %v1122 = vmul.f32 %v1066, 1.442695
        %v1123 = vpow.pop %v1122
        %v1124 = vmul.f32 %v1067, 1.442695
        %v1125 = vpow.pop %v1124
        %v1126 = vmul.f32 %v1068, 1.442695
        %v1127 = vpow.pop %v1126
        %v1128 = vmul.f32 %v1069, 1.442695
        %v1129 = vpow.pop %v1128
        %v1130 = vmul.f32 %v1070, 1.442695
        %v1131 = vpow.pop %v1130
        %v1132 = vmul.f32 %v1071, 1.442695
        %v1133 = vpow.pop %v1132
        %v1134 = vmul.f32 %v1072, 1.442695
        %v1135 = vpow.pop %v1134
        %v1136 = vmul.f32 %v1073, 1.442695
        %v1137 = vpow.pop %v1136
        %v1138 = vadd.f32 %v1075, 1.0
        %v1139 = vadd.f32 %v1077, 1.0
        %v1140 = vadd.f32 %v1079, 1.0
        %v1141 = vadd.f32 %v1081, 1.0
        %v1142 = vadd.f32 %v1083, 1.0
        %v1143 = vadd.f32 %v1085, 1.0
        %v1144 = vadd.f32 %v1087, 1.0
        %v1145 = vadd.f32 %v1089, 1.0
        %v1146 = vadd.f32 %v1091, 1.0
        %v1147 = vadd.f32 %v1093, 1.0
        %v1148 = vadd.f32 %v1095, 1.0
        %v1149 = vadd.f32 %v1097, 1.0
        %v1150 = vadd.f32 %v1099, 1.0
        %v1151 = vadd.f32 %v1101, 1.0
        %v1152 = vadd.f32 %v1103, 1.0
        %v1153 = vadd.f32 %v1105, 1.0
        %v1154 = vadd.f32 %v1107, 1.0
        %v1155 = vadd.f32 %v1109, 1.0
        %v1156 = vadd.f32 %v1111, 1.0
        %v1157 = vadd.f32 %v1113, 1.0
        %v1158 = vadd.f32 %v1115, 1.0
        %v1159 = vadd.f32 %v1117, 1.0
        %v1160 = vadd.f32 %v1119, 1.0
        %v1161 = vadd.f32 %v1121, 1.0
        %v1162 = vadd.f32 %v1123, 1.0
        %v1163 = vadd.f32 %v1125, 1.0
        %v1164 = vadd.f32 %v1127, 1.0
        %v1165 = vadd.f32 %v1129, 1.0
        %v1166 = vadd.f32 %v1131, 1.0
        %v1167 = vadd.f32 %v1133, 1.0
        %v1168 = vadd.f32 %v1135, 1.0
        %v1169 = vadd.f32 %v1137, 1.0
        %v1170 = vrcp.pop %v1138
        %v1171 = vmul.f32 %v1138, %v1170
        %v1172 = vsub.f32 1.0, %v1171
        %v1173 = vmul.f32 %v1170, %v1172
        %v1174 = vadd.f32 %v1170, %v1173
        %vm1175 = vweird.f32 %v1138
        %vm1176 = vweird.f32 %v1170
        %vm1177 = vmor %vm1175, %vm1176
        %v1178 = vsel %vm1177, %v1170, %v1174
        %v1179 = vand.u32 2147483647, %v1138
        %vm1180 = vcmp.eq.f32.partialorder %v1179, 8.507059e+37
        %v1181 = vand.u32 %v1138, 2147483648
        %v1182 = vor.u32 1.1754944e-38, %v1181
        %v1183 = vsel %vm1180, %v1182, %v1178
        %v1184 = vmul.f32 1.0, %v1183
        %v1185 = vrcp.pop %v1139
        %v1186 = vmul.f32 %v1139, %v1185
        %v1187 = vsub.f32 1.0, %v1186
        %v1188 = vmul.f32 %v1185, %v1187
        %v1189 = vadd.f32 %v1185, %v1188
        %vm1190 = vweird.f32 %v1139
        %vm1191 = vweird.f32 %v1185
        %vm1192 = vmor %vm1190, %vm1191
        %v1193 = vsel %vm1192, %v1185, %v1189
        %v1194 = vand.u32 2147483647, %v1139
        %vm1195 = vcmp.eq.f32.partialorder %v1194, 8.507059e+37
        %v1196 = vand.u32 %v1139, 2147483648
        %v1197 = vor.u32 1.1754944e-38, %v1196
        %v1198 = vsel %vm1195, %v1197, %v1193
        %v1199 = vmul.f32 1.0, %v1198
        %v1200 = vrcp.pop %v1140
        %v1201 = vmul.f32 %v1140, %v1200
        %v1202 = vsub.f32 1.0, %v1201
        %v1203 = vmul.f32 %v1200, %v1202
        %v1204 = vadd.f32 %v1200, %v1203
        %vm1205 = vweird.f32 %v1140
        %vm1206 = vweird.f32 %v1200
        %vm1207 = vmor %vm1205, %vm1206
        %v1208 = vsel %vm1207, %v1200, %v1204
        %v1209 = vand.u32 2147483647, %v1140
        %vm1210 = vcmp.eq.f32.partialorder %v1209, 8.507059e+37
        %v1211 = vand.u32 %v1140, 2147483648
        %v1212 = vor.u32 1.1754944e-38, %v1211
        %v1213 = vsel %vm1210, %v1212, %v1208
        %v1214 = vmul.f32 1.0, %v1213
        %v1215 = vrcp.pop %v1141
        %v1216 = vmul.f32 %v1141, %v1215
        %v1217 = vsub.f32 1.0, %v1216
        %v1218 = vmul.f32 %v1215, %v1217
        %v1219 = vadd.f32 %v1215, %v1218
        %vm1220 = vweird.f32 %v1141
        %vm1221 = vweird.f32 %v1215
        %vm1222 = vmor %vm1220, %vm1221
        %v1223 = vsel %vm1222, %v1215, %v1219
        %v1224 = vand.u32 2147483647, %v1141
        %vm1225 = vcmp.eq.f32.partialorder %v1224, 8.507059e+37
        %v1226 = vand.u32 %v1141, 2147483648
        %v1227 = vor.u32 1.1754944e-38, %v1226
        %v1228 = vsel %vm1225, %v1227, %v1223
        %v1229 = vmul.f32 1.0, %v1228
        %v1230 = vrcp.pop %v1142
        %v1231 = vmul.f32 %v1142, %v1230
        %v1232 = vsub.f32 1.0, %v1231
        %v1233 = vmul.f32 %v1230, %v1232
        %v1234 = vadd.f32 %v1230, %v1233
        %vm1235 = vweird.f32 %v1142
        %vm1236 = vweird.f32 %v1230
        %vm1237 = vmor %vm1235, %vm1236
        %v1238 = vsel %vm1237, %v1230, %v1234
        %v1239 = vand.u32 2147483647, %v1142
        %vm1240 = vcmp.eq.f32.partialorder %v1239, 8.507059e+37
        %v1241 = vand.u32 %v1142, 2147483648
        %v1242 = vor.u32 1.1754944e-38, %v1241
        %v1243 = vsel %vm1240, %v1242, %v1238
        %v1244 = vmul.f32 1.0, %v1243
        %v1245 = vrcp.pop %v1143
        %v1246 = vmul.f32 %v1143, %v1245
        %v1247 = vsub.f32 1.0, %v1246
        %v1248 = vmul.f32 %v1245, %v1247
        %v1249 = vadd.f32 %v1245, %v1248
        %vm1250 = vweird.f32 %v1143
        %vm1251 = vweird.f32 %v1245
        %vm1252 = vmor %vm1250, %vm1251
        %v1253 = vsel %vm1252, %v1245, %v1249
        %v1254 = vand.u32 2147483647, %v1143
        %vm1255 = vcmp.eq.f32.partialorder %v1254, 8.507059e+37
        %v1256 = vand.u32 %v1143, 2147483648
        %v1257 = vor.u32 1.1754944e-38, %v1256
        %v1258 = vsel %vm1255, %v1257, %v1253
        %v1259 = vmul.f32 1.0, %v1258
        %v1260 = vrcp.pop %v1144
        %v1261 = vmul.f32 %v1144, %v1260
        %v1262 = vsub.f32 1.0, %v1261
        %v1263 = vmul.f32 %v1260, %v1262
        %v1264 = vadd.f32 %v1260, %v1263
        %vm1265 = vweird.f32 %v1144
        %vm1266 = vweird.f32 %v1260
        %vm1267 = vmor %vm1265, %vm1266
        %v1268 = vsel %vm1267, %v1260, %v1264
        %v1269 = vand.u32 2147483647, %v1144
        %vm1270 = vcmp.eq.f32.partialorder %v1269, 8.507059e+37
        %v1271 = vand.u32 %v1144, 2147483648
        %v1272 = vor.u32 1.1754944e-38, %v1271
        %v1273 = vsel %vm1270, %v1272, %v1268
        %v1274 = vmul.f32 1.0, %v1273
        %v1275 = vrcp.pop %v1145
        %v1276 = vmul.f32 %v1145, %v1275
        %v1277 = vsub.f32 1.0, %v1276
        %v1278 = vmul.f32 %v1275, %v1277
        %v1279 = vadd.f32 %v1275, %v1278
        %vm1280 = vweird.f32 %v1145
        %vm1281 = vweird.f32 %v1275
        %vm1282 = vmor %vm1280, %vm1281
        %v1283 = vsel %vm1282, %v1275, %v1279
        %v1284 = vand.u32 2147483647, %v1145
        %vm1285 = vcmp.eq.f32.partialorder %v1284, 8.507059e+37
        %v1286 = vand.u32 %v1145, 2147483648
        %v1287 = vor.u32 1.1754944e-38, %v1286
        %v1288 = vsel %vm1285, %v1287, %v1283
        %v1289 = vmul.f32 1.0, %v1288
        %v1290 = vrcp.pop %v1146
        %v1291 = vmul.f32 %v1146, %v1290
        %v1292 = vsub.f32 1.0, %v1291
        %v1293 = vmul.f32 %v1290, %v1292
        %v1294 = vadd.f32 %v1290, %v1293
        %vm1295 = vweird.f32 %v1146
        %vm1296 = vweird.f32 %v1290
        %vm1297 = vmor %vm1295, %vm1296
        %v1298 = vsel %vm1297, %v1290, %v1294
        %v1299 = vand.u32 2147483647, %v1146
        %vm1300 = vcmp.eq.f32.partialorder %v1299, 8.507059e+37
        %v1301 = vand.u32 %v1146, 2147483648
        %v1302 = vor.u32 1.1754944e-38, %v1301
        %v1303 = vsel %vm1300, %v1302, %v1298
        %v1304 = vmul.f32 1.0, %v1303
        %v1305 = vrcp.pop %v1147
        %v1306 = vmul.f32 %v1147, %v1305
        %v1307 = vsub.f32 1.0, %v1306
        %v1308 = vmul.f32 %v1305, %v1307
        %v1309 = vadd.f32 %v1305, %v1308
        %vm1310 = vweird.f32 %v1147
        %vm1311 = vweird.f32 %v1305
        %vm1312 = vmor %vm1310, %vm1311
        %v1313 = vsel %vm1312, %v1305, %v1309
        %v1314 = vand.u32 2147483647, %v1147
        %vm1315 = vcmp.eq.f32.partialorder %v1314, 8.507059e+37
        %v1316 = vand.u32 %v1147, 2147483648
        %v1317 = vor.u32 1.1754944e-38, %v1316
        %v1318 = vsel %vm1315, %v1317, %v1313
        %v1319 = vmul.f32 1.0, %v1318
        %v1320 = vrcp.pop %v1148
        %v1321 = vmul.f32 %v1148, %v1320
        %v1322 = vsub.f32 1.0, %v1321
        %v1323 = vmul.f32 %v1320, %v1322
        %v1324 = vadd.f32 %v1320, %v1323
        %vm1325 = vweird.f32 %v1148
        %vm1326 = vweird.f32 %v1320
        %vm1327 = vmor %vm1325, %vm1326
        %v1328 = vsel %vm1327, %v1320, %v1324
        %v1329 = vand.u32 2147483647, %v1148
        %vm1330 = vcmp.eq.f32.partialorder %v1329, 8.507059e+37
        %v1331 = vand.u32 %v1148, 2147483648
        %v1332 = vor.u32 1.1754944e-38, %v1331
        %v1333 = vsel %vm1330, %v1332, %v1328
        %v1334 = vmul.f32 1.0, %v1333
        %v1335 = vrcp.pop %v1149
        %v1336 = vmul.f32 %v1149, %v1335
        %v1337 = vsub.f32 1.0, %v1336
        %v1338 = vmul.f32 %v1335, %v1337
        %v1339 = vadd.f32 %v1335, %v1338
        %vm1340 = vweird.f32 %v1149
        %vm1341 = vweird.f32 %v1335
        %vm1342 = vmor %vm1340, %vm1341
        %v1343 = vsel %vm1342, %v1335, %v1339
        %v1344 = vand.u32 2147483647, %v1149
        %vm1345 = vcmp.eq.f32.partialorder %v1344, 8.507059e+37
        %v1346 = vand.u32 %v1149, 2147483648
        %v1347 = vor.u32 1.1754944e-38, %v1346
        %v1348 = vsel %vm1345, %v1347, %v1343
        %v1349 = vmul.f32 1.0, %v1348
        %v1350 = vrcp.pop %v1150
        %v1351 = vmul.f32 %v1150, %v1350
        %v1352 = vsub.f32 1.0, %v1351
        %v1353 = vmul.f32 %v1350, %v1352
        %v1354 = vadd.f32 %v1350, %v1353
        %vm1355 = vweird.f32 %v1150
        %vm1356 = vweird.f32 %v1350
        %vm1357 = vmor %vm1355, %vm1356
        %v1358 = vsel %vm1357, %v1350, %v1354
        %v1359 = vand.u32 2147483647, %v1150
        %vm1360 = vcmp.eq.f32.partialorder %v1359, 8.507059e+37
        %v1361 = vand.u32 %v1150, 2147483648
        %v1362 = vor.u32 1.1754944e-38, %v1361
        %v1363 = vsel %vm1360, %v1362, %v1358
        %v1364 = vmul.f32 1.0, %v1363
        %v1365 = vrcp.pop %v1151
        %v1366 = vmul.f32 %v1151, %v1365
        %v1367 = vsub.f32 1.0, %v1366
        %v1368 = vmul.f32 %v1365, %v1367
        %v1369 = vadd.f32 %v1365, %v1368
        %vm1370 = vweird.f32 %v1151
        %vm1371 = vweird.f32 %v1365
        %vm1372 = vmor %vm1370, %vm1371
        %v1373 = vsel %vm1372, %v1365, %v1369
        %v1374 = vand.u32 2147483647, %v1151
        %vm1375 = vcmp.eq.f32.partialorder %v1374, 8.507059e+37
        %v1376 = vand.u32 %v1151, 2147483648
        %v1377 = vor.u32 1.1754944e-38, %v1376
        %v1378 = vsel %vm1375, %v1377, %v1373
        %v1379 = vmul.f32 1.0, %v1378
        %v1380 = vrcp.pop %v1152
        %v1381 = vmul.f32 %v1152, %v1380
        %v1382 = vsub.f32 1.0, %v1381
        %v1383 = vmul.f32 %v1380, %v1382
        %v1384 = vadd.f32 %v1380, %v1383
        %vm1385 = vweird.f32 %v1152
        %vm1386 = vweird.f32 %v1380
        %vm1387 = vmor %vm1385, %vm1386
        %v1388 = vsel %vm1387, %v1380, %v1384
        %v1389 = vand.u32 2147483647, %v1152
        %vm1390 = vcmp.eq.f32.partialorder %v1389, 8.507059e+37
        %v1391 = vand.u32 %v1152, 2147483648
        %v1392 = vor.u32 1.1754944e-38, %v1391
        %v1393 = vsel %vm1390, %v1392, %v1388
        %v1394 = vmul.f32 1.0, %v1393
        %v1395 = vrcp.pop %v1153
        %v1396 = vmul.f32 %v1153, %v1395
        %v1397 = vsub.f32 1.0, %v1396
        %v1398 = vmul.f32 %v1395, %v1397
        %v1399 = vadd.f32 %v1395, %v1398
        %vm1400 = vweird.f32 %v1153
        %vm1401 = vweird.f32 %v1395
        %vm1402 = vmor %vm1400, %vm1401
        %v1403 = vsel %vm1402, %v1395, %v1399
        %v1404 = vand.u32 2147483647, %v1153
        %vm1405 = vcmp.eq.f32.partialorder %v1404, 8.507059e+37
        %v1406 = vand.u32 %v1153, 2147483648
        %v1407 = vor.u32 1.1754944e-38, %v1406
        %v1408 = vsel %vm1405, %v1407, %v1403
        %v1409 = vmul.f32 1.0, %v1408
        %v1410 = vrcp.pop %v1154
        %v1411 = vmul.f32 %v1154, %v1410
        %v1412 = vsub.f32 1.0, %v1411
        %v1413 = vmul.f32 %v1410, %v1412
        %v1414 = vadd.f32 %v1410, %v1413
        %vm1415 = vweird.f32 %v1154
        %vm1416 = vweird.f32 %v1410
        %vm1417 = vmor %vm1415, %vm1416
        %v1418 = vsel %vm1417, %v1410, %v1414
        %v1419 = vand.u32 2147483647, %v1154
        %vm1420 = vcmp.eq.f32.partialorder %v1419, 8.507059e+37
        %v1421 = vand.u32 %v1154, 2147483648
        %v1422 = vor.u32 1.1754944e-38, %v1421
        %v1423 = vsel %vm1420, %v1422, %v1418
        %v1424 = vmul.f32 1.0, %v1423
        %v1425 = vrcp.pop %v1155
        %v1426 = vmul.f32 %v1155, %v1425
        %v1427 = vsub.f32 1.0, %v1426
        %v1428 = vmul.f32 %v1425, %v1427
        %v1429 = vadd.f32 %v1425, %v1428
        %vm1430 = vweird.f32 %v1155
        %vm1431 = vweird.f32 %v1425
        %vm1432 = vmor %vm1430, %vm1431
        %v1433 = vsel %vm1432, %v1425, %v1429
        %v1434 = vand.u32 2147483647, %v1155
        %vm1435 = vcmp.eq.f32.partialorder %v1434, 8.507059e+37
        %v1436 = vand.u32 %v1155, 2147483648
        %v1437 = vor.u32 1.1754944e-38, %v1436
        %v1438 = vsel %vm1435, %v1437, %v1433
        %v1439 = vmul.f32 1.0, %v1438
        %v1440 = vrcp.pop %v1156
        %v1441 = vmul.f32 %v1156, %v1440
        %v1442 = vsub.f32 1.0, %v1441
        %v1443 = vmul.f32 %v1440, %v1442
        %v1444 = vadd.f32 %v1440, %v1443
        %vm1445 = vweird.f32 %v1156
        %vm1446 = vweird.f32 %v1440
        %vm1447 = vmor %vm1445, %vm1446
        %v1448 = vsel %vm1447, %v1440, %v1444
        %v1449 = vand.u32 2147483647, %v1156
        %vm1450 = vcmp.eq.f32.partialorder %v1449, 8.507059e+37
        %v1451 = vand.u32 %v1156, 2147483648
        %v1452 = vor.u32 1.1754944e-38, %v1451
        %v1453 = vsel %vm1450, %v1452, %v1448
        %v1454 = vmul.f32 1.0, %v1453
        %v1455 = vrcp.pop %v1157
        %v1456 = vmul.f32 %v1157, %v1455
        %v1457 = vsub.f32 1.0, %v1456
        %v1458 = vmul.f32 %v1455, %v1457
        %v1459 = vadd.f32 %v1455, %v1458
        %vm1460 = vweird.f32 %v1157
        %vm1461 = vweird.f32 %v1455
        %vm1462 = vmor %vm1460, %vm1461
        %v1463 = vsel %vm1462, %v1455, %v1459
        %v1464 = vand.u32 2147483647, %v1157
        %vm1465 = vcmp.eq.f32.partialorder %v1464, 8.507059e+37
        %v1466 = vand.u32 %v1157, 2147483648
        %v1467 = vor.u32 1.1754944e-38, %v1466
        %v1468 = vsel %vm1465, %v1467, %v1463
        %v1469 = vmul.f32 1.0, %v1468
        %v1470 = vrcp.pop %v1158
        %v1471 = vmul.f32 %v1158, %v1470
        %v1472 = vsub.f32 1.0, %v1471
        %v1473 = vmul.f32 %v1470, %v1472
        %v1474 = vadd.f32 %v1470, %v1473
        %vm1475 = vweird.f32 %v1158
        %vm1476 = vweird.f32 %v1470
        %vm1477 = vmor %vm1475, %vm1476
        %v1478 = vsel %vm1477, %v1470, %v1474
        %v1479 = vand.u32 2147483647, %v1158
        %vm1480 = vcmp.eq.f32.partialorder %v1479, 8.507059e+37
        %v1481 = vand.u32 %v1158, 2147483648
        %v1482 = vor.u32 1.1754944e-38, %v1481
        %v1483 = vsel %vm1480, %v1482, %v1478
        %v1484 = vmul.f32 1.0, %v1483
        %v1485 = vrcp.pop %v1159
        %v1486 = vmul.f32 %v1159, %v1485
        %v1487 = vsub.f32 1.0, %v1486
        %v1488 = vmul.f32 %v1485, %v1487
        %v1489 = vadd.f32 %v1485, %v1488
        %vm1490 = vweird.f32 %v1159
        %vm1491 = vweird.f32 %v1485
        %vm1492 = vmor %vm1490, %vm1491
        %v1493 = vsel %vm1492, %v1485, %v1489
        %v1494 = vand.u32 2147483647, %v1159
        %vm1495 = vcmp.eq.f32.partialorder %v1494, 8.507059e+37
        %v1496 = vand.u32 %v1159, 2147483648
        %v1497 = vor.u32 1.1754944e-38, %v1496
        %v1498 = vsel %vm1495, %v1497, %v1493
        %v1499 = vmul.f32 1.0, %v1498
        %v1500 = vrcp.pop %v1160
        %v1501 = vmul.f32 %v1160, %v1500
        %v1502 = vsub.f32 1.0, %v1501
        %v1503 = vmul.f32 %v1500, %v1502
        %v1504 = vadd.f32 %v1500, %v1503
        %vm1505 = vweird.f32 %v1160
        %vm1506 = vweird.f32 %v1500
        %vm1507 = vmor %vm1505, %vm1506
        %v1508 = vsel %vm1507, %v1500, %v1504
        %v1509 = vand.u32 2147483647, %v1160
        %vm1510 = vcmp.eq.f32.partialorder %v1509, 8.507059e+37
        %v1511 = vand.u32 %v1160, 2147483648
        %v1512 = vor.u32 1.1754944e-38, %v1511
        %v1513 = vsel %vm1510, %v1512, %v1508
        %v1514 = vmul.f32 1.0, %v1513
        %v1515 = vrcp.pop %v1161
        %v1516 = vmul.f32 %v1161, %v1515
        %v1517 = vsub.f32 1.0, %v1516
        %v1518 = vmul.f32 %v1515, %v1517
        %v1519 = vadd.f32 %v1515, %v1518
        %vm1520 = vweird.f32 %v1161
        %vm1521 = vweird.f32 %v1515
        %vm1522 = vmor %vm1520, %vm1521
        %v1523 = vsel %vm1522, %v1515, %v1519
        %v1524 = vand.u32 2147483647, %v1161
        %vm1525 = vcmp.eq.f32.partialorder %v1524, 8.507059e+37
        %v1526 = vand.u32 %v1161, 2147483648
        %v1527 = vor.u32 1.1754944e-38, %v1526
        %v1528 = vsel %vm1525, %v1527, %v1523
        %v1529 = vmul.f32 1.0, %v1528
        %v1530 = vrcp.pop %v1162
        %v1531 = vmul.f32 %v1162, %v1530
        %v1532 = vsub.f32 1.0, %v1531
        %v1533 = vmul.f32 %v1530, %v1532
        %v1534 = vadd.f32 %v1530, %v1533
        %vm1535 = vweird.f32 %v1162
        %vm1536 = vweird.f32 %v1530
        %vm1537 = vmor %vm1535, %vm1536
        %v1538 = vsel %vm1537, %v1530, %v1534
        %v1539 = vand.u32 2147483647, %v1162
        %vm1540 = vcmp.eq.f32.partialorder %v1539, 8.507059e+37
        %v1541 = vand.u32 %v1162, 2147483648
        %v1542 = vor.u32 1.1754944e-38, %v1541
        %v1543 = vsel %vm1540, %v1542, %v1538
        %v1544 = vmul.f32 1.0, %v1543
        %v1545 = vrcp.pop %v1163
        %v1546 = vmul.f32 %v1163, %v1545
        %v1547 = vsub.f32 1.0, %v1546
        %v1548 = vmul.f32 %v1545, %v1547
        %v1549 = vadd.f32 %v1545, %v1548
        %vm1550 = vweird.f32 %v1163
        %vm1551 = vweird.f32 %v1545
        %vm1552 = vmor %vm1550, %vm1551
        %v1553 = vsel %vm1552, %v1545, %v1549
        %v1554 = vand.u32 2147483647, %v1163
        %vm1555 = vcmp.eq.f32.partialorder %v1554, 8.507059e+37
        %v1556 = vand.u32 %v1163, 2147483648
        %v1557 = vor.u32 1.1754944e-38, %v1556
        %v1558 = vsel %vm1555, %v1557, %v1553
        %v1559 = vmul.f32 1.0, %v1558
        %v1560 = vrcp.pop %v1164
        %v1561 = vmul.f32 %v1164, %v1560
        %v1562 = vsub.f32 1.0, %v1561
        %v1563 = vmul.f32 %v1560, %v1562
        %v1564 = vadd.f32 %v1560, %v1563
        %vm1565 = vweird.f32 %v1164
        %vm1566 = vweird.f32 %v1560
        %vm1567 = vmor %vm1565, %vm1566
        %v1568 = vsel %vm1567, %v1560, %v1564
        %v1569 = vand.u32 2147483647, %v1164
        %vm1570 = vcmp.eq.f32.partialorder %v1569, 8.507059e+37
        %v1571 = vand.u32 %v1164, 2147483648
        %v1572 = vor.u32 1.1754944e-38, %v1571
        %v1573 = vsel %vm1570, %v1572, %v1568
        %v1574 = vmul.f32 1.0, %v1573
        %v1575 = vrcp.pop %v1165
        %v1576 = vmul.f32 %v1165, %v1575
        %v1577 = vsub.f32 1.0, %v1576
        %v1578 = vmul.f32 %v1575, %v1577
        %v1579 = vadd.f32 %v1575, %v1578
        %vm1580 = vweird.f32 %v1165
        %vm1581 = vweird.f32 %v1575
        %vm1582 = vmor %vm1580, %vm1581
        %v1583 = vsel %vm1582, %v1575, %v1579
        %v1584 = vand.u32 2147483647, %v1165
        %vm1585 = vcmp.eq.f32.partialorder %v1584, 8.507059e+37
        %v1586 = vand.u32 %v1165, 2147483648
        %v1587 = vor.u32 1.1754944e-38, %v1586
        %v1588 = vsel %vm1585, %v1587, %v1583
        %v1589 = vmul.f32 1.0, %v1588
        %v1590 = vrcp.pop %v1166
        %v1591 = vmul.f32 %v1166, %v1590
        %v1592 = vsub.f32 1.0, %v1591
        %v1593 = vmul.f32 %v1590, %v1592
        %v1594 = vadd.f32 %v1590, %v1593
        %vm1595 = vweird.f32 %v1166
        %vm1596 = vweird.f32 %v1590
        %vm1597 = vmor %vm1595, %vm1596
        %v1598 = vsel %vm1597, %v1590, %v1594
        %v1599 = vand.u32 2147483647, %v1166
        %vm1600 = vcmp.eq.f32.partialorder %v1599, 8.507059e+37
        %v1601 = vand.u32 %v1166, 2147483648
        %v1602 = vor.u32 1.1754944e-38, %v1601
        %v1603 = vsel %vm1600, %v1602, %v1598
        %v1604 = vmul.f32 1.0, %v1603
        %v1605 = vrcp.pop %v1167
        %v1606 = vmul.f32 %v1167, %v1605
        %v1607 = vsub.f32 1.0, %v1606
        %v1608 = vmul.f32 %v1605, %v1607
        %v1609 = vadd.f32 %v1605, %v1608
        %vm1610 = vweird.f32 %v1167
        %vm1611 = vweird.f32 %v1605
        %vm1612 = vmor %vm1610, %vm1611
        %v1613 = vsel %vm1612, %v1605, %v1609
        %v1614 = vand.u32 2147483647, %v1167
        %vm1615 = vcmp.eq.f32.partialorder %v1614, 8.507059e+37
        %v1616 = vand.u32 %v1167, 2147483648
        %v1617 = vor.u32 1.1754944e-38, %v1616
        %v1618 = vsel %vm1615, %v1617, %v1613
        %v1619 = vmul.f32 1.0, %v1618
        %v1620 = vrcp.pop %v1168
        %v1621 = vmul.f32 %v1168, %v1620
        %v1622 = vsub.f32 1.0, %v1621
        %v1623 = vmul.f32 %v1620, %v1622
        %v1624 = vadd.f32 %v1620, %v1623
        %vm1625 = vweird.f32 %v1168
        %vm1626 = vweird.f32 %v1620
        %vm1627 = vmor %vm1625, %vm1626
        %v1628 = vsel %vm1627, %v1620, %v1624
        %v1629 = vand.u32 2147483647, %v1168
        %vm1630 = vcmp.eq.f32.partialorder %v1629, 8.507059e+37
        %v1631 = vand.u32 %v1168, 2147483648
        %v1632 = vor.u32 1.1754944e-38, %v1631
        %v1633 = vsel %vm1630, %v1632, %v1628
        %v1634 = vmul.f32 1.0, %v1633
        %v1635 = vrcp.pop %v1169
        %v1636 = vmul.f32 %v1169, %v1635
        %v1637 = vsub.f32 1.0, %v1636
        %v1638 = vmul.f32 %v1635, %v1637
        %v1639 = vadd.f32 %v1635, %v1638
        %vm1640 = vweird.f32 %v1169
        %vm1641 = vweird.f32 %v1635
        %vm1642 = vmor %vm1640, %vm1641
        %v1643 = vsel %vm1642, %v1635, %v1639
        %v1644 = vand.u32 2147483647, %v1169
        %vm1645 = vcmp.eq.f32.partialorder %v1644, 8.507059e+37
        %v1646 = vand.u32 %v1169, 2147483648
        %v1647 = vor.u32 1.1754944e-38, %v1646
        %v1648 = vsel %vm1645, %v1647, %v1643
        %v1649 = vmul.f32 1.0, %v1648
        %v1650 = vmul.f32 %v1010, %v1184
        %v1651 = vmul.f32 %v1011, %v1199
        %v1652 = vmul.f32 %v1012, %v1214
        %v1653 = vmul.f32 %v1013, %v1229
        %v1654 = vmul.f32 %v1014, %v1244
        %v1655 = vmul.f32 %v1015, %v1259
        %v1656 = vmul.f32 %v1016, %v1274
        %v1657 = vmul.f32 %v1017, %v1289
        %v1658 = vmul.f32 %v1018, %v1304
        %v1659 = vmul.f32 %v1019, %v1319
        %v1660 = vmul.f32 %v1020, %v1334
        %v1661 = vmul.f32 %v1021, %v1349
        %v1662 = vmul.f32 %v1022, %v1364
        %v1663 = vmul.f32 %v1023, %v1379
        %v1664 = vmul.f32 %v1024, %v1394
        %v1665 = vmul.f32 %v1025, %v1409
        %v1666 = vmul.f32 %v1026, %v1424
        %v1667 = vmul.f32 %v1027, %v1439
        %v1668 = vmul.f32 %v1028, %v1454
        %v1669 = vmul.f32 %v1029, %v1469
        %v1670 = vmul.f32 %v1030, %v1484
        %v1671 = vmul.f32 %v1031, %v1499
        %v1672 = vmul.f32 %v1032, %v1514
        %v1673 = vmul.f32 %v1033, %v1529
        %v1674 = vmul.f32 %v1034, %v1544
        %v1675 = vmul.f32 %v1035, %v1559
        %v1676 = vmul.f32 %v1036, %v1574
        %v1677 = vmul.f32 %v1037, %v1589
        %v1678 = vmul.f32 %v1038, %v1604
        %v1679 = vmul.f32 %v1039, %v1619
        %v1680 = vmul.f32 %v1040, %v1634
        %v1681 = vmul.f32 %v1041, %v1649
        %vm1682 = vcmask 64512
        %1683 = vst.msk [vmem:[#allocation2] sm:$0xff] %vm1682, 0.0
        %1684 = vst.msk [vmem:[#allocation2 + $0x8] sm:$0xff] %vm1682, 0.0
        %vm1685 = vcmask 58368
        %1686 = vst.msk [vmem:[#allocation2 + $0x10] sm:$0x3] %vm1685, 0.0
        %1687 = vst.msk [vmem:[#allocation2 + $0x18] sm:$0xff] %vm1682, 0.0
        %1688 = vst.msk [vmem:[#allocation2 + $0x20] sm:$0xff] %vm1682, 0.0
        %1689 = vst.msk [vmem:[#allocation2 + $0x28] sm:$0x3] %vm1685, 0.0
        %1690 = vst.msk [vmem:[#allocation2 + $0x30] sm:$0xff] %vm1682, 0.0
        %1691 = vst.msk [vmem:[#allocation2 + $0x38] sm:$0xff] %vm1682, 0.0
        %1692 = vst.msk [vmem:[#allocation2 + $0x40] sm:$0x3] %vm1685, 0.0
        %1693 = vst.msk [vmem:[#allocation2 + $0x48] sm:$0xff] %vm1682, 0.0
        %1694 = vst.msk [vmem:[#allocation2 + $0x50] sm:$0xff] %vm1682, 0.0
        %1695 = vst.msk [vmem:[#allocation2 + $0x58] sm:$0x3] %vm1685, 0.0
        %1696 = vst.msk [vmem:[#allocation2 + $0x60] sm:$0xff] %vm1682, 0.0
        %1697 = vst.msk [vmem:[#allocation2 + $0x68] sm:$0xff] %vm1682, 0.0
        %1698 = vst.msk [vmem:[#allocation2 + $0x70] sm:$0x3] %vm1685, 0.0
        %1699 = vst.msk [vmem:[#allocation2 + $0x78] sm:$0xff] %vm1682, 0.0
        %1700 = vst.msk [vmem:[#allocation2 + $0x80] sm:$0xff] %vm1682, 0.0
        %1701 = vst.msk [vmem:[#allocation2 + $0x88] sm:$0x3] %vm1685, 0.0
        %1702 = vst.msk [vmem:[#allocation2 + $0x90] sm:$0xff] %vm1682, 0.0
        %1703 = vst.msk [vmem:[#allocation2 + $0x98] sm:$0xff] %vm1682, 0.0
        %1704 = vst.msk [vmem:[#allocation2 + $0xa0] sm:$0x3] %vm1685, 0.0
        %1705 = vst.msk [vmem:[#allocation2 + $0xa8] sm:$0xff] %vm1682, 0.0
        %1706 = vst.msk [vmem:[#allocation2 + $0xb0] sm:$0xff] %vm1682, 0.0
        %1707 = vst.msk [vmem:[#allocation2 + $0xb8] sm:$0x3] %vm1685, 0.0
        %1708 = vst.msk [vmem:[#allocation2 + $0xc0] sm:$0xff] %vm1682, 0.0
        %1709 = vst.msk [vmem:[#allocation2 + $0xc8] sm:$0xff] %vm1682, 0.0
        %1710 = vst.msk [vmem:[#allocation2 + $0xd0] sm:$0x3] %vm1685, 0.0
        %1711 = vst.msk [vmem:[#allocation2 + $0xd8] sm:$0xff] %vm1682, 0.0
        %1712 = vst.msk [vmem:[#allocation2 + $0xe0] sm:$0xff] %vm1682, 0.0
        %1713 = vst.msk [vmem:[#allocation2 + $0xe8] sm:$0x3] %vm1685, 0.0
        %1714 = vst.msk [vmem:[#allocation2 + $0xf0] sm:$0xff] %vm1682, 0.0
        %1715 = vst.msk [vmem:[#allocation2 + $0xf8] sm:$0xff] %vm1682, 0.0
        %1716 = vst.msk [vmem:[#allocation2 + $0x100] sm:$0x3] %vm1685, 0.0
        %1717 = vst.msk [vmem:[#allocation2 + $0x108] sm:$0xff] %vm1682, 0.0
        %1718 = vst.msk [vmem:[#allocation2 + $0x110] sm:$0xff] %vm1682, 0.0
        %1719 = vst.msk [vmem:[#allocation2 + $0x118] sm:$0x3] %vm1685, 0.0
        %1720 = vst.msk [vmem:[#allocation2 + $0x120] sm:$0xff] %vm1682, 0.0
        %1721 = vst.msk [vmem:[#allocation2 + $0x128] sm:$0xff] %vm1682, 0.0
        %1722 = vst.msk [vmem:[#allocation2 + $0x130] sm:$0x3] %vm1685, 0.0
        %1723 = vst.msk [vmem:[#allocation2 + $0x138] sm:$0xff] %vm1682, 0.0
        %1724 = vst.msk [vmem:[#allocation2 + $0x140] sm:$0xff] %vm1682, 0.0
        %1725 = vst.msk [vmem:[#allocation2 + $0x148] sm:$0x3] %vm1685, 0.0
        %1726 = vst.msk [vmem:[#allocation2 + $0x150] sm:$0xff] %vm1682, 0.0
        %1727 = vst.msk [vmem:[#allocation2 + $0x158] sm:$0xff] %vm1682, 0.0
        %1728 = vst.msk [vmem:[#allocation2 + $0x160] sm:$0x3] %vm1685, 0.0
        %1729 = vst.msk [vmem:[#allocation2 + $0x168] sm:$0xff] %vm1682, 0.0
        %1730 = vst.msk [vmem:[#allocation2 + $0x170] sm:$0xff] %vm1682, 0.0
        %1731 = vst.msk [vmem:[#allocation2 + $0x178] sm:$0x3] %vm1685, 0.0
        %1732 = vst.msk [vmem:[#allocation2 + $0x180] sm:$0xff] %vm1682, 0.0
        %1733 = vst.msk [vmem:[#allocation2 + $0x188] sm:$0xff] %vm1682, 0.0
        %1734 = vst.msk [vmem:[#allocation2 + $0x190] sm:$0x3] %vm1685, 0.0
        %1735 = vst.msk [vmem:[#allocation2 + $0x198] sm:$0xff] %vm1682, 0.0
        %1736 = vst.msk [vmem:[#allocation2 + $0x1a0] sm:$0xff] %vm1682, 0.0
        %1737 = vst.msk [vmem:[#allocation2 + $0x1a8] sm:$0x3] %vm1685, 0.0
        %s1738 = scalar_lea.vmem [#allocation2], 24
        %1739 = vst.msk [vmem:[%s1738 + $0x1] sm:$0xff] %vm703, %v1650
        %1740 = vst.msk [vmem:[%s1738 + $0x9] sm:$0xff] %vm703, %v1651
        %1741 = vst.msk [vmem:[%s1738 + $0x19] sm:$0xff] %vm703, %v1652
        %1742 = vst.msk [vmem:[%s1738 + $0x21] sm:$0xff] %vm703, %v1653
        %1743 = vst.msk [vmem:[%s1738 + $0x31] sm:$0xff] %vm703, %v1654
        %1744 = vst.msk [vmem:[%s1738 + $0x39] sm:$0xff] %vm703, %v1655
        %1745 = vst.msk [vmem:[%s1738 + $0x49] sm:$0xff] %vm703, %v1656
        %1746 = vst.msk [vmem:[%s1738 + $0x51] sm:$0xff] %vm703, %v1657
        %1747 = vst.msk [vmem:[%s1738 + $0x61] sm:$0xff] %vm703, %v1658
        %1748 = vst.msk [vmem:[%s1738 + $0x69] sm:$0xff] %vm703, %v1659
        %1749 = vst.msk [vmem:[%s1738 + $0x79] sm:$0xff] %vm703, %v1660
        %1750 = vst.msk [vmem:[%s1738 + $0x81] sm:$0xff] %vm703, %v1661
        %1751 = vst.msk [vmem:[%s1738 + $0x91] sm:$0xff] %vm703, %v1662
        %1752 = vst.msk [vmem:[%s1738 + $0x99] sm:$0xff] %vm703, %v1663
        %1753 = vst.msk [vmem:[%s1738 + $0xa9] sm:$0xff] %vm703, %v1664
        %1754 = vst.msk [vmem:[%s1738 + $0xb1] sm:$0xff] %vm703, %v1665
        %1755 = vst.msk [vmem:[%s1738 + $0xc1] sm:$0xff] %vm703, %v1666
        %1756 = vst.msk [vmem:[%s1738 + $0xc9] sm:$0xff] %vm703, %v1667
        %1757 = vst.msk [vmem:[%s1738 + $0xd9] sm:$0xff] %vm703, %v1668
        %1758 = vst.msk [vmem:[%s1738 + $0xe1] sm:$0xff] %vm703, %v1669
        %1759 = vst.msk [vmem:[%s1738 + $0xf1] sm:$0xff] %vm703, %v1670
        %1760 = vst.msk [vmem:[%s1738 + $0xf9] sm:$0xff] %vm703, %v1671
        %1761 = vst.msk [vmem:[%s1738 + $0x109] sm:$0xff] %vm703, %v1672
        %1762 = vst.msk [vmem:[%s1738 + $0x111] sm:$0xff] %vm703, %v1673
        %1763 = vst.msk [vmem:[%s1738 + $0x121] sm:$0xff] %vm703, %v1674
        %1764 = vst.msk [vmem:[%s1738 + $0x129] sm:$0xff] %vm703, %v1675
        %1765 = vst.msk [vmem:[%s1738 + $0x139] sm:$0xff] %vm703, %v1676
        %1766 = vst.msk [vmem:[%s1738 + $0x141] sm:$0xff] %vm703, %v1677
        %1767 = vst.msk [vmem:[%s1738 + $0x151] sm:$0xff] %vm703, %v1678
        %1768 = vst.msk [vmem:[%s1738 + $0x159] sm:$0xff] %vm703, %v1679
        %1769 = vst.msk [vmem:[%s1738 + $0x169] sm:$0xff] %vm703, %v1680
        %1770 = vst.msk [vmem:[%s1738 + $0x171] sm:$0xff] %vm703, %v1681
        %v1771 = vld [vmem:[#allocation2] sm:$0xff]
        %v1772 = vld [vmem:[#allocation2 + $0x8] sm:$0xff]
        %v1773 = vld [vmem:[#allocation2 + $0x18] sm:$0xff]
        %v1774 = vld [vmem:[#allocation2 + $0x20] sm:$0xff]
        %v1775 = vld [vmem:[#allocation2 + $0x30] sm:$0xff]
        %v1776 = vld [vmem:[#allocation2 + $0x38] sm:$0xff]
        %v1777 = vld [vmem:[#allocation2 + $0x48] sm:$0xff]
        %v1778 = vld [vmem:[#allocation2 + $0x50] sm:$0xff]
        %v1779 = vld [vmem:[#allocation2 + $0x60] sm:$0xff]
        %v1780 = vld [vmem:[#allocation2 + $0x68] sm:$0xff]
        %v1781 = vld [vmem:[#allocation2 + $0x78] sm:$0xff]
        %v1782 = vld [vmem:[#allocation2 + $0x80] sm:$0xff]
        %v1783 = vld [vmem:[#allocation2 + $0x90] sm:$0xff]
        %v1784 = vld [vmem:[#allocation2 + $0x98] sm:$0xff]
        %v1785 = vld [vmem:[#allocation2 + $0xa8] sm:$0xff]
        %v1786 = vld [vmem:[#allocation2 + $0xb0] sm:$0xff]
        %v1787 = vld [vmem:[#allocation2 + $0xc0] sm:$0xff]
        %v1788 = vld [vmem:[#allocation2 + $0xc8] sm:$0xff]
        %v1789 = vld [vmem:[#allocation2 + $0xd8] sm:$0xff]
        %v1790 = vld [vmem:[#allocation2 + $0xe0] sm:$0xff]
        %v1791 = vld [vmem:[#allocation2 + $0xf0] sm:$0xff]
        %v1792 = vld [vmem:[#allocation2 + $0xf8] sm:$0xff]
        %v1793 = vld [vmem:[#allocation2 + $0x108] sm:$0xff]
        %v1794 = vld [vmem:[#allocation2 + $0x110] sm:$0xff]
        %v1795 = vld [vmem:[#allocation2 + $0x120] sm:$0xff]
        %v1796 = vld [vmem:[#allocation2 + $0x128] sm:$0xff]
        %v1797 = vld [vmem:[#allocation2 + $0x138] sm:$0xff]
        %v1798 = vld [vmem:[#allocation2 + $0x140] sm:$0xff]
        %v1799 = vld [vmem:[#allocation2 + $0x150] sm:$0xff]
        %v1800 = vld [vmem:[#allocation2 + $0x158] sm:$0xff]
        %v1801 = vld [vmem:[#allocation2 + $0x168] sm:$0xff]
        %v1802 = vld [vmem:[#allocation2 + $0x170] sm:$0xff]
        %1803 = vst.msk [vmem:[#allocation3] sm:$0xff] %vm703, %v1771
        %1804 = vst.msk [vmem:[#allocation3 + $0x8] sm:$0xff] %vm703, %v1772
        %1805 = vst.msk [vmem:[#allocation3 + $0x10] sm:$0xff] %vm703, %v1773
        %1806 = vst.msk [vmem:[#allocation3 + $0x18] sm:$0xff] %vm703, %v1774
        %1807 = vst.msk [vmem:[#allocation3 + $0x20] sm:$0xff] %vm703, %v1775
        %1808 = vst.msk [vmem:[#allocation3 + $0x28] sm:$0xff] %vm703, %v1776
        %1809 = vst.msk [vmem:[#allocation3 + $0x30] sm:$0xff] %vm703, %v1777
        %1810 = vst.msk [vmem:[#allocation3 + $0x38] sm:$0xff] %vm703, %v1778
        %1811 = vst.msk [vmem:[#allocation3 + $0x40] sm:$0xff] %vm703, %v1779
        %1812 = vst.msk [vmem:[#allocation3 + $0x48] sm:$0xff] %vm703, %v1780
        %1813 = vst.msk [vmem:[#allocation3 + $0x50] sm:$0xff] %vm703, %v1781
        %1814 = vst.msk [vmem:[#allocation3 + $0x58] sm:$0xff] %vm703, %v1782
        %1815 = vst.msk [vmem:[#allocation3 + $0x60] sm:$0xff] %vm703, %v1783
        %1816 = vst.msk [vmem:[#allocation3 + $0x68] sm:$0xff] %vm703, %v1784
        %1817 = vst.msk [vmem:[#allocation3 + $0x70] sm:$0xff] %vm703, %v1785
        %1818 = vst.msk [vmem:[#allocation3 + $0x78] sm:$0xff] %vm703, %v1786
        %1819 = vst.msk [vmem:[#allocation3 + $0x80] sm:$0xff] %vm703, %v1787
        %1820 = vst.msk [vmem:[#allocation3 + $0x88] sm:$0xff] %vm703, %v1788
        %1821 = vst.msk [vmem:[#allocation3 + $0x90] sm:$0xff] %vm703, %v1789
        %1822 = vst.msk [vmem:[#allocation3 + $0x98] sm:$0xff] %vm703, %v1790
        %1823 = vst.msk [vmem:[#allocation3 + $0xa0] sm:$0xff] %vm703, %v1791
        %1824 = vst.msk [vmem:[#allocation3 + $0xa8] sm:$0xff] %vm703, %v1792
        %1825 = vst.msk [vmem:[#allocation3 + $0xb0] sm:$0xff] %vm703, %v1793
        %1826 = vst.msk [vmem:[#allocation3 + $0xb8] sm:$0xff] %vm703, %v1794
        %1827 = vst.msk [vmem:[#allocation3 + $0xc0] sm:$0xff] %vm703, %v1795
        %1828 = vst.msk [vmem:[#allocation3 + $0xc8] sm:$0xff] %vm703, %v1796
        %1829 = vst.msk [vmem:[#allocation3 + $0xd0] sm:$0xff] %vm703, %v1797
        %1830 = vst.msk [vmem:[#allocation3 + $0xd8] sm:$0xff] %vm703, %v1798
        %1831 = vst.msk [vmem:[#allocation3 + $0xe0] sm:$0xff] %vm703, %v1799
        %1832 = vst.msk [vmem:[#allocation3 + $0xe8] sm:$0xff] %vm703, %v1800
        %1833 = vst.msk [vmem:[#allocation3 + $0xf0] sm:$0xff] %vm703, %v1801
        %1834 = vst.msk [vmem:[#allocation3 + $0xf8] sm:$0xff] %vm703, %v1802
        %v1835 = vld [vmem:[#allocation2 + $0x1] sm:$0xff]
        %v1836 = vld [vmem:[#allocation2 + $0x9] sm:$0xff]
        %v1837 = vld [vmem:[#allocation2 + $0x19] sm:$0xff]
        %v1838 = vld [vmem:[#allocation2 + $0x21] sm:$0xff]
        %v1839 = vld [vmem:[#allocation2 + $0x31] sm:$0xff]
        %v1840 = vld [vmem:[#allocation2 + $0x39] sm:$0xff]
        %v1841 = vld [vmem:[#allocation2 + $0x49] sm:$0xff]
        %v1842 = vld [vmem:[#allocation2 + $0x51] sm:$0xff]
        %v1843 = vld [vmem:[#allocation2 + $0x61] sm:$0xff]
        %v1844 = vld [vmem:[#allocation2 + $0x69] sm:$0xff]
        %v1845 = vld [vmem:[#allocation2 + $0x79] sm:$0xff]
        %v1846 = vld [vmem:[#allocation2 + $0x81] sm:$0xff]
        %v1847 = vld [vmem:[#allocation2 + $0x91] sm:$0xff]
        %v1848 = vld [vmem:[#allocation2 + $0x99] sm:$0xff]
        %v1849 = vld [vmem:[#allocation2 + $0xa9] sm:$0xff]
        %v1850 = vld [vmem:[#allocation2 + $0xb1] sm:$0xff]
        %v1851 = vld [vmem:[#allocation2 + $0xc1] sm:$0xff]
        %v1852 = vld [vmem:[#allocation2 + $0xc9] sm:$0xff]
        %v1853 = vld [vmem:[#allocation2 + $0xd9] sm:$0xff]
        %v1854 = vld [vmem:[#allocation2 + $0xe1] sm:$0xff]
        %v1855 = vld [vmem:[#allocation2 + $0xf1] sm:$0xff]
        %v1856 = vld [vmem:[#allocation2 + $0xf9] sm:$0xff]
        %v1857 = vld [vmem:[#allocation2 + $0x109] sm:$0xff]
        %v1858 = vld [vmem:[#allocation2 + $0x111] sm:$0xff]
        %v1859 = vld [vmem:[#allocation2 + $0x121] sm:$0xff]
        %v1860 = vld [vmem:[#allocation2 + $0x129] sm:$0xff]
        %v1861 = vld [vmem:[#allocation2 + $0x139] sm:$0xff]
        %v1862 = vld [vmem:[#allocation2 + $0x141] sm:$0xff]
        %v1863 = vld [vmem:[#allocation2 + $0x151] sm:$0xff]
        %v1864 = vld [vmem:[#allocation2 + $0x159] sm:$0xff]
        %v1865 = vld [vmem:[#allocation2 + $0x169] sm:$0xff]
        %v1866 = vld [vmem:[#allocation2 + $0x171] sm:$0xff]
        %1899 = vrot.lane.b32.xlu0 %v1835, 4
        %v1900 = vpop.permute.xlu0 %1899
        %1901 = vrot.lane.b32.xlu0 %v1836, 4
        %v1902 = vpop.permute.xlu0 %1901
        %1903 = vrot.lane.b32.xlu0 %v1837, 4
        %v1904 = vpop.permute.xlu0 %1903
        %1905 = vrot.lane.b32.xlu0 %v1838, 4
        %v1906 = vpop.permute.xlu0 %1905
        %1907 = vrot.lane.b32.xlu0 %v1839, 4
        %v1908 = vpop.permute.xlu0 %1907
        %1909 = vrot.lane.b32.xlu0 %v1840, 4
        %v1910 = vpop.permute.xlu0 %1909
        %1911 = vrot.lane.b32.xlu0 %v1841, 4
        %v1912 = vpop.permute.xlu0 %1911
        %1913 = vrot.lane.b32.xlu0 %v1842, 4
        %v1914 = vpop.permute.xlu0 %1913
        %1915 = vrot.lane.b32.xlu0 %v1843, 4
        %v1916 = vpop.permute.xlu0 %1915
        %1917 = vrot.lane.b32.xlu0 %v1844, 4
        %v1918 = vpop.permute.xlu0 %1917
        %1919 = vrot.lane.b32.xlu0 %v1845, 4
        %v1920 = vpop.permute.xlu0 %1919
        %1921 = vrot.lane.b32.xlu0 %v1846, 4
        %v1922 = vpop.permute.xlu0 %1921
        %1923 = vrot.lane.b32.xlu0 %v1847, 4
        %v1924 = vpop.permute.xlu0 %1923
        %1925 = vrot.lane.b32.xlu0 %v1848, 4
        %v1926 = vpop.permute.xlu0 %1925
        %1927 = vrot.lane.b32.xlu0 %v1849, 4
        %v1928 = vpop.permute.xlu0 %1927
        %1929 = vrot.lane.b32.xlu0 %v1850, 4
        %v1930 = vpop.permute.xlu0 %1929
        %1931 = vrot.lane.b32.xlu0 %v1851, 4
        %v1932 = vpop.permute.xlu0 %1931
        %1933 = vrot.lane.b32.xlu0 %v1852, 4
        %v1934 = vpop.permute.xlu0 %1933
        %1935 = vrot.lane.b32.xlu0 %v1853, 4
        %v1936 = vpop.permute.xlu0 %1935
        %1937 = vrot.lane.b32.xlu0 %v1854, 4
        %v1938 = vpop.permute.xlu0 %1937
        %1939 = vrot.lane.b32.xlu0 %v1855, 4
        %v1940 = vpop.permute.xlu0 %1939
        %1941 = vrot.lane.b32.xlu0 %v1856, 4
        %v1942 = vpop.permute.xlu0 %1941
        %1943 = vrot.lane.b32.xlu0 %v1857, 4
        %v1944 = vpop.permute.xlu0 %1943
        %1945 = vrot.lane.b32.xlu0 %v1858, 4
        %v1946 = vpop.permute.xlu0 %1945
        %1947 = vrot.lane.b32.xlu0 %v1859, 4
        %v1948 = vpop.permute.xlu0 %1947
        %1949 = vrot.lane.b32.xlu0 %v1860, 4
        %v1950 = vpop.permute.xlu0 %1949
        %1951 = vrot.lane.b32.xlu0 %v1861, 4
        %v1952 = vpop.permute.xlu0 %1951
        %1953 = vrot.lane.b32.xlu0 %v1862, 4
        %v1954 = vpop.permute.xlu0 %1953
        %1955 = vrot.lane.b32.xlu0 %v1863, 4
        %v1956 = vpop.permute.xlu0 %1955
        %1957 = vrot.lane.b32.xlu0 %v1864, 4
        %v1958 = vpop.permute.xlu0 %1957
        %1959 = vrot.lane.b32.xlu0 %v1865, 4
        %v1960 = vpop.permute.xlu0 %1959
        %1961 = vrot.lane.b32.xlu0 %v1866, 4
        %v1962 = vpop.permute.xlu0 %1961
        %vm1995 = vcmask 64544
        %1996 = vst.msk [vmem:[#allocation3] sm:$0xff] %vm1995, %v1900
        %1997 = vst.msk [vmem:[#allocation3 + $0x8] sm:$0xff] %vm1995, %v1902
        %1998 = vst.msk [vmem:[#allocation3 + $0x10] sm:$0xff] %vm1995, %v1904
        %1999 = vst.msk [vmem:[#allocation3 + $0x18] sm:$0xff] %vm1995, %v1906
        %2000 = vst.msk [vmem:[#allocation3 + $0x20] sm:$0xff] %vm1995, %v1908
        %2001 = vst.msk [vmem:[#allocation3 + $0x28] sm:$0xff] %vm1995, %v1910
        %2002 = vst.msk [vmem:[#allocation3 + $0x30] sm:$0xff] %vm1995, %v1912
        %2003 = vst.msk [vmem:[#allocation3 + $0x38] sm:$0xff] %vm1995, %v1914
        %2004 = vst.msk [vmem:[#allocation3 + $0x40] sm:$0xff] %vm1995, %v1916
        %2005 = vst.msk [vmem:[#allocation3 + $0x48] sm:$0xff] %vm1995, %v1918
        %2006 = vst.msk [vmem:[#allocation3 + $0x50] sm:$0xff] %vm1995, %v1920
        %2007 = vst.msk [vmem:[#allocation3 + $0x58] sm:$0xff] %vm1995, %v1922
        %2008 = vst.msk [vmem:[#allocation3 + $0x60] sm:$0xff] %vm1995, %v1924
        %2009 = vst.msk [vmem:[#allocation3 + $0x68] sm:$0xff] %vm1995, %v1926
        %2010 = vst.msk [vmem:[#allocation3 + $0x70] sm:$0xff] %vm1995, %v1928
        %2011 = vst.msk [vmem:[#allocation3 + $0x78] sm:$0xff] %vm1995, %v1930
        %2012 = vst.msk [vmem:[#allocation3 + $0x80] sm:$0xff] %vm1995, %v1932
        %2013 = vst.msk [vmem:[#allocation3 + $0x88] sm:$0xff] %vm1995, %v1934
        %2014 = vst.msk [vmem:[#allocation3 + $0x90] sm:$0xff] %vm1995, %v1936
        %2015 = vst.msk [vmem:[#allocation3 + $0x98] sm:$0xff] %vm1995, %v1938
        %2016 = vst.msk [vmem:[#allocation3 + $0xa0] sm:$0xff] %vm1995, %v1940
        %2017 = vst.msk [vmem:[#allocation3 + $0xa8] sm:$0xff] %vm1995, %v1942
        %2018 = vst.msk [vmem:[#allocation3 + $0xb0] sm:$0xff] %vm1995, %v1944
        %2019 = vst.msk [vmem:[#allocation3 + $0xb8] sm:$0xff] %vm1995, %v1946
        %2020 = vst.msk [vmem:[#allocation3 + $0xc0] sm:$0xff] %vm1995, %v1948
        %2021 = vst.msk [vmem:[#allocation3 + $0xc8] sm:$0xff] %vm1995, %v1950
        %2022 = vst.msk [vmem:[#allocation3 + $0xd0] sm:$0xff] %vm1995, %v1952
        %2023 = vst.msk [vmem:[#allocation3 + $0xd8] sm:$0xff] %vm1995, %v1954
        %2024 = vst.msk [vmem:[#allocation3 + $0xe0] sm:$0xff] %vm1995, %v1956
        %2025 = vst.msk [vmem:[#allocation3 + $0xe8] sm:$0xff] %vm1995, %v1958
        %2026 = vst.msk [vmem:[#allocation3 + $0xf0] sm:$0xff] %vm1995, %v1960
        %2027 = vst.msk [vmem:[#allocation3 + $0xf8] sm:$0xff] %vm1995, %v1962
        %v2028 = vld [vmem:[#allocation2 + $0x2] sm:$0xff]
        %v2029 = vld [vmem:[#allocation2 + $0xa] sm:$0xff]
        %v2030 = vld [vmem:[#allocation2 + $0x1a] sm:$0xff]
        %v2031 = vld [vmem:[#allocation2 + $0x22] sm:$0xff]
        %v2032 = vld [vmem:[#allocation2 + $0x32] sm:$0xff]
        %v2033 = vld [vmem:[#allocation2 + $0x3a] sm:$0xff]
        %v2034 = vld [vmem:[#allocation2 + $0x4a] sm:$0xff]
        %v2035 = vld [vmem:[#allocation2 + $0x52] sm:$0xff]
        %v2036 = vld [vmem:[#allocation2 + $0x62] sm:$0xff]
        %v2037 = vld [vmem:[#allocation2 + $0x6a] sm:$0xff]
        %v2038 = vld [vmem:[#allocation2 + $0x7a] sm:$0xff]
        %v2039 = vld [vmem:[#allocation2 + $0x82] sm:$0xff]
        %v2040 = vld [vmem:[#allocation2 + $0x92] sm:$0xff]
        %v2041 = vld [vmem:[#allocation2 + $0x9a] sm:$0xff]
        %v2042 = vld [vmem:[#allocation2 + $0xaa] sm:$0xff]
        %v2043 = vld [vmem:[#allocation2 + $0xb2] sm:$0xff]
        %v2044 = vld [vmem:[#allocation2 + $0xc2] sm:$0xff]
        %v2045 = vld [vmem:[#allocation2 + $0xca] sm:$0xff]
        %v2046 = vld [vmem:[#allocation2 + $0xda] sm:$0xff]
        %v2047 = vld [vmem:[#allocation2 + $0xe2] sm:$0xff]
        %v2048 = vld [vmem:[#allocation2 + $0xf2] sm:$0xff]
        %v2049 = vld [vmem:[#allocation2 + $0xfa] sm:$0xff]
        %v2050 = vld [vmem:[#allocation2 + $0x10a] sm:$0xff]
        %v2051 = vld [vmem:[#allocation2 + $0x112] sm:$0xff]
        %v2052 = vld [vmem:[#allocation2 + $0x122] sm:$0xff]
        %v2053 = vld [vmem:[#allocation2 + $0x12a] sm:$0xff]
        %v2054 = vld [vmem:[#allocation2 + $0x13a] sm:$0xff]
        %v2055 = vld [vmem:[#allocation2 + $0x142] sm:$0xff]
        %v2056 = vld [vmem:[#allocation2 + $0x152] sm:$0xff]
        %v2057 = vld [vmem:[#allocation2 + $0x15a] sm:$0xff]
        %v2058 = vld [vmem:[#allocation2 + $0x16a] sm:$0xff]
        %v2059 = vld [vmem:[#allocation2 + $0x172] sm:$0xff]
        %2092 = vrot.lane.b32.xlu0 %v2028, 8
        %v2093 = vpop.permute.xlu0 %2092
        %2094 = vrot.lane.b32.xlu0 %v2029, 8
        %v2095 = vpop.permute.xlu0 %2094
        %2096 = vrot.lane.b32.xlu0 %v2030, 8
        %v2097 = vpop.permute.xlu0 %2096
        %2098 = vrot.lane.b32.xlu0 %v2031, 8
        %v2099 = vpop.permute.xlu0 %2098
        %2100 = vrot.lane.b32.xlu0 %v2032, 8
        %v2101 = vpop.permute.xlu0 %2100
        %2102 = vrot.lane.b32.xlu0 %v2033, 8
        %v2103 = vpop.permute.xlu0 %2102
        %2104 = vrot.lane.b32.xlu0 %v2034, 8
        %v2105 = vpop.permute.xlu0 %2104
        %2106 = vrot.lane.b32.xlu0 %v2035, 8
        %v2107 = vpop.permute.xlu0 %2106
        %2108 = vrot.lane.b32.xlu0 %v2036, 8
        %v2109 = vpop.permute.xlu0 %2108
        %2110 = vrot.lane.b32.xlu0 %v2037, 8
        %v2111 = vpop.permute.xlu0 %2110
        %2112 = vrot.lane.b32.xlu0 %v2038, 8
        %v2113 = vpop.permute.xlu0 %2112
        %2114 = vrot.lane.b32.xlu0 %v2039, 8
        %v2115 = vpop.permute.xlu0 %2114
        %2116 = vrot.lane.b32.xlu0 %v2040, 8
        %v2117 = vpop.permute.xlu0 %2116
        %2118 = vrot.lane.b32.xlu0 %v2041, 8
        %v2119 = vpop.permute.xlu0 %2118
        %2120 = vrot.lane.b32.xlu0 %v2042, 8
        %v2121 = vpop.permute.xlu0 %2120
        %2122 = vrot.lane.b32.xlu0 %v2043, 8
        %v2123 = vpop.permute.xlu0 %2122
        %2124 = vrot.lane.b32.xlu0 %v2044, 8
        %v2125 = vpop.permute.xlu0 %2124
        %2126 = vrot.lane.b32.xlu0 %v2045, 8
        %v2127 = vpop.permute.xlu0 %2126
        %2128 = vrot.lane.b32.xlu0 %v2046, 8
        %v2129 = vpop.permute.xlu0 %2128
        %2130 = vrot.lane.b32.xlu0 %v2047, 8
        %v2131 = vpop.permute.xlu0 %2130
        %2132 = vrot.lane.b32.xlu0 %v2048, 8
        %v2133 = vpop.permute.xlu0 %2132
        %2134 = vrot.lane.b32.xlu0 %v2049, 8
        %v2135 = vpop.permute.xlu0 %2134
        %2136 = vrot.lane.b32.xlu0 %v2050, 8
        %v2137 = vpop.permute.xlu0 %2136
        %2138 = vrot.lane.b32.xlu0 %v2051, 8
        %v2139 = vpop.permute.xlu0 %2138
        %2140 = vrot.lane.b32.xlu0 %v2052, 8
        %v2141 = vpop.permute.xlu0 %2140
        %2142 = vrot.lane.b32.xlu0 %v2053, 8
        %v2143 = vpop.permute.xlu0 %2142
        %2144 = vrot.lane.b32.xlu0 %v2054, 8
        %v2145 = vpop.permute.xlu0 %2144
        %2146 = vrot.lane.b32.xlu0 %v2055, 8
        %v2147 = vpop.permute.xlu0 %2146
        %2148 = vrot.lane.b32.xlu0 %v2056, 8
        %v2149 = vpop.permute.xlu0 %2148
        %2150 = vrot.lane.b32.xlu0 %v2057, 8
        %v2151 = vpop.permute.xlu0 %2150
        %2152 = vrot.lane.b32.xlu0 %v2058, 8
        %v2153 = vpop.permute.xlu0 %2152
        %2154 = vrot.lane.b32.xlu0 %v2059, 8
        %v2155 = vpop.permute.xlu0 %2154
        %vm2188 = vcmask 97344
        %2189 = vst.msk [vmem:[#allocation3] sm:$0xff] %vm2188, %v2093
        %2190 = vst.msk [vmem:[#allocation3 + $0x8] sm:$0xff] %vm2188, %v2095
        %2191 = vst.msk [vmem:[#allocation3 + $0x10] sm:$0xff] %vm2188, %v2097
        %2192 = vst.msk [vmem:[#allocation3 + $0x18] sm:$0xff] %vm2188, %v2099
        %2193 = vst.msk [vmem:[#allocation3 + $0x20] sm:$0xff] %vm2188, %v2101
        %2194 = vst.msk [vmem:[#allocation3 + $0x28] sm:$0xff] %vm2188, %v2103
        %2195 = vst.msk [vmem:[#allocation3 + $0x30] sm:$0xff] %vm2188, %v2105
        %2196 = vst.msk [vmem:[#allocation3 + $0x38] sm:$0xff] %vm2188, %v2107
        %2197 = vst.msk [vmem:[#allocation3 + $0x40] sm:$0xff] %vm2188, %v2109
        %2198 = vst.msk [vmem:[#allocation3 + $0x48] sm:$0xff] %vm2188, %v2111
        %2199 = vst.msk [vmem:[#allocation3 + $0x50] sm:$0xff] %vm2188, %v2113
        %2200 = vst.msk [vmem:[#allocation3 + $0x58] sm:$0xff] %vm2188, %v2115
        %2201 = vst.msk [vmem:[#allocation3 + $0x60] sm:$0xff] %vm2188, %v2117
        %2202 = vst.msk [vmem:[#allocation3 + $0x68] sm:$0xff] %vm2188, %v2119
        %2203 = vst.msk [vmem:[#allocation3 + $0x70] sm:$0xff] %vm2188, %v2121
        %2204 = vst.msk [vmem:[#allocation3 + $0x78] sm:$0xff] %vm2188, %v2123
        %2205 = vst.msk [vmem:[#allocation3 + $0x80] sm:$0xff] %vm2188, %v2125
        %2206 = vst.msk [vmem:[#allocation3 + $0x88] sm:$0xff] %vm2188, %v2127
        %2207 = vst.msk [vmem:[#allocation3 + $0x90] sm:$0xff] %vm2188, %v2129
        %2208 = vst.msk [vmem:[#allocation3 + $0x98] sm:$0xff] %vm2188, %v2131
        %2209 = vst.msk [vmem:[#allocation3 + $0xa0] sm:$0xff] %vm2188, %v2133
        %2210 = vst.msk [vmem:[#allocation3 + $0xa8] sm:$0xff] %vm2188, %v2135
        %2211 = vst.msk [vmem:[#allocation3 + $0xb0] sm:$0xff] %vm2188, %v2137
        %2212 = vst.msk [vmem:[#allocation3 + $0xb8] sm:$0xff] %vm2188, %v2139
        %2213 = vst.msk [vmem:[#allocation3 + $0xc0] sm:$0xff] %vm2188, %v2141
        %2214 = vst.msk [vmem:[#allocation3 + $0xc8] sm:$0xff] %vm2188, %v2143
        %2215 = vst.msk [vmem:[#allocation3 + $0xd0] sm:$0xff] %vm2188, %v2145
        %2216 = vst.msk [vmem:[#allocation3 + $0xd8] sm:$0xff] %vm2188, %v2147
        %2217 = vst.msk [vmem:[#allocation3 + $0xe0] sm:$0xff] %vm2188, %v2149
        %2218 = vst.msk [vmem:[#allocation3 + $0xe8] sm:$0xff] %vm2188, %v2151
        %2219 = vst.msk [vmem:[#allocation3 + $0xf0] sm:$0xff] %vm2188, %v2153
        %2220 = vst.msk [vmem:[#allocation3 + $0xf8] sm:$0xff] %vm2188, %v2155
        %v2221 = vld [vmem:[%s1738] sm:$0xff]
        %v2222 = vld [vmem:[%s1738 + $0x8] sm:$0xff]
        %v2223 = vld [vmem:[%s1738 + $0x18] sm:$0xff]
        %v2224 = vld [vmem:[%s1738 + $0x20] sm:$0xff]
        %v2225 = vld [vmem:[%s1738 + $0x30] sm:$0xff]
        %v2226 = vld [vmem:[%s1738 + $0x38] sm:$0xff]
        %v2227 = vld [vmem:[%s1738 + $0x48] sm:$0xff]
        %v2228 = vld [vmem:[%s1738 + $0x50] sm:$0xff]
        %v2229 = vld [vmem:[%s1738 + $0x60] sm:$0xff]
        %v2230 = vld [vmem:[%s1738 + $0x68] sm:$0xff]
        %v2231 = vld [vmem:[%s1738 + $0x78] sm:$0xff]
        %v2232 = vld [vmem:[%s1738 + $0x80] sm:$0xff]
        %v2233 = vld [vmem:[%s1738 + $0x90] sm:$0xff]
        %v2234 = vld [vmem:[%s1738 + $0x98] sm:$0xff]
        %v2235 = vld [vmem:[%s1738 + $0xa8] sm:$0xff]
        %v2236 = vld [vmem:[%s1738 + $0xb0] sm:$0xff]
        %v2237 = vld [vmem:[%s1738 + $0xc0] sm:$0xff]
        %v2238 = vld [vmem:[%s1738 + $0xc8] sm:$0xff]
        %v2239 = vld [vmem:[%s1738 + $0xd8] sm:$0xff]
        %v2240 = vld [vmem:[%s1738 + $0xe0] sm:$0xff]
        %v2241 = vld [vmem:[%s1738 + $0xf0] sm:$0xff]
        %v2242 = vld [vmem:[%s1738 + $0xf8] sm:$0xff]
        %v2243 = vld [vmem:[%s1738 + $0x108] sm:$0xff]
        %v2244 = vld [vmem:[%s1738 + $0x110] sm:$0xff]
        %v2245 = vld [vmem:[%s1738 + $0x120] sm:$0xff]
        %v2246 = vld [vmem:[%s1738 + $0x128] sm:$0xff]
        %v2247 = vld [vmem:[%s1738 + $0x138] sm:$0xff]
        %v2248 = vld [vmem:[%s1738 + $0x140] sm:$0xff]
        %v2249 = vld [vmem:[%s1738 + $0x150] sm:$0xff]
        %v2250 = vld [vmem:[%s1738 + $0x158] sm:$0xff]
        %v2251 = vld [vmem:[%s1738 + $0x168] sm:$0xff]
        %v2252 = vld [vmem:[%s1738 + $0x170] sm:$0xff]
        %2285 = vrot.lane.b32.xlu0 %v2221, 12
        %v2286 = vpop.permute.xlu0 %2285
        %2287 = vrot.lane.b32.xlu0 %v2222, 12
        %v2288 = vpop.permute.xlu0 %2287
        %2289 = vrot.lane.b32.xlu0 %v2223, 12
        %v2290 = vpop.permute.xlu0 %2289
        %2291 = vrot.lane.b32.xlu0 %v2224, 12
        %v2292 = vpop.permute.xlu0 %2291
        %2293 = vrot.lane.b32.xlu0 %v2225, 12
        %v2294 = vpop.permute.xlu0 %2293
        %2295 = vrot.lane.b32.xlu0 %v2226, 12
        %v2296 = vpop.permute.xlu0 %2295
        %2297 = vrot.lane.b32.xlu0 %v2227, 12
        %v2298 = vpop.permute.xlu0 %2297
        %2299 = vrot.lane.b32.xlu0 %v2228, 12
        %v2300 = vpop.permute.xlu0 %2299
        %2301 = vrot.lane.b32.xlu0 %v2229, 12
        %v2302 = vpop.permute.xlu0 %2301
        %2303 = vrot.lane.b32.xlu0 %v2230, 12
        %v2304 = vpop.permute.xlu0 %2303
        %2305 = vrot.lane.b32.xlu0 %v2231, 12
        %v2306 = vpop.permute.xlu0 %2305
        %2307 = vrot.lane.b32.xlu0 %v2232, 12
        %v2308 = vpop.permute.xlu0 %2307
        %2309 = vrot.lane.b32.xlu0 %v2233, 12
        %v2310 = vpop.permute.xlu0 %2309
        %2311 = vrot.lane.b32.xlu0 %v2234, 12
        %v2312 = vpop.permute.xlu0 %2311
        %2313 = vrot.lane.b32.xlu0 %v2235, 12
        %v2314 = vpop.permute.xlu0 %2313
        %2315 = vrot.lane.b32.xlu0 %v2236, 12
        %v2316 = vpop.permute.xlu0 %2315
        %2317 = vrot.lane.b32.xlu0 %v2237, 12
        %v2318 = vpop.permute.xlu0 %2317
        %2319 = vrot.lane.b32.xlu0 %v2238, 12
        %v2320 = vpop.permute.xlu0 %2319
        %2321 = vrot.lane.b32.xlu0 %v2239, 12
        %v2322 = vpop.permute.xlu0 %2321
        %2323 = vrot.lane.b32.xlu0 %v2240, 12
        %v2324 = vpop.permute.xlu0 %2323
        %2325 = vrot.lane.b32.xlu0 %v2241, 12
        %v2326 = vpop.permute.xlu0 %2325
        %2327 = vrot.lane.b32.xlu0 %v2242, 12
        %v2328 = vpop.permute.xlu0 %2327
        %2329 = vrot.lane.b32.xlu0 %v2243, 12
        %v2330 = vpop.permute.xlu0 %2329
        %2331 = vrot.lane.b32.xlu0 %v2244, 12
        %v2332 = vpop.permute.xlu0 %2331
        %2333 = vrot.lane.b32.xlu0 %v2245, 12
        %v2334 = vpop.permute.xlu0 %2333
        %2335 = vrot.lane.b32.xlu0 %v2246, 12
        %v2336 = vpop.permute.xlu0 %2335
        %2337 = vrot.lane.b32.xlu0 %v2247, 12
        %v2338 = vpop.permute.xlu0 %2337
        %2339 = vrot.lane.b32.xlu0 %v2248, 12
        %v2340 = vpop.permute.xlu0 %2339
        %2341 = vrot.lane.b32.xlu0 %v2249, 12
        %v2342 = vpop.permute.xlu0 %2341
        %2343 = vrot.lane.b32.xlu0 %v2250, 12
        %v2344 = vpop.permute.xlu0 %2343
        %2345 = vrot.lane.b32.xlu0 %v2251, 12
        %v2346 = vpop.permute.xlu0 %2345
        %2347 = vrot.lane.b32.xlu0 %v2252, 12
        %v2348 = vpop.permute.xlu0 %2347
        %vm2381 = vcmask 130144
        %2382 = vst.msk [vmem:[#allocation3] sm:$0xff] %vm2381, %v2286
        %2383 = vst.msk [vmem:[#allocation3 + $0x8] sm:$0xff] %vm2381, %v2288
        %2384 = vst.msk [vmem:[#allocation3 + $0x10] sm:$0xff] %vm2381, %v2290
        %2385 = vst.msk [vmem:[#allocation3 + $0x18] sm:$0xff] %vm2381, %v2292
        %2386 = vst.msk [vmem:[#allocation3 + $0x20] sm:$0xff] %vm2381, %v2294
        %2387 = vst.msk [vmem:[#allocation3 + $0x28] sm:$0xff] %vm2381, %v2296
        %2388 = vst.msk [vmem:[#allocation3 + $0x30] sm:$0xff] %vm2381, %v2298
        %2389 = vst.msk [vmem:[#allocation3 + $0x38] sm:$0xff] %vm2381, %v2300
        %2390 = vst.msk [vmem:[#allocation3 + $0x40] sm:$0xff] %vm2381, %v2302
        %2391 = vst.msk [vmem:[#allocation3 + $0x48] sm:$0xff] %vm2381, %v2304
        %2392 = vst.msk [vmem:[#allocation3 + $0x50] sm:$0xff] %vm2381, %v2306
        %2393 = vst.msk [vmem:[#allocation3 + $0x58] sm:$0xff] %vm2381, %v2308
        %2394 = vst.msk [vmem:[#allocation3 + $0x60] sm:$0xff] %vm2381, %v2310
        %2395 = vst.msk [vmem:[#allocation3 + $0x68] sm:$0xff] %vm2381, %v2312
        %2396 = vst.msk [vmem:[#allocation3 + $0x70] sm:$0xff] %vm2381, %v2314
        %2397 = vst.msk [vmem:[#allocation3 + $0x78] sm:$0xff] %vm2381, %v2316
        %2398 = vst.msk [vmem:[#allocation3 + $0x80] sm:$0xff] %vm2381, %v2318
        %2399 = vst.msk [vmem:[#allocation3 + $0x88] sm:$0xff] %vm2381, %v2320
        %2400 = vst.msk [vmem:[#allocation3 + $0x90] sm:$0xff] %vm2381, %v2322
        %2401 = vst.msk [vmem:[#allocation3 + $0x98] sm:$0xff] %vm2381, %v2324
        %2402 = vst.msk [vmem:[#allocation3 + $0xa0] sm:$0xff] %vm2381, %v2326
        %2403 = vst.msk [vmem:[#allocation3 + $0xa8] sm:$0xff] %vm2381, %v2328
        %2404 = vst.msk [vmem:[#allocation3 + $0xb0] sm:$0xff] %vm2381, %v2330
        %2405 = vst.msk [vmem:[#allocation3 + $0xb8] sm:$0xff] %vm2381, %v2332
        %2406 = vst.msk [vmem:[#allocation3 + $0xc0] sm:$0xff] %vm2381, %v2334
        %2407 = vst.msk [vmem:[#allocation3 + $0xc8] sm:$0xff] %vm2381, %v2336
        %2408 = vst.msk [vmem:[#allocation3 + $0xd0] sm:$0xff] %vm2381, %v2338
        %2409 = vst.msk [vmem:[#allocation3 + $0xd8] sm:$0xff] %vm2381, %v2340
        %2410 = vst.msk [vmem:[#allocation3 + $0xe0] sm:$0xff] %vm2381, %v2342
        %2411 = vst.msk [vmem:[#allocation3 + $0xe8] sm:$0xff] %vm2381, %v2344
        %2412 = vst.msk [vmem:[#allocation3 + $0xf0] sm:$0xff] %vm2381, %v2346
        %2413 = vst.msk [vmem:[#allocation3 + $0xf8] sm:$0xff] %vm2381, %v2348
        %v2414 = vld [vmem:[%s1738 + $0x1] sm:$0xff]
        %v2415 = vld [vmem:[%s1738 + $0x9] sm:$0xff]
        %v2416 = vld [vmem:[%s1738 + $0x19] sm:$0xff]
        %v2417 = vld [vmem:[%s1738 + $0x21] sm:$0xff]
        %v2418 = vld [vmem:[%s1738 + $0x31] sm:$0xff]
        %v2419 = vld [vmem:[%s1738 + $0x39] sm:$0xff]
        %v2420 = vld [vmem:[%s1738 + $0x49] sm:$0xff]
        %v2421 = vld [vmem:[%s1738 + $0x51] sm:$0xff]
        %v2422 = vld [vmem:[%s1738 + $0x61] sm:$0xff]
        %v2423 = vld [vmem:[%s1738 + $0x69] sm:$0xff]
        %v2424 = vld [vmem:[%s1738 + $0x79] sm:$0xff]
        %v2425 = vld [vmem:[%s1738 + $0x81] sm:$0xff]
        %v2426 = vld [vmem:[%s1738 + $0x91] sm:$0xff]
        %v2427 = vld [vmem:[%s1738 + $0x99] sm:$0xff]
        %v2428 = vld [vmem:[%s1738 + $0xa9] sm:$0xff]
        %v2429 = vld [vmem:[%s1738 + $0xb1] sm:$0xff]
        %v2430 = vld [vmem:[%s1738 + $0xc1] sm:$0xff]
        %v2431 = vld [vmem:[%s1738 + $0xc9] sm:$0xff]
        %v2432 = vld [vmem:[%s1738 + $0xd9] sm:$0xff]
        %v2433 = vld [vmem:[%s1738 + $0xe1] sm:$0xff]
        %v2434 = vld [vmem:[%s1738 + $0xf1] sm:$0xff]
        %v2435 = vld [vmem:[%s1738 + $0xf9] sm:$0xff]
        %v2436 = vld [vmem:[%s1738 + $0x109] sm:$0xff]
        %v2437 = vld [vmem:[%s1738 + $0x111] sm:$0xff]
        %v2438 = vld [vmem:[%s1738 + $0x121] sm:$0xff]
        %v2439 = vld [vmem:[%s1738 + $0x129] sm:$0xff]
        %v2440 = vld [vmem:[%s1738 + $0x139] sm:$0xff]
        %v2441 = vld [vmem:[%s1738 + $0x141] sm:$0xff]
        %v2442 = vld [vmem:[%s1738 + $0x151] sm:$0xff]
        %v2443 = vld [vmem:[%s1738 + $0x159] sm:$0xff]
        %v2444 = vld [vmem:[%s1738 + $0x169] sm:$0xff]
        %v2445 = vld [vmem:[%s1738 + $0x171] sm:$0xff]
        %2478 = vrot.lane.b32.xlu0 %v2414, 16
        %v2479 = vpop.permute.xlu0 %2478
        %2480 = vrot.lane.b32.xlu0 %v2415, 16
        %v2481 = vpop.permute.xlu0 %2480
        %2482 = vrot.lane.b32.xlu0 %v2416, 16
        %v2483 = vpop.permute.xlu0 %2482
        %2484 = vrot.lane.b32.xlu0 %v2417, 16
        %v2485 = vpop.permute.xlu0 %2484
        %2486 = vrot.lane.b32.xlu0 %v2418, 16
        %v2487 = vpop.permute.xlu0 %2486
        %2488 = vrot.lane.b32.xlu0 %v2419, 16
        %v2489 = vpop.permute.xlu0 %2488
        %2490 = vrot.lane.b32.xlu0 %v2420, 16
        %v2491 = vpop.permute.xlu0 %2490
        %2492 = vrot.lane.b32.xlu0 %v2421, 16
        %v2493 = vpop.permute.xlu0 %2492
        %2494 = vrot.lane.b32.xlu0 %v2422, 16
        %v2495 = vpop.permute.xlu0 %2494
        %2496 = vrot.lane.b32.xlu0 %v2423, 16
        %v2497 = vpop.permute.xlu0 %2496
        %2498 = vrot.lane.b32.xlu0 %v2424, 16
        %v2499 = vpop.permute.xlu0 %2498
        %2500 = vrot.lane.b32.xlu0 %v2425, 16
        %v2501 = vpop.permute.xlu0 %2500
        %2502 = vrot.lane.b32.xlu0 %v2426, 16
        %v2503 = vpop.permute.xlu0 %2502
        %2504 = vrot.lane.b32.xlu0 %v2427, 16
        %v2505 = vpop.permute.xlu0 %2504
        %2506 = vrot.lane.b32.xlu0 %v2428, 16
        %v2507 = vpop.permute.xlu0 %2506
        %2508 = vrot.lane.b32.xlu0 %v2429, 16
        %v2509 = vpop.permute.xlu0 %2508
        %2510 = vrot.lane.b32.xlu0 %v2430, 16
        %v2511 = vpop.permute.xlu0 %2510
        %2512 = vrot.lane.b32.xlu0 %v2431, 16
        %v2513 = vpop.permute.xlu0 %2512
        %2514 = vrot.lane.b32.xlu0 %v2432, 16
        %v2515 = vpop.permute.xlu0 %2514
        %2516 = vrot.lane.b32.xlu0 %v2433, 16
        %v2517 = vpop.permute.xlu0 %2516
        %2518 = vrot.lane.b32.xlu0 %v2434, 16
        %v2519 = vpop.permute.xlu0 %2518
        %2520 = vrot.lane.b32.xlu0 %v2435, 16
        %v2521 = vpop.permute.xlu0 %2520
        %2522 = vrot.lane.b32.xlu0 %v2436, 16
        %v2523 = vpop.permute.xlu0 %2522
        %2524 = vrot.lane.b32.xlu0 %v2437, 16
        %v2525 = vpop.permute.xlu0 %2524
        %2526 = vrot.lane.b32.xlu0 %v2438, 16
        %v2527 = vpop.permute.xlu0 %2526
        %2528 = vrot.lane.b32.xlu0 %v2439, 16
        %v2529 = vpop.permute.xlu0 %2528
        %2530 = vrot.lane.b32.xlu0 %v2440, 16
        %v2531 = vpop.permute.xlu0 %2530
        %2532 = vrot.lane.b32.xlu0 %v2441, 16
        %v2533 = vpop.permute.xlu0 %2532
        %2534 = vrot.lane.b32.xlu0 %v2442, 16
        %v2535 = vpop.permute.xlu0 %2534
        %2536 = vrot.lane.b32.xlu0 %v2443, 16
        %v2537 = vpop.permute.xlu0 %2536
        %2538 = vrot.lane.b32.xlu0 %v2444, 16
        %v2539 = vpop.permute.xlu0 %2538
        %2540 = vrot.lane.b32.xlu0 %v2445, 16
        %v2541 = vpop.permute.xlu0 %2540
        %vm2574 = vcmask 162944
        %2575 = vst.msk [vmem:[#allocation3] sm:$0xff] %vm2574, %v2479
        %2576 = vst.msk [vmem:[#allocation3 + $0x8] sm:$0xff] %vm2574, %v2481
        %2577 = vst.msk [vmem:[#allocation3 + $0x10] sm:$0xff] %vm2574, %v2483
        %2578 = vst.msk [vmem:[#allocation3 + $0x18] sm:$0xff] %vm2574, %v2485
        %2579 = vst.msk [vmem:[#allocation3 + $0x20] sm:$0xff] %vm2574, %v2487
        %2580 = vst.msk [vmem:[#allocation3 + $0x28] sm:$0xff] %vm2574, %v2489
        %2581 = vst.msk [vmem:[#allocation3 + $0x30] sm:$0xff] %vm2574, %v2491
        %2582 = vst.msk [vmem:[#allocation3 + $0x38] sm:$0xff] %vm2574, %v2493
        %2583 = vst.msk [vmem:[#allocation3 + $0x40] sm:$0xff] %vm2574, %v2495
        %2584 = vst.msk [vmem:[#allocation3 + $0x48] sm:$0xff] %vm2574, %v2497
        %2585 = vst.msk [vmem:[#allocation3 + $0x50] sm:$0xff] %vm2574, %v2499
        %2586 = vst.msk [vmem:[#allocation3 + $0x58] sm:$0xff] %vm2574, %v2501
        %2587 = vst.msk [vmem:[#allocation3 + $0x60] sm:$0xff] %vm2574, %v2503
        %2588 = vst.msk [vmem:[#allocation3 + $0x68] sm:$0xff] %vm2574, %v2505
        %2589 = vst.msk [vmem:[#allocation3 + $0x70] sm:$0xff] %vm2574, %v2507
        %2590 = vst.msk [vmem:[#allocation3 + $0x78] sm:$0xff] %vm2574, %v2509
        %2591 = vst.msk [vmem:[#allocation3 + $0x80] sm:$0xff] %vm2574, %v2511
        %2592 = vst.msk [vmem:[#allocation3 + $0x88] sm:$0xff] %vm2574, %v2513
        %2593 = vst.msk [vmem:[#allocation3 + $0x90] sm:$0xff] %vm2574, %v2515
        %2594 = vst.msk [vmem:[#allocation3 + $0x98] sm:$0xff] %vm2574, %v2517
        %2595 = vst.msk [vmem:[#allocation3 + $0xa0] sm:$0xff] %vm2574, %v2519
        %2596 = vst.msk [vmem:[#allocation3 + $0xa8] sm:$0xff] %vm2574, %v2521
        %2597 = vst.msk [vmem:[#allocation3 + $0xb0] sm:$0xff] %vm2574, %v2523
        %2598 = vst.msk [vmem:[#allocation3 + $0xb8] sm:$0xff] %vm2574, %v2525
        %2599 = vst.msk [vmem:[#allocation3 + $0xc0] sm:$0xff] %vm2574, %v2527
        %2600 = vst.msk [vmem:[#allocation3 + $0xc8] sm:$0xff] %vm2574, %v2529
        %2601 = vst.msk [vmem:[#allocation3 + $0xd0] sm:$0xff] %vm2574, %v2531
        %2602 = vst.msk [vmem:[#allocation3 + $0xd8] sm:$0xff] %vm2574, %v2533
        %2603 = vst.msk [vmem:[#allocation3 + $0xe0] sm:$0xff] %vm2574, %v2535
        %2604 = vst.msk [vmem:[#allocation3 + $0xe8] sm:$0xff] %vm2574, %v2537
        %2605 = vst.msk [vmem:[#allocation3 + $0xf0] sm:$0xff] %vm2574, %v2539
        %2606 = vst.msk [vmem:[#allocation3 + $0xf8] sm:$0xff] %vm2574, %v2541
        %v2607 = vld [vmem:[%s1738 + $0x2] sm:$0xff]
        %v2608 = vld [vmem:[%s1738 + $0xa] sm:$0xff]
        %v2609 = vld [vmem:[%s1738 + $0x1a] sm:$0xff]
        %v2610 = vld [vmem:[%s1738 + $0x22] sm:$0xff]
        %v2611 = vld [vmem:[%s1738 + $0x32] sm:$0xff]
        %v2612 = vld [vmem:[%s1738 + $0x3a] sm:$0xff]
        %v2613 = vld [vmem:[%s1738 + $0x4a] sm:$0xff]
        %v2614 = vld [vmem:[%s1738 + $0x52] sm:$0xff]
        %v2615 = vld [vmem:[%s1738 + $0x62] sm:$0xff]
        %v2616 = vld [vmem:[%s1738 + $0x6a] sm:$0xff]
        %v2617 = vld [vmem:[%s1738 + $0x7a] sm:$0xff]
        %v2618 = vld [vmem:[%s1738 + $0x82] sm:$0xff]
        %v2619 = vld [vmem:[%s1738 + $0x92] sm:$0xff]
        %v2620 = vld [vmem:[%s1738 + $0x9a] sm:$0xff]
        %v2621 = vld [vmem:[%s1738 + $0xaa] sm:$0xff]
        %v2622 = vld [vmem:[%s1738 + $0xb2] sm:$0xff]
        %v2623 = vld [vmem:[%s1738 + $0xc2] sm:$0xff]
        %v2624 = vld [vmem:[%s1738 + $0xca] sm:$0xff]
        %v2625 = vld [vmem:[%s1738 + $0xda] sm:$0xff]
        %v2626 = vld [vmem:[%s1738 + $0xe2] sm:$0xff]
        %v2627 = vld [vmem:[%s1738 + $0xf2] sm:$0xff]
        %v2628 = vld [vmem:[%s1738 + $0xfa] sm:$0xff]
        %v2629 = vld [vmem:[%s1738 + $0x10a] sm:$0xff]
        %v2630 = vld [vmem:[%s1738 + $0x112] sm:$0xff]
        %v2631 = vld [vmem:[%s1738 + $0x122] sm:$0xff]
        %v2632 = vld [vmem:[%s1738 + $0x12a] sm:$0xff]
        %v2633 = vld [vmem:[%s1738 + $0x13a] sm:$0xff]
        %v2634 = vld [vmem:[%s1738 + $0x142] sm:$0xff]
        %v2635 = vld [vmem:[%s1738 + $0x152] sm:$0xff]
        %v2636 = vld [vmem:[%s1738 + $0x15a] sm:$0xff]
        %v2637 = vld [vmem:[%s1738 + $0x16a] sm:$0xff]
        %v2638 = vld [vmem:[%s1738 + $0x172] sm:$0xff]
        %2671 = vrot.lane.b32.xlu0 %v2607, 20
        %v2672 = vpop.permute.xlu0 %2671
        %2673 = vrot.lane.b32.xlu0 %v2608, 20
        %v2674 = vpop.permute.xlu0 %2673
        %2675 = vrot.lane.b32.xlu0 %v2609, 20
        %v2676 = vpop.permute.xlu0 %2675
        %2677 = vrot.lane.b32.xlu0 %v2610, 20
        %v2678 = vpop.permute.xlu0 %2677
        %2679 = vrot.lane.b32.xlu0 %v2611, 20
        %v2680 = vpop.permute.xlu0 %2679
        %2681 = vrot.lane.b32.xlu0 %v2612, 20
        %v2682 = vpop.permute.xlu0 %2681
        %2683 = vrot.lane.b32.xlu0 %v2613, 20
        %v2684 = vpop.permute.xlu0 %2683
        %2685 = vrot.lane.b32.xlu0 %v2614, 20
        %v2686 = vpop.permute.xlu0 %2685
        %2687 = vrot.lane.b32.xlu0 %v2615, 20
        %v2688 = vpop.permute.xlu0 %2687
        %2689 = vrot.lane.b32.xlu0 %v2616, 20
        %v2690 = vpop.permute.xlu0 %2689
        %2691 = vrot.lane.b32.xlu0 %v2617, 20
        %v2692 = vpop.permute.xlu0 %2691
        %2693 = vrot.lane.b32.xlu0 %v2618, 20
        %v2694 = vpop.permute.xlu0 %2693
        %2695 = vrot.lane.b32.xlu0 %v2619, 20
        %v2696 = vpop.permute.xlu0 %2695
        %2697 = vrot.lane.b32.xlu0 %v2620, 20
        %v2698 = vpop.permute.xlu0 %2697
        %2699 = vrot.lane.b32.xlu0 %v2621, 20
        %v2700 = vpop.permute.xlu0 %2699
        %2701 = vrot.lane.b32.xlu0 %v2622, 20
        %v2702 = vpop.permute.xlu0 %2701
        %2703 = vrot.lane.b32.xlu0 %v2623, 20
        %v2704 = vpop.permute.xlu0 %2703
        %2705 = vrot.lane.b32.xlu0 %v2624, 20
        %v2706 = vpop.permute.xlu0 %2705
        %2707 = vrot.lane.b32.xlu0 %v2625, 20
        %v2708 = vpop.permute.xlu0 %2707
        %2709 = vrot.lane.b32.xlu0 %v2626, 20
        %v2710 = vpop.permute.xlu0 %2709
        %2711 = vrot.lane.b32.xlu0 %v2627, 20
        %v2712 = vpop.permute.xlu0 %2711
        %2713 = vrot.lane.b32.xlu0 %v2628, 20
        %v2714 = vpop.permute.xlu0 %2713
        %2715 = vrot.lane.b32.xlu0 %v2629, 20
        %v2716 = vpop.permute.xlu0 %2715
        %2717 = vrot.lane.b32.xlu0 %v2630, 20
        %v2718 = vpop.permute.xlu0 %2717
        %2719 = vrot.lane.b32.xlu0 %v2631, 20
        %v2720 = vpop.permute.xlu0 %2719
        %2721 = vrot.lane.b32.xlu0 %v2632, 20
        %v2722 = vpop.permute.xlu0 %2721
        %2723 = vrot.lane.b32.xlu0 %v2633, 20
        %v2724 = vpop.permute.xlu0 %2723
        %2725 = vrot.lane.b32.xlu0 %v2634, 20
        %v2726 = vpop.permute.xlu0 %2725
        %2727 = vrot.lane.b32.xlu0 %v2635, 20
        %v2728 = vpop.permute.xlu0 %2727
        %2729 = vrot.lane.b32.xlu0 %v2636, 20
        %v2730 = vpop.permute.xlu0 %2729
        %2731 = vrot.lane.b32.xlu0 %v2637, 20
        %v2732 = vpop.permute.xlu0 %2731
        %2733 = vrot.lane.b32.xlu0 %v2638, 20
        %v2734 = vpop.permute.xlu0 %2733
        %vm2767 = vcmask 195744
        %2768 = vst.msk [vmem:[#allocation3] sm:$0xff] %vm2767, %v2672
        %2769 = vst.msk [vmem:[#allocation3 + $0x8] sm:$0xff] %vm2767, %v2674
        %2770 = vst.msk [vmem:[#allocation3 + $0x10] sm:$0xff] %vm2767, %v2676
        %2771 = vst.msk [vmem:[#allocation3 + $0x18] sm:$0xff] %vm2767, %v2678
        %2772 = vst.msk [vmem:[#allocation3 + $0x20] sm:$0xff] %vm2767, %v2680
        %2773 = vst.msk [vmem:[#allocation3 + $0x28] sm:$0xff] %vm2767, %v2682
        %2774 = vst.msk [vmem:[#allocation3 + $0x30] sm:$0xff] %vm2767, %v2684
        %2775 = vst.msk [vmem:[#allocation3 + $0x38] sm:$0xff] %vm2767, %v2686
        %2776 = vst.msk [vmem:[#allocation3 + $0x40] sm:$0xff] %vm2767, %v2688
        %2777 = vst.msk [vmem:[#allocation3 + $0x48] sm:$0xff] %vm2767, %v2690
        %2778 = vst.msk [vmem:[#allocation3 + $0x50] sm:$0xff] %vm2767, %v2692
        %2779 = vst.msk [vmem:[#allocation3 + $0x58] sm:$0xff] %vm2767, %v2694
        %2780 = vst.msk [vmem:[#allocation3 + $0x60] sm:$0xff] %vm2767, %v2696
        %2781 = vst.msk [vmem:[#allocation3 + $0x68] sm:$0xff] %vm2767, %v2698
        %2782 = vst.msk [vmem:[#allocation3 + $0x70] sm:$0xff] %vm2767, %v2700
        %2783 = vst.msk [vmem:[#allocation3 + $0x78] sm:$0xff] %vm2767, %v2702
        %2784 = vst.msk [vmem:[#allocation3 + $0x80] sm:$0xff] %vm2767, %v2704
        %2785 = vst.msk [vmem:[#allocation3 + $0x88] sm:$0xff] %vm2767, %v2706
        %2786 = vst.msk [vmem:[#allocation3 + $0x90] sm:$0xff] %vm2767, %v2708
        %2787 = vst.msk [vmem:[#allocation3 + $0x98] sm:$0xff] %vm2767, %v2710
        %2788 = vst.msk [vmem:[#allocation3 + $0xa0] sm:$0xff] %vm2767, %v2712
        %2789 = vst.msk [vmem:[#allocation3 + $0xa8] sm:$0xff] %vm2767, %v2714
        %2790 = vst.msk [vmem:[#allocation3 + $0xb0] sm:$0xff] %vm2767, %v2716
        %2791 = vst.msk [vmem:[#allocation3 + $0xb8] sm:$0xff] %vm2767, %v2718
        %2792 = vst.msk [vmem:[#allocation3 + $0xc0] sm:$0xff] %vm2767, %v2720
        %2793 = vst.msk [vmem:[#allocation3 + $0xc8] sm:$0xff] %vm2767, %v2722
        %2794 = vst.msk [vmem:[#allocation3 + $0xd0] sm:$0xff] %vm2767, %v2724
        %2795 = vst.msk [vmem:[#allocation3 + $0xd8] sm:$0xff] %vm2767, %v2726
        %2796 = vst.msk [vmem:[#allocation3 + $0xe0] sm:$0xff] %vm2767, %v2728
        %2797 = vst.msk [vmem:[#allocation3 + $0xe8] sm:$0xff] %vm2767, %v2730
        %2798 = vst.msk [vmem:[#allocation3 + $0xf0] sm:$0xff] %vm2767, %v2732
        %2799 = vst.msk [vmem:[#allocation3 + $0xf8] sm:$0xff] %vm2767, %v2734
        %s2800 = scalar_lea.vmem [#allocation2], 48
        %v2801 = vld [vmem:[%s2800] sm:$0xff]
        %v2802 = vld [vmem:[%s2800 + $0x8] sm:$0xff]
        %v2803 = vld [vmem:[%s2800 + $0x18] sm:$0xff]
        %v2804 = vld [vmem:[%s2800 + $0x20] sm:$0xff]
        %v2805 = vld [vmem:[%s2800 + $0x30] sm:$0xff]
        %v2806 = vld [vmem:[%s2800 + $0x38] sm:$0xff]
        %v2807 = vld [vmem:[%s2800 + $0x48] sm:$0xff]
        %v2808 = vld [vmem:[%s2800 + $0x50] sm:$0xff]
        %v2809 = vld [vmem:[%s2800 + $0x60] sm:$0xff]
        %v2810 = vld [vmem:[%s2800 + $0x68] sm:$0xff]
        %v2811 = vld [vmem:[%s2800 + $0x78] sm:$0xff]
        %v2812 = vld [vmem:[%s2800 + $0x80] sm:$0xff]
        %v2813 = vld [vmem:[%s2800 + $0x90] sm:$0xff]
        %v2814 = vld [vmem:[%s2800 + $0x98] sm:$0xff]
        %v2815 = vld [vmem:[%s2800 + $0xa8] sm:$0xff]
        %v2816 = vld [vmem:[%s2800 + $0xb0] sm:$0xff]
        %v2817 = vld [vmem:[%s2800 + $0xc0] sm:$0xff]
        %v2818 = vld [vmem:[%s2800 + $0xc8] sm:$0xff]
        %v2819 = vld [vmem:[%s2800 + $0xd8] sm:$0xff]
        %v2820 = vld [vmem:[%s2800 + $0xe0] sm:$0xff]
        %v2821 = vld [vmem:[%s2800 + $0xf0] sm:$0xff]
        %v2822 = vld [vmem:[%s2800 + $0xf8] sm:$0xff]
        %v2823 = vld [vmem:[%s2800 + $0x108] sm:$0xff]
        %v2824 = vld [vmem:[%s2800 + $0x110] sm:$0xff]
        %v2825 = vld [vmem:[%s2800 + $0x120] sm:$0xff]
        %v2826 = vld [vmem:[%s2800 + $0x128] sm:$0xff]
        %v2827 = vld [vmem:[%s2800 + $0x138] sm:$0xff]
        %v2828 = vld [vmem:[%s2800 + $0x140] sm:$0xff]
        %v2829 = vld [vmem:[%s2800 + $0x150] sm:$0xff]
        %v2830 = vld [vmem:[%s2800 + $0x158] sm:$0xff]
        %v2831 = vld [vmem:[%s2800 + $0x168] sm:$0xff]
        %v2832 = vld [vmem:[%s2800 + $0x170] sm:$0xff]
        %2865 = vrot.lane.b32.xlu0 %v2801, 24
        %v2866 = vpop.permute.xlu0 %2865
        %2867 = vrot.lane.b32.xlu0 %v2802, 24
        %v2868 = vpop.permute.xlu0 %2867
        %2869 = vrot.lane.b32.xlu0 %v2803, 24
        %v2870 = vpop.permute.xlu0 %2869
        %2871 = vrot.lane.b32.xlu0 %v2804, 24
        %v2872 = vpop.permute.xlu0 %2871
        %2873 = vrot.lane.b32.xlu0 %v2805, 24
        %v2874 = vpop.permute.xlu0 %2873
        %2875 = vrot.lane.b32.xlu0 %v2806, 24
        %v2876 = vpop.permute.xlu0 %2875
        %2877 = vrot.lane.b32.xlu0 %v2807, 24
        %v2878 = vpop.permute.xlu0 %2877
        %2879 = vrot.lane.b32.xlu0 %v2808, 24
        %v2880 = vpop.permute.xlu0 %2879
        %2881 = vrot.lane.b32.xlu0 %v2809, 24
        %v2882 = vpop.permute.xlu0 %2881
        %2883 = vrot.lane.b32.xlu0 %v2810, 24
        %v2884 = vpop.permute.xlu0 %2883
        %2885 = vrot.lane.b32.xlu0 %v2811, 24
        %v2886 = vpop.permute.xlu0 %2885
        %2887 = vrot.lane.b32.xlu0 %v2812, 24
        %v2888 = vpop.permute.xlu0 %2887
        %2889 = vrot.lane.b32.xlu0 %v2813, 24
        %v2890 = vpop.permute.xlu0 %2889
        %2891 = vrot.lane.b32.xlu0 %v2814, 24
        %v2892 = vpop.permute.xlu0 %2891
        %2893 = vrot.lane.b32.xlu0 %v2815, 24
        %v2894 = vpop.permute.xlu0 %2893
        %2895 = vrot.lane.b32.xlu0 %v2816, 24
        %v2896 = vpop.permute.xlu0 %2895
        %2897 = vrot.lane.b32.xlu0 %v2817, 24
        %v2898 = vpop.permute.xlu0 %2897
        %2899 = vrot.lane.b32.xlu0 %v2818, 24
        %v2900 = vpop.permute.xlu0 %2899
        %2901 = vrot.lane.b32.xlu0 %v2819, 24
        %v2902 = vpop.permute.xlu0 %2901
        %2903 = vrot.lane.b32.xlu0 %v2820, 24
        %v2904 = vpop.permute.xlu0 %2903
        %2905 = vrot.lane.b32.xlu0 %v2821, 24
        %v2906 = vpop.permute.xlu0 %2905
        %2907 = vrot.lane.b32.xlu0 %v2822, 24
        %v2908 = vpop.permute.xlu0 %2907
        %2909 = vrot.lane.b32.xlu0 %v2823, 24
        %v2910 = vpop.permute.xlu0 %2909
        %2911 = vrot.lane.b32.xlu0 %v2824, 24
        %v2912 = vpop.permute.xlu0 %2911
        %2913 = vrot.lane.b32.xlu0 %v2825, 24
        %v2914 = vpop.permute.xlu0 %2913
        %2915 = vrot.lane.b32.xlu0 %v2826, 24
        %v2916 = vpop.permute.xlu0 %2915
        %2917 = vrot.lane.b32.xlu0 %v2827, 24
        %v2918 = vpop.permute.xlu0 %2917
        %2919 = vrot.lane.b32.xlu0 %v2828, 24
        %v2920 = vpop.permute.xlu0 %2919
        %2921 = vrot.lane.b32.xlu0 %v2829, 24
        %v2922 = vpop.permute.xlu0 %2921
        %2923 = vrot.lane.b32.xlu0 %v2830, 24
        %v2924 = vpop.permute.xlu0 %2923
        %2925 = vrot.lane.b32.xlu0 %v2831, 24
        %v2926 = vpop.permute.xlu0 %2925
        %2927 = vrot.lane.b32.xlu0 %v2832, 24
        %v2928 = vpop.permute.xlu0 %2927
        %vm2961 = vcmask 228544
        %2962 = vst.msk [vmem:[#allocation3] sm:$0xff] %vm2961, %v2866
        %2963 = vst.msk [vmem:[#allocation3 + $0x8] sm:$0xff] %vm2961, %v2868
        %2964 = vst.msk [vmem:[#allocation3 + $0x10] sm:$0xff] %vm2961, %v2870
        %2965 = vst.msk [vmem:[#allocation3 + $0x18] sm:$0xff] %vm2961, %v2872
        %2966 = vst.msk [vmem:[#allocation3 + $0x20] sm:$0xff] %vm2961, %v2874
        %2967 = vst.msk [vmem:[#allocation3 + $0x28] sm:$0xff] %vm2961, %v2876
        %2968 = vst.msk [vmem:[#allocation3 + $0x30] sm:$0xff] %vm2961, %v2878
        %2969 = vst.msk [vmem:[#allocation3 + $0x38] sm:$0xff] %vm2961, %v2880
        %2970 = vst.msk [vmem:[#allocation3 + $0x40] sm:$0xff] %vm2961, %v2882
        %2971 = vst.msk [vmem:[#allocation3 + $0x48] sm:$0xff] %vm2961, %v2884
        %2972 = vst.msk [vmem:[#allocation3 + $0x50] sm:$0xff] %vm2961, %v2886
        %2973 = vst.msk [vmem:[#allocation3 + $0x58] sm:$0xff] %vm2961, %v2888
        %2974 = vst.msk [vmem:[#allocation3 + $0x60] sm:$0xff] %vm2961, %v2890
        %2975 = vst.msk [vmem:[#allocation3 + $0x68] sm:$0xff] %vm2961, %v2892
        %2976 = vst.msk [vmem:[#allocation3 + $0x70] sm:$0xff] %vm2961, %v2894
        %2977 = vst.msk [vmem:[#allocation3 + $0x78] sm:$0xff] %vm2961, %v2896
        %2978 = vst.msk [vmem:[#allocation3 + $0x80] sm:$0xff] %vm2961, %v2898
        %2979 = vst.msk [vmem:[#allocation3 + $0x88] sm:$0xff] %vm2961, %v2900
        %2980 = vst.msk [vmem:[#allocation3 + $0x90] sm:$0xff] %vm2961, %v2902
        %2981 = vst.msk [vmem:[#allocation3 + $0x98] sm:$0xff] %vm2961, %v2904
        %2982 = vst.msk [vmem:[#allocation3 + $0xa0] sm:$0xff] %vm2961, %v2906
        %2983 = vst.msk [vmem:[#allocation3 + $0xa8] sm:$0xff] %vm2961, %v2908
        %2984 = vst.msk [vmem:[#allocation3 + $0xb0] sm:$0xff] %vm2961, %v2910
        %2985 = vst.msk [vmem:[#allocation3 + $0xb8] sm:$0xff] %vm2961, %v2912
        %2986 = vst.msk [vmem:[#allocation3 + $0xc0] sm:$0xff] %vm2961, %v2914
        %2987 = vst.msk [vmem:[#allocation3 + $0xc8] sm:$0xff] %vm2961, %v2916
        %2988 = vst.msk [vmem:[#allocation3 + $0xd0] sm:$0xff] %vm2961, %v2918
        %2989 = vst.msk [vmem:[#allocation3 + $0xd8] sm:$0xff] %vm2961, %v2920
        %2990 = vst.msk [vmem:[#allocation3 + $0xe0] sm:$0xff] %vm2961, %v2922
        %2991 = vst.msk [vmem:[#allocation3 + $0xe8] sm:$0xff] %vm2961, %v2924
        %2992 = vst.msk [vmem:[#allocation3 + $0xf0] sm:$0xff] %vm2961, %v2926
        %2993 = vst.msk [vmem:[#allocation3 + $0xf8] sm:$0xff] %vm2961, %v2928
        %v2994 = vld [vmem:[%s2800 + $0x1] sm:$0xff]
        %v2995 = vld [vmem:[%s2800 + $0x9] sm:$0xff]
        %v2996 = vld [vmem:[%s2800 + $0x19] sm:$0xff]
        %v2997 = vld [vmem:[%s2800 + $0x21] sm:$0xff]
        %v2998 = vld [vmem:[%s2800 + $0x31] sm:$0xff]
        %v2999 = vld [vmem:[%s2800 + $0x39] sm:$0xff]
        %v3000 = vld [vmem:[%s2800 + $0x49] sm:$0xff]
        %v3001 = vld [vmem:[%s2800 + $0x51] sm:$0xff]
        %v3002 = vld [vmem:[%s2800 + $0x61] sm:$0xff]
        %v3003 = vld [vmem:[%s2800 + $0x69] sm:$0xff]
        %v3004 = vld [vmem:[%s2800 + $0x79] sm:$0xff]
        %v3005 = vld [vmem:[%s2800 + $0x81] sm:$0xff]
        %v3006 = vld [vmem:[%s2800 + $0x91] sm:$0xff]
        %v3007 = vld [vmem:[%s2800 + $0x99] sm:$0xff]
        %v3008 = vld [vmem:[%s2800 + $0xa9] sm:$0xff]
        %v3009 = vld [vmem:[%s2800 + $0xb1] sm:$0xff]
        %v3010 = vld [vmem:[%s2800 + $0xc1] sm:$0xff]
        %v3011 = vld [vmem:[%s2800 + $0xc9] sm:$0xff]
        %v3012 = vld [vmem:[%s2800 + $0xd9] sm:$0xff]
        %v3013 = vld [vmem:[%s2800 + $0xe1] sm:$0xff]
        %v3014 = vld [vmem:[%s2800 + $0xf1] sm:$0xff]
        %v3015 = vld [vmem:[%s2800 + $0xf9] sm:$0xff]
        %v3016 = vld [vmem:[%s2800 + $0x109] sm:$0xff]
        %v3017 = vld [vmem:[%s2800 + $0x111] sm:$0xff]
        %v3018 = vld [vmem:[%s2800 + $0x121] sm:$0xff]
        %v3019 = vld [vmem:[%s2800 + $0x129] sm:$0xff]
        %v3020 = vld [vmem:[%s2800 + $0x139] sm:$0xff]
        %v3021 = vld [vmem:[%s2800 + $0x141] sm:$0xff]
        %v3022 = vld [vmem:[%s2800 + $0x151] sm:$0xff]
        %v3023 = vld [vmem:[%s2800 + $0x159] sm:$0xff]
        %v3024 = vld [vmem:[%s2800 + $0x169] sm:$0xff]
        %v3025 = vld [vmem:[%s2800 + $0x171] sm:$0xff]
        %3058 = vrot.lane.b32.xlu0 %v2994, 28
        %v3059 = vpop.permute.xlu0 %3058
        %3060 = vrot.lane.b32.xlu0 %v2995, 28
        %v3061 = vpop.permute.xlu0 %3060
        %3062 = vrot.lane.b32.xlu0 %v2996, 28
        %v3063 = vpop.permute.xlu0 %3062
        %3064 = vrot.lane.b32.xlu0 %v2997, 28
        %v3065 = vpop.permute.xlu0 %3064
        %3066 = vrot.lane.b32.xlu0 %v2998, 28
        %v3067 = vpop.permute.xlu0 %3066
        %3068 = vrot.lane.b32.xlu0 %v2999, 28
        %v3069 = vpop.permute.xlu0 %3068
        %3070 = vrot.lane.b32.xlu0 %v3000, 28
        %v3071 = vpop.permute.xlu0 %3070
        %3072 = vrot.lane.b32.xlu0 %v3001, 28
        %v3073 = vpop.permute.xlu0 %3072
        %3074 = vrot.lane.b32.xlu0 %v3002, 28
        %v3075 = vpop.permute.xlu0 %3074
        %3076 = vrot.lane.b32.xlu0 %v3003, 28
        %v3077 = vpop.permute.xlu0 %3076
        %3078 = vrot.lane.b32.xlu0 %v3004, 28
        %v3079 = vpop.permute.xlu0 %3078
        %3080 = vrot.lane.b32.xlu0 %v3005, 28
        %v3081 = vpop.permute.xlu0 %3080
        %3082 = vrot.lane.b32.xlu0 %v3006, 28
        %v3083 = vpop.permute.xlu0 %3082
        %3084 = vrot.lane.b32.xlu0 %v3007, 28
        %v3085 = vpop.permute.xlu0 %3084
        %3086 = vrot.lane.b32.xlu0 %v3008, 28
        %v3087 = vpop.permute.xlu0 %3086
        %3088 = vrot.lane.b32.xlu0 %v3009, 28
        %v3089 = vpop.permute.xlu0 %3088
        %3090 = vrot.lane.b32.xlu0 %v3010, 28
        %v3091 = vpop.permute.xlu0 %3090
        %3092 = vrot.lane.b32.xlu0 %v3011, 28
        %v3093 = vpop.permute.xlu0 %3092
        %3094 = vrot.lane.b32.xlu0 %v3012, 28
        %v3095 = vpop.permute.xlu0 %3094
        %3096 = vrot.lane.b32.xlu0 %v3013, 28
        %v3097 = vpop.permute.xlu0 %3096
        %3098 = vrot.lane.b32.xlu0 %v3014, 28
        %v3099 = vpop.permute.xlu0 %3098
        %3100 = vrot.lane.b32.xlu0 %v3015, 28
        %v3101 = vpop.permute.xlu0 %3100
        %3102 = vrot.lane.b32.xlu0 %v3016, 28
        %v3103 = vpop.permute.xlu0 %3102
        %3104 = vrot.lane.b32.xlu0 %v3017, 28
        %v3105 = vpop.permute.xlu0 %3104
        %3106 = vrot.lane.b32.xlu0 %v3018, 28
        %v3107 = vpop.permute.xlu0 %3106
        %3108 = vrot.lane.b32.xlu0 %v3019, 28
        %v3109 = vpop.permute.xlu0 %3108
        %3110 = vrot.lane.b32.xlu0 %v3020, 28
        %v3111 = vpop.permute.xlu0 %3110
        %3112 = vrot.lane.b32.xlu0 %v3021, 28
        %v3113 = vpop.permute.xlu0 %3112
        %3114 = vrot.lane.b32.xlu0 %v3022, 28
        %v3115 = vpop.permute.xlu0 %3114
        %3116 = vrot.lane.b32.xlu0 %v3023, 28
        %v3117 = vpop.permute.xlu0 %3116
        %3118 = vrot.lane.b32.xlu0 %v3024, 28
        %v3119 = vpop.permute.xlu0 %3118
        %3120 = vrot.lane.b32.xlu0 %v3025, 28
        %v3121 = vpop.permute.xlu0 %3120
        %vm3154 = vcmask 261344
        %3155 = vst.msk [vmem:[#allocation3] sm:$0xff] %vm3154, %v3059
        %3156 = vst.msk [vmem:[#allocation3 + $0x8] sm:$0xff] %vm3154, %v3061
        %3157 = vst.msk [vmem:[#allocation3 + $0x10] sm:$0xff] %vm3154, %v3063
        %3158 = vst.msk [vmem:[#allocation3 + $0x18] sm:$0xff] %vm3154, %v3065
        %3159 = vst.msk [vmem:[#allocation3 + $0x20] sm:$0xff] %vm3154, %v3067
        %3160 = vst.msk [vmem:[#allocation3 + $0x28] sm:$0xff] %vm3154, %v3069
        %3161 = vst.msk [vmem:[#allocation3 + $0x30] sm:$0xff] %vm3154, %v3071
        %3162 = vst.msk [vmem:[#allocation3 + $0x38] sm:$0xff] %vm3154, %v3073
        %3163 = vst.msk [vmem:[#allocation3 + $0x40] sm:$0xff] %vm3154, %v3075
        %3164 = vst.msk [vmem:[#allocation3 + $0x48] sm:$0xff] %vm3154, %v3077
        %3165 = vst.msk [vmem:[#allocation3 + $0x50] sm:$0xff] %vm3154, %v3079
        %3166 = vst.msk [vmem:[#allocation3 + $0x58] sm:$0xff] %vm3154, %v3081
        %3167 = vst.msk [vmem:[#allocation3 + $0x60] sm:$0xff] %vm3154, %v3083
        %3168 = vst.msk [vmem:[#allocation3 + $0x68] sm:$0xff] %vm3154, %v3085
        %3169 = vst.msk [vmem:[#allocation3 + $0x70] sm:$0xff] %vm3154, %v3087
        %3170 = vst.msk [vmem:[#allocation3 + $0x78] sm:$0xff] %vm3154, %v3089
        %3171 = vst.msk [vmem:[#allocation3 + $0x80] sm:$0xff] %vm3154, %v3091
        %3172 = vst.msk [vmem:[#allocation3 + $0x88] sm:$0xff] %vm3154, %v3093
        %3173 = vst.msk [vmem:[#allocation3 + $0x90] sm:$0xff] %vm3154, %v3095
        %3174 = vst.msk [vmem:[#allocation3 + $0x98] sm:$0xff] %vm3154, %v3097
        %3175 = vst.msk [vmem:[#allocation3 + $0xa0] sm:$0xff] %vm3154, %v3099
        %3176 = vst.msk [vmem:[#allocation3 + $0xa8] sm:$0xff] %vm3154, %v3101
        %3177 = vst.msk [vmem:[#allocation3 + $0xb0] sm:$0xff] %vm3154, %v3103
        %3178 = vst.msk [vmem:[#allocation3 + $0xb8] sm:$0xff] %vm3154, %v3105
        %3179 = vst.msk [vmem:[#allocation3 + $0xc0] sm:$0xff] %vm3154, %v3107
        %3180 = vst.msk [vmem:[#allocation3 + $0xc8] sm:$0xff] %vm3154, %v3109
        %3181 = vst.msk [vmem:[#allocation3 + $0xd0] sm:$0xff] %vm3154, %v3111
        %3182 = vst.msk [vmem:[#allocation3 + $0xd8] sm:$0xff] %vm3154, %v3113
        %3183 = vst.msk [vmem:[#allocation3 + $0xe0] sm:$0xff] %vm3154, %v3115
        %3184 = vst.msk [vmem:[#allocation3 + $0xe8] sm:$0xff] %vm3154, %v3117
        %3185 = vst.msk [vmem:[#allocation3 + $0xf0] sm:$0xff] %vm3154, %v3119
        %3186 = vst.msk [vmem:[#allocation3 + $0xf8] sm:$0xff] %vm3154, %v3121
        %v3187 = vld [vmem:[%s2800 + $0x2] sm:$0xff]
        %v3188 = vld [vmem:[%s2800 + $0xa] sm:$0xff]
        %v3189 = vld [vmem:[%s2800 + $0x1a] sm:$0xff]
        %v3190 = vld [vmem:[%s2800 + $0x22] sm:$0xff]
        %v3191 = vld [vmem:[%s2800 + $0x32] sm:$0xff]
        %v3192 = vld [vmem:[%s2800 + $0x3a] sm:$0xff]
        %v3193 = vld [vmem:[%s2800 + $0x4a] sm:$0xff]
        %v3194 = vld [vmem:[%s2800 + $0x52] sm:$0xff]
        %v3195 = vld [vmem:[%s2800 + $0x62] sm:$0xff]
        %v3196 = vld [vmem:[%s2800 + $0x6a] sm:$0xff]
        %v3197 = vld [vmem:[%s2800 + $0x7a] sm:$0xff]
        %v3198 = vld [vmem:[%s2800 + $0x82] sm:$0xff]
        %v3199 = vld [vmem:[%s2800 + $0x92] sm:$0xff]
        %v3200 = vld [vmem:[%s2800 + $0x9a] sm:$0xff]
        %v3201 = vld [vmem:[%s2800 + $0xaa] sm:$0xff]
        %v3202 = vld [vmem:[%s2800 + $0xb2] sm:$0xff]
        %v3203 = vld [vmem:[%s2800 + $0xc2] sm:$0xff]
        %v3204 = vld [vmem:[%s2800 + $0xca] sm:$0xff]
        %v3205 = vld [vmem:[%s2800 + $0xda] sm:$0xff]
        %v3206 = vld [vmem:[%s2800 + $0xe2] sm:$0xff]
        %v3207 = vld [vmem:[%s2800 + $0xf2] sm:$0xff]
        %v3208 = vld [vmem:[%s2800 + $0xfa] sm:$0xff]
        %v3209 = vld [vmem:[%s2800 + $0x10a] sm:$0xff]
        %v3210 = vld [vmem:[%s2800 + $0x112] sm:$0xff]
        %v3211 = vld [vmem:[%s2800 + $0x122] sm:$0xff]
        %v3212 = vld [vmem:[%s2800 + $0x12a] sm:$0xff]
        %v3213 = vld [vmem:[%s2800 + $0x13a] sm:$0xff]
        %v3214 = vld [vmem:[%s2800 + $0x142] sm:$0xff]
        %v3215 = vld [vmem:[%s2800 + $0x152] sm:$0xff]
        %v3216 = vld [vmem:[%s2800 + $0x15a] sm:$0xff]
        %v3217 = vld [vmem:[%s2800 + $0x16a] sm:$0xff]
        %v3218 = vld [vmem:[%s2800 + $0x172] sm:$0xff]
        %3251 = vrot.lane.b32.xlu0 %v3187, 32
        %v3252 = vpop.permute.xlu0 %3251
        %3253 = vrot.lane.b32.xlu0 %v3188, 32
        %v3254 = vpop.permute.xlu0 %3253
        %3255 = vrot.lane.b32.xlu0 %v3189, 32
        %v3256 = vpop.permute.xlu0 %3255
        %3257 = vrot.lane.b32.xlu0 %v3190, 32
        %v3258 = vpop.permute.xlu0 %3257
        %3259 = vrot.lane.b32.xlu0 %v3191, 32
        %v3260 = vpop.permute.xlu0 %3259
        %3261 = vrot.lane.b32.xlu0 %v3192, 32
        %v3262 = vpop.permute.xlu0 %3261
        %3263 = vrot.lane.b32.xlu0 %v3193, 32
        %v3264 = vpop.permute.xlu0 %3263
        %3265 = vrot.lane.b32.xlu0 %v3194, 32
        %v3266 = vpop.permute.xlu0 %3265
        %3267 = vrot.lane.b32.xlu0 %v3195, 32
        %v3268 = vpop.permute.xlu0 %3267
        %3269 = vrot.lane.b32.xlu0 %v3196, 32
        %v3270 = vpop.permute.xlu0 %3269
        %3271 = vrot.lane.b32.xlu0 %v3197, 32
        %v3272 = vpop.permute.xlu0 %3271
        %3273 = vrot.lane.b32.xlu0 %v3198, 32
        %v3274 = vpop.permute.xlu0 %3273
        %3275 = vrot.lane.b32.xlu0 %v3199, 32
        %v3276 = vpop.permute.xlu0 %3275
        %3277 = vrot.lane.b32.xlu0 %v3200, 32
        %v3278 = vpop.permute.xlu0 %3277
        %3279 = vrot.lane.b32.xlu0 %v3201, 32
        %v3280 = vpop.permute.xlu0 %3279
        %3281 = vrot.lane.b32.xlu0 %v3202, 32
        %v3282 = vpop.permute.xlu0 %3281
        %3283 = vrot.lane.b32.xlu0 %v3203, 32
        %v3284 = vpop.permute.xlu0 %3283
        %3285 = vrot.lane.b32.xlu0 %v3204, 32
        %v3286 = vpop.permute.xlu0 %3285
        %3287 = vrot.lane.b32.xlu0 %v3205, 32
        %v3288 = vpop.permute.xlu0 %3287
        %3289 = vrot.lane.b32.xlu0 %v3206, 32
        %v3290 = vpop.permute.xlu0 %3289
        %3291 = vrot.lane.b32.xlu0 %v3207, 32
        %v3292 = vpop.permute.xlu0 %3291
        %3293 = vrot.lane.b32.xlu0 %v3208, 32
        %v3294 = vpop.permute.xlu0 %3293
        %3295 = vrot.lane.b32.xlu0 %v3209, 32
        %v3296 = vpop.permute.xlu0 %3295
        %3297 = vrot.lane.b32.xlu0 %v3210, 32
        %v3298 = vpop.permute.xlu0 %3297
        %3299 = vrot.lane.b32.xlu0 %v3211, 32
        %v3300 = vpop.permute.xlu0 %3299
        %3301 = vrot.lane.b32.xlu0 %v3212, 32
        %v3302 = vpop.permute.xlu0 %3301
        %3303 = vrot.lane.b32.xlu0 %v3213, 32
        %v3304 = vpop.permute.xlu0 %3303
        %3305 = vrot.lane.b32.xlu0 %v3214, 32
        %v3306 = vpop.permute.xlu0 %3305
        %3307 = vrot.lane.b32.xlu0 %v3215, 32
        %v3308 = vpop.permute.xlu0 %3307
        %3309 = vrot.lane.b32.xlu0 %v3216, 32
        %v3310 = vpop.permute.xlu0 %3309
        %3311 = vrot.lane.b32.xlu0 %v3217, 32
        %v3312 = vpop.permute.xlu0 %3311
        %3313 = vrot.lane.b32.xlu0 %v3218, 32
        %v3314 = vpop.permute.xlu0 %3313
        %vm3347 = vcmask 294144
        %3348 = vst.msk [vmem:[#allocation3] sm:$0xff] %vm3347, %v3252
        %3349 = vst.msk [vmem:[#allocation3 + $0x8] sm:$0xff] %vm3347, %v3254
        %3350 = vst.msk [vmem:[#allocation3 + $0x10] sm:$0xff] %vm3347, %v3256
        %3351 = vst.msk [vmem:[#allocation3 + $0x18] sm:$0xff] %vm3347, %v3258
        %3352 = vst.msk [vmem:[#allocation3 + $0x20] sm:$0xff] %vm3347, %v3260
        %3353 = vst.msk [vmem:[#allocation3 + $0x28] sm:$0xff] %vm3347, %v3262
        %3354 = vst.msk [vmem:[#allocation3 + $0x30] sm:$0xff] %vm3347, %v3264
        %3355 = vst.msk [vmem:[#allocation3 + $0x38] sm:$0xff] %vm3347, %v3266
        %3356 = vst.msk [vmem:[#allocation3 + $0x40] sm:$0xff] %vm3347, %v3268
        %3357 = vst.msk [vmem:[#allocation3 + $0x48] sm:$0xff] %vm3347, %v3270
        %3358 = vst.msk [vmem:[#allocation3 + $0x50] sm:$0xff] %vm3347, %v3272
        %3359 = vst.msk [vmem:[#allocation3 + $0x58] sm:$0xff] %vm3347, %v3274
        %3360 = vst.msk [vmem:[#allocation3 + $0x60] sm:$0xff] %vm3347, %v3276
        %3361 = vst.msk [vmem:[#allocation3 + $0x68] sm:$0xff] %vm3347, %v3278
        %3362 = vst.msk [vmem:[#allocation3 + $0x70] sm:$0xff] %vm3347, %v3280
        %3363 = vst.msk [vmem:[#allocation3 + $0x78] sm:$0xff] %vm3347, %v3282
        %3364 = vst.msk [vmem:[#allocation3 + $0x80] sm:$0xff] %vm3347, %v3284
        %3365 = vst.msk [vmem:[#allocation3 + $0x88] sm:$0xff] %vm3347, %v3286
        %3366 = vst.msk [vmem:[#allocation3 + $0x90] sm:$0xff] %vm3347, %v3288
        %3367 = vst.msk [vmem:[#allocation3 + $0x98] sm:$0xff] %vm3347, %v3290
        %3368 = vst.msk [vmem:[#allocation3 + $0xa0] sm:$0xff] %vm3347, %v3292
        %3369 = vst.msk [vmem:[#allocation3 + $0xa8] sm:$0xff] %vm3347, %v3294
        %3370 = vst.msk [vmem:[#allocation3 + $0xb0] sm:$0xff] %vm3347, %v3296
        %3371 = vst.msk [vmem:[#allocation3 + $0xb8] sm:$0xff] %vm3347, %v3298
        %3372 = vst.msk [vmem:[#allocation3 + $0xc0] sm:$0xff] %vm3347, %v3300
        %3373 = vst.msk [vmem:[#allocation3 + $0xc8] sm:$0xff] %vm3347, %v3302
        %3374 = vst.msk [vmem:[#allocation3 + $0xd0] sm:$0xff] %vm3347, %v3304
        %3375 = vst.msk [vmem:[#allocation3 + $0xd8] sm:$0xff] %vm3347, %v3306
        %3376 = vst.msk [vmem:[#allocation3 + $0xe0] sm:$0xff] %vm3347, %v3308
        %3377 = vst.msk [vmem:[#allocation3 + $0xe8] sm:$0xff] %vm3347, %v3310
        %3378 = vst.msk [vmem:[#allocation3 + $0xf0] sm:$0xff] %vm3347, %v3312
        %3379 = vst.msk [vmem:[#allocation3 + $0xf8] sm:$0xff] %vm3347, %v3314
        %v3380 = vld [vmem:[#allocation3] sm:$0xff]
        %v3381 = vld [vmem:[#allocation3 + $0x8] sm:$0xff]
        %v3382 = vld [vmem:[#allocation3 + $0x10] sm:$0xff]
        %v3383 = vld [vmem:[#allocation3 + $0x18] sm:$0xff]
        %v3384 = vld [vmem:[#allocation3 + $0x20] sm:$0xff]
        %v3385 = vld [vmem:[#allocation3 + $0x28] sm:$0xff]
        %v3386 = vld [vmem:[#allocation3 + $0x30] sm:$0xff]
        %v3387 = vld [vmem:[#allocation3 + $0x38] sm:$0xff]
        %v3388 = vld [vmem:[#allocation3 + $0x40] sm:$0xff]
        %v3389 = vld [vmem:[#allocation3 + $0x48] sm:$0xff]
        %v3390 = vld [vmem:[#allocation3 + $0x50] sm:$0xff]
        %v3391 = vld [vmem:[#allocation3 + $0x58] sm:$0xff]
        %v3392 = vld [vmem:[#allocation3 + $0x60] sm:$0xff]
        %v3393 = vld [vmem:[#allocation3 + $0x68] sm:$0xff]
        %v3394 = vld [vmem:[#allocation3 + $0x70] sm:$0xff]
        %v3395 = vld [vmem:[#allocation3 + $0x78] sm:$0xff]
        %v3396 = vld [vmem:[#allocation3 + $0x80] sm:$0xff]
        %v3397 = vld [vmem:[#allocation3 + $0x88] sm:$0xff]
        %v3398 = vld [vmem:[#allocation3 + $0x90] sm:$0xff]
        %v3399 = vld [vmem:[#allocation3 + $0x98] sm:$0xff]
        %v3400 = vld [vmem:[#allocation3 + $0xa0] sm:$0xff]
        %v3401 = vld [vmem:[#allocation3 + $0xa8] sm:$0xff]
        %v3402 = vld [vmem:[#allocation3 + $0xb0] sm:$0xff]
        %v3403 = vld [vmem:[#allocation3 + $0xb8] sm:$0xff]
        %v3404 = vld [vmem:[#allocation3 + $0xc0] sm:$0xff]
        %v3405 = vld [vmem:[#allocation3 + $0xc8] sm:$0xff]
        %v3406 = vld [vmem:[#allocation3 + $0xd0] sm:$0xff]
        %v3407 = vld [vmem:[#allocation3 + $0xd8] sm:$0xff]
        %v3408 = vld [vmem:[#allocation3 + $0xe0] sm:$0xff]
        %v3409 = vld [vmem:[#allocation3 + $0xe8] sm:$0xff]
        %v3410 = vld [vmem:[#allocation3 + $0xf0] sm:$0xff]
        %v3411 = vld [vmem:[#allocation3 + $0xf8] sm:$0xff]
        %v3412 = vld [vmem:[%s2] sm:$0xff]
        %v3413 = vld [vmem:[%s11] sm:$0x1]
        %v3415 = vperm.slane %v3413, 0
        %vm3417 = vcmask 293888
        %v3419 = vsel %vm3417, %v3380, 0
        %v3422 = vsel %vm3417, %v3381, 0
        %v3425 = vsel %vm3417, %v3382, 0
        %v3428 = vsel %vm3417, %v3383, 0
        %v3431 = vsel %vm3417, %v3384, 0
        %v3434 = vsel %vm3417, %v3385, 0
        %v3437 = vsel %vm3417, %v3386, 0
        %v3440 = vsel %vm3417, %v3387, 0
        %v3443 = vsel %vm3417, %v3388, 0
        %v3446 = vsel %vm3417, %v3389, 0
        %v3449 = vsel %vm3417, %v3390, 0
        %v3452 = vsel %vm3417, %v3391, 0
        %v3455 = vsel %vm3417, %v3392, 0
        %v3458 = vsel %vm3417, %v3393, 0
        %v3461 = vsel %vm3417, %v3394, 0
        %v3464 = vsel %vm3417, %v3395, 0
        %v3467 = vsel %vm3417, %v3396, 0
        %v3470 = vsel %vm3417, %v3397, 0
        %v3473 = vsel %vm3417, %v3398, 0
        %v3476 = vsel %vm3417, %v3399, 0
        %v3479 = vsel %vm3417, %v3400, 0
        %v3482 = vsel %vm3417, %v3401, 0
        %v3485 = vsel %vm3417, %v3402, 0
        %v3488 = vsel %vm3417, %v3403, 0
        %v3491 = vsel %vm3417, %v3404, 0
        %v3494 = vsel %vm3417, %v3405, 0
        %v3497 = vsel %vm3417, %v3406, 0
        %v3500 = vsel %vm3417, %v3407, 0
        %v3503 = vsel %vm3417, %v3408, 0
        %v3506 = vsel %vm3417, %v3409, 0
        %v3509 = vsel %vm3417, %v3410, 0
        %v3512 = vsel %vm3417, %v3411, 0
        %v3515 = vsel %vm3417, %v3412, 0
        %3517 = vmatpush.xpose.msra.mxu0 0.0
        %3518 = vmatpush.xpose.msra.mxu0 0.0
        %3519 = vmatpush.xpose.msra.mxu0 0.0
        %3520 = vmatpush.xpose.msra.mxu0 0.0
        %3521 = vmatpush.xpose.msra.mxu0 0.0
        %3522 = vmatpush.xpose.msra.mxu0 0.0
        %3523 = vmatpush.xpose.msra.mxu0 0.0
        %3524 = vmatpush.xpose.msra.mxu0 0.0
        %3525 = vmatpush.xpose.msra.mxu0 0.0
        %3526 = vmatpush.xpose.msra.mxu0 0.0
        %3527 = vmatpush.xpose.msra.mxu0 0.0
        %3528 = vmatpush.xpose.msra.mxu0 0.0
        %3529 = vmatpush.xpose.msra.mxu0 0.0
        %3530 = vmatpush.xpose.msra.mxu0 0.0
        %3531 = vmatpush.xpose.msra.mxu0 0.0
        %3532 = vmatpush.xpose.msra.mxu0 %v3515
        %3533 = vmatmul.f32.gmra.mxu0 %v3419
        %v3534 = vpop.f32.mrf.mxu0
        %v3535 = vadd.f32 %v3415, %v3534
        %3536 = vmatmul.f32.gmra.mxu0 %v3422
        %v3537 = vpop.f32.mrf.mxu0
        %v3538 = vadd.f32 %v3415, %v3537
        %3539 = vmatmul.f32.gmra.mxu0 %v3425
        %v3540 = vpop.f32.mrf.mxu0
        %v3541 = vadd.f32 %v3415, %v3540
        %3542 = vmatmul.f32.gmra.mxu0 %v3428
        %v3543 = vpop.f32.mrf.mxu0
        %v3544 = vadd.f32 %v3415, %v3543
        %3545 = vmatmul.f32.gmra.mxu0 %v3431
        %v3546 = vpop.f32.mrf.mxu0
        %v3547 = vadd.f32 %v3415, %v3546
        %3548 = vmatmul.f32.gmra.mxu0 %v3434
        %v3549 = vpop.f32.mrf.mxu0
        %v3550 = vadd.f32 %v3415, %v3549
        %3551 = vmatmul.f32.gmra.mxu0 %v3437
        %v3552 = vpop.f32.mrf.mxu0
        %v3553 = vadd.f32 %v3415, %v3552
        %3554 = vmatmul.f32.gmra.mxu0 %v3440
        %v3555 = vpop.f32.mrf.mxu0
        %v3556 = vadd.f32 %v3415, %v3555
        %3557 = vmatmul.f32.gmra.mxu0 %v3443
        %v3558 = vpop.f32.mrf.mxu0
        %v3559 = vadd.f32 %v3415, %v3558
        %3560 = vmatmul.f32.gmra.mxu0 %v3446
        %v3561 = vpop.f32.mrf.mxu0
        %v3562 = vadd.f32 %v3415, %v3561
        %3563 = vmatmul.f32.gmra.mxu0 %v3449
        %v3564 = vpop.f32.mrf.mxu0
        %v3565 = vadd.f32 %v3415, %v3564
        %3566 = vmatmul.f32.gmra.mxu0 %v3452
        %v3567 = vpop.f32.mrf.mxu0
        %v3568 = vadd.f32 %v3415, %v3567
        %3569 = vmatmul.f32.gmra.mxu0 %v3455
        %v3570 = vpop.f32.mrf.mxu0
        %v3571 = vadd.f32 %v3415, %v3570
        %3572 = vmatmul.f32.gmra.mxu0 %v3458
        %v3573 = vpop.f32.mrf.mxu0
        %v3574 = vadd.f32 %v3415, %v3573
        %3575 = vmatmul.f32.gmra.mxu0 %v3461
        %v3576 = vpop.f32.mrf.mxu0
        %v3577 = vadd.f32 %v3415, %v3576
        %3578 = vmatmul.f32.gmra.mxu0 %v3464
        %v3579 = vpop.f32.mrf.mxu0
        %v3580 = vadd.f32 %v3415, %v3579
        %3581 = vmatmul.f32.gmra.mxu0 %v3467
        %v3582 = vpop.f32.mrf.mxu0
        %v3583 = vadd.f32 %v3415, %v3582
        %3584 = vmatmul.f32.gmra.mxu0 %v3470
        %v3585 = vpop.f32.mrf.mxu0
        %v3586 = vadd.f32 %v3415, %v3585
        %3587 = vmatmul.f32.gmra.mxu0 %v3473
        %v3588 = vpop.f32.mrf.mxu0
        %v3589 = vadd.f32 %v3415, %v3588
        %3590 = vmatmul.f32.gmra.mxu0 %v3476
        %v3591 = vpop.f32.mrf.mxu0
        %v3592 = vadd.f32 %v3415, %v3591
        %3593 = vmatmul.f32.gmra.mxu0 %v3479
        %v3594 = vpop.f32.mrf.mxu0
        %v3595 = vadd.f32 %v3415, %v3594
        %3596 = vmatmul.f32.gmra.mxu0 %v3482
        %v3597 = vpop.f32.mrf.mxu0
        %v3598 = vadd.f32 %v3415, %v3597
        %3599 = vmatmul.f32.gmra.mxu0 %v3485
        %v3600 = vpop.f32.mrf.mxu0
        %v3601 = vadd.f32 %v3415, %v3600
        %3602 = vmatmul.f32.gmra.mxu0 %v3488
        %v3603 = vpop.f32.mrf.mxu0
        %v3604 = vadd.f32 %v3415, %v3603
        %3605 = vmatmul.f32.gmra.mxu0 %v3491
        %v3606 = vpop.f32.mrf.mxu0
        %v3607 = vadd.f32 %v3415, %v3606
        %3608 = vmatmul.f32.gmra.mxu0 %v3494
        %v3609 = vpop.f32.mrf.mxu0
        %v3610 = vadd.f32 %v3415, %v3609
        %3611 = vmatmul.f32.gmra.mxu0 %v3497
        %v3612 = vpop.f32.mrf.mxu0
        %v3613 = vadd.f32 %v3415, %v3612
        %3614 = vmatmul.f32.gmra.mxu0 %v3500
        %v3615 = vpop.f32.mrf.mxu0
        %v3616 = vadd.f32 %v3415, %v3615
        %3617 = vmatmul.f32.gmra.mxu0 %v3503
        %v3618 = vpop.f32.mrf.mxu0
        %v3619 = vadd.f32 %v3415, %v3618
        %3620 = vmatmul.f32.gmra.mxu0 %v3506
        %v3621 = vpop.f32.mrf.mxu0
        %v3622 = vadd.f32 %v3415, %v3621
        %3623 = vmatmul.f32.gmra.mxu0 %v3509
        %v3624 = vpop.f32.mrf.mxu0
        %v3625 = vadd.f32 %v3415, %v3624
        %3626 = vmatmul.f32.gmra.mxu0 %v3512
        %v3627 = vpop.f32.mrf.mxu0
        %v3628 = vadd.f32 %v3415, %v3627
        %3629 = vdwg.mxu0
        %v3630 = vxor.u32 %v637, 2147483648
        %v3631 = vxor.u32 %v638, 2147483648
        %v3632 = vxor.u32 %v639, 2147483648
        %v3633 = vxor.u32 %v640, 2147483648
        %v3634 = vxor.u32 %v641, 2147483648
        %v3635 = vxor.u32 %v642, 2147483648
        %v3636 = vxor.u32 %v643, 2147483648
        %v3637 = vxor.u32 %v644, 2147483648
        %v3638 = vxor.u32 %v645, 2147483648
        %v3639 = vxor.u32 %v646, 2147483648
        %v3640 = vxor.u32 %v647, 2147483648
        %v3641 = vxor.u32 %v648, 2147483648
        %v3642 = vxor.u32 %v649, 2147483648
        %v3643 = vxor.u32 %v650, 2147483648
        %v3644 = vxor.u32 %v651, 2147483648
        %v3645 = vxor.u32 %v652, 2147483648
        %v3646 = vxor.u32 %v653, 2147483648
        %v3647 = vxor.u32 %v654, 2147483648
        %v3648 = vxor.u32 %v655, 2147483648
        %v3649 = vxor.u32 %v656, 2147483648
        %v3650 = vxor.u32 %v657, 2147483648
        %v3651 = vxor.u32 %v658, 2147483648
        %v3652 = vxor.u32 %v659, 2147483648
        %v3653 = vxor.u32 %v660, 2147483648
        %v3654 = vxor.u32 %v661, 2147483648
        %v3655 = vxor.u32 %v662, 2147483648
        %v3656 = vxor.u32 %v663, 2147483648
        %v3657 = vxor.u32 %v664, 2147483648
        %v3658 = vxor.u32 %v665, 2147483648
        %v3659 = vxor.u32 %v666, 2147483648
        %v3660 = vxor.u32 %v667, 2147483648
        %v3661 = vxor.u32 %v668, 2147483648
        %v3662 = vmul.f32 %v3630, 1.442695
        %v3663 = vpow.pop %v3662
        %v3664 = vmul.f32 %v3631, 1.442695
        %v3665 = vpow.pop %v3664
        %v3666 = vmul.f32 %v3632, 1.442695
        %v3667 = vpow.pop %v3666
        %v3668 = vmul.f32 %v3633, 1.442695
        %v3669 = vpow.pop %v3668
        %v3670 = vmul.f32 %v3634, 1.442695
        %v3671 = vpow.pop %v3670
        %v3672 = vmul.f32 %v3635, 1.442695
        %v3673 = vpow.pop %v3672
        %v3674 = vmul.f32 %v3636, 1.442695
        %v3675 = vpow.pop %v3674
        %v3676 = vmul.f32 %v3637, 1.442695
        %v3677 = vpow.pop %v3676
        %v3678 = vmul.f32 %v3638, 1.442695
        %v3679 = vpow.pop %v3678
        %v3680 = vmul.f32 %v3639, 1.442695
        %v3681 = vpow.pop %v3680
        %v3682 = vmul.f32 %v3640, 1.442695
        %v3683 = vpow.pop %v3682
        %v3684 = vmul.f32 %v3641, 1.442695
        %v3685 = vpow.pop %v3684
        %v3686 = vmul.f32 %v3642, 1.442695
        %v3687 = vpow.pop %v3686
        %v3688 = vmul.f32 %v3643, 1.442695
        %v3689 = vpow.pop %v3688
        %v3690 = vmul.f32 %v3644, 1.442695
        %v3691 = vpow.pop %v3690
        %v3692 = vmul.f32 %v3645, 1.442695
        %v3693 = vpow.pop %v3692
        %v3694 = vmul.f32 %v3646, 1.442695
        %v3695 = vpow.pop %v3694
        %v3696 = vmul.f32 %v3647, 1.442695
        %v3697 = vpow.pop %v3696
        %v3698 = vmul.f32 %v3648, 1.442695
        %v3699 = vpow.pop %v3698
        %v3700 = vmul.f32 %v3649, 1.442695
        %v3701 = vpow.pop %v3700
        %v3702 = vmul.f32 %v3650, 1.442695
        %v3703 = vpow.pop %v3702
        %v3704 = vmul.f32 %v3651, 1.442695
        %v3705 = vpow.pop %v3704
        %v3706 = vmul.f32 %v3652, 1.442695
        %v3707 = vpow.pop %v3706
        %v3708 = vmul.f32 %v3653, 1.442695
        %v3709 = vpow.pop %v3708
        %v3710 = vmul.f32 %v3654, 1.442695
        %v3711 = vpow.pop %v3710
        %v3712 = vmul.f32 %v3655, 1.442695
        %v3713 = vpow.pop %v3712
        %v3714 = vmul.f32 %v3656, 1.442695
        %v3715 = vpow.pop %v3714
        %v3716 = vmul.f32 %v3657, 1.442695
        %v3717 = vpow.pop %v3716
        %v3718 = vmul.f32 %v3658, 1.442695
        %v3719 = vpow.pop %v3718
        %v3720 = vmul.f32 %v3659, 1.442695
        %v3721 = vpow.pop %v3720
        %v3722 = vmul.f32 %v3660, 1.442695
        %v3723 = vpow.pop %v3722
        %v3724 = vmul.f32 %v3661, 1.442695
        %v3725 = vpow.pop %v3724
        %v3726 = vadd.f32 %v3663, 1.0
        %v3727 = vadd.f32 %v3665, 1.0
        %v3728 = vadd.f32 %v3667, 1.0
        %v3729 = vadd.f32 %v3669, 1.0
        %v3730 = vadd.f32 %v3671, 1.0
        %v3731 = vadd.f32 %v3673, 1.0
        %v3732 = vadd.f32 %v3675, 1.0
        %v3733 = vadd.f32 %v3677, 1.0
        %v3734 = vadd.f32 %v3679, 1.0
        %v3735 = vadd.f32 %v3681, 1.0
        %v3736 = vadd.f32 %v3683, 1.0
        %v3737 = vadd.f32 %v3685, 1.0
        %v3738 = vadd.f32 %v3687, 1.0
        %v3739 = vadd.f32 %v3689, 1.0
        %v3740 = vadd.f32 %v3691, 1.0
        %v3741 = vadd.f32 %v3693, 1.0
        %v3742 = vadd.f32 %v3695, 1.0
        %v3743 = vadd.f32 %v3697, 1.0
        %v3744 = vadd.f32 %v3699, 1.0
        %v3745 = vadd.f32 %v3701, 1.0
        %v3746 = vadd.f32 %v3703, 1.0
        %v3747 = vadd.f32 %v3705, 1.0
        %v3748 = vadd.f32 %v3707, 1.0
        %v3749 = vadd.f32 %v3709, 1.0
        %v3750 = vadd.f32 %v3711, 1.0
        %v3751 = vadd.f32 %v3713, 1.0
        %v3752 = vadd.f32 %v3715, 1.0
        %v3753 = vadd.f32 %v3717, 1.0
        %v3754 = vadd.f32 %v3719, 1.0
        %v3755 = vadd.f32 %v3721, 1.0
        %v3756 = vadd.f32 %v3723, 1.0
        %v3757 = vadd.f32 %v3725, 1.0
        %v3758 = vrcp.pop %v3726
        %v3759 = vmul.f32 %v3726, %v3758
        %v3760 = vsub.f32 1.0, %v3759
        %v3761 = vmul.f32 %v3758, %v3760
        %v3762 = vadd.f32 %v3758, %v3761
        %vm3763 = vweird.f32 %v3726
        %vm3764 = vweird.f32 %v3758
        %vm3765 = vmor %vm3763, %vm3764
        %v3766 = vsel %vm3765, %v3758, %v3762
        %v3767 = vand.u32 2147483647, %v3726
        %vm3768 = vcmp.eq.f32.partialorder %v3767, 8.507059e+37
        %v3769 = vand.u32 %v3726, 2147483648
        %v3770 = vor.u32 1.1754944e-38, %v3769
        %v3771 = vsel %vm3768, %v3770, %v3766
        %v3772 = vmul.f32 1.0, %v3771
        %v3773 = vrcp.pop %v3727
        %v3774 = vmul.f32 %v3727, %v3773
        %v3775 = vsub.f32 1.0, %v3774
        %v3776 = vmul.f32 %v3773, %v3775
        %v3777 = vadd.f32 %v3773, %v3776
        %vm3778 = vweird.f32 %v3727
        %vm3779 = vweird.f32 %v3773
        %vm3780 = vmor %vm3778, %vm3779
        %v3781 = vsel %vm3780, %v3773, %v3777
        %v3782 = vand.u32 2147483647, %v3727
        %vm3783 = vcmp.eq.f32.partialorder %v3782, 8.507059e+37
        %v3784 = vand.u32 %v3727, 2147483648
        %v3785 = vor.u32 1.1754944e-38, %v3784
        %v3786 = vsel %vm3783, %v3785, %v3781
        %v3787 = vmul.f32 1.0, %v3786
        %v3788 = vrcp.pop %v3728
        %v3789 = vmul.f32 %v3728, %v3788
        %v3790 = vsub.f32 1.0, %v3789
        %v3791 = vmul.f32 %v3788, %v3790
        %v3792 = vadd.f32 %v3788, %v3791
        %vm3793 = vweird.f32 %v3728
        %vm3794 = vweird.f32 %v3788
        %vm3795 = vmor %vm3793, %vm3794
        %v3796 = vsel %vm3795, %v3788, %v3792
        %v3797 = vand.u32 2147483647, %v3728
        %vm3798 = vcmp.eq.f32.partialorder %v3797, 8.507059e+37
        %v3799 = vand.u32 %v3728, 2147483648
        %v3800 = vor.u32 1.1754944e-38, %v3799
        %v3801 = vsel %vm3798, %v3800, %v3796
        %v3802 = vmul.f32 1.0, %v3801
        %v3803 = vrcp.pop %v3729
        %v3804 = vmul.f32 %v3729, %v3803
        %v3805 = vsub.f32 1.0, %v3804
        %v3806 = vmul.f32 %v3803, %v3805
        %v3807 = vadd.f32 %v3803, %v3806
        %vm3808 = vweird.f32 %v3729
        %vm3809 = vweird.f32 %v3803
        %vm3810 = vmor %vm3808, %vm3809
        %v3811 = vsel %vm3810, %v3803, %v3807
        %v3812 = vand.u32 2147483647, %v3729
        %vm3813 = vcmp.eq.f32.partialorder %v3812, 8.507059e+37
        %v3814 = vand.u32 %v3729, 2147483648
        %v3815 = vor.u32 1.1754944e-38, %v3814
        %v3816 = vsel %vm3813, %v3815, %v3811
        %v3817 = vmul.f32 1.0, %v3816
        %v3818 = vrcp.pop %v3730
        %v3819 = vmul.f32 %v3730, %v3818
        %v3820 = vsub.f32 1.0, %v3819
        %v3821 = vmul.f32 %v3818, %v3820
        %v3822 = vadd.f32 %v3818, %v3821
        %vm3823 = vweird.f32 %v3730
        %vm3824 = vweird.f32 %v3818
        %vm3825 = vmor %vm3823, %vm3824
        %v3826 = vsel %vm3825, %v3818, %v3822
        %v3827 = vand.u32 2147483647, %v3730
        %vm3828 = vcmp.eq.f32.partialorder %v3827, 8.507059e+37
        %v3829 = vand.u32 %v3730, 2147483648
        %v3830 = vor.u32 1.1754944e-38, %v3829
        %v3831 = vsel %vm3828, %v3830, %v3826
        %v3832 = vmul.f32 1.0, %v3831
        %v3833 = vrcp.pop %v3731
        %v3834 = vmul.f32 %v3731, %v3833
        %v3835 = vsub.f32 1.0, %v3834
        %v3836 = vmul.f32 %v3833, %v3835
        %v3837 = vadd.f32 %v3833, %v3836
        %vm3838 = vweird.f32 %v3731
        %vm3839 = vweird.f32 %v3833
        %vm3840 = vmor %vm3838, %vm3839
        %v3841 = vsel %vm3840, %v3833, %v3837
        %v3842 = vand.u32 2147483647, %v3731
        %vm3843 = vcmp.eq.f32.partialorder %v3842, 8.507059e+37
        %v3844 = vand.u32 %v3731, 2147483648
        %v3845 = vor.u32 1.1754944e-38, %v3844
        %v3846 = vsel %vm3843, %v3845, %v3841
        %v3847 = vmul.f32 1.0, %v3846
        %v3848 = vrcp.pop %v3732
        %v3849 = vmul.f32 %v3732, %v3848
        %v3850 = vsub.f32 1.0, %v3849
        %v3851 = vmul.f32 %v3848, %v3850
        %v3852 = vadd.f32 %v3848, %v3851
        %vm3853 = vweird.f32 %v3732
        %vm3854 = vweird.f32 %v3848
        %vm3855 = vmor %vm3853, %vm3854
        %v3856 = vsel %vm3855, %v3848, %v3852
        %v3857 = vand.u32 2147483647, %v3732
        %vm3858 = vcmp.eq.f32.partialorder %v3857, 8.507059e+37
        %v3859 = vand.u32 %v3732, 2147483648
        %v3860 = vor.u32 1.1754944e-38, %v3859
        %v3861 = vsel %vm3858, %v3860, %v3856
        %v3862 = vmul.f32 1.0, %v3861
        %v3863 = vrcp.pop %v3733
        %v3864 = vmul.f32 %v3733, %v3863
        %v3865 = vsub.f32 1.0, %v3864
        %v3866 = vmul.f32 %v3863, %v3865
        %v3867 = vadd.f32 %v3863, %v3866
        %vm3868 = vweird.f32 %v3733
        %vm3869 = vweird.f32 %v3863
        %vm3870 = vmor %vm3868, %vm3869
        %v3871 = vsel %vm3870, %v3863, %v3867
        %v3872 = vand.u32 2147483647, %v3733
        %vm3873 = vcmp.eq.f32.partialorder %v3872, 8.507059e+37
        %v3874 = vand.u32 %v3733, 2147483648
        %v3875 = vor.u32 1.1754944e-38, %v3874
        %v3876 = vsel %vm3873, %v3875, %v3871
        %v3877 = vmul.f32 1.0, %v3876
        %v3878 = vrcp.pop %v3734
        %v3879 = vmul.f32 %v3734, %v3878
        %v3880 = vsub.f32 1.0, %v3879
        %v3881 = vmul.f32 %v3878, %v3880
        %v3882 = vadd.f32 %v3878, %v3881
        %vm3883 = vweird.f32 %v3734
        %vm3884 = vweird.f32 %v3878
        %vm3885 = vmor %vm3883, %vm3884
        %v3886 = vsel %vm3885, %v3878, %v3882
        %v3887 = vand.u32 2147483647, %v3734
        %vm3888 = vcmp.eq.f32.partialorder %v3887, 8.507059e+37
        %v3889 = vand.u32 %v3734, 2147483648
        %v3890 = vor.u32 1.1754944e-38, %v3889
        %v3891 = vsel %vm3888, %v3890, %v3886
        %v3892 = vmul.f32 1.0, %v3891
        %v3893 = vrcp.pop %v3735
        %v3894 = vmul.f32 %v3735, %v3893
        %v3895 = vsub.f32 1.0, %v3894
        %v3896 = vmul.f32 %v3893, %v3895
        %v3897 = vadd.f32 %v3893, %v3896
        %vm3898 = vweird.f32 %v3735
        %vm3899 = vweird.f32 %v3893
        %vm3900 = vmor %vm3898, %vm3899
        %v3901 = vsel %vm3900, %v3893, %v3897
        %v3902 = vand.u32 2147483647, %v3735
        %vm3903 = vcmp.eq.f32.partialorder %v3902, 8.507059e+37
        %v3904 = vand.u32 %v3735, 2147483648
        %v3905 = vor.u32 1.1754944e-38, %v3904
        %v3906 = vsel %vm3903, %v3905, %v3901
        %v3907 = vmul.f32 1.0, %v3906
        %v3908 = vrcp.pop %v3736
        %v3909 = vmul.f32 %v3736, %v3908
        %v3910 = vsub.f32 1.0, %v3909
        %v3911 = vmul.f32 %v3908, %v3910
        %v3912 = vadd.f32 %v3908, %v3911
        %vm3913 = vweird.f32 %v3736
        %vm3914 = vweird.f32 %v3908
        %vm3915 = vmor %vm3913, %vm3914
        %v3916 = vsel %vm3915, %v3908, %v3912
        %v3917 = vand.u32 2147483647, %v3736
        %vm3918 = vcmp.eq.f32.partialorder %v3917, 8.507059e+37
        %v3919 = vand.u32 %v3736, 2147483648
        %v3920 = vor.u32 1.1754944e-38, %v3919
        %v3921 = vsel %vm3918, %v3920, %v3916
        %v3922 = vmul.f32 1.0, %v3921
        %v3923 = vrcp.pop %v3737
        %v3924 = vmul.f32 %v3737, %v3923
        %v3925 = vsub.f32 1.0, %v3924
        %v3926 = vmul.f32 %v3923, %v3925
        %v3927 = vadd.f32 %v3923, %v3926
        %vm3928 = vweird.f32 %v3737
        %vm3929 = vweird.f32 %v3923
        %vm3930 = vmor %vm3928, %vm3929
        %v3931 = vsel %vm3930, %v3923, %v3927
        %v3932 = vand.u32 2147483647, %v3737
        %vm3933 = vcmp.eq.f32.partialorder %v3932, 8.507059e+37
        %v3934 = vand.u32 %v3737, 2147483648
        %v3935 = vor.u32 1.1754944e-38, %v3934
        %v3936 = vsel %vm3933, %v3935, %v3931
        %v3937 = vmul.f32 1.0, %v3936
        %v3938 = vrcp.pop %v3738
        %v3939 = vmul.f32 %v3738, %v3938
        %v3940 = vsub.f32 1.0, %v3939
        %v3941 = vmul.f32 %v3938, %v3940
        %v3942 = vadd.f32 %v3938, %v3941
        %vm3943 = vweird.f32 %v3738
        %vm3944 = vweird.f32 %v3938
        %vm3945 = vmor %vm3943, %vm3944
        %v3946 = vsel %vm3945, %v3938, %v3942
        %v3947 = vand.u32 2147483647, %v3738
        %vm3948 = vcmp.eq.f32.partialorder %v3947, 8.507059e+37
        %v3949 = vand.u32 %v3738, 2147483648
        %v3950 = vor.u32 1.1754944e-38, %v3949
        %v3951 = vsel %vm3948, %v3950, %v3946
        %v3952 = vmul.f32 1.0, %v3951
        %v3953 = vrcp.pop %v3739
        %v3954 = vmul.f32 %v3739, %v3953
        %v3955 = vsub.f32 1.0, %v3954
        %v3956 = vmul.f32 %v3953, %v3955
        %v3957 = vadd.f32 %v3953, %v3956
        %vm3958 = vweird.f32 %v3739
        %vm3959 = vweird.f32 %v3953
        %vm3960 = vmor %vm3958, %vm3959
        %v3961 = vsel %vm3960, %v3953, %v3957
        %v3962 = vand.u32 2147483647, %v3739
        %vm3963 = vcmp.eq.f32.partialorder %v3962, 8.507059e+37
        %v3964 = vand.u32 %v3739, 2147483648
        %v3965 = vor.u32 1.1754944e-38, %v3964
        %v3966 = vsel %vm3963, %v3965, %v3961
        %v3967 = vmul.f32 1.0, %v3966
        %v3968 = vrcp.pop %v3740
        %v3969 = vmul.f32 %v3740, %v3968
        %v3970 = vsub.f32 1.0, %v3969
        %v3971 = vmul.f32 %v3968, %v3970
        %v3972 = vadd.f32 %v3968, %v3971
        %vm3973 = vweird.f32 %v3740
        %vm3974 = vweird.f32 %v3968
        %vm3975 = vmor %vm3973, %vm3974
        %v3976 = vsel %vm3975, %v3968, %v3972
        %v3977 = vand.u32 2147483647, %v3740
        %vm3978 = vcmp.eq.f32.partialorder %v3977, 8.507059e+37
        %v3979 = vand.u32 %v3740, 2147483648
        %v3980 = vor.u32 1.1754944e-38, %v3979
        %v3981 = vsel %vm3978, %v3980, %v3976
        %v3982 = vmul.f32 1.0, %v3981
        %v3983 = vrcp.pop %v3741
        %v3984 = vmul.f32 %v3741, %v3983
        %v3985 = vsub.f32 1.0, %v3984
        %v3986 = vmul.f32 %v3983, %v3985
        %v3987 = vadd.f32 %v3983, %v3986
        %vm3988 = vweird.f32 %v3741
        %vm3989 = vweird.f32 %v3983
        %vm3990 = vmor %vm3988, %vm3989
        %v3991 = vsel %vm3990, %v3983, %v3987
        %v3992 = vand.u32 2147483647, %v3741
        %vm3993 = vcmp.eq.f32.partialorder %v3992, 8.507059e+37
        %v3994 = vand.u32 %v3741, 2147483648
        %v3995 = vor.u32 1.1754944e-38, %v3994
        %v3996 = vsel %vm3993, %v3995, %v3991
        %v3997 = vmul.f32 1.0, %v3996
        %v3998 = vrcp.pop %v3742
        %v3999 = vmul.f32 %v3742, %v3998
        %v4000 = vsub.f32 1.0, %v3999
        %v4001 = vmul.f32 %v3998, %v4000
        %v4002 = vadd.f32 %v3998, %v4001
        %vm4003 = vweird.f32 %v3742
        %vm4004 = vweird.f32 %v3998
        %vm4005 = vmor %vm4003, %vm4004
        %v4006 = vsel %vm4005, %v3998, %v4002
        %v4007 = vand.u32 2147483647, %v3742
        %vm4008 = vcmp.eq.f32.partialorder %v4007, 8.507059e+37
        %v4009 = vand.u32 %v3742, 2147483648
        %v4010 = vor.u32 1.1754944e-38, %v4009
        %v4011 = vsel %vm4008, %v4010, %v4006
        %v4012 = vmul.f32 1.0, %v4011
        %v4013 = vrcp.pop %v3743
        %v4014 = vmul.f32 %v3743, %v4013
        %v4015 = vsub.f32 1.0, %v4014
        %v4016 = vmul.f32 %v4013, %v4015
        %v4017 = vadd.f32 %v4013, %v4016
        %vm4018 = vweird.f32 %v3743
        %vm4019 = vweird.f32 %v4013
        %vm4020 = vmor %vm4018, %vm4019
        %v4021 = vsel %vm4020, %v4013, %v4017
        %v4022 = vand.u32 2147483647, %v3743
        %vm4023 = vcmp.eq.f32.partialorder %v4022, 8.507059e+37
        %v4024 = vand.u32 %v3743, 2147483648
        %v4025 = vor.u32 1.1754944e-38, %v4024
        %v4026 = vsel %vm4023, %v4025, %v4021
        %v4027 = vmul.f32 1.0, %v4026
        %v4028 = vrcp.pop %v3744
        %v4029 = vmul.f32 %v3744, %v4028
        %v4030 = vsub.f32 1.0, %v4029
        %v4031 = vmul.f32 %v4028, %v4030
        %v4032 = vadd.f32 %v4028, %v4031
        %vm4033 = vweird.f32 %v3744
        %vm4034 = vweird.f32 %v4028
        %vm4035 = vmor %vm4033, %vm4034
        %v4036 = vsel %vm4035, %v4028, %v4032
        %v4037 = vand.u32 2147483647, %v3744
        %vm4038 = vcmp.eq.f32.partialorder %v4037, 8.507059e+37
        %v4039 = vand.u32 %v3744, 2147483648
        %v4040 = vor.u32 1.1754944e-38, %v4039
        %v4041 = vsel %vm4038, %v4040, %v4036
        %v4042 = vmul.f32 1.0, %v4041
        %v4043 = vrcp.pop %v3745
        %v4044 = vmul.f32 %v3745, %v4043
        %v4045 = vsub.f32 1.0, %v4044
        %v4046 = vmul.f32 %v4043, %v4045
        %v4047 = vadd.f32 %v4043, %v4046
        %vm4048 = vweird.f32 %v3745
        %vm4049 = vweird.f32 %v4043
        %vm4050 = vmor %vm4048, %vm4049
        %v4051 = vsel %vm4050, %v4043, %v4047
        %v4052 = vand.u32 2147483647, %v3745
        %vm4053 = vcmp.eq.f32.partialorder %v4052, 8.507059e+37
        %v4054 = vand.u32 %v3745, 2147483648
        %v4055 = vor.u32 1.1754944e-38, %v4054
        %v4056 = vsel %vm4053, %v4055, %v4051
        %v4057 = vmul.f32 1.0, %v4056
        %v4058 = vrcp.pop %v3746
        %v4059 = vmul.f32 %v3746, %v4058
        %v4060 = vsub.f32 1.0, %v4059
        %v4061 = vmul.f32 %v4058, %v4060
        %v4062 = vadd.f32 %v4058, %v4061
        %vm4063 = vweird.f32 %v3746
        %vm4064 = vweird.f32 %v4058
        %vm4065 = vmor %vm4063, %vm4064
        %v4066 = vsel %vm4065, %v4058, %v4062
        %v4067 = vand.u32 2147483647, %v3746
        %vm4068 = vcmp.eq.f32.partialorder %v4067, 8.507059e+37
        %v4069 = vand.u32 %v3746, 2147483648
        %v4070 = vor.u32 1.1754944e-38, %v4069
        %v4071 = vsel %vm4068, %v4070, %v4066
        %v4072 = vmul.f32 1.0, %v4071
        %v4073 = vrcp.pop %v3747
        %v4074 = vmul.f32 %v3747, %v4073
        %v4075 = vsub.f32 1.0, %v4074
        %v4076 = vmul.f32 %v4073, %v4075
        %v4077 = vadd.f32 %v4073, %v4076
        %vm4078 = vweird.f32 %v3747
        %vm4079 = vweird.f32 %v4073
        %vm4080 = vmor %vm4078, %vm4079
        %v4081 = vsel %vm4080, %v4073, %v4077
        %v4082 = vand.u32 2147483647, %v3747
        %vm4083 = vcmp.eq.f32.partialorder %v4082, 8.507059e+37
        %v4084 = vand.u32 %v3747, 2147483648
        %v4085 = vor.u32 1.1754944e-38, %v4084
        %v4086 = vsel %vm4083, %v4085, %v4081
        %v4087 = vmul.f32 1.0, %v4086
        %v4088 = vrcp.pop %v3748
        %v4089 = vmul.f32 %v3748, %v4088
        %v4090 = vsub.f32 1.0, %v4089
        %v4091 = vmul.f32 %v4088, %v4090
        %v4092 = vadd.f32 %v4088, %v4091
        %vm4093 = vweird.f32 %v3748
        %vm4094 = vweird.f32 %v4088
        %vm4095 = vmor %vm4093, %vm4094
        %v4096 = vsel %vm4095, %v4088, %v4092
        %v4097 = vand.u32 2147483647, %v3748
        %vm4098 = vcmp.eq.f32.partialorder %v4097, 8.507059e+37
        %v4099 = vand.u32 %v3748, 2147483648
        %v4100 = vor.u32 1.1754944e-38, %v4099
        %v4101 = vsel %vm4098, %v4100, %v4096
        %v4102 = vmul.f32 1.0, %v4101
        %v4103 = vrcp.pop %v3749
        %v4104 = vmul.f32 %v3749, %v4103
        %v4105 = vsub.f32 1.0, %v4104
        %v4106 = vmul.f32 %v4103, %v4105
        %v4107 = vadd.f32 %v4103, %v4106
        %vm4108 = vweird.f32 %v3749
        %vm4109 = vweird.f32 %v4103
        %vm4110 = vmor %vm4108, %vm4109
        %v4111 = vsel %vm4110, %v4103, %v4107
        %v4112 = vand.u32 2147483647, %v3749
        %vm4113 = vcmp.eq.f32.partialorder %v4112, 8.507059e+37
        %v4114 = vand.u32 %v3749, 2147483648
        %v4115 = vor.u32 1.1754944e-38, %v4114
        %v4116 = vsel %vm4113, %v4115, %v4111
        %v4117 = vmul.f32 1.0, %v4116
        %v4118 = vrcp.pop %v3750
        %v4119 = vmul.f32 %v3750, %v4118
        %v4120 = vsub.f32 1.0, %v4119
        %v4121 = vmul.f32 %v4118, %v4120
        %v4122 = vadd.f32 %v4118, %v4121
        %vm4123 = vweird.f32 %v3750
        %vm4124 = vweird.f32 %v4118
        %vm4125 = vmor %vm4123, %vm4124
        %v4126 = vsel %vm4125, %v4118, %v4122
        %v4127 = vand.u32 2147483647, %v3750
        %vm4128 = vcmp.eq.f32.partialorder %v4127, 8.507059e+37
        %v4129 = vand.u32 %v3750, 2147483648
        %v4130 = vor.u32 1.1754944e-38, %v4129
        %v4131 = vsel %vm4128, %v4130, %v4126
        %v4132 = vmul.f32 1.0, %v4131
        %v4133 = vrcp.pop %v3751
        %v4134 = vmul.f32 %v3751, %v4133
        %v4135 = vsub.f32 1.0, %v4134
        %v4136 = vmul.f32 %v4133, %v4135
        %v4137 = vadd.f32 %v4133, %v4136
        %vm4138 = vweird.f32 %v3751
        %vm4139 = vweird.f32 %v4133
        %vm4140 = vmor %vm4138, %vm4139
        %v4141 = vsel %vm4140, %v4133, %v4137
        %v4142 = vand.u32 2147483647, %v3751
        %vm4143 = vcmp.eq.f32.partialorder %v4142, 8.507059e+37
        %v4144 = vand.u32 %v3751, 2147483648
        %v4145 = vor.u32 1.1754944e-38, %v4144
        %v4146 = vsel %vm4143, %v4145, %v4141
        %v4147 = vmul.f32 1.0, %v4146
        %v4148 = vrcp.pop %v3752
        %v4149 = vmul.f32 %v3752, %v4148
        %v4150 = vsub.f32 1.0, %v4149
        %v4151 = vmul.f32 %v4148, %v4150
        %v4152 = vadd.f32 %v4148, %v4151
        %vm4153 = vweird.f32 %v3752
        %vm4154 = vweird.f32 %v4148
        %vm4155 = vmor %vm4153, %vm4154
        %v4156 = vsel %vm4155, %v4148, %v4152
        %v4157 = vand.u32 2147483647, %v3752
        %vm4158 = vcmp.eq.f32.partialorder %v4157, 8.507059e+37
        %v4159 = vand.u32 %v3752, 2147483648
        %v4160 = vor.u32 1.1754944e-38, %v4159
        %v4161 = vsel %vm4158, %v4160, %v4156
        %v4162 = vmul.f32 1.0, %v4161
        %v4163 = vrcp.pop %v3753
        %v4164 = vmul.f32 %v3753, %v4163
        %v4165 = vsub.f32 1.0, %v4164
        %v4166 = vmul.f32 %v4163, %v4165
        %v4167 = vadd.f32 %v4163, %v4166
        %vm4168 = vweird.f32 %v3753
        %vm4169 = vweird.f32 %v4163
        %vm4170 = vmor %vm4168, %vm4169
        %v4171 = vsel %vm4170, %v4163, %v4167
        %v4172 = vand.u32 2147483647, %v3753
        %vm4173 = vcmp.eq.f32.partialorder %v4172, 8.507059e+37
        %v4174 = vand.u32 %v3753, 2147483648
        %v4175 = vor.u32 1.1754944e-38, %v4174
        %v4176 = vsel %vm4173, %v4175, %v4171
        %v4177 = vmul.f32 1.0, %v4176
        %v4178 = vrcp.pop %v3754
        %v4179 = vmul.f32 %v3754, %v4178
        %v4180 = vsub.f32 1.0, %v4179
        %v4181 = vmul.f32 %v4178, %v4180
        %v4182 = vadd.f32 %v4178, %v4181
        %vm4183 = vweird.f32 %v3754
        %vm4184 = vweird.f32 %v4178
        %vm4185 = vmor %vm4183, %vm4184
        %v4186 = vsel %vm4185, %v4178, %v4182
        %v4187 = vand.u32 2147483647, %v3754
        %vm4188 = vcmp.eq.f32.partialorder %v4187, 8.507059e+37
        %v4189 = vand.u32 %v3754, 2147483648
        %v4190 = vor.u32 1.1754944e-38, %v4189
        %v4191 = vsel %vm4188, %v4190, %v4186
        %v4192 = vmul.f32 1.0, %v4191
        %v4193 = vrcp.pop %v3755
        %v4194 = vmul.f32 %v3755, %v4193
        %v4195 = vsub.f32 1.0, %v4194
        %v4196 = vmul.f32 %v4193, %v4195
        %v4197 = vadd.f32 %v4193, %v4196
        %vm4198 = vweird.f32 %v3755
        %vm4199 = vweird.f32 %v4193
        %vm4200 = vmor %vm4198, %vm4199
        %v4201 = vsel %vm4200, %v4193, %v4197
        %v4202 = vand.u32 2147483647, %v3755
        %vm4203 = vcmp.eq.f32.partialorder %v4202, 8.507059e+37
        %v4204 = vand.u32 %v3755, 2147483648
        %v4205 = vor.u32 1.1754944e-38, %v4204
        %v4206 = vsel %vm4203, %v4205, %v4201
        %v4207 = vmul.f32 1.0, %v4206
        %v4208 = vrcp.pop %v3756
        %v4209 = vmul.f32 %v3756, %v4208
        %v4210 = vsub.f32 1.0, %v4209
        %v4211 = vmul.f32 %v4208, %v4210
        %v4212 = vadd.f32 %v4208, %v4211
        %vm4213 = vweird.f32 %v3756
        %vm4214 = vweird.f32 %v4208
        %vm4215 = vmor %vm4213, %vm4214
        %v4216 = vsel %vm4215, %v4208, %v4212
        %v4217 = vand.u32 2147483647, %v3756
        %vm4218 = vcmp.eq.f32.partialorder %v4217, 8.507059e+37
        %v4219 = vand.u32 %v3756, 2147483648
        %v4220 = vor.u32 1.1754944e-38, %v4219
        %v4221 = vsel %vm4218, %v4220, %v4216
        %v4222 = vmul.f32 1.0, %v4221
        %v4223 = vrcp.pop %v3757
        %v4224 = vmul.f32 %v3757, %v4223
        %v4225 = vsub.f32 1.0, %v4224
        %v4226 = vmul.f32 %v4223, %v4225
        %v4227 = vadd.f32 %v4223, %v4226
        %vm4228 = vweird.f32 %v3757
        %vm4229 = vweird.f32 %v4223
        %vm4230 = vmor %vm4228, %vm4229
        %v4231 = vsel %vm4230, %v4223, %v4227
        %v4232 = vand.u32 2147483647, %v3757
        %vm4233 = vcmp.eq.f32.partialorder %v4232, 8.507059e+37
        %v4234 = vand.u32 %v3757, 2147483648
        %v4235 = vor.u32 1.1754944e-38, %v4234
        %v4236 = vsel %vm4233, %v4235, %v4231
        %v4237 = vmul.f32 1.0, %v4236
        %v4238 = vmul.f32 %v637, %v3772
        %v4239 = vmul.f32 %v638, %v3787
        %v4240 = vmul.f32 %v639, %v3802
        %v4241 = vmul.f32 %v640, %v3817
        %v4242 = vmul.f32 %v641, %v3832
        %v4243 = vmul.f32 %v642, %v3847
        %v4244 = vmul.f32 %v643, %v3862
        %v4245 = vmul.f32 %v644, %v3877
        %v4246 = vmul.f32 %v645, %v3892
        %v4247 = vmul.f32 %v646, %v3907
        %v4248 = vmul.f32 %v647, %v3922
        %v4249 = vmul.f32 %v648, %v3937
        %v4250 = vmul.f32 %v649, %v3952
        %v4251 = vmul.f32 %v650, %v3967
        %v4252 = vmul.f32 %v651, %v3982
        %v4253 = vmul.f32 %v652, %v3997
        %v4254 = vmul.f32 %v653, %v4012
        %v4255 = vmul.f32 %v654, %v4027
        %v4256 = vmul.f32 %v655, %v4042
        %v4257 = vmul.f32 %v656, %v4057
        %v4258 = vmul.f32 %v657, %v4072
        %v4259 = vmul.f32 %v658, %v4087
        %v4260 = vmul.f32 %v659, %v4102
        %v4261 = vmul.f32 %v660, %v4117
        %v4262 = vmul.f32 %v661, %v4132
        %v4263 = vmul.f32 %v662, %v4147
        %v4264 = vmul.f32 %v663, %v4162
        %v4265 = vmul.f32 %v664, %v4177
        %v4266 = vmul.f32 %v665, %v4192
        %v4267 = vmul.f32 %v666, %v4207
        %v4268 = vmul.f32 %v667, %v4222
        %v4269 = vmul.f32 %v668, %v4237
        %4270 = vst.msk [vmem:[#allocation2] sm:$0xff] %vm1682, 0.0
        %4271 = vst.msk [vmem:[#allocation2 + $0x8] sm:$0xff] %vm1682, 0.0
        %4272 = vst.msk [vmem:[#allocation2 + $0x10] sm:$0x3] %vm1685, 0.0
        %4273 = vst.msk [vmem:[#allocation2 + $0x18] sm:$0xff] %vm1682, 0.0
        %4274 = vst.msk [vmem:[#allocation2 + $0x20] sm:$0xff] %vm1682, 0.0
        %4275 = vst.msk [vmem:[#allocation2 + $0x28] sm:$0x3] %vm1685, 0.0
        %4276 = vst.msk [vmem:[#allocation2 + $0x30] sm:$0xff] %vm1682, 0.0
        %4277 = vst.msk [vmem:[#allocation2 + $0x38] sm:$0xff] %vm1682, 0.0
        %4278 = vst.msk [vmem:[#allocation2 + $0x40] sm:$0x3] %vm1685, 0.0
        %4279 = vst.msk [vmem:[#allocation2 + $0x48] sm:$0xff] %vm1682, 0.0
        %4280 = vst.msk [vmem:[#allocation2 + $0x50] sm:$0xff] %vm1682, 0.0
        %4281 = vst.msk [vmem:[#allocation2 + $0x58] sm:$0x3] %vm1685, 0.0
        %4282 = vst.msk [vmem:[#allocation2 + $0x60] sm:$0xff] %vm1682, 0.0
        %4283 = vst.msk [vmem:[#allocation2 + $0x68] sm:$0xff] %vm1682, 0.0
        %4284 = vst.msk [vmem:[#allocation2 + $0x70] sm:$0x3] %vm1685, 0.0
        %4285 = vst.msk [vmem:[#allocation2 + $0x78] sm:$0xff] %vm1682, 0.0
        %4286 = vst.msk [vmem:[#allocation2 + $0x80] sm:$0xff] %vm1682, 0.0
        %4287 = vst.msk [vmem:[#allocation2 + $0x88] sm:$0x3] %vm1685, 0.0
        %4288 = vst.msk [vmem:[#allocation2 + $0x90] sm:$0xff] %vm1682, 0.0
        %4289 = vst.msk [vmem:[#allocation2 + $0x98] sm:$0xff] %vm1682, 0.0
        %4290 = vst.msk [vmem:[#allocation2 + $0xa0] sm:$0x3] %vm1685, 0.0
        %4291 = vst.msk [vmem:[#allocation2 + $0xa8] sm:$0xff] %vm1682, 0.0
        %4292 = vst.msk [vmem:[#allocation2 + $0xb0] sm:$0xff] %vm1682, 0.0
        %4293 = vst.msk [vmem:[#allocation2 + $0xb8] sm:$0x3] %vm1685, 0.0
        %4294 = vst.msk [vmem:[#allocation2 + $0xc0] sm:$0xff] %vm1682, 0.0
        %4295 = vst.msk [vmem:[#allocation2 + $0xc8] sm:$0xff] %vm1682, 0.0
        %4296 = vst.msk [vmem:[#allocation2 + $0xd0] sm:$0x3] %vm1685, 0.0
        %4297 = vst.msk [vmem:[#allocation2 + $0xd8] sm:$0xff] %vm1682, 0.0
        %4298 = vst.msk [vmem:[#allocation2 + $0xe0] sm:$0xff] %vm1682, 0.0
        %4299 = vst.msk [vmem:[#allocation2 + $0xe8] sm:$0x3] %vm1685, 0.0
        %4300 = vst.msk [vmem:[#allocation2 + $0xf0] sm:$0xff] %vm1682, 0.0
        %4301 = vst.msk [vmem:[#allocation2 + $0xf8] sm:$0xff] %vm1682, 0.0
        %4302 = vst.msk [vmem:[#allocation2 + $0x100] sm:$0x3] %vm1685, 0.0
        %4303 = vst.msk [vmem:[#allocation2 + $0x108] sm:$0xff] %vm1682, 0.0
        %4304 = vst.msk [vmem:[#allocation2 + $0x110] sm:$0xff] %vm1682, 0.0
        %4305 = vst.msk [vmem:[#allocation2 + $0x118] sm:$0x3] %vm1685, 0.0
        %4306 = vst.msk [vmem:[#allocation2 + $0x120] sm:$0xff] %vm1682, 0.0
        %4307 = vst.msk [vmem:[#allocation2 + $0x128] sm:$0xff] %vm1682, 0.0
        %4308 = vst.msk [vmem:[#allocation2 + $0x130] sm:$0x3] %vm1685, 0.0
        %4309 = vst.msk [vmem:[#allocation2 + $0x138] sm:$0xff] %vm1682, 0.0
        %4310 = vst.msk [vmem:[#allocation2 + $0x140] sm:$0xff] %vm1682, 0.0
        %4311 = vst.msk [vmem:[#allocation2 + $0x148] sm:$0x3] %vm1685, 0.0
        %4312 = vst.msk [vmem:[#allocation2 + $0x150] sm:$0xff] %vm1682, 0.0
        %4313 = vst.msk [vmem:[#allocation2 + $0x158] sm:$0xff] %vm1682, 0.0
        %4314 = vst.msk [vmem:[#allocation2 + $0x160] sm:$0x3] %vm1685, 0.0
        %4315 = vst.msk [vmem:[#allocation2 + $0x168] sm:$0xff] %vm1682, 0.0
        %4316 = vst.msk [vmem:[#allocation2 + $0x170] sm:$0xff] %vm1682, 0.0
        %4317 = vst.msk [vmem:[#allocation2 + $0x178] sm:$0x3] %vm1685, 0.0
        %4318 = vst.msk [vmem:[#allocation2 + $0x180] sm:$0xff] %vm1682, 0.0
        %4319 = vst.msk [vmem:[#allocation2 + $0x188] sm:$0xff] %vm1682, 0.0
        %4320 = vst.msk [vmem:[#allocation2 + $0x190] sm:$0x3] %vm1685, 0.0
        %4321 = vst.msk [vmem:[#allocation2 + $0x198] sm:$0xff] %vm1682, 0.0
        %4322 = vst.msk [vmem:[#allocation2 + $0x1a0] sm:$0xff] %vm1682, 0.0
        %4323 = vst.msk [vmem:[#allocation2 + $0x1a8] sm:$0x3] %vm1685, 0.0
        %4324 = vst.msk [vmem:[%s1738 + $0x1] sm:$0xff] %vm703, %v4238
        %4325 = vst.msk [vmem:[%s1738 + $0x9] sm:$0xff] %vm703, %v4239
        %4326 = vst.msk [vmem:[%s1738 + $0x19] sm:$0xff] %vm703, %v4240
        %4327 = vst.msk [vmem:[%s1738 + $0x21] sm:$0xff] %vm703, %v4241
        %4328 = vst.msk [vmem:[%s1738 + $0x31] sm:$0xff] %vm703, %v4242
        %4329 = vst.msk [vmem:[%s1738 + $0x39] sm:$0xff] %vm703, %v4243
        %4330 = vst.msk [vmem:[%s1738 + $0x49] sm:$0xff] %vm703, %v4244
        %4331 = vst.msk [vmem:[%s1738 + $0x51] sm:$0xff] %vm703, %v4245
        %4332 = vst.msk [vmem:[%s1738 + $0x61] sm:$0xff] %vm703, %v4246
        %4333 = vst.msk [vmem:[%s1738 + $0x69] sm:$0xff] %vm703, %v4247
        %4334 = vst.msk [vmem:[%s1738 + $0x79] sm:$0xff] %vm703, %v4248
        %4335 = vst.msk [vmem:[%s1738 + $0x81] sm:$0xff] %vm703, %v4249
        %4336 = vst.msk [vmem:[%s1738 + $0x91] sm:$0xff] %vm703, %v4250
        %4337 = vst.msk [vmem:[%s1738 + $0x99] sm:$0xff] %vm703, %v4251
        %4338 = vst.msk [vmem:[%s1738 + $0xa9] sm:$0xff] %vm703, %v4252
        %4339 = vst.msk [vmem:[%s1738 + $0xb1] sm:$0xff] %vm703, %v4253
        %4340 = vst.msk [vmem:[%s1738 + $0xc1] sm:$0xff] %vm703, %v4254
        %4341 = vst.msk [vmem:[%s1738 + $0xc9] sm:$0xff] %vm703, %v4255
        %4342 = vst.msk [vmem:[%s1738 + $0xd9] sm:$0xff] %vm703, %v4256
        %4343 = vst.msk [vmem:[%s1738 + $0xe1] sm:$0xff] %vm703, %v4257
        %4344 = vst.msk [vmem:[%s1738 + $0xf1] sm:$0xff] %vm703, %v4258
        %4345 = vst.msk [vmem:[%s1738 + $0xf9] sm:$0xff] %vm703, %v4259
        %4346 = vst.msk [vmem:[%s1738 + $0x109] sm:$0xff] %vm703, %v4260
        %4347 = vst.msk [vmem:[%s1738 + $0x111] sm:$0xff] %vm703, %v4261
        %4348 = vst.msk [vmem:[%s1738 + $0x121] sm:$0xff] %vm703, %v4262
        %4349 = vst.msk [vmem:[%s1738 + $0x129] sm:$0xff] %vm703, %v4263
        %4350 = vst.msk [vmem:[%s1738 + $0x139] sm:$0xff] %vm703, %v4264
        %4351 = vst.msk [vmem:[%s1738 + $0x141] sm:$0xff] %vm703, %v4265
        %4352 = vst.msk [vmem:[%s1738 + $0x151] sm:$0xff] %vm703, %v4266
        %4353 = vst.msk [vmem:[%s1738 + $0x159] sm:$0xff] %vm703, %v4267
        %4354 = vst.msk [vmem:[%s1738 + $0x169] sm:$0xff] %vm703, %v4268
        %4355 = vst.msk [vmem:[%s1738 + $0x171] sm:$0xff] %vm703, %v4269
        %v4356 = vld [vmem:[#allocation2] sm:$0xff]
        %v4357 = vld [vmem:[#allocation2 + $0x8] sm:$0xff]
        %v4358 = vld [vmem:[#allocation2 + $0x18] sm:$0xff]
        %v4359 = vld [vmem:[#allocation2 + $0x20] sm:$0xff]
        %v4360 = vld [vmem:[#allocation2 + $0x30] sm:$0xff]
        %v4361 = vld [vmem:[#allocation2 + $0x38] sm:$0xff]
        %v4362 = vld [vmem:[#allocation2 + $0x48] sm:$0xff]
        %v4363 = vld [vmem:[#allocation2 + $0x50] sm:$0xff]
        %v4364 = vld [vmem:[#allocation2 + $0x60] sm:$0xff]
        %v4365 = vld [vmem:[#allocation2 + $0x68] sm:$0xff]
        %v4366 = vld [vmem:[#allocation2 + $0x78] sm:$0xff]
        %v4367 = vld [vmem:[#allocation2 + $0x80] sm:$0xff]
        %v4368 = vld [vmem:[#allocation2 + $0x90] sm:$0xff]
        %v4369 = vld [vmem:[#allocation2 + $0x98] sm:$0xff]
        %v4370 = vld [vmem:[#allocation2 + $0xa8] sm:$0xff]
        %v4371 = vld [vmem:[#allocation2 + $0xb0] sm:$0xff]
        %v4372 = vld [vmem:[#allocation2 + $0xc0] sm:$0xff]
        %v4373 = vld [vmem:[#allocation2 + $0xc8] sm:$0xff]
        %v4374 = vld [vmem:[#allocation2 + $0xd8] sm:$0xff]
        %v4375 = vld [vmem:[#allocation2 + $0xe0] sm:$0xff]
        %v4376 = vld [vmem:[#allocation2 + $0xf0] sm:$0xff]
        %v4377 = vld [vmem:[#allocation2 + $0xf8] sm:$0xff]
        %v4378 = vld [vmem:[#allocation2 + $0x108] sm:$0xff]
        %v4379 = vld [vmem:[#allocation2 + $0x110] sm:$0xff]
        %v4380 = vld [vmem:[#allocation2 + $0x120] sm:$0xff]
        %v4381 = vld [vmem:[#allocation2 + $0x128] sm:$0xff]
        %v4382 = vld [vmem:[#allocation2 + $0x138] sm:$0xff]
        %v4383 = vld [vmem:[#allocation2 + $0x140] sm:$0xff]
        %v4384 = vld [vmem:[#allocation2 + $0x150] sm:$0xff]
        %v4385 = vld [vmem:[#allocation2 + $0x158] sm:$0xff]
        %v4386 = vld [vmem:[#allocation2 + $0x168] sm:$0xff]
        %v4387 = vld [vmem:[#allocation2 + $0x170] sm:$0xff]
        %4388 = vst.msk [vmem:[#allocation3] sm:$0xff] %vm703, %v4356
        %4389 = vst.msk [vmem:[#allocation3 + $0x8] sm:$0xff] %vm703, %v4357
        %4390 = vst.msk [vmem:[#allocation3 + $0x10] sm:$0xff] %vm703, %v4358
        %4391 = vst.msk [vmem:[#allocation3 + $0x18] sm:$0xff] %vm703, %v4359
        %4392 = vst.msk [vmem:[#allocation3 + $0x20] sm:$0xff] %vm703, %v4360
        %4393 = vst.msk [vmem:[#allocation3 + $0x28] sm:$0xff] %vm703, %v4361
        %4394 = vst.msk [vmem:[#allocation3 + $0x30] sm:$0xff] %vm703, %v4362
        %4395 = vst.msk [vmem:[#allocation3 + $0x38] sm:$0xff] %vm703, %v4363
        %4396 = vst.msk [vmem:[#allocation3 + $0x40] sm:$0xff] %vm703, %v4364
        %4397 = vst.msk [vmem:[#allocation3 + $0x48] sm:$0xff] %vm703, %v4365
        %4398 = vst.msk [vmem:[#allocation3 + $0x50] sm:$0xff] %vm703, %v4366
        %4399 = vst.msk [vmem:[#allocation3 + $0x58] sm:$0xff] %vm703, %v4367
        %4400 = vst.msk [vmem:[#allocation3 + $0x60] sm:$0xff] %vm703, %v4368
        %4401 = vst.msk [vmem:[#allocation3 + $0x68] sm:$0xff] %vm703, %v4369
        %4402 = vst.msk [vmem:[#allocation3 + $0x70] sm:$0xff] %vm703, %v4370
        %4403 = vst.msk [vmem:[#allocation3 + $0x78] sm:$0xff] %vm703, %v4371
        %4404 = vst.msk [vmem:[#allocation3 + $0x80] sm:$0xff] %vm703, %v4372
        %4405 = vst.msk [vmem:[#allocation3 + $0x88] sm:$0xff] %vm703, %v4373
        %4406 = vst.msk [vmem:[#allocation3 + $0x90] sm:$0xff] %vm703, %v4374
        %4407 = vst.msk [vmem:[#allocation3 + $0x98] sm:$0xff] %vm703, %v4375
        %4408 = vst.msk [vmem:[#allocation3 + $0xa0] sm:$0xff] %vm703, %v4376
        %4409 = vst.msk [vmem:[#allocation3 + $0xa8] sm:$0xff] %vm703, %v4377
        %4410 = vst.msk [vmem:[#allocation3 + $0xb0] sm:$0xff] %vm703, %v4378
        %4411 = vst.msk [vmem:[#allocation3 + $0xb8] sm:$0xff] %vm703, %v4379
        %4412 = vst.msk [vmem:[#allocation3 + $0xc0] sm:$0xff] %vm703, %v4380
        %4413 = vst.msk [vmem:[#allocation3 + $0xc8] sm:$0xff] %vm703, %v4381
        %4414 = vst.msk [vmem:[#allocation3 + $0xd0] sm:$0xff] %vm703, %v4382
        %4415 = vst.msk [vmem:[#allocation3 + $0xd8] sm:$0xff] %vm703, %v4383
        %4416 = vst.msk [vmem:[#allocation3 + $0xe0] sm:$0xff] %vm703, %v4384
        %4417 = vst.msk [vmem:[#allocation3 + $0xe8] sm:$0xff] %vm703, %v4385
        %4418 = vst.msk [vmem:[#allocation3 + $0xf0] sm:$0xff] %vm703, %v4386
        %4419 = vst.msk [vmem:[#allocation3 + $0xf8] sm:$0xff] %vm703, %v4387
        %v4420 = vld [vmem:[#allocation2 + $0x1] sm:$0xff]
        %v4421 = vld [vmem:[#allocation2 + $0x9] sm:$0xff]
        %v4422 = vld [vmem:[#allocation2 + $0x19] sm:$0xff]
        %v4423 = vld [vmem:[#allocation2 + $0x21] sm:$0xff]
        %v4424 = vld [vmem:[#allocation2 + $0x31] sm:$0xff]
        %v4425 = vld [vmem:[#allocation2 + $0x39] sm:$0xff]
        %v4426 = vld [vmem:[#allocation2 + $0x49] sm:$0xff]
        %v4427 = vld [vmem:[#allocation2 + $0x51] sm:$0xff]
        %v4428 = vld [vmem:[#allocation2 + $0x61] sm:$0xff]
        %v4429 = vld [vmem:[#allocation2 + $0x69] sm:$0xff]
        %v4430 = vld [vmem:[#allocation2 + $0x79] sm:$0xff]
        %v4431 = vld [vmem:[#allocation2 + $0x81] sm:$0xff]
        %v4432 = vld [vmem:[#allocation2 + $0x91] sm:$0xff]
        %v4433 = vld [vmem:[#allocation2 + $0x99] sm:$0xff]
        %v4434 = vld [vmem:[#allocation2 + $0xa9] sm:$0xff]
        %v4435 = vld [vmem:[#allocation2 + $0xb1] sm:$0xff]
        %v4436 = vld [vmem:[#allocation2 + $0xc1] sm:$0xff]
        %v4437 = vld [vmem:[#allocation2 + $0xc9] sm:$0xff]
        %v4438 = vld [vmem:[#allocation2 + $0xd9] sm:$0xff]
        %v4439 = vld [vmem:[#allocation2 + $0xe1] sm:$0xff]
        %v4440 = vld [vmem:[#allocation2 + $0xf1] sm:$0xff]
        %v4441 = vld [vmem:[#allocation2 + $0xf9] sm:$0xff]
        %v4442 = vld [vmem:[#allocation2 + $0x109] sm:$0xff]
        %v4443 = vld [vmem:[#allocation2 + $0x111] sm:$0xff]
        %v4444 = vld [vmem:[#allocation2 + $0x121] sm:$0xff]
        %v4445 = vld [vmem:[#allocation2 + $0x129] sm:$0xff]
        %v4446 = vld [vmem:[#allocation2 + $0x139] sm:$0xff]
        %v4447 = vld [vmem:[#allocation2 + $0x141] sm:$0xff]
        %v4448 = vld [vmem:[#allocation2 + $0x151] sm:$0xff]
        %v4449 = vld [vmem:[#allocation2 + $0x159] sm:$0xff]
        %v4450 = vld [vmem:[#allocation2 + $0x169] sm:$0xff]
        %v4451 = vld [vmem:[#allocation2 + $0x171] sm:$0xff]
        %4484 = vrot.lane.b32.xlu0 %v4420, 4
        %v4485 = vpop.permute.xlu0 %4484
        %4486 = vrot.lane.b32.xlu0 %v4421, 4
        %v4487 = vpop.permute.xlu0 %4486
        %4488 = vrot.lane.b32.xlu0 %v4422, 4
        %v4489 = vpop.permute.xlu0 %4488
        %4490 = vrot.lane.b32.xlu0 %v4423, 4
        %v4491 = vpop.permute.xlu0 %4490
        %4492 = vrot.lane.b32.xlu0 %v4424, 4
        %v4493 = vpop.permute.xlu0 %4492
        %4494 = vrot.lane.b32.xlu0 %v4425, 4
        %v4495 = vpop.permute.xlu0 %4494
        %4496 = vrot.lane.b32.xlu0 %v4426, 4
        %v4497 = vpop.permute.xlu0 %4496
        %4498 = vrot.lane.b32.xlu0 %v4427, 4
        %v4499 = vpop.permute.xlu0 %4498
        %4500 = vrot.lane.b32.xlu0 %v4428, 4
        %v4501 = vpop.permute.xlu0 %4500
        %4502 = vrot.lane.b32.xlu0 %v4429, 4
        %v4503 = vpop.permute.xlu0 %4502
        %4504 = vrot.lane.b32.xlu0 %v4430, 4
        %v4505 = vpop.permute.xlu0 %4504
        %4506 = vrot.lane.b32.xlu0 %v4431, 4
        %v4507 = vpop.permute.xlu0 %4506
        %4508 = vrot.lane.b32.xlu0 %v4432, 4
        %v4509 = vpop.permute.xlu0 %4508
        %4510 = vrot.lane.b32.xlu0 %v4433, 4
        %v4511 = vpop.permute.xlu0 %4510
        %4512 = vrot.lane.b32.xlu0 %v4434, 4
        %v4513 = vpop.permute.xlu0 %4512
        %4514 = vrot.lane.b32.xlu0 %v4435, 4
        %v4515 = vpop.permute.xlu0 %4514
        %4516 = vrot.lane.b32.xlu0 %v4436, 4
        %v4517 = vpop.permute.xlu0 %4516
        %4518 = vrot.lane.b32.xlu0 %v4437, 4
        %v4519 = vpop.permute.xlu0 %4518
        %4520 = vrot.lane.b32.xlu0 %v4438, 4
        %v4521 = vpop.permute.xlu0 %4520
        %4522 = vrot.lane.b32.xlu0 %v4439, 4
        %v4523 = vpop.permute.xlu0 %4522
        %4524 = vrot.lane.b32.xlu0 %v4440, 4
        %v4525 = vpop.permute.xlu0 %4524
        %4526 = vrot.lane.b32.xlu0 %v4441, 4
        %v4527 = vpop.permute.xlu0 %4526
        %4528 = vrot.lane.b32.xlu0 %v4442, 4
        %v4529 = vpop.permute.xlu0 %4528
        %4530 = vrot.lane.b32.xlu0 %v4443, 4
        %v4531 = vpop.permute.xlu0 %4530
        %4532 = vrot.lane.b32.xlu0 %v4444, 4
        %v4533 = vpop.permute.xlu0 %4532
        %4534 = vrot.lane.b32.xlu0 %v4445, 4
        %v4535 = vpop.permute.xlu0 %4534
        %4536 = vrot.lane.b32.xlu0 %v4446, 4
        %v4537 = vpop.permute.xlu0 %4536
        %4538 = vrot.lane.b32.xlu0 %v4447, 4
        %v4539 = vpop.permute.xlu0 %4538
        %4540 = vrot.lane.b32.xlu0 %v4448, 4
        %v4541 = vpop.permute.xlu0 %4540
        %4542 = vrot.lane.b32.xlu0 %v4449, 4
        %v4543 = vpop.permute.xlu0 %4542
        %4544 = vrot.lane.b32.xlu0 %v4450, 4
        %v4545 = vpop.permute.xlu0 %4544
        %4546 = vrot.lane.b32.xlu0 %v4451, 4
        %v4547 = vpop.permute.xlu0 %4546
        %4580 = vst.msk [vmem:[#allocation3] sm:$0xff] %vm1995, %v4485
        %4581 = vst.msk [vmem:[#allocation3 + $0x8] sm:$0xff] %vm1995, %v4487
        %4582 = vst.msk [vmem:[#allocation3 + $0x10] sm:$0xff] %vm1995, %v4489
        %4583 = vst.msk [vmem:[#allocation3 + $0x18] sm:$0xff] %vm1995, %v4491
        %4584 = vst.msk [vmem:[#allocation3 + $0x20] sm:$0xff] %vm1995, %v4493
        %4585 = vst.msk [vmem:[#allocation3 + $0x28] sm:$0xff] %vm1995, %v4495
        %4586 = vst.msk [vmem:[#allocation3 + $0x30] sm:$0xff] %vm1995, %v4497
        %4587 = vst.msk [vmem:[#allocation3 + $0x38] sm:$0xff] %vm1995, %v4499
        %4588 = vst.msk [vmem:[#allocation3 + $0x40] sm:$0xff] %vm1995, %v4501
        %4589 = vst.msk [vmem:[#allocation3 + $0x48] sm:$0xff] %vm1995, %v4503
        %4590 = vst.msk [vmem:[#allocation3 + $0x50] sm:$0xff] %vm1995, %v4505
        %4591 = vst.msk [vmem:[#allocation3 + $0x58] sm:$0xff] %vm1995, %v4507
        %4592 = vst.msk [vmem:[#allocation3 + $0x60] sm:$0xff] %vm1995, %v4509
        %4593 = vst.msk [vmem:[#allocation3 + $0x68] sm:$0xff] %vm1995, %v4511
        %4594 = vst.msk [vmem:[#allocation3 + $0x70] sm:$0xff] %vm1995, %v4513
        %4595 = vst.msk [vmem:[#allocation3 + $0x78] sm:$0xff] %vm1995, %v4515
        %4596 = vst.msk [vmem:[#allocation3 + $0x80] sm:$0xff] %vm1995, %v4517
        %4597 = vst.msk [vmem:[#allocation3 + $0x88] sm:$0xff] %vm1995, %v4519
        %4598 = vst.msk [vmem:[#allocation3 + $0x90] sm:$0xff] %vm1995, %v4521
        %4599 = vst.msk [vmem:[#allocation3 + $0x98] sm:$0xff] %vm1995, %v4523
        %4600 = vst.msk [vmem:[#allocation3 + $0xa0] sm:$0xff] %vm1995, %v4525
        %4601 = vst.msk [vmem:[#allocation3 + $0xa8] sm:$0xff] %vm1995, %v4527
        %4602 = vst.msk [vmem:[#allocation3 + $0xb0] sm:$0xff] %vm1995, %v4529
        %4603 = vst.msk [vmem:[#allocation3 + $0xb8] sm:$0xff] %vm1995, %v4531
        %4604 = vst.msk [vmem:[#allocation3 + $0xc0] sm:$0xff] %vm1995, %v4533
        %4605 = vst.msk [vmem:[#allocation3 + $0xc8] sm:$0xff] %vm1995, %v4535
        %4606 = vst.msk [vmem:[#allocation3 + $0xd0] sm:$0xff] %vm1995, %v4537
        %4607 = vst.msk [vmem:[#allocation3 + $0xd8] sm:$0xff] %vm1995, %v4539
        %4608 = vst.msk [vmem:[#allocation3 + $0xe0] sm:$0xff] %vm1995, %v4541
        %4609 = vst.msk [vmem:[#allocation3 + $0xe8] sm:$0xff] %vm1995, %v4543
        %4610 = vst.msk [vmem:[#allocation3 + $0xf0] sm:$0xff] %vm1995, %v4545
        %4611 = vst.msk [vmem:[#allocation3 + $0xf8] sm:$0xff] %vm1995, %v4547
        %v4612 = vld [vmem:[#allocation2 + $0x2] sm:$0xff]
        %v4613 = vld [vmem:[#allocation2 + $0xa] sm:$0xff]
        %v4614 = vld [vmem:[#allocation2 + $0x1a] sm:$0xff]
        %v4615 = vld [vmem:[#allocation2 + $0x22] sm:$0xff]
        %v4616 = vld [vmem:[#allocation2 + $0x32] sm:$0xff]
        %v4617 = vld [vmem:[#allocation2 + $0x3a] sm:$0xff]
        %v4618 = vld [vmem:[#allocation2 + $0x4a] sm:$0xff]
        %v4619 = vld [vmem:[#allocation2 + $0x52] sm:$0xff]
        %v4620 = vld [vmem:[#allocation2 + $0x62] sm:$0xff]
        %v4621 = vld [vmem:[#allocation2 + $0x6a] sm:$0xff]
        %v4622 = vld [vmem:[#allocation2 + $0x7a] sm:$0xff]
        %v4623 = vld [vmem:[#allocation2 + $0x82] sm:$0xff]
        %v4624 = vld [vmem:[#allocation2 + $0x92] sm:$0xff]
        %v4625 = vld [vmem:[#allocation2 + $0x9a] sm:$0xff]
        %v4626 = vld [vmem:[#allocation2 + $0xaa] sm:$0xff]
        %v4627 = vld [vmem:[#allocation2 + $0xb2] sm:$0xff]
        %v4628 = vld [vmem:[#allocation2 + $0xc2] sm:$0xff]
        %v4629 = vld [vmem:[#allocation2 + $0xca] sm:$0xff]
        %v4630 = vld [vmem:[#allocation2 + $0xda] sm:$0xff]
        %v4631 = vld [vmem:[#allocation2 + $0xe2] sm:$0xff]
        %v4632 = vld [vmem:[#allocation2 + $0xf2] sm:$0xff]
        %v4633 = vld [vmem:[#allocation2 + $0xfa] sm:$0xff]
        %v4634 = vld [vmem:[#allocation2 + $0x10a] sm:$0xff]
        %v4635 = vld [vmem:[#allocation2 + $0x112] sm:$0xff]
        %v4636 = vld [vmem:[#allocation2 + $0x122] sm:$0xff]
        %v4637 = vld [vmem:[#allocation2 + $0x12a] sm:$0xff]
        %v4638 = vld [vmem:[#allocation2 + $0x13a] sm:$0xff]
        %v4639 = vld [vmem:[#allocation2 + $0x142] sm:$0xff]
        %v4640 = vld [vmem:[#allocation2 + $0x152] sm:$0xff]
        %v4641 = vld [vmem:[#allocation2 + $0x15a] sm:$0xff]
        %v4642 = vld [vmem:[#allocation2 + $0x16a] sm:$0xff]
        %v4643 = vld [vmem:[#allocation2 + $0x172] sm:$0xff]
        %4676 = vrot.lane.b32.xlu0 %v4612, 8
        %v4677 = vpop.permute.xlu0 %4676
        %4678 = vrot.lane.b32.xlu0 %v4613, 8
        %v4679 = vpop.permute.xlu0 %4678
        %4680 = vrot.lane.b32.xlu0 %v4614, 8
        %v4681 = vpop.permute.xlu0 %4680
        %4682 = vrot.lane.b32.xlu0 %v4615, 8
        %v4683 = vpop.permute.xlu0 %4682
        %4684 = vrot.lane.b32.xlu0 %v4616, 8
        %v4685 = vpop.permute.xlu0 %4684
        %4686 = vrot.lane.b32.xlu0 %v4617, 8
        %v4687 = vpop.permute.xlu0 %4686
        %4688 = vrot.lane.b32.xlu0 %v4618, 8
        %v4689 = vpop.permute.xlu0 %4688
        %4690 = vrot.lane.b32.xlu0 %v4619, 8
        %v4691 = vpop.permute.xlu0 %4690
        %4692 = vrot.lane.b32.xlu0 %v4620, 8
        %v4693 = vpop.permute.xlu0 %4692
        %4694 = vrot.lane.b32.xlu0 %v4621, 8
        %v4695 = vpop.permute.xlu0 %4694
        %4696 = vrot.lane.b32.xlu0 %v4622, 8
        %v4697 = vpop.permute.xlu0 %4696
        %4698 = vrot.lane.b32.xlu0 %v4623, 8
        %v4699 = vpop.permute.xlu0 %4698
        %4700 = vrot.lane.b32.xlu0 %v4624, 8
        %v4701 = vpop.permute.xlu0 %4700
        %4702 = vrot.lane.b32.xlu0 %v4625, 8
        %v4703 = vpop.permute.xlu0 %4702
        %4704 = vrot.lane.b32.xlu0 %v4626, 8
        %v4705 = vpop.permute.xlu0 %4704
        %4706 = vrot.lane.b32.xlu0 %v4627, 8
        %v4707 = vpop.permute.xlu0 %4706
        %4708 = vrot.lane.b32.xlu0 %v4628, 8
        %v4709 = vpop.permute.xlu0 %4708
        %4710 = vrot.lane.b32.xlu0 %v4629, 8
        %v4711 = vpop.permute.xlu0 %4710
        %4712 = vrot.lane.b32.xlu0 %v4630, 8
        %v4713 = vpop.permute.xlu0 %4712
        %4714 = vrot.lane.b32.xlu0 %v4631, 8
        %v4715 = vpop.permute.xlu0 %4714
        %4716 = vrot.lane.b32.xlu0 %v4632, 8
        %v4717 = vpop.permute.xlu0 %4716
        %4718 = vrot.lane.b32.xlu0 %v4633, 8
        %v4719 = vpop.permute.xlu0 %4718
        %4720 = vrot.lane.b32.xlu0 %v4634, 8
        %v4721 = vpop.permute.xlu0 %4720
        %4722 = vrot.lane.b32.xlu0 %v4635, 8
        %v4723 = vpop.permute.xlu0 %4722
        %4724 = vrot.lane.b32.xlu0 %v4636, 8
        %v4725 = vpop.permute.xlu0 %4724
        %4726 = vrot.lane.b32.xlu0 %v4637, 8
        %v4727 = vpop.permute.xlu0 %4726
        %4728 = vrot.lane.b32.xlu0 %v4638, 8
        %v4729 = vpop.permute.xlu0 %4728
        %4730 = vrot.lane.b32.xlu0 %v4639, 8
        %v4731 = vpop.permute.xlu0 %4730
        %4732 = vrot.lane.b32.xlu0 %v4640, 8
        %v4733 = vpop.permute.xlu0 %4732
        %4734 = vrot.lane.b32.xlu0 %v4641, 8
        %v4735 = vpop.permute.xlu0 %4734
        %4736 = vrot.lane.b32.xlu0 %v4642, 8
        %v4737 = vpop.permute.xlu0 %4736
        %4738 = vrot.lane.b32.xlu0 %v4643, 8
        %v4739 = vpop.permute.xlu0 %4738
        %4772 = vst.msk [vmem:[#allocation3] sm:$0xff] %vm2188, %v4677
        %4773 = vst.msk [vmem:[#allocation3 + $0x8] sm:$0xff] %vm2188, %v4679
        %4774 = vst.msk [vmem:[#allocation3 + $0x10] sm:$0xff] %vm2188, %v4681
        %4775 = vst.msk [vmem:[#allocation3 + $0x18] sm:$0xff] %vm2188, %v4683
        %4776 = vst.msk [vmem:[#allocation3 + $0x20] sm:$0xff] %vm2188, %v4685
        %4777 = vst.msk [vmem:[#allocation3 + $0x28] sm:$0xff] %vm2188, %v4687
        %4778 = vst.msk [vmem:[#allocation3 + $0x30] sm:$0xff] %vm2188, %v4689
        %4779 = vst.msk [vmem:[#allocation3 + $0x38] sm:$0xff] %vm2188, %v4691
        %4780 = vst.msk [vmem:[#allocation3 + $0x40] sm:$0xff] %vm2188, %v4693
        %4781 = vst.msk [vmem:[#allocation3 + $0x48] sm:$0xff] %vm2188, %v4695
        %4782 = vst.msk [vmem:[#allocation3 + $0x50] sm:$0xff] %vm2188, %v4697
        %4783 = vst.msk [vmem:[#allocation3 + $0x58] sm:$0xff] %vm2188, %v4699
        %4784 = vst.msk [vmem:[#allocation3 + $0x60] sm:$0xff] %vm2188, %v4701
        %4785 = vst.msk [vmem:[#allocation3 + $0x68] sm:$0xff] %vm2188, %v4703
        %4786 = vst.msk [vmem:[#allocation3 + $0x70] sm:$0xff] %vm2188, %v4705
        %4787 = vst.msk [vmem:[#allocation3 + $0x78] sm:$0xff] %vm2188, %v4707
        %4788 = vst.msk [vmem:[#allocation3 + $0x80] sm:$0xff] %vm2188, %v4709
        %4789 = vst.msk [vmem:[#allocation3 + $0x88] sm:$0xff] %vm2188, %v4711
        %4790 = vst.msk [vmem:[#allocation3 + $0x90] sm:$0xff] %vm2188, %v4713
        %4791 = vst.msk [vmem:[#allocation3 + $0x98] sm:$0xff] %vm2188, %v4715
        %4792 = vst.msk [vmem:[#allocation3 + $0xa0] sm:$0xff] %vm2188, %v4717
        %4793 = vst.msk [vmem:[#allocation3 + $0xa8] sm:$0xff] %vm2188, %v4719
        %4794 = vst.msk [vmem:[#allocation3 + $0xb0] sm:$0xff] %vm2188, %v4721
        %4795 = vst.msk [vmem:[#allocation3 + $0xb8] sm:$0xff] %vm2188, %v4723
        %4796 = vst.msk [vmem:[#allocation3 + $0xc0] sm:$0xff] %vm2188, %v4725
        %4797 = vst.msk [vmem:[#allocation3 + $0xc8] sm:$0xff] %vm2188, %v4727
        %4798 = vst.msk [vmem:[#allocation3 + $0xd0] sm:$0xff] %vm2188, %v4729
        %4799 = vst.msk [vmem:[#allocation3 + $0xd8] sm:$0xff] %vm2188, %v4731
        %4800 = vst.msk [vmem:[#allocation3 + $0xe0] sm:$0xff] %vm2188, %v4733
        %4801 = vst.msk [vmem:[#allocation3 + $0xe8] sm:$0xff] %vm2188, %v4735
        %4802 = vst.msk [vmem:[#allocation3 + $0xf0] sm:$0xff] %vm2188, %v4737
        %4803 = vst.msk [vmem:[#allocation3 + $0xf8] sm:$0xff] %vm2188, %v4739
        %v4804 = vld [vmem:[%s1738] sm:$0xff]
        %v4805 = vld [vmem:[%s1738 + $0x8] sm:$0xff]
        %v4806 = vld [vmem:[%s1738 + $0x18] sm:$0xff]
        %v4807 = vld [vmem:[%s1738 + $0x20] sm:$0xff]
        %v4808 = vld [vmem:[%s1738 + $0x30] sm:$0xff]
        %v4809 = vld [vmem:[%s1738 + $0x38] sm:$0xff]
        %v4810 = vld [vmem:[%s1738 + $0x48] sm:$0xff]
        %v4811 = vld [vmem:[%s1738 + $0x50] sm:$0xff]
        %v4812 = vld [vmem:[%s1738 + $0x60] sm:$0xff]
        %v4813 = vld [vmem:[%s1738 + $0x68] sm:$0xff]
        %v4814 = vld [vmem:[%s1738 + $0x78] sm:$0xff]
        %v4815 = vld [vmem:[%s1738 + $0x80] sm:$0xff]
        %v4816 = vld [vmem:[%s1738 + $0x90] sm:$0xff]
        %v4817 = vld [vmem:[%s1738 + $0x98] sm:$0xff]
        %v4818 = vld [vmem:[%s1738 + $0xa8] sm:$0xff]
        %v4819 = vld [vmem:[%s1738 + $0xb0] sm:$0xff]
        %v4820 = vld [vmem:[%s1738 + $0xc0] sm:$0xff]
        %v4821 = vld [vmem:[%s1738 + $0xc8] sm:$0xff]
        %v4822 = vld [vmem:[%s1738 + $0xd8] sm:$0xff]
        %v4823 = vld [vmem:[%s1738 + $0xe0] sm:$0xff]
        %v4824 = vld [vmem:[%s1738 + $0xf0] sm:$0xff]
        %v4825 = vld [vmem:[%s1738 + $0xf8] sm:$0xff]
        %v4826 = vld [vmem:[%s1738 + $0x108] sm:$0xff]
        %v4827 = vld [vmem:[%s1738 + $0x110] sm:$0xff]
        %v4828 = vld [vmem:[%s1738 + $0x120] sm:$0xff]
        %v4829 = vld [vmem:[%s1738 + $0x128] sm:$0xff]
        %v4830 = vld [vmem:[%s1738 + $0x138] sm:$0xff]
        %v4831 = vld [vmem:[%s1738 + $0x140] sm:$0xff]
        %v4832 = vld [vmem:[%s1738 + $0x150] sm:$0xff]
        %v4833 = vld [vmem:[%s1738 + $0x158] sm:$0xff]
        %v4834 = vld [vmem:[%s1738 + $0x168] sm:$0xff]
        %v4835 = vld [vmem:[%s1738 + $0x170] sm:$0xff]
        %4868 = vrot.lane.b32.xlu0 %v4804, 12
        %v4869 = vpop.permute.xlu0 %4868
        %4870 = vrot.lane.b32.xlu0 %v4805, 12
        %v4871 = vpop.permute.xlu0 %4870
        %4872 = vrot.lane.b32.xlu0 %v4806, 12
        %v4873 = vpop.permute.xlu0 %4872
        %4874 = vrot.lane.b32.xlu0 %v4807, 12
        %v4875 = vpop.permute.xlu0 %4874
        %4876 = vrot.lane.b32.xlu0 %v4808, 12
        %v4877 = vpop.permute.xlu0 %4876
        %4878 = vrot.lane.b32.xlu0 %v4809, 12
        %v4879 = vpop.permute.xlu0 %4878
        %4880 = vrot.lane.b32.xlu0 %v4810, 12
        %v4881 = vpop.permute.xlu0 %4880
        %4882 = vrot.lane.b32.xlu0 %v4811, 12
        %v4883 = vpop.permute.xlu0 %4882
        %4884 = vrot.lane.b32.xlu0 %v4812, 12
        %v4885 = vpop.permute.xlu0 %4884
        %4886 = vrot.lane.b32.xlu0 %v4813, 12
        %v4887 = vpop.permute.xlu0 %4886
        %4888 = vrot.lane.b32.xlu0 %v4814, 12
        %v4889 = vpop.permute.xlu0 %4888
        %4890 = vrot.lane.b32.xlu0 %v4815, 12
        %v4891 = vpop.permute.xlu0 %4890
        %4892 = vrot.lane.b32.xlu0 %v4816, 12
        %v4893 = vpop.permute.xlu0 %4892
        %4894 = vrot.lane.b32.xlu0 %v4817, 12
        %v4895 = vpop.permute.xlu0 %4894
        %4896 = vrot.lane.b32.xlu0 %v4818, 12
        %v4897 = vpop.permute.xlu0 %4896
        %4898 = vrot.lane.b32.xlu0 %v4819, 12
        %v4899 = vpop.permute.xlu0 %4898
        %4900 = vrot.lane.b32.xlu0 %v4820, 12
        %v4901 = vpop.permute.xlu0 %4900
        %4902 = vrot.lane.b32.xlu0 %v4821, 12
        %v4903 = vpop.permute.xlu0 %4902
        %4904 = vrot.lane.b32.xlu0 %v4822, 12
        %v4905 = vpop.permute.xlu0 %4904
        %4906 = vrot.lane.b32.xlu0 %v4823, 12
        %v4907 = vpop.permute.xlu0 %4906
        %4908 = vrot.lane.b32.xlu0 %v4824, 12
        %v4909 = vpop.permute.xlu0 %4908
        %4910 = vrot.lane.b32.xlu0 %v4825, 12
        %v4911 = vpop.permute.xlu0 %4910
        %4912 = vrot.lane.b32.xlu0 %v4826, 12
        %v4913 = vpop.permute.xlu0 %4912
        %4914 = vrot.lane.b32.xlu0 %v4827, 12
        %v4915 = vpop.permute.xlu0 %4914
        %4916 = vrot.lane.b32.xlu0 %v4828, 12
        %v4917 = vpop.permute.xlu0 %4916
        %4918 = vrot.lane.b32.xlu0 %v4829, 12
        %v4919 = vpop.permute.xlu0 %4918
        %4920 = vrot.lane.b32.xlu0 %v4830, 12
        %v4921 = vpop.permute.xlu0 %4920
        %4922 = vrot.lane.b32.xlu0 %v4831, 12
        %v4923 = vpop.permute.xlu0 %4922
        %4924 = vrot.lane.b32.xlu0 %v4832, 12
        %v4925 = vpop.permute.xlu0 %4924
        %4926 = vrot.lane.b32.xlu0 %v4833, 12
        %v4927 = vpop.permute.xlu0 %4926
        %4928 = vrot.lane.b32.xlu0 %v4834, 12
        %v4929 = vpop.permute.xlu0 %4928
        %4930 = vrot.lane.b32.xlu0 %v4835, 12
        %v4931 = vpop.permute.xlu0 %4930
        %4964 = vst.msk [vmem:[#allocation3] sm:$0xff] %vm2381, %v4869
        %4965 = vst.msk [vmem:[#allocation3 + $0x8] sm:$0xff] %vm2381, %v4871
        %4966 = vst.msk [vmem:[#allocation3 + $0x10] sm:$0xff] %vm2381, %v4873
        %4967 = vst.msk [vmem:[#allocation3 + $0x18] sm:$0xff] %vm2381, %v4875
        %4968 = vst.msk [vmem:[#allocation3 + $0x20] sm:$0xff] %vm2381, %v4877
        %4969 = vst.msk [vmem:[#allocation3 + $0x28] sm:$0xff] %vm2381, %v4879
        %4970 = vst.msk [vmem:[#allocation3 + $0x30] sm:$0xff] %vm2381, %v4881
        %4971 = vst.msk [vmem:[#allocation3 + $0x38] sm:$0xff] %vm2381, %v4883
        %4972 = vst.msk [vmem:[#allocation3 + $0x40] sm:$0xff] %vm2381, %v4885
        %4973 = vst.msk [vmem:[#allocation3 + $0x48] sm:$0xff] %vm2381, %v4887
        %4974 = vst.msk [vmem:[#allocation3 + $0x50] sm:$0xff] %vm2381, %v4889
        %4975 = vst.msk [vmem:[#allocation3 + $0x58] sm:$0xff] %vm2381, %v4891
        %4976 = vst.msk [vmem:[#allocation3 + $0x60] sm:$0xff] %vm2381, %v4893
        %4977 = vst.msk [vmem:[#allocation3 + $0x68] sm:$0xff] %vm2381, %v4895
        %4978 = vst.msk [vmem:[#allocation3 + $0x70] sm:$0xff] %vm2381, %v4897
        %4979 = vst.msk [vmem:[#allocation3 + $0x78] sm:$0xff] %vm2381, %v4899
        %4980 = vst.msk [vmem:[#allocation3 + $0x80] sm:$0xff] %vm2381, %v4901
        %4981 = vst.msk [vmem:[#allocation3 + $0x88] sm:$0xff] %vm2381, %v4903
        %4982 = vst.msk [vmem:[#allocation3 + $0x90] sm:$0xff] %vm2381, %v4905
        %4983 = vst.msk [vmem:[#allocation3 + $0x98] sm:$0xff] %vm2381, %v4907
        %4984 = vst.msk [vmem:[#allocation3 + $0xa0] sm:$0xff] %vm2381, %v4909
        %4985 = vst.msk [vmem:[#allocation3 + $0xa8] sm:$0xff] %vm2381, %v4911
        %4986 = vst.msk [vmem:[#allocation3 + $0xb0] sm:$0xff] %vm2381, %v4913
        %4987 = vst.msk [vmem:[#allocation3 + $0xb8] sm:$0xff] %vm2381, %v4915
        %4988 = vst.msk [vmem:[#allocation3 + $0xc0] sm:$0xff] %vm2381, %v4917
        %4989 = vst.msk [vmem:[#allocation3 + $0xc8] sm:$0xff] %vm2381, %v4919
        %4990 = vst.msk [vmem:[#allocation3 + $0xd0] sm:$0xff] %vm2381, %v4921
        %4991 = vst.msk [vmem:[#allocation3 + $0xd8] sm:$0xff] %vm2381, %v4923
        %4992 = vst.msk [vmem:[#allocation3 + $0xe0] sm:$0xff] %vm2381, %v4925
        %4993 = vst.msk [vmem:[#allocation3 + $0xe8] sm:$0xff] %vm2381, %v4927
        %4994 = vst.msk [vmem:[#allocation3 + $0xf0] sm:$0xff] %vm2381, %v4929
        %4995 = vst.msk [vmem:[#allocation3 + $0xf8] sm:$0xff] %vm2381, %v4931
        %v4996 = vld [vmem:[%s1738 + $0x1] sm:$0xff]
        %v4997 = vld [vmem:[%s1738 + $0x9] sm:$0xff]
        %v4998 = vld [vmem:[%s1738 + $0x19] sm:$0xff]
        %v4999 = vld [vmem:[%s1738 + $0x21] sm:$0xff]
        %v5000 = vld [vmem:[%s1738 + $0x31] sm:$0xff]
        %v5001 = vld [vmem:[%s1738 + $0x39] sm:$0xff]
        %v5002 = vld [vmem:[%s1738 + $0x49] sm:$0xff]
        %v5003 = vld [vmem:[%s1738 + $0x51] sm:$0xff]
        %v5004 = vld [vmem:[%s1738 + $0x61] sm:$0xff]
        %v5005 = vld [vmem:[%s1738 + $0x69] sm:$0xff]
        %v5006 = vld [vmem:[%s1738 + $0x79] sm:$0xff]
        %v5007 = vld [vmem:[%s1738 + $0x81] sm:$0xff]
        %v5008 = vld [vmem:[%s1738 + $0x91] sm:$0xff]
        %v5009 = vld [vmem:[%s1738 + $0x99] sm:$0xff]
        %v5010 = vld [vmem:[%s1738 + $0xa9] sm:$0xff]
        %v5011 = vld [vmem:[%s1738 + $0xb1] sm:$0xff]
        %v5012 = vld [vmem:[%s1738 + $0xc1] sm:$0xff]
        %v5013 = vld [vmem:[%s1738 + $0xc9] sm:$0xff]
        %v5014 = vld [vmem:[%s1738 + $0xd9] sm:$0xff]
        %v5015 = vld [vmem:[%s1738 + $0xe1] sm:$0xff]
        %v5016 = vld [vmem:[%s1738 + $0xf1] sm:$0xff]
        %v5017 = vld [vmem:[%s1738 + $0xf9] sm:$0xff]
        %v5018 = vld [vmem:[%s1738 + $0x109] sm:$0xff]
        %v5019 = vld [vmem:[%s1738 + $0x111] sm:$0xff]
        %v5020 = vld [vmem:[%s1738 + $0x121] sm:$0xff]
        %v5021 = vld [vmem:[%s1738 + $0x129] sm:$0xff]
        %v5022 = vld [vmem:[%s1738 + $0x139] sm:$0xff]
        %v5023 = vld [vmem:[%s1738 + $0x141] sm:$0xff]
        %v5024 = vld [vmem:[%s1738 + $0x151] sm:$0xff]
        %v5025 = vld [vmem:[%s1738 + $0x159] sm:$0xff]
        %v5026 = vld [vmem:[%s1738 + $0x169] sm:$0xff]
        %v5027 = vld [vmem:[%s1738 + $0x171] sm:$0xff]
        %5060 = vrot.lane.b32.xlu0 %v4996, 16
        %v5061 = vpop.permute.xlu0 %5060
        %5062 = vrot.lane.b32.xlu0 %v4997, 16
        %v5063 = vpop.permute.xlu0 %5062
        %5064 = vrot.lane.b32.xlu0 %v4998, 16
        %v5065 = vpop.permute.xlu0 %5064
        %5066 = vrot.lane.b32.xlu0 %v4999, 16
        %v5067 = vpop.permute.xlu0 %5066
        %5068 = vrot.lane.b32.xlu0 %v5000, 16
        %v5069 = vpop.permute.xlu0 %5068
        %5070 = vrot.lane.b32.xlu0 %v5001, 16
        %v5071 = vpop.permute.xlu0 %5070
        %5072 = vrot.lane.b32.xlu0 %v5002, 16
        %v5073 = vpop.permute.xlu0 %5072
        %5074 = vrot.lane.b32.xlu0 %v5003, 16
        %v5075 = vpop.permute.xlu0 %5074
        %5076 = vrot.lane.b32.xlu0 %v5004, 16
        %v5077 = vpop.permute.xlu0 %5076
        %5078 = vrot.lane.b32.xlu0 %v5005, 16
        %v5079 = vpop.permute.xlu0 %5078
        %5080 = vrot.lane.b32.xlu0 %v5006, 16
        %v5081 = vpop.permute.xlu0 %5080
        %5082 = vrot.lane.b32.xlu0 %v5007, 16
        %v5083 = vpop.permute.xlu0 %5082
        %5084 = vrot.lane.b32.xlu0 %v5008, 16
        %v5085 = vpop.permute.xlu0 %5084
        %5086 = vrot.lane.b32.xlu0 %v5009, 16
        %v5087 = vpop.permute.xlu0 %5086
        %5088 = vrot.lane.b32.xlu0 %v5010, 16
        %v5089 = vpop.permute.xlu0 %5088
        %5090 = vrot.lane.b32.xlu0 %v5011, 16
        %v5091 = vpop.permute.xlu0 %5090
        %5092 = vrot.lane.b32.xlu0 %v5012, 16
        %v5093 = vpop.permute.xlu0 %5092
        %5094 = vrot.lane.b32.xlu0 %v5013, 16
        %v5095 = vpop.permute.xlu0 %5094
        %5096 = vrot.lane.b32.xlu0 %v5014, 16
        %v5097 = vpop.permute.xlu0 %5096
        %5098 = vrot.lane.b32.xlu0 %v5015, 16
        %v5099 = vpop.permute.xlu0 %5098
        %5100 = vrot.lane.b32.xlu0 %v5016, 16
        %v5101 = vpop.permute.xlu0 %5100
        %5102 = vrot.lane.b32.xlu0 %v5017, 16
        %v5103 = vpop.permute.xlu0 %5102
        %5104 = vrot.lane.b32.xlu0 %v5018, 16
        %v5105 = vpop.permute.xlu0 %5104
        %5106 = vrot.lane.b32.xlu0 %v5019, 16
        %v5107 = vpop.permute.xlu0 %5106
        %5108 = vrot.lane.b32.xlu0 %v5020, 16
        %v5109 = vpop.permute.xlu0 %5108
        %5110 = vrot.lane.b32.xlu0 %v5021, 16
        %v5111 = vpop.permute.xlu0 %5110
        %5112 = vrot.lane.b32.xlu0 %v5022, 16
        %v5113 = vpop.permute.xlu0 %5112
        %5114 = vrot.lane.b32.xlu0 %v5023, 16
        %v5115 = vpop.permute.xlu0 %5114
        %5116 = vrot.lane.b32.xlu0 %v5024, 16
        %v5117 = vpop.permute.xlu0 %5116
        %5118 = vrot.lane.b32.xlu0 %v5025, 16
        %v5119 = vpop.permute.xlu0 %5118
        %5120 = vrot.lane.b32.xlu0 %v5026, 16
        %v5121 = vpop.permute.xlu0 %5120
        %5122 = vrot.lane.b32.xlu0 %v5027, 16
        %v5123 = vpop.permute.xlu0 %5122
        %5156 = vst.msk [vmem:[#allocation3] sm:$0xff] %vm2574, %v5061
        %5157 = vst.msk [vmem:[#allocation3 + $0x8] sm:$0xff] %vm2574, %v5063
        %5158 = vst.msk [vmem:[#allocation3 + $0x10] sm:$0xff] %vm2574, %v5065
        %5159 = vst.msk [vmem:[#allocation3 + $0x18] sm:$0xff] %vm2574, %v5067
        %5160 = vst.msk [vmem:[#allocation3 + $0x20] sm:$0xff] %vm2574, %v5069
        %5161 = vst.msk [vmem:[#allocation3 + $0x28] sm:$0xff] %vm2574, %v5071
        %5162 = vst.msk [vmem:[#allocation3 + $0x30] sm:$0xff] %vm2574, %v5073
        %5163 = vst.msk [vmem:[#allocation3 + $0x38] sm:$0xff] %vm2574, %v5075
        %5164 = vst.msk [vmem:[#allocation3 + $0x40] sm:$0xff] %vm2574, %v5077
        %5165 = vst.msk [vmem:[#allocation3 + $0x48] sm:$0xff] %vm2574, %v5079
        %5166 = vst.msk [vmem:[#allocation3 + $0x50] sm:$0xff] %vm2574, %v5081
        %5167 = vst.msk [vmem:[#allocation3 + $0x58] sm:$0xff] %vm2574, %v5083
        %5168 = vst.msk [vmem:[#allocation3 + $0x60] sm:$0xff] %vm2574, %v5085
        %5169 = vst.msk [vmem:[#allocation3 + $0x68] sm:$0xff] %vm2574, %v5087
        %5170 = vst.msk [vmem:[#allocation3 + $0x70] sm:$0xff] %vm2574, %v5089
        %5171 = vst.msk [vmem:[#allocation3 + $0x78] sm:$0xff] %vm2574, %v5091
        %5172 = vst.msk [vmem:[#allocation3 + $0x80] sm:$0xff] %vm2574, %v5093
        %5173 = vst.msk [vmem:[#allocation3 + $0x88] sm:$0xff] %vm2574, %v5095
        %5174 = vst.msk [vmem:[#allocation3 + $0x90] sm:$0xff] %vm2574, %v5097
        %5175 = vst.msk [vmem:[#allocation3 + $0x98] sm:$0xff] %vm2574, %v5099
        %5176 = vst.msk [vmem:[#allocation3 + $0xa0] sm:$0xff] %vm2574, %v5101
        %5177 = vst.msk [vmem:[#allocation3 + $0xa8] sm:$0xff] %vm2574, %v5103
        %5178 = vst.msk [vmem:[#allocation3 + $0xb0] sm:$0xff] %vm2574, %v5105
        %5179 = vst.msk [vmem:[#allocation3 + $0xb8] sm:$0xff] %vm2574, %v5107
        %5180 = vst.msk [vmem:[#allocation3 + $0xc0] sm:$0xff] %vm2574, %v5109
        %5181 = vst.msk [vmem:[#allocation3 + $0xc8] sm:$0xff] %vm2574, %v5111
        %5182 = vst.msk [vmem:[#allocation3 + $0xd0] sm:$0xff] %vm2574, %v5113
        %5183 = vst.msk [vmem:[#allocation3 + $0xd8] sm:$0xff] %vm2574, %v5115
        %5184 = vst.msk [vmem:[#allocation3 + $0xe0] sm:$0xff] %vm2574, %v5117
        %5185 = vst.msk [vmem:[#allocation3 + $0xe8] sm:$0xff] %vm2574, %v5119
        %5186 = vst.msk [vmem:[#allocation3 + $0xf0] sm:$0xff] %vm2574, %v5121
        %5187 = vst.msk [vmem:[#allocation3 + $0xf8] sm:$0xff] %vm2574, %v5123
        %v5188 = vld [vmem:[%s1738 + $0x2] sm:$0xff]
        %v5189 = vld [vmem:[%s1738 + $0xa] sm:$0xff]
        %v5190 = vld [vmem:[%s1738 + $0x1a] sm:$0xff]
        %v5191 = vld [vmem:[%s1738 + $0x22] sm:$0xff]
        %v5192 = vld [vmem:[%s1738 + $0x32] sm:$0xff]
        %v5193 = vld [vmem:[%s1738 + $0x3a] sm:$0xff]
        %v5194 = vld [vmem:[%s1738 + $0x4a] sm:$0xff]
        %v5195 = vld [vmem:[%s1738 + $0x52] sm:$0xff]
        %v5196 = vld [vmem:[%s1738 + $0x62] sm:$0xff]
        %v5197 = vld [vmem:[%s1738 + $0x6a] sm:$0xff]
        %v5198 = vld [vmem:[%s1738 + $0x7a] sm:$0xff]
        %v5199 = vld [vmem:[%s1738 + $0x82] sm:$0xff]
        %v5200 = vld [vmem:[%s1738 + $0x92] sm:$0xff]
        %v5201 = vld [vmem:[%s1738 + $0x9a] sm:$0xff]
        %v5202 = vld [vmem:[%s1738 + $0xaa] sm:$0xff]
        %v5203 = vld [vmem:[%s1738 + $0xb2] sm:$0xff]
        %v5204 = vld [vmem:[%s1738 + $0xc2] sm:$0xff]
        %v5205 = vld [vmem:[%s1738 + $0xca] sm:$0xff]
        %v5206 = vld [vmem:[%s1738 + $0xda] sm:$0xff]
        %v5207 = vld [vmem:[%s1738 + $0xe2] sm:$0xff]
        %v5208 = vld [vmem:[%s1738 + $0xf2] sm:$0xff]
        %v5209 = vld [vmem:[%s1738 + $0xfa] sm:$0xff]
        %v5210 = vld [vmem:[%s1738 + $0x10a] sm:$0xff]
        %v5211 = vld [vmem:[%s1738 + $0x112] sm:$0xff]
        %v5212 = vld [vmem:[%s1738 + $0x122] sm:$0xff]
        %v5213 = vld [vmem:[%s1738 + $0x12a] sm:$0xff]
        %v5214 = vld [vmem:[%s1738 + $0x13a] sm:$0xff]
        %v5215 = vld [vmem:[%s1738 + $0x142] sm:$0xff]
        %v5216 = vld [vmem:[%s1738 + $0x152] sm:$0xff]
        %v5217 = vld [vmem:[%s1738 + $0x15a] sm:$0xff]
        %v5218 = vld [vmem:[%s1738 + $0x16a] sm:$0xff]
        %v5219 = vld [vmem:[%s1738 + $0x172] sm:$0xff]
        %5252 = vrot.lane.b32.xlu0 %v5188, 20
        %v5253 = vpop.permute.xlu0 %5252
        %5254 = vrot.lane.b32.xlu0 %v5189, 20
        %v5255 = vpop.permute.xlu0 %5254
        %5256 = vrot.lane.b32.xlu0 %v5190, 20
        %v5257 = vpop.permute.xlu0 %5256
        %5258 = vrot.lane.b32.xlu0 %v5191, 20
        %v5259 = vpop.permute.xlu0 %5258
        %5260 = vrot.lane.b32.xlu0 %v5192, 20
        %v5261 = vpop.permute.xlu0 %5260
        %5262 = vrot.lane.b32.xlu0 %v5193, 20
        %v5263 = vpop.permute.xlu0 %5262
        %5264 = vrot.lane.b32.xlu0 %v5194, 20
        %v5265 = vpop.permute.xlu0 %5264
        %5266 = vrot.lane.b32.xlu0 %v5195, 20
        %v5267 = vpop.permute.xlu0 %5266
        %5268 = vrot.lane.b32.xlu0 %v5196, 20
        %v5269 = vpop.permute.xlu0 %5268
        %5270 = vrot.lane.b32.xlu0 %v5197, 20
        %v5271 = vpop.permute.xlu0 %5270
        %5272 = vrot.lane.b32.xlu0 %v5198, 20
        %v5273 = vpop.permute.xlu0 %5272
        %5274 = vrot.lane.b32.xlu0 %v5199, 20
        %v5275 = vpop.permute.xlu0 %5274
        %5276 = vrot.lane.b32.xlu0 %v5200, 20
        %v5277 = vpop.permute.xlu0 %5276
        %5278 = vrot.lane.b32.xlu0 %v5201, 20
        %v5279 = vpop.permute.xlu0 %5278
        %5280 = vrot.lane.b32.xlu0 %v5202, 20
        %v5281 = vpop.permute.xlu0 %5280
        %5282 = vrot.lane.b32.xlu0 %v5203, 20
        %v5283 = vpop.permute.xlu0 %5282
        %5284 = vrot.lane.b32.xlu0 %v5204, 20
        %v5285 = vpop.permute.xlu0 %5284
        %5286 = vrot.lane.b32.xlu0 %v5205, 20
        %v5287 = vpop.permute.xlu0 %5286
        %5288 = vrot.lane.b32.xlu0 %v5206, 20
        %v5289 = vpop.permute.xlu0 %5288
        %5290 = vrot.lane.b32.xlu0 %v5207, 20
        %v5291 = vpop.permute.xlu0 %5290
        %5292 = vrot.lane.b32.xlu0 %v5208, 20
        %v5293 = vpop.permute.xlu0 %5292
        %5294 = vrot.lane.b32.xlu0 %v5209, 20
        %v5295 = vpop.permute.xlu0 %5294
        %5296 = vrot.lane.b32.xlu0 %v5210, 20
        %v5297 = vpop.permute.xlu0 %5296
        %5298 = vrot.lane.b32.xlu0 %v5211, 20
        %v5299 = vpop.permute.xlu0 %5298
        %5300 = vrot.lane.b32.xlu0 %v5212, 20
        %v5301 = vpop.permute.xlu0 %5300
        %5302 = vrot.lane.b32.xlu0 %v5213, 20
        %v5303 = vpop.permute.xlu0 %5302
        %5304 = vrot.lane.b32.xlu0 %v5214, 20
        %v5305 = vpop.permute.xlu0 %5304
        %5306 = vrot.lane.b32.xlu0 %v5215, 20
        %v5307 = vpop.permute.xlu0 %5306
        %5308 = vrot.lane.b32.xlu0 %v5216, 20
        %v5309 = vpop.permute.xlu0 %5308
        %5310 = vrot.lane.b32.xlu0 %v5217, 20
        %v5311 = vpop.permute.xlu0 %5310
        %5312 = vrot.lane.b32.xlu0 %v5218, 20
        %v5313 = vpop.permute.xlu0 %5312
        %5314 = vrot.lane.b32.xlu0 %v5219, 20
        %v5315 = vpop.permute.xlu0 %5314
        %5348 = vst.msk [vmem:[#allocation3] sm:$0xff] %vm2767, %v5253
        %5349 = vst.msk [vmem:[#allocation3 + $0x8] sm:$0xff] %vm2767, %v5255
        %5350 = vst.msk [vmem:[#allocation3 + $0x10] sm:$0xff] %vm2767, %v5257
        %5351 = vst.msk [vmem:[#allocation3 + $0x18] sm:$0xff] %vm2767, %v5259
        %5352 = vst.msk [vmem:[#allocation3 + $0x20] sm:$0xff] %vm2767, %v5261
        %5353 = vst.msk [vmem:[#allocation3 + $0x28] sm:$0xff] %vm2767, %v5263
        %5354 = vst.msk [vmem:[#allocation3 + $0x30] sm:$0xff] %vm2767, %v5265
        %5355 = vst.msk [vmem:[#allocation3 + $0x38] sm:$0xff] %vm2767, %v5267
        %5356 = vst.msk [vmem:[#allocation3 + $0x40] sm:$0xff] %vm2767, %v5269
        %5357 = vst.msk [vmem:[#allocation3 + $0x48] sm:$0xff] %vm2767, %v5271
        %5358 = vst.msk [vmem:[#allocation3 + $0x50] sm:$0xff] %vm2767, %v5273
        %5359 = vst.msk [vmem:[#allocation3 + $0x58] sm:$0xff] %vm2767, %v5275
        %5360 = vst.msk [vmem:[#allocation3 + $0x60] sm:$0xff] %vm2767, %v5277
        %5361 = vst.msk [vmem:[#allocation3 + $0x68] sm:$0xff] %vm2767, %v5279
        %5362 = vst.msk [vmem:[#allocation3 + $0x70] sm:$0xff] %vm2767, %v5281
        %5363 = vst.msk [vmem:[#allocation3 + $0x78] sm:$0xff] %vm2767, %v5283
        %5364 = vst.msk [vmem:[#allocation3 + $0x80] sm:$0xff] %vm2767, %v5285
        %5365 = vst.msk [vmem:[#allocation3 + $0x88] sm:$0xff] %vm2767, %v5287
        %5366 = vst.msk [vmem:[#allocation3 + $0x90] sm:$0xff] %vm2767, %v5289
        %5367 = vst.msk [vmem:[#allocation3 + $0x98] sm:$0xff] %vm2767, %v5291
        %5368 = vst.msk [vmem:[#allocation3 + $0xa0] sm:$0xff] %vm2767, %v5293
        %5369 = vst.msk [vmem:[#allocation3 + $0xa8] sm:$0xff] %vm2767, %v5295
        %5370 = vst.msk [vmem:[#allocation3 + $0xb0] sm:$0xff] %vm2767, %v5297
        %5371 = vst.msk [vmem:[#allocation3 + $0xb8] sm:$0xff] %vm2767, %v5299
        %5372 = vst.msk [vmem:[#allocation3 + $0xc0] sm:$0xff] %vm2767, %v5301
        %5373 = vst.msk [vmem:[#allocation3 + $0xc8] sm:$0xff] %vm2767, %v5303
        %5374 = vst.msk [vmem:[#allocation3 + $0xd0] sm:$0xff] %vm2767, %v5305
        %5375 = vst.msk [vmem:[#allocation3 + $0xd8] sm:$0xff] %vm2767, %v5307
        %5376 = vst.msk [vmem:[#allocation3 + $0xe0] sm:$0xff] %vm2767, %v5309
        %5377 = vst.msk [vmem:[#allocation3 + $0xe8] sm:$0xff] %vm2767, %v5311
        %5378 = vst.msk [vmem:[#allocation3 + $0xf0] sm:$0xff] %vm2767, %v5313
        %5379 = vst.msk [vmem:[#allocation3 + $0xf8] sm:$0xff] %vm2767, %v5315
        %v5380 = vld [vmem:[%s2800] sm:$0xff]
        %v5381 = vld [vmem:[%s2800 + $0x8] sm:$0xff]
        %v5382 = vld [vmem:[%s2800 + $0x18] sm:$0xff]
        %v5383 = vld [vmem:[%s2800 + $0x20] sm:$0xff]
        %v5384 = vld [vmem:[%s2800 + $0x30] sm:$0xff]
        %v5385 = vld [vmem:[%s2800 + $0x38] sm:$0xff]
        %v5386 = vld [vmem:[%s2800 + $0x48] sm:$0xff]
        %v5387 = vld [vmem:[%s2800 + $0x50] sm:$0xff]
        %v5388 = vld [vmem:[%s2800 + $0x60] sm:$0xff]
        %v5389 = vld [vmem:[%s2800 + $0x68] sm:$0xff]
        %v5390 = vld [vmem:[%s2800 + $0x78] sm:$0xff]
        %v5391 = vld [vmem:[%s2800 + $0x80] sm:$0xff]
        %v5392 = vld [vmem:[%s2800 + $0x90] sm:$0xff]
        %v5393 = vld [vmem:[%s2800 + $0x98] sm:$0xff]
        %v5394 = vld [vmem:[%s2800 + $0xa8] sm:$0xff]
        %v5395 = vld [vmem:[%s2800 + $0xb0] sm:$0xff]
        %v5396 = vld [vmem:[%s2800 + $0xc0] sm:$0xff]
        %v5397 = vld [vmem:[%s2800 + $0xc8] sm:$0xff]
        %v5398 = vld [vmem:[%s2800 + $0xd8] sm:$0xff]
        %v5399 = vld [vmem:[%s2800 + $0xe0] sm:$0xff]
        %v5400 = vld [vmem:[%s2800 + $0xf0] sm:$0xff]
        %v5401 = vld [vmem:[%s2800 + $0xf8] sm:$0xff]
        %v5402 = vld [vmem:[%s2800 + $0x108] sm:$0xff]
        %v5403 = vld [vmem:[%s2800 + $0x110] sm:$0xff]
        %v5404 = vld [vmem:[%s2800 + $0x120] sm:$0xff]
        %v5405 = vld [vmem:[%s2800 + $0x128] sm:$0xff]
        %v5406 = vld [vmem:[%s2800 + $0x138] sm:$0xff]
        %v5407 = vld [vmem:[%s2800 + $0x140] sm:$0xff]
        %v5408 = vld [vmem:[%s2800 + $0x150] sm:$0xff]
        %v5409 = vld [vmem:[%s2800 + $0x158] sm:$0xff]
        %v5410 = vld [vmem:[%s2800 + $0x168] sm:$0xff]
        %v5411 = vld [vmem:[%s2800 + $0x170] sm:$0xff]
        %5444 = vrot.lane.b32.xlu0 %v5380, 24
        %v5445 = vpop.permute.xlu0 %5444
        %5446 = vrot.lane.b32.xlu0 %v5381, 24
        %v5447 = vpop.permute.xlu0 %5446
        %5448 = vrot.lane.b32.xlu0 %v5382, 24
        %v5449 = vpop.permute.xlu0 %5448
        %5450 = vrot.lane.b32.xlu0 %v5383, 24
        %v5451 = vpop.permute.xlu0 %5450
        %5452 = vrot.lane.b32.xlu0 %v5384, 24
        %v5453 = vpop.permute.xlu0 %5452
        %5454 = vrot.lane.b32.xlu0 %v5385, 24
        %v5455 = vpop.permute.xlu0 %5454
        %5456 = vrot.lane.b32.xlu0 %v5386, 24
        %v5457 = vpop.permute.xlu0 %5456
        %5458 = vrot.lane.b32.xlu0 %v5387, 24
        %v5459 = vpop.permute.xlu0 %5458
        %5460 = vrot.lane.b32.xlu0 %v5388, 24
        %v5461 = vpop.permute.xlu0 %5460
        %5462 = vrot.lane.b32.xlu0 %v5389, 24
        %v5463 = vpop.permute.xlu0 %5462
        %5464 = vrot.lane.b32.xlu0 %v5390, 24
        %v5465 = vpop.permute.xlu0 %5464
        %5466 = vrot.lane.b32.xlu0 %v5391, 24
        %v5467 = vpop.permute.xlu0 %5466
        %5468 = vrot.lane.b32.xlu0 %v5392, 24
        %v5469 = vpop.permute.xlu0 %5468
        %5470 = vrot.lane.b32.xlu0 %v5393, 24
        %v5471 = vpop.permute.xlu0 %5470
        %5472 = vrot.lane.b32.xlu0 %v5394, 24
        %v5473 = vpop.permute.xlu0 %5472
        %5474 = vrot.lane.b32.xlu0 %v5395, 24
        %v5475 = vpop.permute.xlu0 %5474
        %5476 = vrot.lane.b32.xlu0 %v5396, 24
        %v5477 = vpop.permute.xlu0 %5476
        %5478 = vrot.lane.b32.xlu0 %v5397, 24
        %v5479 = vpop.permute.xlu0 %5478
        %5480 = vrot.lane.b32.xlu0 %v5398, 24
        %v5481 = vpop.permute.xlu0 %5480
        %5482 = vrot.lane.b32.xlu0 %v5399, 24
        %v5483 = vpop.permute.xlu0 %5482
        %5484 = vrot.lane.b32.xlu0 %v5400, 24
        %v5485 = vpop.permute.xlu0 %5484
        %5486 = vrot.lane.b32.xlu0 %v5401, 24
        %v5487 = vpop.permute.xlu0 %5486
        %5488 = vrot.lane.b32.xlu0 %v5402, 24
        %v5489 = vpop.permute.xlu0 %5488
        %5490 = vrot.lane.b32.xlu0 %v5403, 24
        %v5491 = vpop.permute.xlu0 %5490
        %5492 = vrot.lane.b32.xlu0 %v5404, 24
        %v5493 = vpop.permute.xlu0 %5492
        %5494 = vrot.lane.b32.xlu0 %v5405, 24
        %v5495 = vpop.permute.xlu0 %5494
        %5496 = vrot.lane.b32.xlu0 %v5406, 24
        %v5497 = vpop.permute.xlu0 %5496
        %5498 = vrot.lane.b32.xlu0 %v5407, 24
        %v5499 = vpop.permute.xlu0 %5498
        %5500 = vrot.lane.b32.xlu0 %v5408, 24
        %v5501 = vpop.permute.xlu0 %5500
        %5502 = vrot.lane.b32.xlu0 %v5409, 24
        %v5503 = vpop.permute.xlu0 %5502
        %5504 = vrot.lane.b32.xlu0 %v5410, 24
        %v5505 = vpop.permute.xlu0 %5504
        %5506 = vrot.lane.b32.xlu0 %v5411, 24
        %v5507 = vpop.permute.xlu0 %5506
        %5540 = vst.msk [vmem:[#allocation3] sm:$0xff] %vm2961, %v5445
        %5541 = vst.msk [vmem:[#allocation3 + $0x8] sm:$0xff] %vm2961, %v5447
        %5542 = vst.msk [vmem:[#allocation3 + $0x10] sm:$0xff] %vm2961, %v5449
        %5543 = vst.msk [vmem:[#allocation3 + $0x18] sm:$0xff] %vm2961, %v5451
        %5544 = vst.msk [vmem:[#allocation3 + $0x20] sm:$0xff] %vm2961, %v5453
        %5545 = vst.msk [vmem:[#allocation3 + $0x28] sm:$0xff] %vm2961, %v5455
        %5546 = vst.msk [vmem:[#allocation3 + $0x30] sm:$0xff] %vm2961, %v5457
        %5547 = vst.msk [vmem:[#allocation3 + $0x38] sm:$0xff] %vm2961, %v5459
        %5548 = vst.msk [vmem:[#allocation3 + $0x40] sm:$0xff] %vm2961, %v5461
        %5549 = vst.msk [vmem:[#allocation3 + $0x48] sm:$0xff] %vm2961, %v5463
        %5550 = vst.msk [vmem:[#allocation3 + $0x50] sm:$0xff] %vm2961, %v5465
        %5551 = vst.msk [vmem:[#allocation3 + $0x58] sm:$0xff] %vm2961, %v5467
        %5552 = vst.msk [vmem:[#allocation3 + $0x60] sm:$0xff] %vm2961, %v5469
        %5553 = vst.msk [vmem:[#allocation3 + $0x68] sm:$0xff] %vm2961, %v5471
        %5554 = vst.msk [vmem:[#allocation3 + $0x70] sm:$0xff] %vm2961, %v5473
        %5555 = vst.msk [vmem:[#allocation3 + $0x78] sm:$0xff] %vm2961, %v5475
        %5556 = vst.msk [vmem:[#allocation3 + $0x80] sm:$0xff] %vm2961, %v5477
        %5557 = vst.msk [vmem:[#allocation3 + $0x88] sm:$0xff] %vm2961, %v5479
        %5558 = vst.msk [vmem:[#allocation3 + $0x90] sm:$0xff] %vm2961, %v5481
        %5559 = vst.msk [vmem:[#allocation3 + $0x98] sm:$0xff] %vm2961, %v5483
        %5560 = vst.msk [vmem:[#allocation3 + $0xa0] sm:$0xff] %vm2961, %v5485
        %5561 = vst.msk [vmem:[#allocation3 + $0xa8] sm:$0xff] %vm2961, %v5487
        %5562 = vst.msk [vmem:[#allocation3 + $0xb0] sm:$0xff] %vm2961, %v5489
        %5563 = vst.msk [vmem:[#allocation3 + $0xb8] sm:$0xff] %vm2961, %v5491
        %5564 = vst.msk [vmem:[#allocation3 + $0xc0] sm:$0xff] %vm2961, %v5493
        %5565 = vst.msk [vmem:[#allocation3 + $0xc8] sm:$0xff] %vm2961, %v5495
        %5566 = vst.msk [vmem:[#allocation3 + $0xd0] sm:$0xff] %vm2961, %v5497
        %5567 = vst.msk [vmem:[#allocation3 + $0xd8] sm:$0xff] %vm2961, %v5499
        %5568 = vst.msk [vmem:[#allocation3 + $0xe0] sm:$0xff] %vm2961, %v5501
        %5569 = vst.msk [vmem:[#allocation3 + $0xe8] sm:$0xff] %vm2961, %v5503
        %5570 = vst.msk [vmem:[#allocation3 + $0xf0] sm:$0xff] %vm2961, %v5505
        %5571 = vst.msk [vmem:[#allocation3 + $0xf8] sm:$0xff] %vm2961, %v5507
        %v5572 = vld [vmem:[%s2800 + $0x1] sm:$0xff]
        %v5573 = vld [vmem:[%s2800 + $0x9] sm:$0xff]
        %v5574 = vld [vmem:[%s2800 + $0x19] sm:$0xff]
        %v5575 = vld [vmem:[%s2800 + $0x21] sm:$0xff]
        %v5576 = vld [vmem:[%s2800 + $0x31] sm:$0xff]
        %v5577 = vld [vmem:[%s2800 + $0x39] sm:$0xff]
        %v5578 = vld [vmem:[%s2800 + $0x49] sm:$0xff]
        %v5579 = vld [vmem:[%s2800 + $0x51] sm:$0xff]
        %v5580 = vld [vmem:[%s2800 + $0x61] sm:$0xff]
        %v5581 = vld [vmem:[%s2800 + $0x69] sm:$0xff]
        %v5582 = vld [vmem:[%s2800 + $0x79] sm:$0xff]
        %v5583 = vld [vmem:[%s2800 + $0x81] sm:$0xff]
        %v5584 = vld [vmem:[%s2800 + $0x91] sm:$0xff]
        %v5585 = vld [vmem:[%s2800 + $0x99] sm:$0xff]
        %v5586 = vld [vmem:[%s2800 + $0xa9] sm:$0xff]
        %v5587 = vld [vmem:[%s2800 + $0xb1] sm:$0xff]
        %v5588 = vld [vmem:[%s2800 + $0xc1] sm:$0xff]
        %v5589 = vld [vmem:[%s2800 + $0xc9] sm:$0xff]
        %v5590 = vld [vmem:[%s2800 + $0xd9] sm:$0xff]
        %v5591 = vld [vmem:[%s2800 + $0xe1] sm:$0xff]
        %v5592 = vld [vmem:[%s2800 + $0xf1] sm:$0xff]
        %v5593 = vld [vmem:[%s2800 + $0xf9] sm:$0xff]
        %v5594 = vld [vmem:[%s2800 + $0x109] sm:$0xff]
        %v5595 = vld [vmem:[%s2800 + $0x111] sm:$0xff]
        %v5596 = vld [vmem:[%s2800 + $0x121] sm:$0xff]
        %v5597 = vld [vmem:[%s2800 + $0x129] sm:$0xff]
        %v5598 = vld [vmem:[%s2800 + $0x139] sm:$0xff]
        %v5599 = vld [vmem:[%s2800 + $0x141] sm:$0xff]
        %v5600 = vld [vmem:[%s2800 + $0x151] sm:$0xff]
        %v5601 = vld [vmem:[%s2800 + $0x159] sm:$0xff]
        %v5602 = vld [vmem:[%s2800 + $0x169] sm:$0xff]
        %v5603 = vld [vmem:[%s2800 + $0x171] sm:$0xff]
        %5636 = vrot.lane.b32.xlu0 %v5572, 28
        %v5637 = vpop.permute.xlu0 %5636
        %5638 = vrot.lane.b32.xlu0 %v5573, 28
        %v5639 = vpop.permute.xlu0 %5638
        %5640 = vrot.lane.b32.xlu0 %v5574, 28
        %v5641 = vpop.permute.xlu0 %5640
        %5642 = vrot.lane.b32.xlu0 %v5575, 28
        %v5643 = vpop.permute.xlu0 %5642
        %5644 = vrot.lane.b32.xlu0 %v5576, 28
        %v5645 = vpop.permute.xlu0 %5644
        %5646 = vrot.lane.b32.xlu0 %v5577, 28
        %v5647 = vpop.permute.xlu0 %5646
        %5648 = vrot.lane.b32.xlu0 %v5578, 28
        %v5649 = vpop.permute.xlu0 %5648
        %5650 = vrot.lane.b32.xlu0 %v5579, 28
        %v5651 = vpop.permute.xlu0 %5650
        %5652 = vrot.lane.b32.xlu0 %v5580, 28
        %v5653 = vpop.permute.xlu0 %5652
        %5654 = vrot.lane.b32.xlu0 %v5581, 28
        %v5655 = vpop.permute.xlu0 %5654
        %5656 = vrot.lane.b32.xlu0 %v5582, 28
        %v5657 = vpop.permute.xlu0 %5656
        %5658 = vrot.lane.b32.xlu0 %v5583, 28
        %v5659 = vpop.permute.xlu0 %5658
        %5660 = vrot.lane.b32.xlu0 %v5584, 28
        %v5661 = vpop.permute.xlu0 %5660
        %5662 = vrot.lane.b32.xlu0 %v5585, 28
        %v5663 = vpop.permute.xlu0 %5662
        %5664 = vrot.lane.b32.xlu0 %v5586, 28
        %v5665 = vpop.permute.xlu0 %5664
        %5666 = vrot.lane.b32.xlu0 %v5587, 28
        %v5667 = vpop.permute.xlu0 %5666
        %5668 = vrot.lane.b32.xlu0 %v5588, 28
        %v5669 = vpop.permute.xlu0 %5668
        %5670 = vrot.lane.b32.xlu0 %v5589, 28
        %v5671 = vpop.permute.xlu0 %5670
        %5672 = vrot.lane.b32.xlu0 %v5590, 28
        %v5673 = vpop.permute.xlu0 %5672
        %5674 = vrot.lane.b32.xlu0 %v5591, 28
        %v5675 = vpop.permute.xlu0 %5674
        %5676 = vrot.lane.b32.xlu0 %v5592, 28
        %v5677 = vpop.permute.xlu0 %5676
        %5678 = vrot.lane.b32.xlu0 %v5593, 28
        %v5679 = vpop.permute.xlu0 %5678
        %5680 = vrot.lane.b32.xlu0 %v5594, 28
        %v5681 = vpop.permute.xlu0 %5680
        %5682 = vrot.lane.b32.xlu0 %v5595, 28
        %v5683 = vpop.permute.xlu0 %5682
        %5684 = vrot.lane.b32.xlu0 %v5596, 28
        %v5685 = vpop.permute.xlu0 %5684
        %5686 = vrot.lane.b32.xlu0 %v5597, 28
        %v5687 = vpop.permute.xlu0 %5686
        %5688 = vrot.lane.b32.xlu0 %v5598, 28
        %v5689 = vpop.permute.xlu0 %5688
        %5690 = vrot.lane.b32.xlu0 %v5599, 28
        %v5691 = vpop.permute.xlu0 %5690
        %5692 = vrot.lane.b32.xlu0 %v5600, 28
        %v5693 = vpop.permute.xlu0 %5692
        %5694 = vrot.lane.b32.xlu0 %v5601, 28
        %v5695 = vpop.permute.xlu0 %5694
        %5696 = vrot.lane.b32.xlu0 %v5602, 28
        %v5697 = vpop.permute.xlu0 %5696
        %5698 = vrot.lane.b32.xlu0 %v5603, 28
        %v5699 = vpop.permute.xlu0 %5698
        %5732 = vst.msk [vmem:[#allocation3] sm:$0xff] %vm3154, %v5637
        %5733 = vst.msk [vmem:[#allocation3 + $0x8] sm:$0xff] %vm3154, %v5639
        %5734 = vst.msk [vmem:[#allocation3 + $0x10] sm:$0xff] %vm3154, %v5641
        %5735 = vst.msk [vmem:[#allocation3 + $0x18] sm:$0xff] %vm3154, %v5643
        %5736 = vst.msk [vmem:[#allocation3 + $0x20] sm:$0xff] %vm3154, %v5645
        %5737 = vst.msk [vmem:[#allocation3 + $0x28] sm:$0xff] %vm3154, %v5647
        %5738 = vst.msk [vmem:[#allocation3 + $0x30] sm:$0xff] %vm3154, %v5649
        %5739 = vst.msk [vmem:[#allocation3 + $0x38] sm:$0xff] %vm3154, %v5651
        %5740 = vst.msk [vmem:[#allocation3 + $0x40] sm:$0xff] %vm3154, %v5653
        %5741 = vst.msk [vmem:[#allocation3 + $0x48] sm:$0xff] %vm3154, %v5655
        %5742 = vst.msk [vmem:[#allocation3 + $0x50] sm:$0xff] %vm3154, %v5657
        %5743 = vst.msk [vmem:[#allocation3 + $0x58] sm:$0xff] %vm3154, %v5659
        %5744 = vst.msk [vmem:[#allocation3 + $0x60] sm:$0xff] %vm3154, %v5661
        %5745 = vst.msk [vmem:[#allocation3 + $0x68] sm:$0xff] %vm3154, %v5663
        %5746 = vst.msk [vmem:[#allocation3 + $0x70] sm:$0xff] %vm3154, %v5665
        %5747 = vst.msk [vmem:[#allocation3 + $0x78] sm:$0xff] %vm3154, %v5667
        %5748 = vst.msk [vmem:[#allocation3 + $0x80] sm:$0xff] %vm3154, %v5669
        %5749 = vst.msk [vmem:[#allocation3 + $0x88] sm:$0xff] %vm3154, %v5671
        %5750 = vst.msk [vmem:[#allocation3 + $0x90] sm:$0xff] %vm3154, %v5673
        %5751 = vst.msk [vmem:[#allocation3 + $0x98] sm:$0xff] %vm3154, %v5675
        %5752 = vst.msk [vmem:[#allocation3 + $0xa0] sm:$0xff] %vm3154, %v5677
        %5753 = vst.msk [vmem:[#allocation3 + $0xa8] sm:$0xff] %vm3154, %v5679
        %5754 = vst.msk [vmem:[#allocation3 + $0xb0] sm:$0xff] %vm3154, %v5681
        %5755 = vst.msk [vmem:[#allocation3 + $0xb8] sm:$0xff] %vm3154, %v5683
        %5756 = vst.msk [vmem:[#allocation3 + $0xc0] sm:$0xff] %vm3154, %v5685
        %5757 = vst.msk [vmem:[#allocation3 + $0xc8] sm:$0xff] %vm3154, %v5687
        %5758 = vst.msk [vmem:[#allocation3 + $0xd0] sm:$0xff] %vm3154, %v5689
        %5759 = vst.msk [vmem:[#allocation3 + $0xd8] sm:$0xff] %vm3154, %v5691
        %5760 = vst.msk [vmem:[#allocation3 + $0xe0] sm:$0xff] %vm3154, %v5693
        %5761 = vst.msk [vmem:[#allocation3 + $0xe8] sm:$0xff] %vm3154, %v5695
        %5762 = vst.msk [vmem:[#allocation3 + $0xf0] sm:$0xff] %vm3154, %v5697
        %5763 = vst.msk [vmem:[#allocation3 + $0xf8] sm:$0xff] %vm3154, %v5699
        %v5764 = vld [vmem:[%s2800 + $0x2] sm:$0xff]
        %v5765 = vld [vmem:[%s2800 + $0xa] sm:$0xff]
        %v5766 = vld [vmem:[%s2800 + $0x1a] sm:$0xff]
        %v5767 = vld [vmem:[%s2800 + $0x22] sm:$0xff]
        %v5768 = vld [vmem:[%s2800 + $0x32] sm:$0xff]
        %v5769 = vld [vmem:[%s2800 + $0x3a] sm:$0xff]
        %v5770 = vld [vmem:[%s2800 + $0x4a] sm:$0xff]
        %v5771 = vld [vmem:[%s2800 + $0x52] sm:$0xff]
        %v5772 = vld [vmem:[%s2800 + $0x62] sm:$0xff]
        %v5773 = vld [vmem:[%s2800 + $0x6a] sm:$0xff]
        %v5774 = vld [vmem:[%s2800 + $0x7a] sm:$0xff]
        %v5775 = vld [vmem:[%s2800 + $0x82] sm:$0xff]
        %v5776 = vld [vmem:[%s2800 + $0x92] sm:$0xff]
        %v5777 = vld [vmem:[%s2800 + $0x9a] sm:$0xff]
        %v5778 = vld [vmem:[%s2800 + $0xaa] sm:$0xff]
        %v5779 = vld [vmem:[%s2800 + $0xb2] sm:$0xff]
        %v5780 = vld [vmem:[%s2800 + $0xc2] sm:$0xff]
        %v5781 = vld [vmem:[%s2800 + $0xca] sm:$0xff]
        %v5782 = vld [vmem:[%s2800 + $0xda] sm:$0xff]
        %v5783 = vld [vmem:[%s2800 + $0xe2] sm:$0xff]
        %v5784 = vld [vmem:[%s2800 + $0xf2] sm:$0xff]
        %v5785 = vld [vmem:[%s2800 + $0xfa] sm:$0xff]
        %v5786 = vld [vmem:[%s2800 + $0x10a] sm:$0xff]
        %v5787 = vld [vmem:[%s2800 + $0x112] sm:$0xff]
        %v5788 = vld [vmem:[%s2800 + $0x122] sm:$0xff]
        %v5789 = vld [vmem:[%s2800 + $0x12a] sm:$0xff]
        %v5790 = vld [vmem:[%s2800 + $0x13a] sm:$0xff]
        %v5791 = vld [vmem:[%s2800 + $0x142] sm:$0xff]
        %v5792 = vld [vmem:[%s2800 + $0x152] sm:$0xff]
        %v5793 = vld [vmem:[%s2800 + $0x15a] sm:$0xff]
        %v5794 = vld [vmem:[%s2800 + $0x16a] sm:$0xff]
        %v5795 = vld [vmem:[%s2800 + $0x172] sm:$0xff]
        %5828 = vrot.lane.b32.xlu0 %v5764, 32
        %v5829 = vpop.permute.xlu0 %5828
        %5830 = vrot.lane.b32.xlu0 %v5765, 32
        %v5831 = vpop.permute.xlu0 %5830
        %5832 = vrot.lane.b32.xlu0 %v5766, 32
        %v5833 = vpop.permute.xlu0 %5832
        %5834 = vrot.lane.b32.xlu0 %v5767, 32
        %v5835 = vpop.permute.xlu0 %5834
        %5836 = vrot.lane.b32.xlu0 %v5768, 32
        %v5837 = vpop.permute.xlu0 %5836
        %5838 = vrot.lane.b32.xlu0 %v5769, 32
        %v5839 = vpop.permute.xlu0 %5838
        %5840 = vrot.lane.b32.xlu0 %v5770, 32
        %v5841 = vpop.permute.xlu0 %5840
        %5842 = vrot.lane.b32.xlu0 %v5771, 32
        %v5843 = vpop.permute.xlu0 %5842
        %5844 = vrot.lane.b32.xlu0 %v5772, 32
        %v5845 = vpop.permute.xlu0 %5844
        %5846 = vrot.lane.b32.xlu0 %v5773, 32
        %v5847 = vpop.permute.xlu0 %5846
        %5848 = vrot.lane.b32.xlu0 %v5774, 32
        %v5849 = vpop.permute.xlu0 %5848
        %5850 = vrot.lane.b32.xlu0 %v5775, 32
        %v5851 = vpop.permute.xlu0 %5850
        %5852 = vrot.lane.b32.xlu0 %v5776, 32
        %v5853 = vpop.permute.xlu0 %5852
        %5854 = vrot.lane.b32.xlu0 %v5777, 32
        %v5855 = vpop.permute.xlu0 %5854
        %5856 = vrot.lane.b32.xlu0 %v5778, 32
        %v5857 = vpop.permute.xlu0 %5856
        %5858 = vrot.lane.b32.xlu0 %v5779, 32
        %v5859 = vpop.permute.xlu0 %5858
        %5860 = vrot.lane.b32.xlu0 %v5780, 32
        %v5861 = vpop.permute.xlu0 %5860
        %5862 = vrot.lane.b32.xlu0 %v5781, 32
        %v5863 = vpop.permute.xlu0 %5862
        %5864 = vrot.lane.b32.xlu0 %v5782, 32
        %v5865 = vpop.permute.xlu0 %5864
        %5866 = vrot.lane.b32.xlu0 %v5783, 32
        %v5867 = vpop.permute.xlu0 %5866
        %5868 = vrot.lane.b32.xlu0 %v5784, 32
        %v5869 = vpop.permute.xlu0 %5868
        %5870 = vrot.lane.b32.xlu0 %v5785, 32
        %v5871 = vpop.permute.xlu0 %5870
        %5872 = vrot.lane.b32.xlu0 %v5786, 32
        %v5873 = vpop.permute.xlu0 %5872
        %5874 = vrot.lane.b32.xlu0 %v5787, 32
        %v5875 = vpop.permute.xlu0 %5874
        %5876 = vrot.lane.b32.xlu0 %v5788, 32
        %v5877 = vpop.permute.xlu0 %5876
        %5878 = vrot.lane.b32.xlu0 %v5789, 32
        %v5879 = vpop.permute.xlu0 %5878
        %5880 = vrot.lane.b32.xlu0 %v5790, 32
        %v5881 = vpop.permute.xlu0 %5880
        %5882 = vrot.lane.b32.xlu0 %v5791, 32
        %v5883 = vpop.permute.xlu0 %5882
        %5884 = vrot.lane.b32.xlu0 %v5792, 32
        %v5885 = vpop.permute.xlu0 %5884
        %5886 = vrot.lane.b32.xlu0 %v5793, 32
        %v5887 = vpop.permute.xlu0 %5886
        %5888 = vrot.lane.b32.xlu0 %v5794, 32
        %v5889 = vpop.permute.xlu0 %5888
        %5890 = vrot.lane.b32.xlu0 %v5795, 32
        %v5891 = vpop.permute.xlu0 %5890
        %5924 = vst.msk [vmem:[#allocation3] sm:$0xff] %vm3347, %v5829
        %5925 = vst.msk [vmem:[#allocation3 + $0x8] sm:$0xff] %vm3347, %v5831
        %5926 = vst.msk [vmem:[#allocation3 + $0x10] sm:$0xff] %vm3347, %v5833
        %5927 = vst.msk [vmem:[#allocation3 + $0x18] sm:$0xff] %vm3347, %v5835
        %5928 = vst.msk [vmem:[#allocation3 + $0x20] sm:$0xff] %vm3347, %v5837
        %5929 = vst.msk [vmem:[#allocation3 + $0x28] sm:$0xff] %vm3347, %v5839
        %5930 = vst.msk [vmem:[#allocation3 + $0x30] sm:$0xff] %vm3347, %v5841
        %5931 = vst.msk [vmem:[#allocation3 + $0x38] sm:$0xff] %vm3347, %v5843
        %5932 = vst.msk [vmem:[#allocation3 + $0x40] sm:$0xff] %vm3347, %v5845
        %5933 = vst.msk [vmem:[#allocation3 + $0x48] sm:$0xff] %vm3347, %v5847
        %5934 = vst.msk [vmem:[#allocation3 + $0x50] sm:$0xff] %vm3347, %v5849
        %5935 = vst.msk [vmem:[#allocation3 + $0x58] sm:$0xff] %vm3347, %v5851
        %5936 = vst.msk [vmem:[#allocation3 + $0x60] sm:$0xff] %vm3347, %v5853
        %5937 = vst.msk [vmem:[#allocation3 + $0x68] sm:$0xff] %vm3347, %v5855
        %5938 = vst.msk [vmem:[#allocation3 + $0x70] sm:$0xff] %vm3347, %v5857
        %5939 = vst.msk [vmem:[#allocation3 + $0x78] sm:$0xff] %vm3347, %v5859
        %5940 = vst.msk [vmem:[#allocation3 + $0x80] sm:$0xff] %vm3347, %v5861
        %5941 = vst.msk [vmem:[#allocation3 + $0x88] sm:$0xff] %vm3347, %v5863
        %5942 = vst.msk [vmem:[#allocation3 + $0x90] sm:$0xff] %vm3347, %v5865
        %5943 = vst.msk [vmem:[#allocation3 + $0x98] sm:$0xff] %vm3347, %v5867
        %5944 = vst.msk [vmem:[#allocation3 + $0xa0] sm:$0xff] %vm3347, %v5869
        %5945 = vst.msk [vmem:[#allocation3 + $0xa8] sm:$0xff] %vm3347, %v5871
        %5946 = vst.msk [vmem:[#allocation3 + $0xb0] sm:$0xff] %vm3347, %v5873
        %5947 = vst.msk [vmem:[#allocation3 + $0xb8] sm:$0xff] %vm3347, %v5875
        %5948 = vst.msk [vmem:[#allocation3 + $0xc0] sm:$0xff] %vm3347, %v5877
        %5949 = vst.msk [vmem:[#allocation3 + $0xc8] sm:$0xff] %vm3347, %v5879
        %5950 = vst.msk [vmem:[#allocation3 + $0xd0] sm:$0xff] %vm3347, %v5881
        %5951 = vst.msk [vmem:[#allocation3 + $0xd8] sm:$0xff] %vm3347, %v5883
        %5952 = vst.msk [vmem:[#allocation3 + $0xe0] sm:$0xff] %vm3347, %v5885
        %5953 = vst.msk [vmem:[#allocation3 + $0xe8] sm:$0xff] %vm3347, %v5887
        %5954 = vst.msk [vmem:[#allocation3 + $0xf0] sm:$0xff] %vm3347, %v5889
        %5955 = vst.msk [vmem:[#allocation3 + $0xf8] sm:$0xff] %vm3347, %v5891
        %v5956 = vld [vmem:[#allocation3] sm:$0xff]
        %v5957 = vld [vmem:[#allocation3 + $0x8] sm:$0xff]
        %v5958 = vld [vmem:[#allocation3 + $0x10] sm:$0xff]
        %v5959 = vld [vmem:[#allocation3 + $0x18] sm:$0xff]
        %v5960 = vld [vmem:[#allocation3 + $0x20] sm:$0xff]
        %v5961 = vld [vmem:[#allocation3 + $0x28] sm:$0xff]
        %v5962 = vld [vmem:[#allocation3 + $0x30] sm:$0xff]
        %v5963 = vld [vmem:[#allocation3 + $0x38] sm:$0xff]
        %v5964 = vld [vmem:[#allocation3 + $0x40] sm:$0xff]
        %v5965 = vld [vmem:[#allocation3 + $0x48] sm:$0xff]
        %v5966 = vld [vmem:[#allocation3 + $0x50] sm:$0xff]
        %v5967 = vld [vmem:[#allocation3 + $0x58] sm:$0xff]
        %v5968 = vld [vmem:[#allocation3 + $0x60] sm:$0xff]
        %v5969 = vld [vmem:[#allocation3 + $0x68] sm:$0xff]
        %v5970 = vld [vmem:[#allocation3 + $0x70] sm:$0xff]
        %v5971 = vld [vmem:[#allocation3 + $0x78] sm:$0xff]
        %v5972 = vld [vmem:[#allocation3 + $0x80] sm:$0xff]
        %v5973 = vld [vmem:[#allocation3 + $0x88] sm:$0xff]
        %v5974 = vld [vmem:[#allocation3 + $0x90] sm:$0xff]
        %v5975 = vld [vmem:[#allocation3 + $0x98] sm:$0xff]
        %v5976 = vld [vmem:[#allocation3 + $0xa0] sm:$0xff]
        %v5977 = vld [vmem:[#allocation3 + $0xa8] sm:$0xff]
        %v5978 = vld [vmem:[#allocation3 + $0xb0] sm:$0xff]
        %v5979 = vld [vmem:[#allocation3 + $0xb8] sm:$0xff]
        %v5980 = vld [vmem:[#allocation3 + $0xc0] sm:$0xff]
        %v5981 = vld [vmem:[#allocation3 + $0xc8] sm:$0xff]
        %v5982 = vld [vmem:[#allocation3 + $0xd0] sm:$0xff]
        %v5983 = vld [vmem:[#allocation3 + $0xd8] sm:$0xff]
        %v5984 = vld [vmem:[#allocation3 + $0xe0] sm:$0xff]
        %v5985 = vld [vmem:[#allocation3 + $0xe8] sm:$0xff]
        %v5986 = vld [vmem:[#allocation3 + $0xf0] sm:$0xff]
        %v5987 = vld [vmem:[#allocation3 + $0xf8] sm:$0xff]
        %v5988 = vld [vmem:[%s3] sm:$0xff]
        %v5989 = vld [vmem:[%s12] sm:$0x1]
        %v5991 = vperm.slane %v5989, 0
        %v5994 = vsel %vm3417, %v5956, 0
        %v5997 = vsel %vm3417, %v5957, 0
        %v6000 = vsel %vm3417, %v5958, 0
        %v6003 = vsel %vm3417, %v5959, 0
        %v6006 = vsel %vm3417, %v5960, 0
        %v6009 = vsel %vm3417, %v5961, 0
        %v6012 = vsel %vm3417, %v5962, 0
        %v6015 = vsel %vm3417, %v5963, 0
        %v6018 = vsel %vm3417, %v5964, 0
        %v6021 = vsel %vm3417, %v5965, 0
        %v6024 = vsel %vm3417, %v5966, 0
        %v6027 = vsel %vm3417, %v5967, 0
        %v6030 = vsel %vm3417, %v5968, 0
        %v6033 = vsel %vm3417, %v5969, 0
        %v6036 = vsel %vm3417, %v5970, 0
        %v6039 = vsel %vm3417, %v5971, 0
        %v6042 = vsel %vm3417, %v5972, 0
        %v6045 = vsel %vm3417, %v5973, 0
        %v6048 = vsel %vm3417, %v5974, 0
        %v6051 = vsel %vm3417, %v5975, 0
        %v6054 = vsel %vm3417, %v5976, 0
        %v6057 = vsel %vm3417, %v5977, 0
        %v6060 = vsel %vm3417, %v5978, 0
        %v6063 = vsel %vm3417, %v5979, 0
        %v6066 = vsel %vm3417, %v5980, 0
        %v6069 = vsel %vm3417, %v5981, 0
        %v6072 = vsel %vm3417, %v5982, 0
        %v6075 = vsel %vm3417, %v5983, 0
        %v6078 = vsel %vm3417, %v5984, 0
        %v6081 = vsel %vm3417, %v5985, 0
        %v6084 = vsel %vm3417, %v5986, 0
        %v6087 = vsel %vm3417, %v5987, 0
        %v6090 = vsel %vm3417, %v5988, 0
        %6092 = vmatpush.xpose.msra.mxu0 0.0
        %6093 = vmatpush.xpose.msra.mxu0 0.0
        %6094 = vmatpush.xpose.msra.mxu0 0.0
        %6095 = vmatpush.xpose.msra.mxu0 0.0
        %6096 = vmatpush.xpose.msra.mxu0 0.0
        %6097 = vmatpush.xpose.msra.mxu0 0.0
        %6098 = vmatpush.xpose.msra.mxu0 0.0
        %6099 = vmatpush.xpose.msra.mxu0 0.0
        %6100 = vmatpush.xpose.msra.mxu0 0.0
        %6101 = vmatpush.xpose.msra.mxu0 0.0
        %6102 = vmatpush.xpose.msra.mxu0 0.0
        %6103 = vmatpush.xpose.msra.mxu0 0.0
        %6104 = vmatpush.xpose.msra.mxu0 0.0
        %6105 = vmatpush.xpose.msra.mxu0 0.0
        %6106 = vmatpush.xpose.msra.mxu0 0.0
        %6107 = vmatpush.xpose.msra.mxu0 %v6090
        %6108 = vmatmul.f32.gmra.mxu0 %v5994
        %v6109 = vpop.f32.mrf.mxu0
        %v6110 = vadd.f32 %v5991, %v6109
        %6111 = vmatmul.f32.gmra.mxu0 %v5997
        %v6112 = vpop.f32.mrf.mxu0
        %v6113 = vadd.f32 %v5991, %v6112
        %6114 = vmatmul.f32.gmra.mxu0 %v6000
        %v6115 = vpop.f32.mrf.mxu0
        %v6116 = vadd.f32 %v5991, %v6115
        %6117 = vmatmul.f32.gmra.mxu0 %v6003
        %v6118 = vpop.f32.mrf.mxu0
        %v6119 = vadd.f32 %v5991, %v6118
        %6120 = vmatmul.f32.gmra.mxu0 %v6006
        %v6121 = vpop.f32.mrf.mxu0
        %v6122 = vadd.f32 %v5991, %v6121
        %6123 = vmatmul.f32.gmra.mxu0 %v6009
        %v6124 = vpop.f32.mrf.mxu0
        %v6125 = vadd.f32 %v5991, %v6124
        %6126 = vmatmul.f32.gmra.mxu0 %v6012
        %v6127 = vpop.f32.mrf.mxu0
        %v6128 = vadd.f32 %v5991, %v6127
        %6129 = vmatmul.f32.gmra.mxu0 %v6015
        %v6130 = vpop.f32.mrf.mxu0
        %v6131 = vadd.f32 %v5991, %v6130
        %6132 = vmatmul.f32.gmra.mxu0 %v6018
        %v6133 = vpop.f32.mrf.mxu0
        %v6134 = vadd.f32 %v5991, %v6133
        %6135 = vmatmul.f32.gmra.mxu0 %v6021
        %v6136 = vpop.f32.mrf.mxu0
        %v6137 = vadd.f32 %v5991, %v6136
        %6138 = vmatmul.f32.gmra.mxu0 %v6024
        %v6139 = vpop.f32.mrf.mxu0
        %v6140 = vadd.f32 %v5991, %v6139
        %6141 = vmatmul.f32.gmra.mxu0 %v6027
        %v6142 = vpop.f32.mrf.mxu0
        %v6143 = vadd.f32 %v5991, %v6142
        %6144 = vmatmul.f32.gmra.mxu0 %v6030
        %v6145 = vpop.f32.mrf.mxu0
        %v6146 = vadd.f32 %v5991, %v6145
        %6147 = vmatmul.f32.gmra.mxu0 %v6033
        %v6148 = vpop.f32.mrf.mxu0
        %v6149 = vadd.f32 %v5991, %v6148
        %6150 = vmatmul.f32.gmra.mxu0 %v6036
        %v6151 = vpop.f32.mrf.mxu0
        %v6152 = vadd.f32 %v5991, %v6151
        %6153 = vmatmul.f32.gmra.mxu0 %v6039
        %v6154 = vpop.f32.mrf.mxu0
        %v6155 = vadd.f32 %v5991, %v6154
        %6156 = vmatmul.f32.gmra.mxu0 %v6042
        %v6157 = vpop.f32.mrf.mxu0
        %v6158 = vadd.f32 %v5991, %v6157
        %6159 = vmatmul.f32.gmra.mxu0 %v6045
        %v6160 = vpop.f32.mrf.mxu0
        %v6161 = vadd.f32 %v5991, %v6160
        %6162 = vmatmul.f32.gmra.mxu0 %v6048
        %v6163 = vpop.f32.mrf.mxu0
        %v6164 = vadd.f32 %v5991, %v6163
        %6165 = vmatmul.f32.gmra.mxu0 %v6051
        %v6166 = vpop.f32.mrf.mxu0
        %v6167 = vadd.f32 %v5991, %v6166
        %6168 = vmatmul.f32.gmra.mxu0 %v6054
        %v6169 = vpop.f32.mrf.mxu0
        %v6170 = vadd.f32 %v5991, %v6169
        %6171 = vmatmul.f32.gmra.mxu0 %v6057
        %v6172 = vpop.f32.mrf.mxu0
        %v6173 = vadd.f32 %v5991, %v6172
        %6174 = vmatmul.f32.gmra.mxu0 %v6060
        %v6175 = vpop.f32.mrf.mxu0
        %v6176 = vadd.f32 %v5991, %v6175
        %6177 = vmatmul.f32.gmra.mxu0 %v6063
        %v6178 = vpop.f32.mrf.mxu0
        %v6179 = vadd.f32 %v5991, %v6178
        %6180 = vmatmul.f32.gmra.mxu0 %v6066
        %v6181 = vpop.f32.mrf.mxu0
        %v6182 = vadd.f32 %v5991, %v6181
        %6183 = vmatmul.f32.gmra.mxu0 %v6069
        %v6184 = vpop.f32.mrf.mxu0
        %v6185 = vadd.f32 %v5991, %v6184
        %6186 = vmatmul.f32.gmra.mxu0 %v6072
        %v6187 = vpop.f32.mrf.mxu0
        %v6188 = vadd.f32 %v5991, %v6187
        %6189 = vmatmul.f32.gmra.mxu0 %v6075
        %v6190 = vpop.f32.mrf.mxu0
        %v6191 = vadd.f32 %v5991, %v6190
        %6192 = vmatmul.f32.gmra.mxu0 %v6078
        %v6193 = vpop.f32.mrf.mxu0
        %v6194 = vadd.f32 %v5991, %v6193
        %6195 = vmatmul.f32.gmra.mxu0 %v6081
        %v6196 = vpop.f32.mrf.mxu0
        %v6197 = vadd.f32 %v5991, %v6196
        %6198 = vmatmul.f32.gmra.mxu0 %v6084
        %v6199 = vpop.f32.mrf.mxu0
        %v6200 = vadd.f32 %v5991, %v6199
        %6201 = vmatmul.f32.gmra.mxu0 %v6087
        %v6202 = vpop.f32.mrf.mxu0
        %v6203 = vadd.f32 %v5991, %v6202
        %6204 = vdwg.mxu0
        %v6205 = vxor.u32 %v6110, 2147483648
        %v6206 = vxor.u32 %v6113, 2147483648
        %v6207 = vxor.u32 %v6116, 2147483648
        %v6208 = vxor.u32 %v6119, 2147483648
        %v6209 = vxor.u32 %v6122, 2147483648
        %v6210 = vxor.u32 %v6125, 2147483648
        %v6211 = vxor.u32 %v6128, 2147483648
        %v6212 = vxor.u32 %v6131, 2147483648
        %v6213 = vxor.u32 %v6134, 2147483648
        %v6214 = vxor.u32 %v6137, 2147483648
        %v6215 = vxor.u32 %v6140, 2147483648
        %v6216 = vxor.u32 %v6143, 2147483648
        %v6217 = vxor.u32 %v6146, 2147483648
        %v6218 = vxor.u32 %v6149, 2147483648
        %v6219 = vxor.u32 %v6152, 2147483648
        %v6220 = vxor.u32 %v6155, 2147483648
        %v6221 = vxor.u32 %v6158, 2147483648
        %v6222 = vxor.u32 %v6161, 2147483648
        %v6223 = vxor.u32 %v6164, 2147483648
        %v6224 = vxor.u32 %v6167, 2147483648
        %v6225 = vxor.u32 %v6170, 2147483648
        %v6226 = vxor.u32 %v6173, 2147483648
        %v6227 = vxor.u32 %v6176, 2147483648
        %v6228 = vxor.u32 %v6179, 2147483648
        %v6229 = vxor.u32 %v6182, 2147483648
        %v6230 = vxor.u32 %v6185, 2147483648
        %v6231 = vxor.u32 %v6188, 2147483648
        %v6232 = vxor.u32 %v6191, 2147483648
        %v6233 = vxor.u32 %v6194, 2147483648
        %v6234 = vxor.u32 %v6197, 2147483648
        %v6235 = vxor.u32 %v6200, 2147483648
        %v6236 = vxor.u32 %v6203, 2147483648
        %v6237 = vmul.f32 %v6205, 1.442695
        %v6238 = vpow.pop %v6237
        %v6239 = vmul.f32 %v6206, 1.442695
        %v6240 = vpow.pop %v6239
        %v6241 = vmul.f32 %v6207, 1.442695
        %v6242 = vpow.pop %v6241
        %v6243 = vmul.f32 %v6208, 1.442695
        %v6244 = vpow.pop %v6243
        %v6245 = vmul.f32 %v6209, 1.442695
        %v6246 = vpow.pop %v6245
        %v6247 = vmul.f32 %v6210, 1.442695
        %v6248 = vpow.pop %v6247
        %v6249 = vmul.f32 %v6211, 1.442695
        %v6250 = vpow.pop %v6249
        %v6251 = vmul.f32 %v6212, 1.442695
        %v6252 = vpow.pop %v6251
        %v6253 = vmul.f32 %v6213, 1.442695
        %v6254 = vpow.pop %v6253
        %v6255 = vmul.f32 %v6214, 1.442695
        %v6256 = vpow.pop %v6255
        %v6257 = vmul.f32 %v6215, 1.442695
        %v6258 = vpow.pop %v6257
        %v6259 = vmul.f32 %v6216, 1.442695
        %v6260 = vpow.pop %v6259
        %v6261 = vmul.f32 %v6217, 1.442695
        %v6262 = vpow.pop %v6261
        %v6263 = vmul.f32 %v6218, 1.442695
        %v6264 = vpow.pop %v6263
        %v6265 = vmul.f32 %v6219, 1.442695
        %v6266 = vpow.pop %v6265
        %v6267 = vmul.f32 %v6220, 1.442695
        %v6268 = vpow.pop %v6267
        %v6269 = vmul.f32 %v6221, 1.442695
        %v6270 = vpow.pop %v6269
        %v6271 = vmul.f32 %v6222, 1.442695
        %v6272 = vpow.pop %v6271
        %v6273 = vmul.f32 %v6223, 1.442695
        %v6274 = vpow.pop %v6273
        %v6275 = vmul.f32 %v6224, 1.442695
        %v6276 = vpow.pop %v6275
        %v6277 = vmul.f32 %v6225, 1.442695
        %v6278 = vpow.pop %v6277
        %v6279 = vmul.f32 %v6226, 1.442695
        %v6280 = vpow.pop %v6279
        %v6281 = vmul.f32 %v6227, 1.442695
        %v6282 = vpow.pop %v6281
        %v6283 = vmul.f32 %v6228, 1.442695
        %v6284 = vpow.pop %v6283
        %v6285 = vmul.f32 %v6229, 1.442695
        %v6286 = vpow.pop %v6285
        %v6287 = vmul.f32 %v6230, 1.442695
        %v6288 = vpow.pop %v6287
        %v6289 = vmul.f32 %v6231, 1.442695
        %v6290 = vpow.pop %v6289
        %v6291 = vmul.f32 %v6232, 1.442695
        %v6292 = vpow.pop %v6291
        %v6293 = vmul.f32 %v6233, 1.442695
        %v6294 = vpow.pop %v6293
        %v6295 = vmul.f32 %v6234, 1.442695
        %v6296 = vpow.pop %v6295
        %v6297 = vmul.f32 %v6235, 1.442695
        %v6298 = vpow.pop %v6297
        %v6299 = vmul.f32 %v6236, 1.442695
        %v6300 = vpow.pop %v6299
        %v6301 = vadd.f32 %v6238, 1.0
        %v6302 = vadd.f32 %v6240, 1.0
        %v6303 = vadd.f32 %v6242, 1.0
        %v6304 = vadd.f32 %v6244, 1.0
        %v6305 = vadd.f32 %v6246, 1.0
        %v6306 = vadd.f32 %v6248, 1.0
        %v6307 = vadd.f32 %v6250, 1.0
        %v6308 = vadd.f32 %v6252, 1.0
        %v6309 = vadd.f32 %v6254, 1.0
        %v6310 = vadd.f32 %v6256, 1.0
        %v6311 = vadd.f32 %v6258, 1.0
        %v6312 = vadd.f32 %v6260, 1.0
        %v6313 = vadd.f32 %v6262, 1.0
        %v6314 = vadd.f32 %v6264, 1.0
        %v6315 = vadd.f32 %v6266, 1.0
        %v6316 = vadd.f32 %v6268, 1.0
        %v6317 = vadd.f32 %v6270, 1.0
        %v6318 = vadd.f32 %v6272, 1.0
        %v6319 = vadd.f32 %v6274, 1.0
        %v6320 = vadd.f32 %v6276, 1.0
        %v6321 = vadd.f32 %v6278, 1.0
        %v6322 = vadd.f32 %v6280, 1.0
        %v6323 = vadd.f32 %v6282, 1.0
        %v6324 = vadd.f32 %v6284, 1.0
        %v6325 = vadd.f32 %v6286, 1.0
        %v6326 = vadd.f32 %v6288, 1.0
        %v6327 = vadd.f32 %v6290, 1.0
        %v6328 = vadd.f32 %v6292, 1.0
        %v6329 = vadd.f32 %v6294, 1.0
        %v6330 = vadd.f32 %v6296, 1.0
        %v6331 = vadd.f32 %v6298, 1.0
        %v6332 = vadd.f32 %v6300, 1.0
        %v6333 = vrcp.pop %v6301
        %v6334 = vmul.f32 %v6301, %v6333
        %v6335 = vsub.f32 1.0, %v6334
        %v6336 = vmul.f32 %v6333, %v6335
        %v6337 = vadd.f32 %v6333, %v6336
        %vm6338 = vweird.f32 %v6301
        %vm6339 = vweird.f32 %v6333
        %vm6340 = vmor %vm6338, %vm6339
        %v6341 = vsel %vm6340, %v6333, %v6337
        %v6342 = vand.u32 2147483647, %v6301
        %vm6343 = vcmp.eq.f32.partialorder %v6342, 8.507059e+37
        %v6344 = vand.u32 %v6301, 2147483648
        %v6345 = vor.u32 1.1754944e-38, %v6344
        %v6346 = vsel %vm6343, %v6345, %v6341
        %v6347 = vmul.f32 1.0, %v6346
        %v6348 = vrcp.pop %v6302
        %v6349 = vmul.f32 %v6302, %v6348
        %v6350 = vsub.f32 1.0, %v6349
        %v6351 = vmul.f32 %v6348, %v6350
        %v6352 = vadd.f32 %v6348, %v6351
        %vm6353 = vweird.f32 %v6302
        %vm6354 = vweird.f32 %v6348
        %vm6355 = vmor %vm6353, %vm6354
        %v6356 = vsel %vm6355, %v6348, %v6352
        %v6357 = vand.u32 2147483647, %v6302
        %vm6358 = vcmp.eq.f32.partialorder %v6357, 8.507059e+37
        %v6359 = vand.u32 %v6302, 2147483648
        %v6360 = vor.u32 1.1754944e-38, %v6359
        %v6361 = vsel %vm6358, %v6360, %v6356
        %v6362 = vmul.f32 1.0, %v6361
        %v6363 = vrcp.pop %v6303
        %v6364 = vmul.f32 %v6303, %v6363
        %v6365 = vsub.f32 1.0, %v6364
        %v6366 = vmul.f32 %v6363, %v6365
        %v6367 = vadd.f32 %v6363, %v6366
        %vm6368 = vweird.f32 %v6303
        %vm6369 = vweird.f32 %v6363
        %vm6370 = vmor %vm6368, %vm6369
        %v6371 = vsel %vm6370, %v6363, %v6367
        %v6372 = vand.u32 2147483647, %v6303
        %vm6373 = vcmp.eq.f32.partialorder %v6372, 8.507059e+37
        %v6374 = vand.u32 %v6303, 2147483648
        %v6375 = vor.u32 1.1754944e-38, %v6374
        %v6376 = vsel %vm6373, %v6375, %v6371
        %v6377 = vmul.f32 1.0, %v6376
        %v6378 = vrcp.pop %v6304
        %v6379 = vmul.f32 %v6304, %v6378
        %v6380 = vsub.f32 1.0, %v6379
        %v6381 = vmul.f32 %v6378, %v6380
        %v6382 = vadd.f32 %v6378, %v6381
        %vm6383 = vweird.f32 %v6304
        %vm6384 = vweird.f32 %v6378
        %vm6385 = vmor %vm6383, %vm6384
        %v6386 = vsel %vm6385, %v6378, %v6382
        %v6387 = vand.u32 2147483647, %v6304
        %vm6388 = vcmp.eq.f32.partialorder %v6387, 8.507059e+37
        %v6389 = vand.u32 %v6304, 2147483648
        %v6390 = vor.u32 1.1754944e-38, %v6389
        %v6391 = vsel %vm6388, %v6390, %v6386
        %v6392 = vmul.f32 1.0, %v6391
        %v6393 = vrcp.pop %v6305
        %v6394 = vmul.f32 %v6305, %v6393
        %v6395 = vsub.f32 1.0, %v6394
        %v6396 = vmul.f32 %v6393, %v6395
        %v6397 = vadd.f32 %v6393, %v6396
        %vm6398 = vweird.f32 %v6305
        %vm6399 = vweird.f32 %v6393
        %vm6400 = vmor %vm6398, %vm6399
        %v6401 = vsel %vm6400, %v6393, %v6397
        %v6402 = vand.u32 2147483647, %v6305
        %vm6403 = vcmp.eq.f32.partialorder %v6402, 8.507059e+37
        %v6404 = vand.u32 %v6305, 2147483648
        %v6405 = vor.u32 1.1754944e-38, %v6404
        %v6406 = vsel %vm6403, %v6405, %v6401
        %v6407 = vmul.f32 1.0, %v6406
        %v6408 = vrcp.pop %v6306
        %v6409 = vmul.f32 %v6306, %v6408
        %v6410 = vsub.f32 1.0, %v6409
        %v6411 = vmul.f32 %v6408, %v6410
        %v6412 = vadd.f32 %v6408, %v6411
        %vm6413 = vweird.f32 %v6306
        %vm6414 = vweird.f32 %v6408
        %vm6415 = vmor %vm6413, %vm6414
        %v6416 = vsel %vm6415, %v6408, %v6412
        %v6417 = vand.u32 2147483647, %v6306
        %vm6418 = vcmp.eq.f32.partialorder %v6417, 8.507059e+37
        %v6419 = vand.u32 %v6306, 2147483648
        %v6420 = vor.u32 1.1754944e-38, %v6419
        %v6421 = vsel %vm6418, %v6420, %v6416
        %v6422 = vmul.f32 1.0, %v6421
        %v6423 = vrcp.pop %v6307
        %v6424 = vmul.f32 %v6307, %v6423
        %v6425 = vsub.f32 1.0, %v6424
        %v6426 = vmul.f32 %v6423, %v6425
        %v6427 = vadd.f32 %v6423, %v6426
        %vm6428 = vweird.f32 %v6307
        %vm6429 = vweird.f32 %v6423
        %vm6430 = vmor %vm6428, %vm6429
        %v6431 = vsel %vm6430, %v6423, %v6427
        %v6432 = vand.u32 2147483647, %v6307
        %vm6433 = vcmp.eq.f32.partialorder %v6432, 8.507059e+37
        %v6434 = vand.u32 %v6307, 2147483648
        %v6435 = vor.u32 1.1754944e-38, %v6434
        %v6436 = vsel %vm6433, %v6435, %v6431
        %v6437 = vmul.f32 1.0, %v6436
        %v6438 = vrcp.pop %v6308
        %v6439 = vmul.f32 %v6308, %v6438
        %v6440 = vsub.f32 1.0, %v6439
        %v6441 = vmul.f32 %v6438, %v6440
        %v6442 = vadd.f32 %v6438, %v6441
        %vm6443 = vweird.f32 %v6308
        %vm6444 = vweird.f32 %v6438
        %vm6445 = vmor %vm6443, %vm6444
        %v6446 = vsel %vm6445, %v6438, %v6442
        %v6447 = vand.u32 2147483647, %v6308
        %vm6448 = vcmp.eq.f32.partialorder %v6447, 8.507059e+37
        %v6449 = vand.u32 %v6308, 2147483648
        %v6450 = vor.u32 1.1754944e-38, %v6449
        %v6451 = vsel %vm6448, %v6450, %v6446
        %v6452 = vmul.f32 1.0, %v6451
        %v6453 = vrcp.pop %v6309
        %v6454 = vmul.f32 %v6309, %v6453
        %v6455 = vsub.f32 1.0, %v6454
        %v6456 = vmul.f32 %v6453, %v6455
        %v6457 = vadd.f32 %v6453, %v6456
        %vm6458 = vweird.f32 %v6309
        %vm6459 = vweird.f32 %v6453
        %vm6460 = vmor %vm6458, %vm6459
        %v6461 = vsel %vm6460, %v6453, %v6457
        %v6462 = vand.u32 2147483647, %v6309
        %vm6463 = vcmp.eq.f32.partialorder %v6462, 8.507059e+37
        %v6464 = vand.u32 %v6309, 2147483648
        %v6465 = vor.u32 1.1754944e-38, %v6464
        %v6466 = vsel %vm6463, %v6465, %v6461
        %v6467 = vmul.f32 1.0, %v6466
        %v6468 = vrcp.pop %v6310
        %v6469 = vmul.f32 %v6310, %v6468
        %v6470 = vsub.f32 1.0, %v6469
        %v6471 = vmul.f32 %v6468, %v6470
        %v6472 = vadd.f32 %v6468, %v6471
        %vm6473 = vweird.f32 %v6310
        %vm6474 = vweird.f32 %v6468
        %vm6475 = vmor %vm6473, %vm6474
        %v6476 = vsel %vm6475, %v6468, %v6472
        %v6477 = vand.u32 2147483647, %v6310
        %vm6478 = vcmp.eq.f32.partialorder %v6477, 8.507059e+37
        %v6479 = vand.u32 %v6310, 2147483648
        %v6480 = vor.u32 1.1754944e-38, %v6479
        %v6481 = vsel %vm6478, %v6480, %v6476
        %v6482 = vmul.f32 1.0, %v6481
        %v6483 = vrcp.pop %v6311
        %v6484 = vmul.f32 %v6311, %v6483
        %v6485 = vsub.f32 1.0, %v6484
        %v6486 = vmul.f32 %v6483, %v6485
        %v6487 = vadd.f32 %v6483, %v6486
        %vm6488 = vweird.f32 %v6311
        %vm6489 = vweird.f32 %v6483
        %vm6490 = vmor %vm6488, %vm6489
        %v6491 = vsel %vm6490, %v6483, %v6487
        %v6492 = vand.u32 2147483647, %v6311
        %vm6493 = vcmp.eq.f32.partialorder %v6492, 8.507059e+37
        %v6494 = vand.u32 %v6311, 2147483648
        %v6495 = vor.u32 1.1754944e-38, %v6494
        %v6496 = vsel %vm6493, %v6495, %v6491
        %v6497 = vmul.f32 1.0, %v6496
        %v6498 = vrcp.pop %v6312
        %v6499 = vmul.f32 %v6312, %v6498
        %v6500 = vsub.f32 1.0, %v6499
        %v6501 = vmul.f32 %v6498, %v6500
        %v6502 = vadd.f32 %v6498, %v6501
        %vm6503 = vweird.f32 %v6312
        %vm6504 = vweird.f32 %v6498
        %vm6505 = vmor %vm6503, %vm6504
        %v6506 = vsel %vm6505, %v6498, %v6502
        %v6507 = vand.u32 2147483647, %v6312
        %vm6508 = vcmp.eq.f32.partialorder %v6507, 8.507059e+37
        %v6509 = vand.u32 %v6312, 2147483648
        %v6510 = vor.u32 1.1754944e-38, %v6509
        %v6511 = vsel %vm6508, %v6510, %v6506
        %v6512 = vmul.f32 1.0, %v6511
        %v6513 = vrcp.pop %v6313
        %v6514 = vmul.f32 %v6313, %v6513
        %v6515 = vsub.f32 1.0, %v6514
        %v6516 = vmul.f32 %v6513, %v6515
        %v6517 = vadd.f32 %v6513, %v6516
        %vm6518 = vweird.f32 %v6313
        %vm6519 = vweird.f32 %v6513
        %vm6520 = vmor %vm6518, %vm6519
        %v6521 = vsel %vm6520, %v6513, %v6517
        %v6522 = vand.u32 2147483647, %v6313
        %vm6523 = vcmp.eq.f32.partialorder %v6522, 8.507059e+37
        %v6524 = vand.u32 %v6313, 2147483648
        %v6525 = vor.u32 1.1754944e-38, %v6524
        %v6526 = vsel %vm6523, %v6525, %v6521
        %v6527 = vmul.f32 1.0, %v6526
        %v6528 = vrcp.pop %v6314
        %v6529 = vmul.f32 %v6314, %v6528
        %v6530 = vsub.f32 1.0, %v6529
        %v6531 = vmul.f32 %v6528, %v6530
        %v6532 = vadd.f32 %v6528, %v6531
        %vm6533 = vweird.f32 %v6314
        %vm6534 = vweird.f32 %v6528
        %vm6535 = vmor %vm6533, %vm6534
        %v6536 = vsel %vm6535, %v6528, %v6532
        %v6537 = vand.u32 2147483647, %v6314
        %vm6538 = vcmp.eq.f32.partialorder %v6537, 8.507059e+37
        %v6539 = vand.u32 %v6314, 2147483648
        %v6540 = vor.u32 1.1754944e-38, %v6539
        %v6541 = vsel %vm6538, %v6540, %v6536
        %v6542 = vmul.f32 1.0, %v6541
        %v6543 = vrcp.pop %v6315
        %v6544 = vmul.f32 %v6315, %v6543
        %v6545 = vsub.f32 1.0, %v6544
        %v6546 = vmul.f32 %v6543, %v6545
        %v6547 = vadd.f32 %v6543, %v6546
        %vm6548 = vweird.f32 %v6315
        %vm6549 = vweird.f32 %v6543
        %vm6550 = vmor %vm6548, %vm6549
        %v6551 = vsel %vm6550, %v6543, %v6547
        %v6552 = vand.u32 2147483647, %v6315
        %vm6553 = vcmp.eq.f32.partialorder %v6552, 8.507059e+37
        %v6554 = vand.u32 %v6315, 2147483648
        %v6555 = vor.u32 1.1754944e-38, %v6554
        %v6556 = vsel %vm6553, %v6555, %v6551
        %v6557 = vmul.f32 1.0, %v6556
        %v6558 = vrcp.pop %v6316
        %v6559 = vmul.f32 %v6316, %v6558
        %v6560 = vsub.f32 1.0, %v6559
        %v6561 = vmul.f32 %v6558, %v6560
        %v6562 = vadd.f32 %v6558, %v6561
        %vm6563 = vweird.f32 %v6316
        %vm6564 = vweird.f32 %v6558
        %vm6565 = vmor %vm6563, %vm6564
        %v6566 = vsel %vm6565, %v6558, %v6562
        %v6567 = vand.u32 2147483647, %v6316
        %vm6568 = vcmp.eq.f32.partialorder %v6567, 8.507059e+37
        %v6569 = vand.u32 %v6316, 2147483648
        %v6570 = vor.u32 1.1754944e-38, %v6569
        %v6571 = vsel %vm6568, %v6570, %v6566
        %v6572 = vmul.f32 1.0, %v6571
        %v6573 = vrcp.pop %v6317
        %v6574 = vmul.f32 %v6317, %v6573
        %v6575 = vsub.f32 1.0, %v6574
        %v6576 = vmul.f32 %v6573, %v6575
        %v6577 = vadd.f32 %v6573, %v6576
        %vm6578 = vweird.f32 %v6317
        %vm6579 = vweird.f32 %v6573
        %vm6580 = vmor %vm6578, %vm6579
        %v6581 = vsel %vm6580, %v6573, %v6577
        %v6582 = vand.u32 2147483647, %v6317
        %vm6583 = vcmp.eq.f32.partialorder %v6582, 8.507059e+37
        %v6584 = vand.u32 %v6317, 2147483648
        %v6585 = vor.u32 1.1754944e-38, %v6584
        %v6586 = vsel %vm6583, %v6585, %v6581
        %v6587 = vmul.f32 1.0, %v6586
        %v6588 = vrcp.pop %v6318
        %v6589 = vmul.f32 %v6318, %v6588
        %v6590 = vsub.f32 1.0, %v6589
        %v6591 = vmul.f32 %v6588, %v6590
        %v6592 = vadd.f32 %v6588, %v6591
        %vm6593 = vweird.f32 %v6318
        %vm6594 = vweird.f32 %v6588
        %vm6595 = vmor %vm6593, %vm6594
        %v6596 = vsel %vm6595, %v6588, %v6592
        %v6597 = vand.u32 2147483647, %v6318
        %vm6598 = vcmp.eq.f32.partialorder %v6597, 8.507059e+37
        %v6599 = vand.u32 %v6318, 2147483648
        %v6600 = vor.u32 1.1754944e-38, %v6599
        %v6601 = vsel %vm6598, %v6600, %v6596
        %v6602 = vmul.f32 1.0, %v6601
        %v6603 = vrcp.pop %v6319
        %v6604 = vmul.f32 %v6319, %v6603
        %v6605 = vsub.f32 1.0, %v6604
        %v6606 = vmul.f32 %v6603, %v6605
        %v6607 = vadd.f32 %v6603, %v6606
        %vm6608 = vweird.f32 %v6319
        %vm6609 = vweird.f32 %v6603
        %vm6610 = vmor %vm6608, %vm6609
        %v6611 = vsel %vm6610, %v6603, %v6607
        %v6612 = vand.u32 2147483647, %v6319
        %vm6613 = vcmp.eq.f32.partialorder %v6612, 8.507059e+37
        %v6614 = vand.u32 %v6319, 2147483648
        %v6615 = vor.u32 1.1754944e-38, %v6614
        %v6616 = vsel %vm6613, %v6615, %v6611
        %v6617 = vmul.f32 1.0, %v6616
        %v6618 = vrcp.pop %v6320
        %v6619 = vmul.f32 %v6320, %v6618
        %v6620 = vsub.f32 1.0, %v6619
        %v6621 = vmul.f32 %v6618, %v6620
        %v6622 = vadd.f32 %v6618, %v6621
        %vm6623 = vweird.f32 %v6320
        %vm6624 = vweird.f32 %v6618
        %vm6625 = vmor %vm6623, %vm6624
        %v6626 = vsel %vm6625, %v6618, %v6622
        %v6627 = vand.u32 2147483647, %v6320
        %vm6628 = vcmp.eq.f32.partialorder %v6627, 8.507059e+37
        %v6629 = vand.u32 %v6320, 2147483648
        %v6630 = vor.u32 1.1754944e-38, %v6629
        %v6631 = vsel %vm6628, %v6630, %v6626
        %v6632 = vmul.f32 1.0, %v6631
        %v6633 = vrcp.pop %v6321
        %v6634 = vmul.f32 %v6321, %v6633
        %v6635 = vsub.f32 1.0, %v6634
        %v6636 = vmul.f32 %v6633, %v6635
        %v6637 = vadd.f32 %v6633, %v6636
        %vm6638 = vweird.f32 %v6321
        %vm6639 = vweird.f32 %v6633
        %vm6640 = vmor %vm6638, %vm6639
        %v6641 = vsel %vm6640, %v6633, %v6637
        %v6642 = vand.u32 2147483647, %v6321
        %vm6643 = vcmp.eq.f32.partialorder %v6642, 8.507059e+37
        %v6644 = vand.u32 %v6321, 2147483648
        %v6645 = vor.u32 1.1754944e-38, %v6644
        %v6646 = vsel %vm6643, %v6645, %v6641
        %v6647 = vmul.f32 1.0, %v6646
        %v6648 = vrcp.pop %v6322
        %v6649 = vmul.f32 %v6322, %v6648
        %v6650 = vsub.f32 1.0, %v6649
        %v6651 = vmul.f32 %v6648, %v6650
        %v6652 = vadd.f32 %v6648, %v6651
        %vm6653 = vweird.f32 %v6322
        %vm6654 = vweird.f32 %v6648
        %vm6655 = vmor %vm6653, %vm6654
        %v6656 = vsel %vm6655, %v6648, %v6652
        %v6657 = vand.u32 2147483647, %v6322
        %vm6658 = vcmp.eq.f32.partialorder %v6657, 8.507059e+37
        %v6659 = vand.u32 %v6322, 2147483648
        %v6660 = vor.u32 1.1754944e-38, %v6659
        %v6661 = vsel %vm6658, %v6660, %v6656
        %v6662 = vmul.f32 1.0, %v6661
        %v6663 = vrcp.pop %v6323
        %v6664 = vmul.f32 %v6323, %v6663
        %v6665 = vsub.f32 1.0, %v6664
        %v6666 = vmul.f32 %v6663, %v6665
        %v6667 = vadd.f32 %v6663, %v6666
        %vm6668 = vweird.f32 %v6323
        %vm6669 = vweird.f32 %v6663
        %vm6670 = vmor %vm6668, %vm6669
        %v6671 = vsel %vm6670, %v6663, %v6667
        %v6672 = vand.u32 2147483647, %v6323
        %vm6673 = vcmp.eq.f32.partialorder %v6672, 8.507059e+37
        %v6674 = vand.u32 %v6323, 2147483648
        %v6675 = vor.u32 1.1754944e-38, %v6674
        %v6676 = vsel %vm6673, %v6675, %v6671
        %v6677 = vmul.f32 1.0, %v6676
        %v6678 = vrcp.pop %v6324
        %v6679 = vmul.f32 %v6324, %v6678
        %v6680 = vsub.f32 1.0, %v6679
        %v6681 = vmul.f32 %v6678, %v6680
        %v6682 = vadd.f32 %v6678, %v6681
        %vm6683 = vweird.f32 %v6324
        %vm6684 = vweird.f32 %v6678
        %vm6685 = vmor %vm6683, %vm6684
        %v6686 = vsel %vm6685, %v6678, %v6682
        %v6687 = vand.u32 2147483647, %v6324
        %vm6688 = vcmp.eq.f32.partialorder %v6687, 8.507059e+37
        %v6689 = vand.u32 %v6324, 2147483648
        %v6690 = vor.u32 1.1754944e-38, %v6689
        %v6691 = vsel %vm6688, %v6690, %v6686
        %v6692 = vmul.f32 1.0, %v6691
        %v6693 = vrcp.pop %v6325
        %v6694 = vmul.f32 %v6325, %v6693
        %v6695 = vsub.f32 1.0, %v6694
        %v6696 = vmul.f32 %v6693, %v6695
        %v6697 = vadd.f32 %v6693, %v6696
        %vm6698 = vweird.f32 %v6325
        %vm6699 = vweird.f32 %v6693
        %vm6700 = vmor %vm6698, %vm6699
        %v6701 = vsel %vm6700, %v6693, %v6697
        %v6702 = vand.u32 2147483647, %v6325
        %vm6703 = vcmp.eq.f32.partialorder %v6702, 8.507059e+37
        %v6704 = vand.u32 %v6325, 2147483648
        %v6705 = vor.u32 1.1754944e-38, %v6704
        %v6706 = vsel %vm6703, %v6705, %v6701
        %v6707 = vmul.f32 1.0, %v6706
        %v6708 = vrcp.pop %v6326
        %v6709 = vmul.f32 %v6326, %v6708
        %v6710 = vsub.f32 1.0, %v6709
        %v6711 = vmul.f32 %v6708, %v6710
        %v6712 = vadd.f32 %v6708, %v6711
        %vm6713 = vweird.f32 %v6326
        %vm6714 = vweird.f32 %v6708
        %vm6715 = vmor %vm6713, %vm6714
        %v6716 = vsel %vm6715, %v6708, %v6712
        %v6717 = vand.u32 2147483647, %v6326
        %vm6718 = vcmp.eq.f32.partialorder %v6717, 8.507059e+37
        %v6719 = vand.u32 %v6326, 2147483648
        %v6720 = vor.u32 1.1754944e-38, %v6719
        %v6721 = vsel %vm6718, %v6720, %v6716
        %v6722 = vmul.f32 1.0, %v6721
        %v6723 = vrcp.pop %v6327
        %v6724 = vmul.f32 %v6327, %v6723
        %v6725 = vsub.f32 1.0, %v6724
        %v6726 = vmul.f32 %v6723, %v6725
        %v6727 = vadd.f32 %v6723, %v6726
        %vm6728 = vweird.f32 %v6327
        %vm6729 = vweird.f32 %v6723
        %vm6730 = vmor %vm6728, %vm6729
        %v6731 = vsel %vm6730, %v6723, %v6727
        %v6732 = vand.u32 2147483647, %v6327
        %vm6733 = vcmp.eq.f32.partialorder %v6732, 8.507059e+37
        %v6734 = vand.u32 %v6327, 2147483648
        %v6735 = vor.u32 1.1754944e-38, %v6734
        %v6736 = vsel %vm6733, %v6735, %v6731
        %v6737 = vmul.f32 1.0, %v6736
        %v6738 = vrcp.pop %v6328
        %v6739 = vmul.f32 %v6328, %v6738
        %v6740 = vsub.f32 1.0, %v6739
        %v6741 = vmul.f32 %v6738, %v6740
        %v6742 = vadd.f32 %v6738, %v6741
        %vm6743 = vweird.f32 %v6328
        %vm6744 = vweird.f32 %v6738
        %vm6745 = vmor %vm6743, %vm6744
        %v6746 = vsel %vm6745, %v6738, %v6742
        %v6747 = vand.u32 2147483647, %v6328
        %vm6748 = vcmp.eq.f32.partialorder %v6747, 8.507059e+37
        %v6749 = vand.u32 %v6328, 2147483648
        %v6750 = vor.u32 1.1754944e-38, %v6749
        %v6751 = vsel %vm6748, %v6750, %v6746
        %v6752 = vmul.f32 1.0, %v6751
        %v6753 = vrcp.pop %v6329
        %v6754 = vmul.f32 %v6329, %v6753
        %v6755 = vsub.f32 1.0, %v6754
        %v6756 = vmul.f32 %v6753, %v6755
        %v6757 = vadd.f32 %v6753, %v6756
        %vm6758 = vweird.f32 %v6329
        %vm6759 = vweird.f32 %v6753
        %vm6760 = vmor %vm6758, %vm6759
        %v6761 = vsel %vm6760, %v6753, %v6757
        %v6762 = vand.u32 2147483647, %v6329
        %vm6763 = vcmp.eq.f32.partialorder %v6762, 8.507059e+37
        %v6764 = vand.u32 %v6329, 2147483648
        %v6765 = vor.u32 1.1754944e-38, %v6764
        %v6766 = vsel %vm6763, %v6765, %v6761
        %v6767 = vmul.f32 1.0, %v6766
        %v6768 = vrcp.pop %v6330
        %v6769 = vmul.f32 %v6330, %v6768
        %v6770 = vsub.f32 1.0, %v6769
        %v6771 = vmul.f32 %v6768, %v6770
        %v6772 = vadd.f32 %v6768, %v6771
        %vm6773 = vweird.f32 %v6330
        %vm6774 = vweird.f32 %v6768
        %vm6775 = vmor %vm6773, %vm6774
        %v6776 = vsel %vm6775, %v6768, %v6772
        %v6777 = vand.u32 2147483647, %v6330
        %vm6778 = vcmp.eq.f32.partialorder %v6777, 8.507059e+37
        %v6779 = vand.u32 %v6330, 2147483648
        %v6780 = vor.u32 1.1754944e-38, %v6779
        %v6781 = vsel %vm6778, %v6780, %v6776
        %v6782 = vmul.f32 1.0, %v6781
        %v6783 = vrcp.pop %v6331
        %v6784 = vmul.f32 %v6331, %v6783
        %v6785 = vsub.f32 1.0, %v6784
        %v6786 = vmul.f32 %v6783, %v6785
        %v6787 = vadd.f32 %v6783, %v6786
        %vm6788 = vweird.f32 %v6331
        %vm6789 = vweird.f32 %v6783
        %vm6790 = vmor %vm6788, %vm6789
        %v6791 = vsel %vm6790, %v6783, %v6787
        %v6792 = vand.u32 2147483647, %v6331
        %vm6793 = vcmp.eq.f32.partialorder %v6792, 8.507059e+37
        %v6794 = vand.u32 %v6331, 2147483648
        %v6795 = vor.u32 1.1754944e-38, %v6794
        %v6796 = vsel %vm6793, %v6795, %v6791
        %v6797 = vmul.f32 1.0, %v6796
        %v6798 = vrcp.pop %v6332
        %v6799 = vmul.f32 %v6332, %v6798
        %v6800 = vsub.f32 1.0, %v6799
        %v6801 = vmul.f32 %v6798, %v6800
        %v6802 = vadd.f32 %v6798, %v6801
        %vm6803 = vweird.f32 %v6332
        %vm6804 = vweird.f32 %v6798
        %vm6805 = vmor %vm6803, %vm6804
        %v6806 = vsel %vm6805, %v6798, %v6802
        %v6807 = vand.u32 2147483647, %v6332
        %vm6808 = vcmp.eq.f32.partialorder %v6807, 8.507059e+37
        %v6809 = vand.u32 %v6332, 2147483648
        %v6810 = vor.u32 1.1754944e-38, %v6809
        %v6811 = vsel %vm6808, %v6810, %v6806
        %v6812 = vmul.f32 1.0, %v6811
        %v6813 = vmul.f32 %v6110, %v6347
        %v6814 = vmul.f32 %v6113, %v6362
        %v6815 = vmul.f32 %v6116, %v6377
        %v6816 = vmul.f32 %v6119, %v6392
        %v6817 = vmul.f32 %v6122, %v6407
        %v6818 = vmul.f32 %v6125, %v6422
        %v6819 = vmul.f32 %v6128, %v6437
        %v6820 = vmul.f32 %v6131, %v6452
        %v6821 = vmul.f32 %v6134, %v6467
        %v6822 = vmul.f32 %v6137, %v6482
        %v6823 = vmul.f32 %v6140, %v6497
        %v6824 = vmul.f32 %v6143, %v6512
        %v6825 = vmul.f32 %v6146, %v6527
        %v6826 = vmul.f32 %v6149, %v6542
        %v6827 = vmul.f32 %v6152, %v6557
        %v6828 = vmul.f32 %v6155, %v6572
        %v6829 = vmul.f32 %v6158, %v6587
        %v6830 = vmul.f32 %v6161, %v6602
        %v6831 = vmul.f32 %v6164, %v6617
        %v6832 = vmul.f32 %v6167, %v6632
        %v6833 = vmul.f32 %v6170, %v6647
        %v6834 = vmul.f32 %v6173, %v6662
        %v6835 = vmul.f32 %v6176, %v6677
        %v6836 = vmul.f32 %v6179, %v6692
        %v6837 = vmul.f32 %v6182, %v6707
        %v6838 = vmul.f32 %v6185, %v6722
        %v6839 = vmul.f32 %v6188, %v6737
        %v6840 = vmul.f32 %v6191, %v6752
        %v6841 = vmul.f32 %v6194, %v6767
        %v6842 = vmul.f32 %v6197, %v6782
        %v6843 = vmul.f32 %v6200, %v6797
        %v6844 = vmul.f32 %v6203, %v6812
        %v6845 = vld [vmem:[%s4] sm:$0xff]
        %v6846 = vld [vmem:[%s13] sm:$0x1]
        %v6848 = vperm.slane %v6846, 0
        %v6851 = vsel %vm1682, %v6813, 0
        %v6854 = vsel %vm1682, %v6814, 0
        %v6857 = vsel %vm1682, %v6815, 0
        %v6860 = vsel %vm1682, %v6816, 0
        %v6863 = vsel %vm1682, %v6817, 0
        %v6866 = vsel %vm1682, %v6818, 0
        %v6869 = vsel %vm1682, %v6819, 0
        %v6872 = vsel %vm1682, %v6820, 0
        %v6875 = vsel %vm1682, %v6821, 0
        %v6878 = vsel %vm1682, %v6822, 0
        %v6881 = vsel %vm1682, %v6823, 0
        %v6884 = vsel %vm1682, %v6824, 0
        %v6887 = vsel %vm1682, %v6825, 0
        %v6890 = vsel %vm1682, %v6826, 0
        %v6893 = vsel %vm1682, %v6827, 0
        %v6896 = vsel %vm1682, %v6828, 0
        %v6899 = vsel %vm1682, %v6829, 0
        %v6902 = vsel %vm1682, %v6830, 0
        %v6905 = vsel %vm1682, %v6831, 0
        %v6908 = vsel %vm1682, %v6832, 0
        %v6911 = vsel %vm1682, %v6833, 0
        %v6914 = vsel %vm1682, %v6834, 0
        %v6917 = vsel %vm1682, %v6835, 0
        %v6920 = vsel %vm1682, %v6836, 0
        %v6923 = vsel %vm1682, %v6837, 0
        %v6926 = vsel %vm1682, %v6838, 0
        %v6929 = vsel %vm1682, %v6839, 0
        %v6932 = vsel %vm1682, %v6840, 0
        %v6935 = vsel %vm1682, %v6841, 0
        %v6938 = vsel %vm1682, %v6842, 0
        %v6941 = vsel %vm1682, %v6843, 0
        %v6944 = vsel %vm1682, %v6844, 0
        %v6947 = vsel %vm1682, %v6845, 0
        %6949 = vmatpush.xpose.msra.mxu0 0.0
        %6950 = vmatpush.xpose.msra.mxu0 0.0
        %6951 = vmatpush.xpose.msra.mxu0 0.0
        %6952 = vmatpush.xpose.msra.mxu0 0.0
        %6953 = vmatpush.xpose.msra.mxu0 0.0
        %6954 = vmatpush.xpose.msra.mxu0 0.0
        %6955 = vmatpush.xpose.msra.mxu0 0.0
        %6956 = vmatpush.xpose.msra.mxu0 0.0
        %6957 = vmatpush.xpose.msra.mxu0 0.0
        %6958 = vmatpush.xpose.msra.mxu0 0.0
        %6959 = vmatpush.xpose.msra.mxu0 0.0
        %6960 = vmatpush.xpose.msra.mxu0 0.0
        %6961 = vmatpush.xpose.msra.mxu0 0.0
        %6962 = vmatpush.xpose.msra.mxu0 0.0
        %6963 = vmatpush.xpose.msra.mxu0 0.0
        %6964 = vmatpush.xpose.msra.mxu0 %v6947
        %6965 = vmatmul.f32.gmra.mxu0 %v6851
        %v6966 = vpop.f32.mrf.mxu0
        %v6967 = vadd.f32 %v6848, %v6966
        %6968 = vmatmul.f32.gmra.mxu0 %v6854
        %v6969 = vpop.f32.mrf.mxu0
        %v6970 = vadd.f32 %v6848, %v6969
        %6971 = vmatmul.f32.gmra.mxu0 %v6857
        %v6972 = vpop.f32.mrf.mxu0
        %v6973 = vadd.f32 %v6848, %v6972
        %6974 = vmatmul.f32.gmra.mxu0 %v6860
        %v6975 = vpop.f32.mrf.mxu0
        %v6976 = vadd.f32 %v6848, %v6975
        %6977 = vmatmul.f32.gmra.mxu0 %v6863
        %v6978 = vpop.f32.mrf.mxu0
        %v6979 = vadd.f32 %v6848, %v6978
        %6980 = vmatmul.f32.gmra.mxu0 %v6866
        %v6981 = vpop.f32.mrf.mxu0
        %v6982 = vadd.f32 %v6848, %v6981
        %6983 = vmatmul.f32.gmra.mxu0 %v6869
        %v6984 = vpop.f32.mrf.mxu0
        %v6985 = vadd.f32 %v6848, %v6984
        %6986 = vmatmul.f32.gmra.mxu0 %v6872
        %v6987 = vpop.f32.mrf.mxu0
        %v6988 = vadd.f32 %v6848, %v6987
        %6989 = vmatmul.f32.gmra.mxu0 %v6875
        %v6990 = vpop.f32.mrf.mxu0
        %v6991 = vadd.f32 %v6848, %v6990
        %6992 = vmatmul.f32.gmra.mxu0 %v6878
        %v6993 = vpop.f32.mrf.mxu0
        %v6994 = vadd.f32 %v6848, %v6993
        %6995 = vmatmul.f32.gmra.mxu0 %v6881
        %v6996 = vpop.f32.mrf.mxu0
        %v6997 = vadd.f32 %v6848, %v6996
        %6998 = vmatmul.f32.gmra.mxu0 %v6884
        %v6999 = vpop.f32.mrf.mxu0
        %v7000 = vadd.f32 %v6848, %v6999
        %7001 = vmatmul.f32.gmra.mxu0 %v6887
        %v7002 = vpop.f32.mrf.mxu0
        %v7003 = vadd.f32 %v6848, %v7002
        %7004 = vmatmul.f32.gmra.mxu0 %v6890
        %v7005 = vpop.f32.mrf.mxu0
        %v7006 = vadd.f32 %v6848, %v7005
        %7007 = vmatmul.f32.gmra.mxu0 %v6893
        %v7008 = vpop.f32.mrf.mxu0
        %v7009 = vadd.f32 %v6848, %v7008
        %7010 = vmatmul.f32.gmra.mxu0 %v6896
        %v7011 = vpop.f32.mrf.mxu0
        %v7012 = vadd.f32 %v6848, %v7011
        %7013 = vmatmul.f32.gmra.mxu0 %v6899
        %v7014 = vpop.f32.mrf.mxu0
        %v7015 = vadd.f32 %v6848, %v7014
        %7016 = vmatmul.f32.gmra.mxu0 %v6902
        %v7017 = vpop.f32.mrf.mxu0
        %v7018 = vadd.f32 %v6848, %v7017
        %7019 = vmatmul.f32.gmra.mxu0 %v6905
        %v7020 = vpop.f32.mrf.mxu0
        %v7021 = vadd.f32 %v6848, %v7020
        %7022 = vmatmul.f32.gmra.mxu0 %v6908
        %v7023 = vpop.f32.mrf.mxu0
        %v7024 = vadd.f32 %v6848, %v7023
        %7025 = vmatmul.f32.gmra.mxu0 %v6911
        %v7026 = vpop.f32.mrf.mxu0
        %v7027 = vadd.f32 %v6848, %v7026
        %7028 = vmatmul.f32.gmra.mxu0 %v6914
        %v7029 = vpop.f32.mrf.mxu0
        %v7030 = vadd.f32 %v6848, %v7029
        %7031 = vmatmul.f32.gmra.mxu0 %v6917
        %v7032 = vpop.f32.mrf.mxu0
        %v7033 = vadd.f32 %v6848, %v7032
        %7034 = vmatmul.f32.gmra.mxu0 %v6920
        %v7035 = vpop.f32.mrf.mxu0
        %v7036 = vadd.f32 %v6848, %v7035
        %7037 = vmatmul.f32.gmra.mxu0 %v6923
        %v7038 = vpop.f32.mrf.mxu0
        %v7039 = vadd.f32 %v6848, %v7038
        %7040 = vmatmul.f32.gmra.mxu0 %v6926
        %v7041 = vpop.f32.mrf.mxu0
        %v7042 = vadd.f32 %v6848, %v7041
        %7043 = vmatmul.f32.gmra.mxu0 %v6929
        %v7044 = vpop.f32.mrf.mxu0
        %v7045 = vadd.f32 %v6848, %v7044
        %7046 = vmatmul.f32.gmra.mxu0 %v6932
        %v7047 = vpop.f32.mrf.mxu0
        %v7048 = vadd.f32 %v6848, %v7047
        %7049 = vmatmul.f32.gmra.mxu0 %v6935
        %v7050 = vpop.f32.mrf.mxu0
        %v7051 = vadd.f32 %v6848, %v7050
        %7052 = vmatmul.f32.gmra.mxu0 %v6938
        %v7053 = vpop.f32.mrf.mxu0
        %v7054 = vadd.f32 %v6848, %v7053
        %7055 = vmatmul.f32.gmra.mxu0 %v6941
        %v7056 = vpop.f32.mrf.mxu0
        %v7057 = vadd.f32 %v6848, %v7056
        %7058 = vmatmul.f32.gmra.mxu0 %v6944
        %v7059 = vpop.f32.mrf.mxu0
        %v7060 = vadd.f32 %v6848, %v7059
        %7061 = vdwg.mxu0
        %v7062 = vld [vmem:[%s14] sm:$0xff]
        %7064 = vset.pattern.permute.xlu0 0
        %7065 = vperm.xlu0 %7064, %v7062
        %v7066 = vpop.permute.xlu0 %7065
        %7068 = vmatpush.xpose.msra.mxu0 %v6896
        %7069 = vmatpush.xpose.msra.mxu0 %v6893
        %7070 = vmatpush.xpose.msra.mxu0 %v6890
        %7071 = vmatpush.xpose.msra.mxu0 %v6887
        %7072 = vmatpush.xpose.msra.mxu0 %v6884
        %7073 = vmatpush.xpose.msra.mxu0 %v6881
        %7074 = vmatpush.xpose.msra.mxu0 %v6878
        %7075 = vmatpush.xpose.msra.mxu0 %v6875
        %7076 = vmatpush.xpose.msra.mxu0 %v6872
        %7077 = vmatpush.xpose.msra.mxu0 %v6869
        %7078 = vmatpush.xpose.msra.mxu0 %v6866
        %7079 = vmatpush.xpose.msra.mxu0 %v6863
        %7080 = vmatpush.xpose.msra.mxu0 %v6860
        %7081 = vmatpush.xpose.msra.mxu0 %v6857
        %7082 = vmatpush.xpose.msra.mxu0 %v6854
        %7083 = vmatpush.xpose.msra.mxu0 %v6851
        %7084 = vmatmul.f32.gmra.mxu0 %v6947
        %v7085 = vpop.f32.mrf.mxu0
        %v7086 = vadd.f32 %v7066, %v7085
        %7087 = vdwg.mxu0
        %7088 = vmatpush.xpose.msra.mxu0 %v6944
        %7089 = vmatpush.xpose.msra.mxu0 %v6941
        %7090 = vmatpush.xpose.msra.mxu0 %v6938
        %7091 = vmatpush.xpose.msra.mxu0 %v6935
        %7092 = vmatpush.xpose.msra.mxu0 %v6932
        %7093 = vmatpush.xpose.msra.mxu0 %v6929
        %7094 = vmatpush.xpose.msra.mxu0 %v6926
        %7095 = vmatpush.xpose.msra.mxu0 %v6923
        %7096 = vmatpush.xpose.msra.mxu0 %v6920
        %7097 = vmatpush.xpose.msra.mxu0 %v6917
        %7098 = vmatpush.xpose.msra.mxu0 %v6914
        %7099 = vmatpush.xpose.msra.mxu0 %v6911
        %7100 = vmatpush.xpose.msra.mxu0 %v6908
        %7101 = vmatpush.xpose.msra.mxu0 %v6905
        %7102 = vmatpush.xpose.msra.mxu0 %v6902
        %7103 = vmatpush.xpose.msra.mxu0 %v6899
        %7104 = vmatmul.f32.gmra.mxu0 %v6947
        %v7105 = vpop.f32.mrf.mxu0
        %v7106 = vadd.f32 %v7066, %v7105
        %7107 = vdwg.mxu0
        %7108 = vst [vmem:[%s594] sm:$0xff] %v7086
        %7109 = vst [vmem:[%s594 + $0x8] sm:$0xff] %v7106
        %v7110 = vadd.f32 %v3535, %v6967
        %v7111 = vadd.f32 %v3538, %v6970
        %v7112 = vadd.f32 %v3541, %v6973
        %v7113 = vadd.f32 %v3544, %v6976
        %v7114 = vadd.f32 %v3547, %v6979
        %v7115 = vadd.f32 %v3550, %v6982
        %v7116 = vadd.f32 %v3553, %v6985
        %v7117 = vadd.f32 %v3556, %v6988
        %v7118 = vadd.f32 %v3559, %v6991
        %v7119 = vadd.f32 %v3562, %v6994
        %v7120 = vadd.f32 %v3565, %v6997
        %v7121 = vadd.f32 %v3568, %v7000
        %v7122 = vadd.f32 %v3571, %v7003
        %v7123 = vadd.f32 %v3574, %v7006
        %v7124 = vadd.f32 %v3577, %v7009
        %v7125 = vadd.f32 %v3580, %v7012
        %v7126 = vadd.f32 %v3583, %v7015
        %v7127 = vadd.f32 %v3586, %v7018
        %v7128 = vadd.f32 %v3589, %v7021
        %v7129 = vadd.f32 %v3592, %v7024
        %v7130 = vadd.f32 %v3595, %v7027
        %v7131 = vadd.f32 %v3598, %v7030
        %v7132 = vadd.f32 %v3601, %v7033
        %v7133 = vadd.f32 %v3604, %v7036
        %v7134 = vadd.f32 %v3607, %v7039
        %v7135 = vadd.f32 %v3610, %v7042
        %v7136 = vadd.f32 %v3613, %v7045
        %v7137 = vadd.f32 %v3616, %v7048
        %v7138 = vadd.f32 %v3619, %v7051
        %v7139 = vadd.f32 %v3622, %v7054
        %v7140 = vadd.f32 %v3625, %v7057
        %v7141 = vadd.f32 %v3628, %v7060
        %v7142 = vld [vmem:[%s9] sm:$0x1]
        %v7143 = vld [vmem:[%s10] sm:$0x1]
        %v7144 = vmul.f32 %v7110, %v7110
        %v7145 = vmul.f32 %v7111, %v7111
        %v7146 = vmul.f32 %v7112, %v7112
        %v7147 = vmul.f32 %v7113, %v7113
        %v7148 = vmul.f32 %v7114, %v7114
        %v7149 = vmul.f32 %v7115, %v7115
        %v7150 = vmul.f32 %v7116, %v7116
        %v7151 = vmul.f32 %v7117, %v7117
        %v7152 = vmul.f32 %v7118, %v7118
        %v7153 = vmul.f32 %v7119, %v7119
        %v7154 = vmul.f32 %v7120, %v7120
        %v7155 = vmul.f32 %v7121, %v7121
        %v7156 = vmul.f32 %v7122, %v7122
        %v7157 = vmul.f32 %v7123, %v7123
        %v7158 = vmul.f32 %v7124, %v7124
        %v7159 = vmul.f32 %v7125, %v7125
        %v7160 = vmul.f32 %v7126, %v7126
        %v7161 = vmul.f32 %v7127, %v7127
        %v7162 = vmul.f32 %v7128, %v7128
        %v7163 = vmul.f32 %v7129, %v7129
        %v7164 = vmul.f32 %v7130, %v7130
        %v7165 = vmul.f32 %v7131, %v7131
        %v7166 = vmul.f32 %v7132, %v7132
        %v7167 = vmul.f32 %v7133, %v7133
        %v7168 = vmul.f32 %v7134, %v7134
        %v7169 = vmul.f32 %v7135, %v7135
        %v7170 = vmul.f32 %v7136, %v7136
        %v7171 = vmul.f32 %v7137, %v7137
        %v7172 = vmul.f32 %v7138, %v7138
        %v7173 = vmul.f32 %v7139, %v7139
        %v7174 = vmul.f32 %v7140, %v7140
        %v7175 = vmul.f32 %v7141, %v7141
        %v7176 = vsel %vm1682, %v7110, 0.0
        %v7177 = vsel %vm1682, %v7111, 0.0
        %v7178 = vadd.f32 %v7176, %v7177
        %v7179 = vsel %vm1682, %v7112, 0.0
        %v7180 = vadd.f32 %v7178, %v7179
        %v7181 = vsel %vm1682, %v7113, 0.0
        %v7182 = vadd.f32 %v7180, %v7181
        %v7183 = vsel %vm1682, %v7114, 0.0
        %v7184 = vadd.f32 %v7182, %v7183
        %v7185 = vsel %vm1682, %v7115, 0.0
        %v7186 = vadd.f32 %v7184, %v7185
        %v7187 = vsel %vm1682, %v7116, 0.0
        %v7188 = vadd.f32 %v7186, %v7187
        %v7189 = vsel %vm1682, %v7117, 0.0
        %v7190 = vadd.f32 %v7188, %v7189
        %v7191 = vsel %vm1682, %v7118, 0.0
        %v7192 = vadd.f32 %v7190, %v7191
        %v7193 = vsel %vm1682, %v7119, 0.0
        %v7194 = vadd.f32 %v7192, %v7193
        %v7195 = vsel %vm1682, %v7120, 0.0
        %v7196 = vadd.f32 %v7194, %v7195
        %v7197 = vsel %vm1682, %v7121, 0.0
        %v7198 = vadd.f32 %v7196, %v7197
        %v7199 = vsel %vm1682, %v7122, 0.0
        %v7200 = vadd.f32 %v7198, %v7199
        %v7201 = vsel %vm1682, %v7123, 0.0
        %v7202 = vadd.f32 %v7200, %v7201
        %v7203 = vsel %vm1682, %v7124, 0.0
        %v7204 = vadd.f32 %v7202, %v7203
        %v7205 = vsel %vm1682, %v7125, 0.0
        %v7206 = vadd.f32 %v7204, %v7205
        %v7207 = vsel %vm1682, %v7126, 0.0
        %v7208 = vadd.f32 %v7206, %v7207
        %v7209 = vsel %vm1682, %v7127, 0.0
        %v7210 = vadd.f32 %v7208, %v7209
        %v7211 = vsel %vm1682, %v7128, 0.0
        %v7212 = vadd.f32 %v7210, %v7211
        %v7213 = vsel %vm1682, %v7129, 0.0
        %v7214 = vadd.f32 %v7212, %v7213
        %v7215 = vsel %vm1682, %v7130, 0.0
        %v7216 = vadd.f32 %v7214, %v7215
        %v7217 = vsel %vm1682, %v7131, 0.0
        %v7218 = vadd.f32 %v7216, %v7217
        %v7219 = vsel %vm1682, %v7132, 0.0
        %v7220 = vadd.f32 %v7218, %v7219
        %v7221 = vsel %vm1682, %v7133, 0.0
        %v7222 = vadd.f32 %v7220, %v7221
        %v7223 = vsel %vm1682, %v7134, 0.0
        %v7224 = vadd.f32 %v7222, %v7223
        %v7225 = vsel %vm1682, %v7135, 0.0
        %v7226 = vadd.f32 %v7224, %v7225
        %v7227 = vsel %vm1682, %v7136, 0.0
        %v7228 = vadd.f32 %v7226, %v7227
        %v7229 = vsel %vm1682, %v7137, 0.0
        %v7230 = vadd.f32 %v7228, %v7229
        %v7231 = vsel %vm1682, %v7138, 0.0
        %v7232 = vadd.f32 %v7230, %v7231
        %v7233 = vsel %vm1682, %v7139, 0.0
        %v7234 = vadd.f32 %v7232, %v7233
        %v7235 = vsel %vm1682, %v7140, 0.0
        %v7236 = vadd.f32 %v7234, %v7235
        %v7237 = vsel %vm1682, %v7141, 0.0
        %v7238 = vadd.f32 %v7236, %v7237
        %v7239 = vrot.slane %v7238, 4
        %v7240 = vadd.f32 %v7238, %v7239
        %v7241 = vrot.slane %v7240, 2
        %v7242 = vadd.f32 %v7240, %v7241
        %v7243 = vrot.slane %v7242, 1
        %v7244 = vadd.f32 %v7242, %v7243
        %v7245 = vsel %vm1682, %v7144, 0.0
        %v7246 = vsel %vm1682, %v7145, 0.0
        %v7247 = vadd.f32 %v7245, %v7246
        %v7248 = vsel %vm1682, %v7146, 0.0
        %v7249 = vadd.f32 %v7247, %v7248
        %v7250 = vsel %vm1682, %v7147, 0.0
        %v7251 = vadd.f32 %v7249, %v7250
        %v7252 = vsel %vm1682, %v7148, 0.0
        %v7253 = vadd.f32 %v7251, %v7252
        %v7254 = vsel %vm1682, %v7149, 0.0
        %v7255 = vadd.f32 %v7253, %v7254
        %v7256 = vsel %vm1682, %v7150, 0.0
        %v7257 = vadd.f32 %v7255, %v7256
        %v7258 = vsel %vm1682, %v7151, 0.0
        %v7259 = vadd.f32 %v7257, %v7258
        %v7260 = vsel %vm1682, %v7152, 0.0
        %v7261 = vadd.f32 %v7259, %v7260
        %v7262 = vsel %vm1682, %v7153, 0.0
        %v7263 = vadd.f32 %v7261, %v7262
        %v7264 = vsel %vm1682, %v7154, 0.0
        %v7265 = vadd.f32 %v7263, %v7264
        %v7266 = vsel %vm1682, %v7155, 0.0
        %v7267 = vadd.f32 %v7265, %v7266
        %v7268 = vsel %vm1682, %v7156, 0.0
        %v7269 = vadd.f32 %v7267, %v7268
        %v7270 = vsel %vm1682, %v7157, 0.0
        %v7271 = vadd.f32 %v7269, %v7270
        %v7272 = vsel %vm1682, %v7158, 0.0
        %v7273 = vadd.f32 %v7271, %v7272
        %v7274 = vsel %vm1682, %v7159, 0.0
        %v7275 = vadd.f32 %v7273, %v7274
        %v7276 = vsel %vm1682, %v7160, 0.0
        %v7277 = vadd.f32 %v7275, %v7276
        %v7278 = vsel %vm1682, %v7161, 0.0
        %v7279 = vadd.f32 %v7277, %v7278
        %v7280 = vsel %vm1682, %v7162, 0.0
        %v7281 = vadd.f32 %v7279, %v7280
        %v7282 = vsel %vm1682, %v7163, 0.0
        %v7283 = vadd.f32 %v7281, %v7282
        %v7284 = vsel %vm1682, %v7164, 0.0
        %v7285 = vadd.f32 %v7283, %v7284
        %v7286 = vsel %vm1682, %v7165, 0.0
        %v7287 = vadd.f32 %v7285, %v7286
        %v7288 = vsel %vm1682, %v7166, 0.0
        %v7289 = vadd.f32 %v7287, %v7288
        %v7290 = vsel %vm1682, %v7167, 0.0
        %v7291 = vadd.f32 %v7289, %v7290
        %v7292 = vsel %vm1682, %v7168, 0.0
        %v7293 = vadd.f32 %v7291, %v7292
        %v7294 = vsel %vm1682, %v7169, 0.0
        %v7295 = vadd.f32 %v7293, %v7294
        %v7296 = vsel %vm1682, %v7170, 0.0
        %v7297 = vadd.f32 %v7295, %v7296
        %v7298 = vsel %vm1682, %v7171, 0.0
        %v7299 = vadd.f32 %v7297, %v7298
        %v7300 = vsel %vm1682, %v7172, 0.0
        %v7301 = vadd.f32 %v7299, %v7300
        %v7302 = vsel %vm1682, %v7173, 0.0
        %v7303 = vadd.f32 %v7301, %v7302
        %v7304 = vsel %vm1682, %v7174, 0.0
        %v7305 = vadd.f32 %v7303, %v7304
        %v7306 = vsel %vm1682, %v7175, 0.0
        %v7307 = vadd.f32 %v7305, %v7306
        %v7308 = vrot.slane %v7307, 4
        %v7309 = vadd.f32 %v7307, %v7308
        %v7310 = vrot.slane %v7309, 2
        %v7311 = vadd.f32 %v7309, %v7310
        %v7312 = vrot.slane %v7311, 1
        %v7313 = vadd.f32 %v7311, %v7312
        %v7314 = vsel %vm848, %v7244, 0.0
        %7315 = vadd.xlane.f32.xlu0 %v7314
        %v7316 = vpop.xlane.xlu0 %7315
        %v7317 = vrot.slane %v7316, 4
        %v7318 = vadd.f32 %v7316, %v7317
        %v7319 = vrot.slane %v7318, 2
        %v7320 = vadd.f32 %v7318, %v7319
        %v7321 = vrot.slane %v7320, 1
        %v7322 = vadd.f32 %v7320, %v7321
        %s7323 = vtos %v7322
        %v7324 = vrcp.pop 1024.0
        %v7325 = vmul.f32 1024.0, %v7324
        %v7326 = vsub.f32 1.0, %v7325
        %v7327 = vmul.f32 %v7324, %v7326
        %v7328 = vadd.f32 %v7324, %v7327
        %vm7329 = vweird.f32 %v7324
        %v7330 = vsel %vm7329, %v7324, %v7328
        %s7331 = vtos %v7330
        %s7332 = smul.f32 %s7323, %s7331
        %v7333 = vsel %vm848, %v7313, 0.0
        %7334 = vadd.xlane.f32.xlu0 %v7333
        %v7335 = vpop.xlane.xlu0 %7334
        %v7336 = vrot.slane %v7335, 4
        %v7337 = vadd.f32 %v7335, %v7336
        %v7338 = vrot.slane %v7337, 2
        %v7339 = vadd.f32 %v7337, %v7338
        %v7340 = vrot.slane %v7339, 1
        %v7341 = vadd.f32 %v7339, %v7340
        %s7342 = vtos %v7341
        %v7343 = vrcp.pop 1024.0
        %v7344 = vmul.f32 1024.0, %v7343
        %v7345 = vsub.f32 1.0, %v7344
        %v7346 = vmul.f32 %v7343, %v7345
        %v7347 = vadd.f32 %v7343, %v7346
        %vm7348 = vweird.f32 %v7343
        %v7349 = vsel %vm7348, %v7343, %v7347
        %s7350 = vtos %v7349
        %s7351 = smul.f32 %s7342, %s7350
        %s7352 = smul.f32 %s7332, %s7332
        %s7353 = ssub.f32 %s7351, %s7352
        %s7354 = smax.f32 %s7353, 0.0
        %v7355 = vstv %s7332
        %v7356 = vsel %vm892, %v7355, 0.0
        %v7357 = vstv %s7354
        %v7358 = vsel %vm892, %v7357, 0.0
        %7360 = vrot.lane.b32.xlu0 %v7244, 124
        %v7361 = vpop.permute.xlu0 %7360
        %v7363 = vsel %vm848, %v7361, 0.0
        %7364 = vadd.xlane.f32.xlu0 %v7363
        %v7365 = vpop.xlane.xlu0 %7364
        %v7366 = vrot.slane %v7365, 4
        %v7367 = vadd.f32 %v7365, %v7366
        %v7368 = vrot.slane %v7367, 2
        %v7369 = vadd.f32 %v7367, %v7368
        %v7370 = vrot.slane %v7369, 1
        %v7371 = vadd.f32 %v7369, %v7370
        %s7372 = vtos %v7371
        %v7373 = vrcp.pop 1024.0
        %v7374 = vmul.f32 1024.0, %v7373
        %v7375 = vsub.f32 1.0, %v7374
        %v7376 = vmul.f32 %v7373, %v7375
        %v7377 = vadd.f32 %v7373, %v7376
        %vm7378 = vweird.f32 %v7373
        %v7379 = vsel %vm7378, %v7373, %v7377
        %s7380 = vtos %v7379
        %s7381 = smul.f32 %s7372, %s7380
        %7383 = vrot.lane.b32.xlu0 %v7313, 124
        %v7384 = vpop.permute.xlu0 %7383
        %v7386 = vsel %vm848, %v7384, 0.0
        %7387 = vadd.xlane.f32.xlu0 %v7386
        %v7388 = vpop.xlane.xlu0 %7387
        %v7389 = vrot.slane %v7388, 4
        %v7390 = vadd.f32 %v7388, %v7389
        %v7391 = vrot.slane %v7390, 2
        %v7392 = vadd.f32 %v7390, %v7391
        %v7393 = vrot.slane %v7392, 1
        %v7394 = vadd.f32 %v7392, %v7393
        %s7395 = vtos %v7394
        %v7396 = vrcp.pop 1024.0
        %v7397 = vmul.f32 1024.0, %v7396
        %v7398 = vsub.f32 1.0, %v7397
        %v7399 = vmul.f32 %v7396, %v7398
        %v7400 = vadd.f32 %v7396, %v7399
        %vm7401 = vweird.f32 %v7396
        %v7402 = vsel %vm7401, %v7396, %v7400
        %s7403 = vtos %v7402
        %s7404 = smul.f32 %s7395, %s7403
        %s7405 = smul.f32 %s7381, %s7381
        %s7406 = ssub.f32 %s7404, %s7405
        %s7407 = smax.f32 %s7406, 0.0
        %vm7408 = vcmp.ge.s32.totalorder %v847, 4
        %vm7409 = vcmp.lt.s32.totalorder %v847, 8
        %vm7410 = vmand %vm7408, %vm7409
        %v7411 = vstv %s7381
        %v7412 = vsel %vm7410, %v7411, %v7356
        %v7413 = vstv %s7407
        %v7414 = vsel %vm7410, %v7413, %v7358
        %v7415 = vsub.f32 %v7110, %v7412
        %v7416 = vsub.f32 %v7111, %v7412
        %v7417 = vsub.f32 %v7112, %v7412
        %v7418 = vsub.f32 %v7113, %v7412
        %v7419 = vsub.f32 %v7114, %v7412
        %v7420 = vsub.f32 %v7115, %v7412
        %v7421 = vsub.f32 %v7116, %v7412
        %v7422 = vsub.f32 %v7117, %v7412
        %v7423 = vsub.f32 %v7118, %v7412
        %v7424 = vsub.f32 %v7119, %v7412
        %v7425 = vsub.f32 %v7120, %v7412
        %v7426 = vsub.f32 %v7121, %v7412
        %v7427 = vsub.f32 %v7122, %v7412
        %v7428 = vsub.f32 %v7123, %v7412
        %v7429 = vsub.f32 %v7124, %v7412
        %v7430 = vsub.f32 %v7125, %v7412
        %v7431 = vsub.f32 %v7126, %v7412
        %v7432 = vsub.f32 %v7127, %v7412
        %v7433 = vsub.f32 %v7128, %v7412
        %v7434 = vsub.f32 %v7129, %v7412
        %v7435 = vsub.f32 %v7130, %v7412
        %v7436 = vsub.f32 %v7131, %v7412
        %v7437 = vsub.f32 %v7132, %v7412
        %v7438 = vsub.f32 %v7133, %v7412
        %v7439 = vsub.f32 %v7134, %v7412
        %v7440 = vsub.f32 %v7135, %v7412
        %v7441 = vsub.f32 %v7136, %v7412
        %v7442 = vsub.f32 %v7137, %v7412
        %v7443 = vsub.f32 %v7138, %v7412
        %v7444 = vsub.f32 %v7139, %v7412
        %v7445 = vsub.f32 %v7140, %v7412
        %v7446 = vsub.f32 %v7141, %v7412
        %v7447 = vadd.f32 %v7414, 1e-06
        %v7448 = vrsqrt.pop %v7447
        %v7449 = vmul.f32 %v7448, %v7447
        %v7450 = vmul.f32 %v7449, %v7448
        %v7451 = vmul.f32 0.5, %v7450
        %v7452 = vsub.f32 1.5, %v7451
        %v7453 = vmul.f32 %v7448, %v7452
        %vm7454 = vweird.f32 %v7447
        %vm7455 = vweird.f32 %v7448
        %vm7456 = vmor %vm7454, %vm7455
        %v7457 = vsel %vm7456, %v7448, %v7453
        %v7458 = vmul.f32 %v7415, %v7457
        %v7459 = vmul.f32 %v7416, %v7457
        %v7460 = vmul.f32 %v7417, %v7457
        %v7461 = vmul.f32 %v7418, %v7457
        %v7462 = vmul.f32 %v7419, %v7457
        %v7463 = vmul.f32 %v7420, %v7457
        %v7464 = vmul.f32 %v7421, %v7457
        %v7465 = vmul.f32 %v7422, %v7457
        %v7466 = vmul.f32 %v7423, %v7457
        %v7467 = vmul.f32 %v7424, %v7457
        %v7468 = vmul.f32 %v7425, %v7457
        %v7469 = vmul.f32 %v7426, %v7457
        %v7470 = vmul.f32 %v7427, %v7457
        %v7471 = vmul.f32 %v7428, %v7457
        %v7472 = vmul.f32 %v7429, %v7457
        %v7473 = vmul.f32 %v7430, %v7457
        %v7474 = vmul.f32 %v7431, %v7457
        %v7475 = vmul.f32 %v7432, %v7457
        %v7476 = vmul.f32 %v7433, %v7457
        %v7477 = vmul.f32 %v7434, %v7457
        %v7478 = vmul.f32 %v7435, %v7457
        %v7479 = vmul.f32 %v7436, %v7457
        %v7480 = vmul.f32 %v7437, %v7457
        %v7481 = vmul.f32 %v7438, %v7457
        %v7482 = vmul.f32 %v7439, %v7457
        %v7483 = vmul.f32 %v7440, %v7457
        %v7484 = vmul.f32 %v7441, %v7457
        %v7485 = vmul.f32 %v7442, %v7457
        %v7486 = vmul.f32 %v7443, %v7457
        %v7487 = vmul.f32 %v7444, %v7457
        %v7488 = vmul.f32 %v7445, %v7457
        %v7489 = vmul.f32 %v7446, %v7457
        %v7491 = vperm.slane %v7142, 0
        %v7493 = vmul.f32 %v7458, %v7491
        %v7494 = vmul.f32 %v7459, %v7491
        %v7495 = vmul.f32 %v7460, %v7491
        %v7496 = vmul.f32 %v7461, %v7491
        %v7497 = vmul.f32 %v7462, %v7491
        %v7498 = vmul.f32 %v7463, %v7491
        %v7499 = vmul.f32 %v7464, %v7491
        %v7500 = vmul.f32 %v7465, %v7491
        %v7501 = vmul.f32 %v7466, %v7491
        %v7502 = vmul.f32 %v7467, %v7491
        %v7503 = vmul.f32 %v7468, %v7491
        %v7504 = vmul.f32 %v7469, %v7491
        %v7505 = vmul.f32 %v7470, %v7491
        %v7506 = vmul.f32 %v7471, %v7491
        %v7507 = vmul.f32 %v7472, %v7491
        %v7508 = vmul.f32 %v7473, %v7491
        %v7509 = vmul.f32 %v7474, %v7491
        %v7510 = vmul.f32 %v7475, %v7491
        %v7511 = vmul.f32 %v7476, %v7491
        %v7512 = vmul.f32 %v7477, %v7491
        %v7513 = vmul.f32 %v7478, %v7491
        %v7514 = vmul.f32 %v7479, %v7491
        %v7515 = vmul.f32 %v7480, %v7491
        %v7516 = vmul.f32 %v7481, %v7491
        %v7517 = vmul.f32 %v7482, %v7491
        %v7518 = vmul.f32 %v7483, %v7491
        %v7519 = vmul.f32 %v7484, %v7491
        %v7520 = vmul.f32 %v7485, %v7491
        %v7521 = vmul.f32 %v7486, %v7491
        %v7522 = vmul.f32 %v7487, %v7491
        %v7523 = vmul.f32 %v7488, %v7491
        %v7524 = vmul.f32 %v7489, %v7491
        %v7526 = vperm.slane %v7143, 0
        %v7528 = vadd.f32 %v7493, %v7526
        %v7529 = vadd.f32 %v7494, %v7526
        %v7530 = vadd.f32 %v7495, %v7526
        %v7531 = vadd.f32 %v7496, %v7526
        %v7532 = vadd.f32 %v7497, %v7526
        %v7533 = vadd.f32 %v7498, %v7526
        %v7534 = vadd.f32 %v7499, %v7526
        %v7535 = vadd.f32 %v7500, %v7526
        %v7536 = vadd.f32 %v7501, %v7526
        %v7537 = vadd.f32 %v7502, %v7526
        %v7538 = vadd.f32 %v7503, %v7526
        %v7539 = vadd.f32 %v7504, %v7526
        %v7540 = vadd.f32 %v7505, %v7526
        %v7541 = vadd.f32 %v7506, %v7526
        %v7542 = vadd.f32 %v7507, %v7526
        %v7543 = vadd.f32 %v7508, %v7526
        %v7544 = vadd.f32 %v7509, %v7526
        %v7545 = vadd.f32 %v7510, %v7526
        %v7546 = vadd.f32 %v7511, %v7526
        %v7547 = vadd.f32 %v7512, %v7526
        %v7548 = vadd.f32 %v7513, %v7526
        %v7549 = vadd.f32 %v7514, %v7526
        %v7550 = vadd.f32 %v7515, %v7526
        %v7551 = vadd.f32 %v7516, %v7526
        %v7552 = vadd.f32 %v7517, %v7526
        %v7553 = vadd.f32 %v7518, %v7526
        %v7554 = vadd.f32 %v7519, %v7526
        %v7555 = vadd.f32 %v7520, %v7526
        %v7556 = vadd.f32 %v7521, %v7526
        %v7557 = vadd.f32 %v7522, %v7526
        %v7558 = vadd.f32 %v7523, %v7526
        %v7559 = vadd.f32 %v7524, %v7526
        %v7560 = vxor.u32 %v7528, 2147483648
        %v7561 = vxor.u32 %v7529, 2147483648
        %v7562 = vxor.u32 %v7530, 2147483648
        %v7563 = vxor.u32 %v7531, 2147483648
        %v7564 = vxor.u32 %v7532, 2147483648
        %v7565 = vxor.u32 %v7533, 2147483648
        %v7566 = vxor.u32 %v7534, 2147483648
        %v7567 = vxor.u32 %v7535, 2147483648
        %v7568 = vxor.u32 %v7536, 2147483648
        %v7569 = vxor.u32 %v7537, 2147483648
        %v7570 = vxor.u32 %v7538, 2147483648
        %v7571 = vxor.u32 %v7539, 2147483648
        %v7572 = vxor.u32 %v7540, 2147483648
        %v7573 = vxor.u32 %v7541, 2147483648
        %v7574 = vxor.u32 %v7542, 2147483648
        %v7575 = vxor.u32 %v7543, 2147483648
        %v7576 = vxor.u32 %v7544, 2147483648
        %v7577 = vxor.u32 %v7545, 2147483648
        %v7578 = vxor.u32 %v7546, 2147483648
        %v7579 = vxor.u32 %v7547, 2147483648
        %v7580 = vxor.u32 %v7548, 2147483648
        %v7581 = vxor.u32 %v7549, 2147483648
        %v7582 = vxor.u32 %v7550, 2147483648
        %v7583 = vxor.u32 %v7551, 2147483648
        %v7584 = vxor.u32 %v7552, 2147483648
        %v7585 = vxor.u32 %v7553, 2147483648
        %v7586 = vxor.u32 %v7554, 2147483648
        %v7587 = vxor.u32 %v7555, 2147483648
        %v7588 = vxor.u32 %v7556, 2147483648
        %v7589 = vxor.u32 %v7557, 2147483648
        %v7590 = vxor.u32 %v7558, 2147483648
        %v7591 = vxor.u32 %v7559, 2147483648
        %v7592 = vmul.f32 %v7560, 1.442695
        %v7593 = vpow.pop %v7592
        %v7594 = vmul.f32 %v7561, 1.442695
        %v7595 = vpow.pop %v7594
        %v7596 = vmul.f32 %v7562, 1.442695
        %v7597 = vpow.pop %v7596
        %v7598 = vmul.f32 %v7563, 1.442695
        %v7599 = vpow.pop %v7598
        %v7600 = vmul.f32 %v7564, 1.442695
        %v7601 = vpow.pop %v7600
        %v7602 = vmul.f32 %v7565, 1.442695
        %v7603 = vpow.pop %v7602
        %v7604 = vmul.f32 %v7566, 1.442695
        %v7605 = vpow.pop %v7604
        %v7606 = vmul.f32 %v7567, 1.442695
        %v7607 = vpow.pop %v7606
        %v7608 = vmul.f32 %v7568, 1.442695
        %v7609 = vpow.pop %v7608
        %v7610 = vmul.f32 %v7569, 1.442695
        %v7611 = vpow.pop %v7610
        %v7612 = vmul.f32 %v7570, 1.442695
        %v7613 = vpow.pop %v7612
        %v7614 = vmul.f32 %v7571, 1.442695
        %v7615 = vpow.pop %v7614
        %v7616 = vmul.f32 %v7572, 1.442695
        %v7617 = vpow.pop %v7616
        %v7618 = vmul.f32 %v7573, 1.442695
        %v7619 = vpow.pop %v7618
        %v7620 = vmul.f32 %v7574, 1.442695
        %v7621 = vpow.pop %v7620
        %v7622 = vmul.f32 %v7575, 1.442695
        %v7623 = vpow.pop %v7622
        %v7624 = vmul.f32 %v7576, 1.442695
        %v7625 = vpow.pop %v7624
        %v7626 = vmul.f32 %v7577, 1.442695
        %v7627 = vpow.pop %v7626
        %v7628 = vmul.f32 %v7578, 1.442695
        %v7629 = vpow.pop %v7628
        %v7630 = vmul.f32 %v7579, 1.442695
        %v7631 = vpow.pop %v7630
        %v7632 = vmul.f32 %v7580, 1.442695
        %v7633 = vpow.pop %v7632
        %v7634 = vmul.f32 %v7581, 1.442695
        %v7635 = vpow.pop %v7634
        %v7636 = vmul.f32 %v7582, 1.442695
        %v7637 = vpow.pop %v7636
        %v7638 = vmul.f32 %v7583, 1.442695
        %v7639 = vpow.pop %v7638
        %v7640 = vmul.f32 %v7584, 1.442695
        %v7641 = vpow.pop %v7640
        %v7642 = vmul.f32 %v7585, 1.442695
        %v7643 = vpow.pop %v7642
        %v7644 = vmul.f32 %v7586, 1.442695
        %v7645 = vpow.pop %v7644
        %v7646 = vmul.f32 %v7587, 1.442695
        %v7647 = vpow.pop %v7646
        %v7648 = vmul.f32 %v7588, 1.442695
        %v7649 = vpow.pop %v7648
        %v7650 = vmul.f32 %v7589, 1.442695
        %v7651 = vpow.pop %v7650
        %v7652 = vmul.f32 %v7590, 1.442695
        %v7653 = vpow.pop %v7652
        %v7654 = vmul.f32 %v7591, 1.442695
        %v7655 = vpow.pop %v7654
        %v7656 = vadd.f32 %v7593, 1.0
        %v7657 = vadd.f32 %v7595, 1.0
        %v7658 = vadd.f32 %v7597, 1.0
        %v7659 = vadd.f32 %v7599, 1.0
        %v7660 = vadd.f32 %v7601, 1.0
        %v7661 = vadd.f32 %v7603, 1.0
        %v7662 = vadd.f32 %v7605, 1.0
        %v7663 = vadd.f32 %v7607, 1.0
        %v7664 = vadd.f32 %v7609, 1.0
        %v7665 = vadd.f32 %v7611, 1.0
        %v7666 = vadd.f32 %v7613, 1.0
        %v7667 = vadd.f32 %v7615, 1.0
        %v7668 = vadd.f32 %v7617, 1.0
        %v7669 = vadd.f32 %v7619, 1.0
        %v7670 = vadd.f32 %v7621, 1.0
        %v7671 = vadd.f32 %v7623, 1.0
        %v7672 = vadd.f32 %v7625, 1.0
        %v7673 = vadd.f32 %v7627, 1.0
        %v7674 = vadd.f32 %v7629, 1.0
        %v7675 = vadd.f32 %v7631, 1.0
        %v7676 = vadd.f32 %v7633, 1.0
        %v7677 = vadd.f32 %v7635, 1.0
        %v7678 = vadd.f32 %v7637, 1.0
        %v7679 = vadd.f32 %v7639, 1.0
        %v7680 = vadd.f32 %v7641, 1.0
        %v7681 = vadd.f32 %v7643, 1.0
        %v7682 = vadd.f32 %v7645, 1.0
        %v7683 = vadd.f32 %v7647, 1.0
        %v7684 = vadd.f32 %v7649, 1.0
        %v7685 = vadd.f32 %v7651, 1.0
        %v7686 = vadd.f32 %v7653, 1.0
        %v7687 = vadd.f32 %v7655, 1.0
        %v7688 = vrcp.pop %v7656
        %v7689 = vmul.f32 %v7656, %v7688
        %v7690 = vsub.f32 1.0, %v7689
        %v7691 = vmul.f32 %v7688, %v7690
        %v7692 = vadd.f32 %v7688, %v7691
        %vm7693 = vweird.f32 %v7656
        %vm7694 = vweird.f32 %v7688
        %vm7695 = vmor %vm7693, %vm7694
        %v7696 = vsel %vm7695, %v7688, %v7692
        %v7697 = vand.u32 2147483647, %v7656
        %vm7698 = vcmp.eq.f32.partialorder %v7697, 8.507059e+37
        %v7699 = vand.u32 %v7656, 2147483648
        %v7700 = vor.u32 1.1754944e-38, %v7699
        %v7701 = vsel %vm7698, %v7700, %v7696
        %v7702 = vmul.f32 1.0, %v7701
        %v7703 = vrcp.pop %v7657
        %v7704 = vmul.f32 %v7657, %v7703
        %v7705 = vsub.f32 1.0, %v7704
        %v7706 = vmul.f32 %v7703, %v7705
        %v7707 = vadd.f32 %v7703, %v7706
        %vm7708 = vweird.f32 %v7657
        %vm7709 = vweird.f32 %v7703
        %vm7710 = vmor %vm7708, %vm7709
        %v7711 = vsel %vm7710, %v7703, %v7707
        %v7712 = vand.u32 2147483647, %v7657
        %vm7713 = vcmp.eq.f32.partialorder %v7712, 8.507059e+37
        %v7714 = vand.u32 %v7657, 2147483648
        %v7715 = vor.u32 1.1754944e-38, %v7714
        %v7716 = vsel %vm7713, %v7715, %v7711
        %v7717 = vmul.f32 1.0, %v7716
        %v7718 = vrcp.pop %v7658
        %v7719 = vmul.f32 %v7658, %v7718
        %v7720 = vsub.f32 1.0, %v7719
        %v7721 = vmul.f32 %v7718, %v7720
        %v7722 = vadd.f32 %v7718, %v7721
        %vm7723 = vweird.f32 %v7658
        %vm7724 = vweird.f32 %v7718
        %vm7725 = vmor %vm7723, %vm7724
        %v7726 = vsel %vm7725, %v7718, %v7722
        %v7727 = vand.u32 2147483647, %v7658
        %vm7728 = vcmp.eq.f32.partialorder %v7727, 8.507059e+37
        %v7729 = vand.u32 %v7658, 2147483648
        %v7730 = vor.u32 1.1754944e-38, %v7729
        %v7731 = vsel %vm7728, %v7730, %v7726
        %v7732 = vmul.f32 1.0, %v7731
        %v7733 = vrcp.pop %v7659
        %v7734 = vmul.f32 %v7659, %v7733
        %v7735 = vsub.f32 1.0, %v7734
        %v7736 = vmul.f32 %v7733, %v7735
        %v7737 = vadd.f32 %v7733, %v7736
        %vm7738 = vweird.f32 %v7659
        %vm7739 = vweird.f32 %v7733
        %vm7740 = vmor %vm7738, %vm7739
        %v7741 = vsel %vm7740, %v7733, %v7737
        %v7742 = vand.u32 2147483647, %v7659
        %vm7743 = vcmp.eq.f32.partialorder %v7742, 8.507059e+37
        %v7744 = vand.u32 %v7659, 2147483648
        %v7745 = vor.u32 1.1754944e-38, %v7744
        %v7746 = vsel %vm7743, %v7745, %v7741
        %v7747 = vmul.f32 1.0, %v7746
        %v7748 = vrcp.pop %v7660
        %v7749 = vmul.f32 %v7660, %v7748
        %v7750 = vsub.f32 1.0, %v7749
        %v7751 = vmul.f32 %v7748, %v7750
        %v7752 = vadd.f32 %v7748, %v7751
        %vm7753 = vweird.f32 %v7660
        %vm7754 = vweird.f32 %v7748
        %vm7755 = vmor %vm7753, %vm7754
        %v7756 = vsel %vm7755, %v7748, %v7752
        %v7757 = vand.u32 2147483647, %v7660
        %vm7758 = vcmp.eq.f32.partialorder %v7757, 8.507059e+37
        %v7759 = vand.u32 %v7660, 2147483648
        %v7760 = vor.u32 1.1754944e-38, %v7759
        %v7761 = vsel %vm7758, %v7760, %v7756
        %v7762 = vmul.f32 1.0, %v7761
        %v7763 = vrcp.pop %v7661
        %v7764 = vmul.f32 %v7661, %v7763
        %v7765 = vsub.f32 1.0, %v7764
        %v7766 = vmul.f32 %v7763, %v7765
        %v7767 = vadd.f32 %v7763, %v7766
        %vm7768 = vweird.f32 %v7661
        %vm7769 = vweird.f32 %v7763
        %vm7770 = vmor %vm7768, %vm7769
        %v7771 = vsel %vm7770, %v7763, %v7767
        %v7772 = vand.u32 2147483647, %v7661
        %vm7773 = vcmp.eq.f32.partialorder %v7772, 8.507059e+37
        %v7774 = vand.u32 %v7661, 2147483648
        %v7775 = vor.u32 1.1754944e-38, %v7774
        %v7776 = vsel %vm7773, %v7775, %v7771
        %v7777 = vmul.f32 1.0, %v7776
        %v7778 = vrcp.pop %v7662
        %v7779 = vmul.f32 %v7662, %v7778
        %v7780 = vsub.f32 1.0, %v7779
        %v7781 = vmul.f32 %v7778, %v7780
        %v7782 = vadd.f32 %v7778, %v7781
        %vm7783 = vweird.f32 %v7662
        %vm7784 = vweird.f32 %v7778
        %vm7785 = vmor %vm7783, %vm7784
        %v7786 = vsel %vm7785, %v7778, %v7782
        %v7787 = vand.u32 2147483647, %v7662
        %vm7788 = vcmp.eq.f32.partialorder %v7787, 8.507059e+37
        %v7789 = vand.u32 %v7662, 2147483648
        %v7790 = vor.u32 1.1754944e-38, %v7789
        %v7791 = vsel %vm7788, %v7790, %v7786
        %v7792 = vmul.f32 1.0, %v7791
        %v7793 = vrcp.pop %v7663
        %v7794 = vmul.f32 %v7663, %v7793
        %v7795 = vsub.f32 1.0, %v7794
        %v7796 = vmul.f32 %v7793, %v7795
        %v7797 = vadd.f32 %v7793, %v7796
        %vm7798 = vweird.f32 %v7663
        %vm7799 = vweird.f32 %v7793
        %vm7800 = vmor %vm7798, %vm7799
        %v7801 = vsel %vm7800, %v7793, %v7797
        %v7802 = vand.u32 2147483647, %v7663
        %vm7803 = vcmp.eq.f32.partialorder %v7802, 8.507059e+37
        %v7804 = vand.u32 %v7663, 2147483648
        %v7805 = vor.u32 1.1754944e-38, %v7804
        %v7806 = vsel %vm7803, %v7805, %v7801
        %v7807 = vmul.f32 1.0, %v7806
        %v7808 = vrcp.pop %v7664
        %v7809 = vmul.f32 %v7664, %v7808
        %v7810 = vsub.f32 1.0, %v7809
        %v7811 = vmul.f32 %v7808, %v7810
        %v7812 = vadd.f32 %v7808, %v7811
        %vm7813 = vweird.f32 %v7664
        %vm7814 = vweird.f32 %v7808
        %vm7815 = vmor %vm7813, %vm7814
        %v7816 = vsel %vm7815, %v7808, %v7812
        %v7817 = vand.u32 2147483647, %v7664
        %vm7818 = vcmp.eq.f32.partialorder %v7817, 8.507059e+37
        %v7819 = vand.u32 %v7664, 2147483648
        %v7820 = vor.u32 1.1754944e-38, %v7819
        %v7821 = vsel %vm7818, %v7820, %v7816
        %v7822 = vmul.f32 1.0, %v7821
        %v7823 = vrcp.pop %v7665
        %v7824 = vmul.f32 %v7665, %v7823
        %v7825 = vsub.f32 1.0, %v7824
        %v7826 = vmul.f32 %v7823, %v7825
        %v7827 = vadd.f32 %v7823, %v7826
        %vm7828 = vweird.f32 %v7665
        %vm7829 = vweird.f32 %v7823
        %vm7830 = vmor %vm7828, %vm7829
        %v7831 = vsel %vm7830, %v7823, %v7827
        %v7832 = vand.u32 2147483647, %v7665
        %vm7833 = vcmp.eq.f32.partialorder %v7832, 8.507059e+37
        %v7834 = vand.u32 %v7665, 2147483648
        %v7835 = vor.u32 1.1754944e-38, %v7834
        %v7836 = vsel %vm7833, %v7835, %v7831
        %v7837 = vmul.f32 1.0, %v7836
        %v7838 = vrcp.pop %v7666
        %v7839 = vmul.f32 %v7666, %v7838
        %v7840 = vsub.f32 1.0, %v7839
        %v7841 = vmul.f32 %v7838, %v7840
        %v7842 = vadd.f32 %v7838, %v7841
        %vm7843 = vweird.f32 %v7666
        %vm7844 = vweird.f32 %v7838
        %vm7845 = vmor %vm7843, %vm7844
        %v7846 = vsel %vm7845, %v7838, %v7842
        %v7847 = vand.u32 2147483647, %v7666
        %vm7848 = vcmp.eq.f32.partialorder %v7847, 8.507059e+37
        %v7849 = vand.u32 %v7666, 2147483648
        %v7850 = vor.u32 1.1754944e-38, %v7849
        %v7851 = vsel %vm7848, %v7850, %v7846
        %v7852 = vmul.f32 1.0, %v7851
        %v7853 = vrcp.pop %v7667
        %v7854 = vmul.f32 %v7667, %v7853
        %v7855 = vsub.f32 1.0, %v7854
        %v7856 = vmul.f32 %v7853, %v7855
        %v7857 = vadd.f32 %v7853, %v7856
        %vm7858 = vweird.f32 %v7667
        %vm7859 = vweird.f32 %v7853
        %vm7860 = vmor %vm7858, %vm7859
        %v7861 = vsel %vm7860, %v7853, %v7857
        %v7862 = vand.u32 2147483647, %v7667
        %vm7863 = vcmp.eq.f32.partialorder %v7862, 8.507059e+37
        %v7864 = vand.u32 %v7667, 2147483648
        %v7865 = vor.u32 1.1754944e-38, %v7864
        %v7866 = vsel %vm7863, %v7865, %v7861
        %v7867 = vmul.f32 1.0, %v7866
        %v7868 = vrcp.pop %v7668
        %v7869 = vmul.f32 %v7668, %v7868
        %v7870 = vsub.f32 1.0, %v7869
        %v7871 = vmul.f32 %v7868, %v7870
        %v7872 = vadd.f32 %v7868, %v7871
        %vm7873 = vweird.f32 %v7668
        %vm7874 = vweird.f32 %v7868
        %vm7875 = vmor %vm7873, %vm7874
        %v7876 = vsel %vm7875, %v7868, %v7872
        %v7877 = vand.u32 2147483647, %v7668
        %vm7878 = vcmp.eq.f32.partialorder %v7877, 8.507059e+37
        %v7879 = vand.u32 %v7668, 2147483648
        %v7880 = vor.u32 1.1754944e-38, %v7879
        %v7881 = vsel %vm7878, %v7880, %v7876
        %v7882 = vmul.f32 1.0, %v7881
        %v7883 = vrcp.pop %v7669
        %v7884 = vmul.f32 %v7669, %v7883
        %v7885 = vsub.f32 1.0, %v7884
        %v7886 = vmul.f32 %v7883, %v7885
        %v7887 = vadd.f32 %v7883, %v7886
        %vm7888 = vweird.f32 %v7669
        %vm7889 = vweird.f32 %v7883
        %vm7890 = vmor %vm7888, %vm7889
        %v7891 = vsel %vm7890, %v7883, %v7887
        %v7892 = vand.u32 2147483647, %v7669
        %vm7893 = vcmp.eq.f32.partialorder %v7892, 8.507059e+37
        %v7894 = vand.u32 %v7669, 2147483648
        %v7895 = vor.u32 1.1754944e-38, %v7894
        %v7896 = vsel %vm7893, %v7895, %v7891
        %v7897 = vmul.f32 1.0, %v7896
        %v7898 = vrcp.pop %v7670
        %v7899 = vmul.f32 %v7670, %v7898
        %v7900 = vsub.f32 1.0, %v7899
        %v7901 = vmul.f32 %v7898, %v7900
        %v7902 = vadd.f32 %v7898, %v7901
        %vm7903 = vweird.f32 %v7670
        %vm7904 = vweird.f32 %v7898
        %vm7905 = vmor %vm7903, %vm7904
        %v7906 = vsel %vm7905, %v7898, %v7902
        %v7907 = vand.u32 2147483647, %v7670
        %vm7908 = vcmp.eq.f32.partialorder %v7907, 8.507059e+37
        %v7909 = vand.u32 %v7670, 2147483648
        %v7910 = vor.u32 1.1754944e-38, %v7909
        %v7911 = vsel %vm7908, %v7910, %v7906
        %v7912 = vmul.f32 1.0, %v7911
        %v7913 = vrcp.pop %v7671
        %v7914 = vmul.f32 %v7671, %v7913
        %v7915 = vsub.f32 1.0, %v7914
        %v7916 = vmul.f32 %v7913, %v7915
        %v7917 = vadd.f32 %v7913, %v7916
        %vm7918 = vweird.f32 %v7671
        %vm7919 = vweird.f32 %v7913
        %vm7920 = vmor %vm7918, %vm7919
        %v7921 = vsel %vm7920, %v7913, %v7917
        %v7922 = vand.u32 2147483647, %v7671
        %vm7923 = vcmp.eq.f32.partialorder %v7922, 8.507059e+37
        %v7924 = vand.u32 %v7671, 2147483648
        %v7925 = vor.u32 1.1754944e-38, %v7924
        %v7926 = vsel %vm7923, %v7925, %v7921
        %v7927 = vmul.f32 1.0, %v7926
        %v7928 = vrcp.pop %v7672
        %v7929 = vmul.f32 %v7672, %v7928
        %v7930 = vsub.f32 1.0, %v7929
        %v7931 = vmul.f32 %v7928, %v7930
        %v7932 = vadd.f32 %v7928, %v7931
        %vm7933 = vweird.f32 %v7672
        %vm7934 = vweird.f32 %v7928
        %vm7935 = vmor %vm7933, %vm7934
        %v7936 = vsel %vm7935, %v7928, %v7932
        %v7937 = vand.u32 2147483647, %v7672
        %vm7938 = vcmp.eq.f32.partialorder %v7937, 8.507059e+37
        %v7939 = vand.u32 %v7672, 2147483648
        %v7940 = vor.u32 1.1754944e-38, %v7939
        %v7941 = vsel %vm7938, %v7940, %v7936
        %v7942 = vmul.f32 1.0, %v7941
        %v7943 = vrcp.pop %v7673
        %v7944 = vmul.f32 %v7673, %v7943
        %v7945 = vsub.f32 1.0, %v7944
        %v7946 = vmul.f32 %v7943, %v7945
        %v7947 = vadd.f32 %v7943, %v7946
        %vm7948 = vweird.f32 %v7673
        %vm7949 = vweird.f32 %v7943
        %vm7950 = vmor %vm7948, %vm7949
        %v7951 = vsel %vm7950, %v7943, %v7947
        %v7952 = vand.u32 2147483647, %v7673
        %vm7953 = vcmp.eq.f32.partialorder %v7952, 8.507059e+37
        %v7954 = vand.u32 %v7673, 2147483648
        %v7955 = vor.u32 1.1754944e-38, %v7954
        %v7956 = vsel %vm7953, %v7955, %v7951
        %v7957 = vmul.f32 1.0, %v7956
        %v7958 = vrcp.pop %v7674
        %v7959 = vmul.f32 %v7674, %v7958
        %v7960 = vsub.f32 1.0, %v7959
        %v7961 = vmul.f32 %v7958, %v7960
        %v7962 = vadd.f32 %v7958, %v7961
        %vm7963 = vweird.f32 %v7674
        %vm7964 = vweird.f32 %v7958
        %vm7965 = vmor %vm7963, %vm7964
        %v7966 = vsel %vm7965, %v7958, %v7962
        %v7967 = vand.u32 2147483647, %v7674
        %vm7968 = vcmp.eq.f32.partialorder %v7967, 8.507059e+37
        %v7969 = vand.u32 %v7674, 2147483648
        %v7970 = vor.u32 1.1754944e-38, %v7969
        %v7971 = vsel %vm7968, %v7970, %v7966
        %v7972 = vmul.f32 1.0, %v7971
        %v7973 = vrcp.pop %v7675
        %v7974 = vmul.f32 %v7675, %v7973
        %v7975 = vsub.f32 1.0, %v7974
        %v7976 = vmul.f32 %v7973, %v7975
        %v7977 = vadd.f32 %v7973, %v7976
        %vm7978 = vweird.f32 %v7675
        %vm7979 = vweird.f32 %v7973
        %vm7980 = vmor %vm7978, %vm7979
        %v7981 = vsel %vm7980, %v7973, %v7977
        %v7982 = vand.u32 2147483647, %v7675
        %vm7983 = vcmp.eq.f32.partialorder %v7982, 8.507059e+37
        %v7984 = vand.u32 %v7675, 2147483648
        %v7985 = vor.u32 1.1754944e-38, %v7984
        %v7986 = vsel %vm7983, %v7985, %v7981
        %v7987 = vmul.f32 1.0, %v7986
        %v7988 = vrcp.pop %v7676
        %v7989 = vmul.f32 %v7676, %v7988
        %v7990 = vsub.f32 1.0, %v7989
        %v7991 = vmul.f32 %v7988, %v7990
        %v7992 = vadd.f32 %v7988, %v7991
        %vm7993 = vweird.f32 %v7676
        %vm7994 = vweird.f32 %v7988
        %vm7995 = vmor %vm7993, %vm7994
        %v7996 = vsel %vm7995, %v7988, %v7992
        %v7997 = vand.u32 2147483647, %v7676
        %vm7998 = vcmp.eq.f32.partialorder %v7997, 8.507059e+37
        %v7999 = vand.u32 %v7676, 2147483648
        %v8000 = vor.u32 1.1754944e-38, %v7999
        %v8001 = vsel %vm7998, %v8000, %v7996
        %v8002 = vmul.f32 1.0, %v8001
        %v8003 = vrcp.pop %v7677
        %v8004 = vmul.f32 %v7677, %v8003
        %v8005 = vsub.f32 1.0, %v8004
        %v8006 = vmul.f32 %v8003, %v8005
        %v8007 = vadd.f32 %v8003, %v8006
        %vm8008 = vweird.f32 %v7677
        %vm8009 = vweird.f32 %v8003
        %vm8010 = vmor %vm8008, %vm8009
        %v8011 = vsel %vm8010, %v8003, %v8007
        %v8012 = vand.u32 2147483647, %v7677
        %vm8013 = vcmp.eq.f32.partialorder %v8012, 8.507059e+37
        %v8014 = vand.u32 %v7677, 2147483648
        %v8015 = vor.u32 1.1754944e-38, %v8014
        %v8016 = vsel %vm8013, %v8015, %v8011
        %v8017 = vmul.f32 1.0, %v8016
        %v8018 = vrcp.pop %v7678
        %v8019 = vmul.f32 %v7678, %v8018
        %v8020 = vsub.f32 1.0, %v8019
        %v8021 = vmul.f32 %v8018, %v8020
        %v8022 = vadd.f32 %v8018, %v8021
        %vm8023 = vweird.f32 %v7678
        %vm8024 = vweird.f32 %v8018
        %vm8025 = vmor %vm8023, %vm8024
        %v8026 = vsel %vm8025, %v8018, %v8022
        %v8027 = vand.u32 2147483647, %v7678
        %vm8028 = vcmp.eq.f32.partialorder %v8027, 8.507059e+37
        %v8029 = vand.u32 %v7678, 2147483648
        %v8030 = vor.u32 1.1754944e-38, %v8029
        %v8031 = vsel %vm8028, %v8030, %v8026
        %v8032 = vmul.f32 1.0, %v8031
        %v8033 = vrcp.pop %v7679
        %v8034 = vmul.f32 %v7679, %v8033
        %v8035 = vsub.f32 1.0, %v8034
        %v8036 = vmul.f32 %v8033, %v8035
        %v8037 = vadd.f32 %v8033, %v8036
        %vm8038 = vweird.f32 %v7679
        %vm8039 = vweird.f32 %v8033
        %vm8040 = vmor %vm8038, %vm8039
        %v8041 = vsel %vm8040, %v8033, %v8037
        %v8042 = vand.u32 2147483647, %v7679
        %vm8043 = vcmp.eq.f32.partialorder %v8042, 8.507059e+37
        %v8044 = vand.u32 %v7679, 2147483648
        %v8045 = vor.u32 1.1754944e-38, %v8044
        %v8046 = vsel %vm8043, %v8045, %v8041
        %v8047 = vmul.f32 1.0, %v8046
        %v8048 = vrcp.pop %v7680
        %v8049 = vmul.f32 %v7680, %v8048
        %v8050 = vsub.f32 1.0, %v8049
        %v8051 = vmul.f32 %v8048, %v8050
        %v8052 = vadd.f32 %v8048, %v8051
        %vm8053 = vweird.f32 %v7680
        %vm8054 = vweird.f32 %v8048
        %vm8055 = vmor %vm8053, %vm8054
        %v8056 = vsel %vm8055, %v8048, %v8052
        %v8057 = vand.u32 2147483647, %v7680
        %vm8058 = vcmp.eq.f32.partialorder %v8057, 8.507059e+37
        %v8059 = vand.u32 %v7680, 2147483648
        %v8060 = vor.u32 1.1754944e-38, %v8059
        %v8061 = vsel %vm8058, %v8060, %v8056
        %v8062 = vmul.f32 1.0, %v8061
        %v8063 = vrcp.pop %v7681
        %v8064 = vmul.f32 %v7681, %v8063
        %v8065 = vsub.f32 1.0, %v8064
        %v8066 = vmul.f32 %v8063, %v8065
        %v8067 = vadd.f32 %v8063, %v8066
        %vm8068 = vweird.f32 %v7681
        %vm8069 = vweird.f32 %v8063
        %vm8070 = vmor %vm8068, %vm8069
        %v8071 = vsel %vm8070, %v8063, %v8067
        %v8072 = vand.u32 2147483647, %v7681
        %vm8073 = vcmp.eq.f32.partialorder %v8072, 8.507059e+37
        %v8074 = vand.u32 %v7681, 2147483648
        %v8075 = vor.u32 1.1754944e-38, %v8074
        %v8076 = vsel %vm8073, %v8075, %v8071
        %v8077 = vmul.f32 1.0, %v8076
        %v8078 = vrcp.pop %v7682
        %v8079 = vmul.f32 %v7682, %v8078
        %v8080 = vsub.f32 1.0, %v8079
        %v8081 = vmul.f32 %v8078, %v8080
        %v8082 = vadd.f32 %v8078, %v8081
        %vm8083 = vweird.f32 %v7682
        %vm8084 = vweird.f32 %v8078
        %vm8085 = vmor %vm8083, %vm8084
        %v8086 = vsel %vm8085, %v8078, %v8082
        %v8087 = vand.u32 2147483647, %v7682
        %vm8088 = vcmp.eq.f32.partialorder %v8087, 8.507059e+37
        %v8089 = vand.u32 %v7682, 2147483648
        %v8090 = vor.u32 1.1754944e-38, %v8089
        %v8091 = vsel %vm8088, %v8090, %v8086
        %v8092 = vmul.f32 1.0, %v8091
        %v8093 = vrcp.pop %v7683
        %v8094 = vmul.f32 %v7683, %v8093
        %v8095 = vsub.f32 1.0, %v8094
        %v8096 = vmul.f32 %v8093, %v8095
        %v8097 = vadd.f32 %v8093, %v8096
        %vm8098 = vweird.f32 %v7683
        %vm8099 = vweird.f32 %v8093
        %vm8100 = vmor %vm8098, %vm8099
        %v8101 = vsel %vm8100, %v8093, %v8097
        %v8102 = vand.u32 2147483647, %v7683
        %vm8103 = vcmp.eq.f32.partialorder %v8102, 8.507059e+37
        %v8104 = vand.u32 %v7683, 2147483648
        %v8105 = vor.u32 1.1754944e-38, %v8104
        %v8106 = vsel %vm8103, %v8105, %v8101
        %v8107 = vmul.f32 1.0, %v8106
        %v8108 = vrcp.pop %v7684
        %v8109 = vmul.f32 %v7684, %v8108
        %v8110 = vsub.f32 1.0, %v8109
        %v8111 = vmul.f32 %v8108, %v8110
        %v8112 = vadd.f32 %v8108, %v8111
        %vm8113 = vweird.f32 %v7684
        %vm8114 = vweird.f32 %v8108
        %vm8115 = vmor %vm8113, %vm8114
        %v8116 = vsel %vm8115, %v8108, %v8112
        %v8117 = vand.u32 2147483647, %v7684
        %vm8118 = vcmp.eq.f32.partialorder %v8117, 8.507059e+37
        %v8119 = vand.u32 %v7684, 2147483648
        %v8120 = vor.u32 1.1754944e-38, %v8119
        %v8121 = vsel %vm8118, %v8120, %v8116
        %v8122 = vmul.f32 1.0, %v8121
        %v8123 = vrcp.pop %v7685
        %v8124 = vmul.f32 %v7685, %v8123
        %v8125 = vsub.f32 1.0, %v8124
        %v8126 = vmul.f32 %v8123, %v8125
        %v8127 = vadd.f32 %v8123, %v8126
        %vm8128 = vweird.f32 %v7685
        %vm8129 = vweird.f32 %v8123
        %vm8130 = vmor %vm8128, %vm8129
        %v8131 = vsel %vm8130, %v8123, %v8127
        %v8132 = vand.u32 2147483647, %v7685
        %vm8133 = vcmp.eq.f32.partialorder %v8132, 8.507059e+37
        %v8134 = vand.u32 %v7685, 2147483648
        %v8135 = vor.u32 1.1754944e-38, %v8134
        %v8136 = vsel %vm8133, %v8135, %v8131
        %v8137 = vmul.f32 1.0, %v8136
        %v8138 = vrcp.pop %v7686
        %v8139 = vmul.f32 %v7686, %v8138
        %v8140 = vsub.f32 1.0, %v8139
        %v8141 = vmul.f32 %v8138, %v8140
        %v8142 = vadd.f32 %v8138, %v8141
        %vm8143 = vweird.f32 %v7686
        %vm8144 = vweird.f32 %v8138
        %vm8145 = vmor %vm8143, %vm8144
        %v8146 = vsel %vm8145, %v8138, %v8142
        %v8147 = vand.u32 2147483647, %v7686
        %vm8148 = vcmp.eq.f32.partialorder %v8147, 8.507059e+37
        %v8149 = vand.u32 %v7686, 2147483648
        %v8150 = vor.u32 1.1754944e-38, %v8149
        %v8151 = vsel %vm8148, %v8150, %v8146
        %v8152 = vmul.f32 1.0, %v8151
        %v8153 = vrcp.pop %v7687
        %v8154 = vmul.f32 %v7687, %v8153
        %v8155 = vsub.f32 1.0, %v8154
        %v8156 = vmul.f32 %v8153, %v8155
        %v8157 = vadd.f32 %v8153, %v8156
        %vm8158 = vweird.f32 %v7687
        %vm8159 = vweird.f32 %v8153
        %vm8160 = vmor %vm8158, %vm8159
        %v8161 = vsel %vm8160, %v8153, %v8157
        %v8162 = vand.u32 2147483647, %v7687
        %vm8163 = vcmp.eq.f32.partialorder %v8162, 8.507059e+37
        %v8164 = vand.u32 %v7687, 2147483648
        %v8165 = vor.u32 1.1754944e-38, %v8164
        %v8166 = vsel %vm8163, %v8165, %v8161
        %v8167 = vmul.f32 1.0, %v8166
        %v8168 = vmul.f32 %v7528, %v7702
        %v8169 = vmul.f32 %v7529, %v7717
        %v8170 = vmul.f32 %v7530, %v7732
        %v8171 = vmul.f32 %v7531, %v7747
        %v8172 = vmul.f32 %v7532, %v7762
        %v8173 = vmul.f32 %v7533, %v7777
        %v8174 = vmul.f32 %v7534, %v7792
        %v8175 = vmul.f32 %v7535, %v7807
        %v8176 = vmul.f32 %v7536, %v7822
        %v8177 = vmul.f32 %v7537, %v7837
        %v8178 = vmul.f32 %v7538, %v7852
        %v8179 = vmul.f32 %v7539, %v7867
        %v8180 = vmul.f32 %v7540, %v7882
        %v8181 = vmul.f32 %v7541, %v7897
        %v8182 = vmul.f32 %v7542, %v7912
        %v8183 = vmul.f32 %v7543, %v7927
        %v8184 = vmul.f32 %v7544, %v7942
        %v8185 = vmul.f32 %v7545, %v7957
        %v8186 = vmul.f32 %v7546, %v7972
        %v8187 = vmul.f32 %v7547, %v7987
        %v8188 = vmul.f32 %v7548, %v8002
        %v8189 = vmul.f32 %v7549, %v8017
        %v8190 = vmul.f32 %v7550, %v8032
        %v8191 = vmul.f32 %v7551, %v8047
        %v8192 = vmul.f32 %v7552, %v8062
        %v8193 = vmul.f32 %v7553, %v8077
        %v8194 = vmul.f32 %v7554, %v8092
        %v8195 = vmul.f32 %v7555, %v8107
        %v8196 = vmul.f32 %v7556, %v8122
        %v8197 = vmul.f32 %v7557, %v8137
        %v8198 = vmul.f32 %v7558, %v8152
        %v8199 = vmul.f32 %v7559, %v8167
        %8200 = vst.msk [vmem:[#allocation2] sm:$0xff] %vm1682, 0.0
        %8201 = vst.msk [vmem:[#allocation2 + $0x8] sm:$0xff] %vm1682, 0.0
        %8202 = vst.msk [vmem:[#allocation2 + $0x10] sm:$0x3] %vm1685, 0.0
        %8203 = vst.msk [vmem:[#allocation2 + $0x18] sm:$0xff] %vm1682, 0.0
        %8204 = vst.msk [vmem:[#allocation2 + $0x20] sm:$0xff] %vm1682, 0.0
        %8205 = vst.msk [vmem:[#allocation2 + $0x28] sm:$0x3] %vm1685, 0.0
        %8206 = vst.msk [vmem:[#allocation2 + $0x30] sm:$0xff] %vm1682, 0.0
        %8207 = vst.msk [vmem:[#allocation2 + $0x38] sm:$0xff] %vm1682, 0.0
        %8208 = vst.msk [vmem:[#allocation2 + $0x40] sm:$0x3] %vm1685, 0.0
        %8209 = vst.msk [vmem:[#allocation2 + $0x48] sm:$0xff] %vm1682, 0.0
        %8210 = vst.msk [vmem:[#allocation2 + $0x50] sm:$0xff] %vm1682, 0.0
        %8211 = vst.msk [vmem:[#allocation2 + $0x58] sm:$0x3] %vm1685, 0.0
        %8212 = vst.msk [vmem:[#allocation2 + $0x60] sm:$0xff] %vm1682, 0.0
        %8213 = vst.msk [vmem:[#allocation2 + $0x68] sm:$0xff] %vm1682, 0.0
        %8214 = vst.msk [vmem:[#allocation2 + $0x70] sm:$0x3] %vm1685, 0.0
        %8215 = vst.msk [vmem:[#allocation2 + $0x78] sm:$0xff] %vm1682, 0.0
        %8216 = vst.msk [vmem:[#allocation2 + $0x80] sm:$0xff] %vm1682, 0.0
        %8217 = vst.msk [vmem:[#allocation2 + $0x88] sm:$0x3] %vm1685, 0.0
        %8218 = vst.msk [vmem:[#allocation2 + $0x90] sm:$0xff] %vm1682, 0.0
        %8219 = vst.msk [vmem:[#allocation2 + $0x98] sm:$0xff] %vm1682, 0.0
        %8220 = vst.msk [vmem:[#allocation2 + $0xa0] sm:$0x3] %vm1685, 0.0
        %8221 = vst.msk [vmem:[#allocation2 + $0xa8] sm:$0xff] %vm1682, 0.0
        %8222 = vst.msk [vmem:[#allocation2 + $0xb0] sm:$0xff] %vm1682, 0.0
        %8223 = vst.msk [vmem:[#allocation2 + $0xb8] sm:$0x3] %vm1685, 0.0
        %8224 = vst.msk [vmem:[#allocation2 + $0xc0] sm:$0xff] %vm1682, 0.0
        %8225 = vst.msk [vmem:[#allocation2 + $0xc8] sm:$0xff] %vm1682, 0.0
        %8226 = vst.msk [vmem:[#allocation2 + $0xd0] sm:$0x3] %vm1685, 0.0
        %8227 = vst.msk [vmem:[#allocation2 + $0xd8] sm:$0xff] %vm1682, 0.0
        %8228 = vst.msk [vmem:[#allocation2 + $0xe0] sm:$0xff] %vm1682, 0.0
        %8229 = vst.msk [vmem:[#allocation2 + $0xe8] sm:$0x3] %vm1685, 0.0
        %8230 = vst.msk [vmem:[#allocation2 + $0xf0] sm:$0xff] %vm1682, 0.0
        %8231 = vst.msk [vmem:[#allocation2 + $0xf8] sm:$0xff] %vm1682, 0.0
        %8232 = vst.msk [vmem:[#allocation2 + $0x100] sm:$0x3] %vm1685, 0.0
        %8233 = vst.msk [vmem:[#allocation2 + $0x108] sm:$0xff] %vm1682, 0.0
        %8234 = vst.msk [vmem:[#allocation2 + $0x110] sm:$0xff] %vm1682, 0.0
        %8235 = vst.msk [vmem:[#allocation2 + $0x118] sm:$0x3] %vm1685, 0.0
        %8236 = vst.msk [vmem:[#allocation2 + $0x120] sm:$0xff] %vm1682, 0.0
        %8237 = vst.msk [vmem:[#allocation2 + $0x128] sm:$0xff] %vm1682, 0.0
        %8238 = vst.msk [vmem:[#allocation2 + $0x130] sm:$0x3] %vm1685, 0.0
        %8239 = vst.msk [vmem:[#allocation2 + $0x138] sm:$0xff] %vm1682, 0.0
        %8240 = vst.msk [vmem:[#allocation2 + $0x140] sm:$0xff] %vm1682, 0.0
        %8241 = vst.msk [vmem:[#allocation2 + $0x148] sm:$0x3] %vm1685, 0.0
        %8242 = vst.msk [vmem:[#allocation2 + $0x150] sm:$0xff] %vm1682, 0.0
        %8243 = vst.msk [vmem:[#allocation2 + $0x158] sm:$0xff] %vm1682, 0.0
        %8244 = vst.msk [vmem:[#allocation2 + $0x160] sm:$0x3] %vm1685, 0.0
        %8245 = vst.msk [vmem:[#allocation2 + $0x168] sm:$0xff] %vm1682, 0.0
        %8246 = vst.msk [vmem:[#allocation2 + $0x170] sm:$0xff] %vm1682, 0.0
        %8247 = vst.msk [vmem:[#allocation2 + $0x178] sm:$0x3] %vm1685, 0.0
        %8248 = vst.msk [vmem:[#allocation2 + $0x180] sm:$0xff] %vm1682, 0.0
        %8249 = vst.msk [vmem:[#allocation2 + $0x188] sm:$0xff] %vm1682, 0.0
        %8250 = vst.msk [vmem:[#allocation2 + $0x190] sm:$0x3] %vm1685, 0.0
        %8251 = vst.msk [vmem:[#allocation2 + $0x198] sm:$0xff] %vm1682, 0.0
        %8252 = vst.msk [vmem:[#allocation2 + $0x1a0] sm:$0xff] %vm1682, 0.0
        %8253 = vst.msk [vmem:[#allocation2 + $0x1a8] sm:$0x3] %vm1685, 0.0
        %8254 = vst.msk [vmem:[%s1738 + $0x1] sm:$0xff] %vm1682, %v8168
        %8255 = vst.msk [vmem:[%s1738 + $0x9] sm:$0xff] %vm1682, %v8169
        %8256 = vst.msk [vmem:[%s1738 + $0x19] sm:$0xff] %vm1682, %v8170
        %8257 = vst.msk [vmem:[%s1738 + $0x21] sm:$0xff] %vm1682, %v8171
        %8258 = vst.msk [vmem:[%s1738 + $0x31] sm:$0xff] %vm1682, %v8172
        %8259 = vst.msk [vmem:[%s1738 + $0x39] sm:$0xff] %vm1682, %v8173
        %8260 = vst.msk [vmem:[%s1738 + $0x49] sm:$0xff] %vm1682, %v8174
        %8261 = vst.msk [vmem:[%s1738 + $0x51] sm:$0xff] %vm1682, %v8175
        %8262 = vst.msk [vmem:[%s1738 + $0x61] sm:$0xff] %vm1682, %v8176
        %8263 = vst.msk [vmem:[%s1738 + $0x69] sm:$0xff] %vm1682, %v8177
        %8264 = vst.msk [vmem:[%s1738 + $0x79] sm:$0xff] %vm1682, %v8178
        %8265 = vst.msk [vmem:[%s1738 + $0x81] sm:$0xff] %vm1682, %v8179
        %8266 = vst.msk [vmem:[%s1738 + $0x91] sm:$0xff] %vm1682, %v8180
        %8267 = vst.msk [vmem:[%s1738 + $0x99] sm:$0xff] %vm1682, %v8181
        %8268 = vst.msk [vmem:[%s1738 + $0xa9] sm:$0xff] %vm1682, %v8182
        %8269 = vst.msk [vmem:[%s1738 + $0xb1] sm:$0xff] %vm1682, %v8183
        %8270 = vst.msk [vmem:[%s1738 + $0xc1] sm:$0xff] %vm1682, %v8184
        %8271 = vst.msk [vmem:[%s1738 + $0xc9] sm:$0xff] %vm1682, %v8185
        %8272 = vst.msk [vmem:[%s1738 + $0xd9] sm:$0xff] %vm1682, %v8186
        %8273 = vst.msk [vmem:[%s1738 + $0xe1] sm:$0xff] %vm1682, %v8187
        %8274 = vst.msk [vmem:[%s1738 + $0xf1] sm:$0xff] %vm1682, %v8188
        %8275 = vst.msk [vmem:[%s1738 + $0xf9] sm:$0xff] %vm1682, %v8189
        %8276 = vst.msk [vmem:[%s1738 + $0x109] sm:$0xff] %vm1682, %v8190
        %8277 = vst.msk [vmem:[%s1738 + $0x111] sm:$0xff] %vm1682, %v8191
        %8278 = vst.msk [vmem:[%s1738 + $0x121] sm:$0xff] %vm1682, %v8192
        %8279 = vst.msk [vmem:[%s1738 + $0x129] sm:$0xff] %vm1682, %v8193
        %8280 = vst.msk [vmem:[%s1738 + $0x139] sm:$0xff] %vm1682, %v8194
        %8281 = vst.msk [vmem:[%s1738 + $0x141] sm:$0xff] %vm1682, %v8195
        %8282 = vst.msk [vmem:[%s1738 + $0x151] sm:$0xff] %vm1682, %v8196
        %8283 = vst.msk [vmem:[%s1738 + $0x159] sm:$0xff] %vm1682, %v8197
        %8284 = vst.msk [vmem:[%s1738 + $0x169] sm:$0xff] %vm1682, %v8198
        %8285 = vst.msk [vmem:[%s1738 + $0x171] sm:$0xff] %vm1682, %v8199
        %v8286 = vld [vmem:[#allocation2] sm:$0xff]
        %v8287 = vld [vmem:[#allocation2 + $0x8] sm:$0xff]
        %v8288 = vld [vmem:[#allocation2 + $0x18] sm:$0xff]
        %v8289 = vld [vmem:[#allocation2 + $0x20] sm:$0xff]
        %v8290 = vld [vmem:[#allocation2 + $0x30] sm:$0xff]
        %v8291 = vld [vmem:[#allocation2 + $0x38] sm:$0xff]
        %v8292 = vld [vmem:[#allocation2 + $0x48] sm:$0xff]
        %v8293 = vld [vmem:[#allocation2 + $0x50] sm:$0xff]
        %v8294 = vld [vmem:[#allocation2 + $0x60] sm:$0xff]
        %v8295 = vld [vmem:[#allocation2 + $0x68] sm:$0xff]
        %v8296 = vld [vmem:[#allocation2 + $0x78] sm:$0xff]
        %v8297 = vld [vmem:[#allocation2 + $0x80] sm:$0xff]
        %v8298 = vld [vmem:[#allocation2 + $0x90] sm:$0xff]
        %v8299 = vld [vmem:[#allocation2 + $0x98] sm:$0xff]
        %v8300 = vld [vmem:[#allocation2 + $0xa8] sm:$0xff]
        %v8301 = vld [vmem:[#allocation2 + $0xb0] sm:$0xff]
        %v8302 = vld [vmem:[#allocation2 + $0xc0] sm:$0xff]
        %v8303 = vld [vmem:[#allocation2 + $0xc8] sm:$0xff]
        %v8304 = vld [vmem:[#allocation2 + $0xd8] sm:$0xff]
        %v8305 = vld [vmem:[#allocation2 + $0xe0] sm:$0xff]
        %v8306 = vld [vmem:[#allocation2 + $0xf0] sm:$0xff]
        %v8307 = vld [vmem:[#allocation2 + $0xf8] sm:$0xff]
        %v8308 = vld [vmem:[#allocation2 + $0x108] sm:$0xff]
        %v8309 = vld [vmem:[#allocation2 + $0x110] sm:$0xff]
        %v8310 = vld [vmem:[#allocation2 + $0x120] sm:$0xff]
        %v8311 = vld [vmem:[#allocation2 + $0x128] sm:$0xff]
        %v8312 = vld [vmem:[#allocation2 + $0x138] sm:$0xff]
        %v8313 = vld [vmem:[#allocation2 + $0x140] sm:$0xff]
        %v8314 = vld [vmem:[#allocation2 + $0x150] sm:$0xff]
        %v8315 = vld [vmem:[#allocation2 + $0x158] sm:$0xff]
        %v8316 = vld [vmem:[#allocation2 + $0x168] sm:$0xff]
        %v8317 = vld [vmem:[#allocation2 + $0x170] sm:$0xff]
        %8318 = vst.msk [vmem:[#allocation3] sm:$0xff] %vm1682, %v8286
        %8319 = vst.msk [vmem:[#allocation3 + $0x8] sm:$0xff] %vm1682, %v8287
        %8320 = vst.msk [vmem:[#allocation3 + $0x10] sm:$0xff] %vm1682, %v8288
        %8321 = vst.msk [vmem:[#allocation3 + $0x18] sm:$0xff] %vm1682, %v8289
        %8322 = vst.msk [vmem:[#allocation3 + $0x20] sm:$0xff] %vm1682, %v8290
        %8323 = vst.msk [vmem:[#allocation3 + $0x28] sm:$0xff] %vm1682, %v8291
        %8324 = vst.msk [vmem:[#allocation3 + $0x30] sm:$0xff] %vm1682, %v8292
        %8325 = vst.msk [vmem:[#allocation3 + $0x38] sm:$0xff] %vm1682, %v8293
        %8326 = vst.msk [vmem:[#allocation3 + $0x40] sm:$0xff] %vm1682, %v8294
        %8327 = vst.msk [vmem:[#allocation3 + $0x48] sm:$0xff] %vm1682, %v8295
        %8328 = vst.msk [vmem:[#allocation3 + $0x50] sm:$0xff] %vm1682, %v8296
        %8329 = vst.msk [vmem:[#allocation3 + $0x58] sm:$0xff] %vm1682, %v8297
        %8330 = vst.msk [vmem:[#allocation3 + $0x60] sm:$0xff] %vm1682, %v8298
        %8331 = vst.msk [vmem:[#allocation3 + $0x68] sm:$0xff] %vm1682, %v8299
        %8332 = vst.msk [vmem:[#allocation3 + $0x70] sm:$0xff] %vm1682, %v8300
        %8333 = vst.msk [vmem:[#allocation3 + $0x78] sm:$0xff] %vm1682, %v8301
        %8334 = vst.msk [vmem:[#allocation3 + $0x80] sm:$0xff] %vm1682, %v8302
        %8335 = vst.msk [vmem:[#allocation3 + $0x88] sm:$0xff] %vm1682, %v8303
        %8336 = vst.msk [vmem:[#allocation3 + $0x90] sm:$0xff] %vm1682, %v8304
        %8337 = vst.msk [vmem:[#allocation3 + $0x98] sm:$0xff] %vm1682, %v8305
        %8338 = vst.msk [vmem:[#allocation3 + $0xa0] sm:$0xff] %vm1682, %v8306
        %8339 = vst.msk [vmem:[#allocation3 + $0xa8] sm:$0xff] %vm1682, %v8307
        %8340 = vst.msk [vmem:[#allocation3 + $0xb0] sm:$0xff] %vm1682, %v8308
        %8341 = vst.msk [vmem:[#allocation3 + $0xb8] sm:$0xff] %vm1682, %v8309
        %8342 = vst.msk [vmem:[#allocation3 + $0xc0] sm:$0xff] %vm1682, %v8310
        %8343 = vst.msk [vmem:[#allocation3 + $0xc8] sm:$0xff] %vm1682, %v8311
        %8344 = vst.msk [vmem:[#allocation3 + $0xd0] sm:$0xff] %vm1682, %v8312
        %8345 = vst.msk [vmem:[#allocation3 + $0xd8] sm:$0xff] %vm1682, %v8313
        %8346 = vst.msk [vmem:[#allocation3 + $0xe0] sm:$0xff] %vm1682, %v8314
        %8347 = vst.msk [vmem:[#allocation3 + $0xe8] sm:$0xff] %vm1682, %v8315
        %8348 = vst.msk [vmem:[#allocation3 + $0xf0] sm:$0xff] %vm1682, %v8316
        %8349 = vst.msk [vmem:[#allocation3 + $0xf8] sm:$0xff] %vm1682, %v8317
        %v8350 = vld [vmem:[#allocation2 + $0x1] sm:$0xff]
        %v8351 = vld [vmem:[#allocation2 + $0x9] sm:$0xff]
        %v8352 = vld [vmem:[#allocation2 + $0x19] sm:$0xff]
        %v8353 = vld [vmem:[#allocation2 + $0x21] sm:$0xff]
        %v8354 = vld [vmem:[#allocation2 + $0x31] sm:$0xff]
        %v8355 = vld [vmem:[#allocation2 + $0x39] sm:$0xff]
        %v8356 = vld [vmem:[#allocation2 + $0x49] sm:$0xff]
        %v8357 = vld [vmem:[#allocation2 + $0x51] sm:$0xff]
        %v8358 = vld [vmem:[#allocation2 + $0x61] sm:$0xff]
        %v8359 = vld [vmem:[#allocation2 + $0x69] sm:$0xff]
        %v8360 = vld [vmem:[#allocation2 + $0x79] sm:$0xff]
        %v8361 = vld [vmem:[#allocation2 + $0x81] sm:$0xff]
        %v8362 = vld [vmem:[#allocation2 + $0x91] sm:$0xff]
        %v8363 = vld [vmem:[#allocation2 + $0x99] sm:$0xff]
        %v8364 = vld [vmem:[#allocation2 + $0xa9] sm:$0xff]
        %v8365 = vld [vmem:[#allocation2 + $0xb1] sm:$0xff]
        %v8366 = vld [vmem:[#allocation2 + $0xc1] sm:$0xff]
        %v8367 = vld [vmem:[#allocation2 + $0xc9] sm:$0xff]
        %v8368 = vld [vmem:[#allocation2 + $0xd9] sm:$0xff]
        %v8369 = vld [vmem:[#allocation2 + $0xe1] sm:$0xff]
        %v8370 = vld [vmem:[#allocation2 + $0xf1] sm:$0xff]
        %v8371 = vld [vmem:[#allocation2 + $0xf9] sm:$0xff]
        %v8372 = vld [vmem:[#allocation2 + $0x109] sm:$0xff]
        %v8373 = vld [vmem:[#allocation2 + $0x111] sm:$0xff]
        %v8374 = vld [vmem:[#allocation2 + $0x121] sm:$0xff]
        %v8375 = vld [vmem:[#allocation2 + $0x129] sm:$0xff]
        %v8376 = vld [vmem:[#allocation2 + $0x139] sm:$0xff]
        %v8377 = vld [vmem:[#allocation2 + $0x141] sm:$0xff]
        %v8378 = vld [vmem:[#allocation2 + $0x151] sm:$0xff]
        %v8379 = vld [vmem:[#allocation2 + $0x159] sm:$0xff]
        %v8380 = vld [vmem:[#allocation2 + $0x169] sm:$0xff]
        %v8381 = vld [vmem:[#allocation2 + $0x171] sm:$0xff]
        %8414 = vrot.lane.b32.xlu0 %v8350, 8
        %v8415 = vpop.permute.xlu0 %8414
        %8416 = vrot.lane.b32.xlu0 %v8351, 8
        %v8417 = vpop.permute.xlu0 %8416
        %8418 = vrot.lane.b32.xlu0 %v8352, 8
        %v8419 = vpop.permute.xlu0 %8418
        %8420 = vrot.lane.b32.xlu0 %v8353, 8
        %v8421 = vpop.permute.xlu0 %8420
        %8422 = vrot.lane.b32.xlu0 %v8354, 8
        %v8423 = vpop.permute.xlu0 %8422
        %8424 = vrot.lane.b32.xlu0 %v8355, 8
        %v8425 = vpop.permute.xlu0 %8424
        %8426 = vrot.lane.b32.xlu0 %v8356, 8
        %v8427 = vpop.permute.xlu0 %8426
        %8428 = vrot.lane.b32.xlu0 %v8357, 8
        %v8429 = vpop.permute.xlu0 %8428
        %8430 = vrot.lane.b32.xlu0 %v8358, 8
        %v8431 = vpop.permute.xlu0 %8430
        %8432 = vrot.lane.b32.xlu0 %v8359, 8
        %v8433 = vpop.permute.xlu0 %8432
        %8434 = vrot.lane.b32.xlu0 %v8360, 8
        %v8435 = vpop.permute.xlu0 %8434
        %8436 = vrot.lane.b32.xlu0 %v8361, 8
        %v8437 = vpop.permute.xlu0 %8436
        %8438 = vrot.lane.b32.xlu0 %v8362, 8
        %v8439 = vpop.permute.xlu0 %8438
        %8440 = vrot.lane.b32.xlu0 %v8363, 8
        %v8441 = vpop.permute.xlu0 %8440
        %8442 = vrot.lane.b32.xlu0 %v8364, 8
        %v8443 = vpop.permute.xlu0 %8442
        %8444 = vrot.lane.b32.xlu0 %v8365, 8
        %v8445 = vpop.permute.xlu0 %8444
        %8446 = vrot.lane.b32.xlu0 %v8366, 8
        %v8447 = vpop.permute.xlu0 %8446
        %8448 = vrot.lane.b32.xlu0 %v8367, 8
        %v8449 = vpop.permute.xlu0 %8448
        %8450 = vrot.lane.b32.xlu0 %v8368, 8
        %v8451 = vpop.permute.xlu0 %8450
        %8452 = vrot.lane.b32.xlu0 %v8369, 8
        %v8453 = vpop.permute.xlu0 %8452
        %8454 = vrot.lane.b32.xlu0 %v8370, 8
        %v8455 = vpop.permute.xlu0 %8454
        %8456 = vrot.lane.b32.xlu0 %v8371, 8
        %v8457 = vpop.permute.xlu0 %8456
        %8458 = vrot.lane.b32.xlu0 %v8372, 8
        %v8459 = vpop.permute.xlu0 %8458
        %8460 = vrot.lane.b32.xlu0 %v8373, 8
        %v8461 = vpop.permute.xlu0 %8460
        %8462 = vrot.lane.b32.xlu0 %v8374, 8
        %v8463 = vpop.permute.xlu0 %8462
        %8464 = vrot.lane.b32.xlu0 %v8375, 8
        %v8465 = vpop.permute.xlu0 %8464
        %8466 = vrot.lane.b32.xlu0 %v8376, 8
        %v8467 = vpop.permute.xlu0 %8466
        %8468 = vrot.lane.b32.xlu0 %v8377, 8
        %v8469 = vpop.permute.xlu0 %8468
        %8470 = vrot.lane.b32.xlu0 %v8378, 8
        %v8471 = vpop.permute.xlu0 %8470
        %8472 = vrot.lane.b32.xlu0 %v8379, 8
        %v8473 = vpop.permute.xlu0 %8472
        %8474 = vrot.lane.b32.xlu0 %v8380, 8
        %v8475 = vpop.permute.xlu0 %8474
        %8476 = vrot.lane.b32.xlu0 %v8381, 8
        %v8477 = vpop.permute.xlu0 %8476
        %vm8510 = vcmask 130112
        %8511 = vst.msk [vmem:[#allocation3] sm:$0xff] %vm8510, %v8415
        %8512 = vst.msk [vmem:[#allocation3 + $0x8] sm:$0xff] %vm8510, %v8417
        %8513 = vst.msk [vmem:[#allocation3 + $0x10] sm:$0xff] %vm8510, %v8419
        %8514 = vst.msk [vmem:[#allocation3 + $0x18] sm:$0xff] %vm8510, %v8421
        %8515 = vst.msk [vmem:[#allocation3 + $0x20] sm:$0xff] %vm8510, %v8423
        %8516 = vst.msk [vmem:[#allocation3 + $0x28] sm:$0xff] %vm8510, %v8425
        %8517 = vst.msk [vmem:[#allocation3 + $0x30] sm:$0xff] %vm8510, %v8427
        %8518 = vst.msk [vmem:[#allocation3 + $0x38] sm:$0xff] %vm8510, %v8429
        %8519 = vst.msk [vmem:[#allocation3 + $0x40] sm:$0xff] %vm8510, %v8431
        %8520 = vst.msk [vmem:[#allocation3 + $0x48] sm:$0xff] %vm8510, %v8433
        %8521 = vst.msk [vmem:[#allocation3 + $0x50] sm:$0xff] %vm8510, %v8435
        %8522 = vst.msk [vmem:[#allocation3 + $0x58] sm:$0xff] %vm8510, %v8437
        %8523 = vst.msk [vmem:[#allocation3 + $0x60] sm:$0xff] %vm8510, %v8439
        %8524 = vst.msk [vmem:[#allocation3 + $0x68] sm:$0xff] %vm8510, %v8441
        %8525 = vst.msk [vmem:[#allocation3 + $0x70] sm:$0xff] %vm8510, %v8443
        %8526 = vst.msk [vmem:[#allocation3 + $0x78] sm:$0xff] %vm8510, %v8445
        %8527 = vst.msk [vmem:[#allocation3 + $0x80] sm:$0xff] %vm8510, %v8447
        %8528 = vst.msk [vmem:[#allocation3 + $0x88] sm:$0xff] %vm8510, %v8449
        %8529 = vst.msk [vmem:[#allocation3 + $0x90] sm:$0xff] %vm8510, %v8451
        %8530 = vst.msk [vmem:[#allocation3 + $0x98] sm:$0xff] %vm8510, %v8453
        %8531 = vst.msk [vmem:[#allocation3 + $0xa0] sm:$0xff] %vm8510, %v8455
        %8532 = vst.msk [vmem:[#allocation3 + $0xa8] sm:$0xff] %vm8510, %v8457
        %8533 = vst.msk [vmem:[#allocation3 + $0xb0] sm:$0xff] %vm8510, %v8459
        %8534 = vst.msk [vmem:[#allocation3 + $0xb8] sm:$0xff] %vm8510, %v8461
        %8535 = vst.msk [vmem:[#allocation3 + $0xc0] sm:$0xff] %vm8510, %v8463
        %8536 = vst.msk [vmem:[#allocation3 + $0xc8] sm:$0xff] %vm8510, %v8465
        %8537 = vst.msk [vmem:[#allocation3 + $0xd0] sm:$0xff] %vm8510, %v8467
        %8538 = vst.msk [vmem:[#allocation3 + $0xd8] sm:$0xff] %vm8510, %v8469
        %8539 = vst.msk [vmem:[#allocation3 + $0xe0] sm:$0xff] %vm8510, %v8471
        %8540 = vst.msk [vmem:[#allocation3 + $0xe8] sm:$0xff] %vm8510, %v8473
        %8541 = vst.msk [vmem:[#allocation3 + $0xf0] sm:$0xff] %vm8510, %v8475
        %8542 = vst.msk [vmem:[#allocation3 + $0xf8] sm:$0xff] %vm8510, %v8477
        %v8543 = vld [vmem:[#allocation2 + $0x2] sm:$0xff]
        %v8544 = vld [vmem:[#allocation2 + $0xa] sm:$0xff]
        %v8545 = vld [vmem:[#allocation2 + $0x1a] sm:$0xff]
        %v8546 = vld [vmem:[#allocation2 + $0x22] sm:$0xff]
        %v8547 = vld [vmem:[#allocation2 + $0x32] sm:$0xff]
        %v8548 = vld [vmem:[#allocation2 + $0x3a] sm:$0xff]
        %v8549 = vld [vmem:[#allocation2 + $0x4a] sm:$0xff]
        %v8550 = vld [vmem:[#allocation2 + $0x52] sm:$0xff]
        %v8551 = vld [vmem:[#allocation2 + $0x62] sm:$0xff]
        %v8552 = vld [vmem:[#allocation2 + $0x6a] sm:$0xff]
        %v8553 = vld [vmem:[#allocation2 + $0x7a] sm:$0xff]
        %v8554 = vld [vmem:[#allocation2 + $0x82] sm:$0xff]
        %v8555 = vld [vmem:[#allocation2 + $0x92] sm:$0xff]
        %v8556 = vld [vmem:[#allocation2 + $0x9a] sm:$0xff]
        %v8557 = vld [vmem:[#allocation2 + $0xaa] sm:$0xff]
        %v8558 = vld [vmem:[#allocation2 + $0xb2] sm:$0xff]
        %v8559 = vld [vmem:[#allocation2 + $0xc2] sm:$0xff]
        %v8560 = vld [vmem:[#allocation2 + $0xca] sm:$0xff]
        %v8561 = vld [vmem:[#allocation2 + $0xda] sm:$0xff]
        %v8562 = vld [vmem:[#allocation2 + $0xe2] sm:$0xff]
        %v8563 = vld [vmem:[#allocation2 + $0xf2] sm:$0xff]
        %v8564 = vld [vmem:[#allocation2 + $0xfa] sm:$0xff]
        %v8565 = vld [vmem:[#allocation2 + $0x10a] sm:$0xff]
        %v8566 = vld [vmem:[#allocation2 + $0x112] sm:$0xff]
        %v8567 = vld [vmem:[#allocation2 + $0x122] sm:$0xff]
        %v8568 = vld [vmem:[#allocation2 + $0x12a] sm:$0xff]
        %v8569 = vld [vmem:[#allocation2 + $0x13a] sm:$0xff]
        %v8570 = vld [vmem:[#allocation2 + $0x142] sm:$0xff]
        %v8571 = vld [vmem:[#allocation2 + $0x152] sm:$0xff]
        %v8572 = vld [vmem:[#allocation2 + $0x15a] sm:$0xff]
        %v8573 = vld [vmem:[#allocation2 + $0x16a] sm:$0xff]
        %v8574 = vld [vmem:[#allocation2 + $0x172] sm:$0xff]
        %8607 = vrot.lane.b32.xlu0 %v8543, 16
        %v8608 = vpop.permute.xlu0 %8607
        %8609 = vrot.lane.b32.xlu0 %v8544, 16
        %v8610 = vpop.permute.xlu0 %8609
        %8611 = vrot.lane.b32.xlu0 %v8545, 16
        %v8612 = vpop.permute.xlu0 %8611
        %8613 = vrot.lane.b32.xlu0 %v8546, 16
        %v8614 = vpop.permute.xlu0 %8613
        %8615 = vrot.lane.b32.xlu0 %v8547, 16
        %v8616 = vpop.permute.xlu0 %8615
        %8617 = vrot.lane.b32.xlu0 %v8548, 16
        %v8618 = vpop.permute.xlu0 %8617
        %8619 = vrot.lane.b32.xlu0 %v8549, 16
        %v8620 = vpop.permute.xlu0 %8619
        %8621 = vrot.lane.b32.xlu0 %v8550, 16
        %v8622 = vpop.permute.xlu0 %8621
        %8623 = vrot.lane.b32.xlu0 %v8551, 16
        %v8624 = vpop.permute.xlu0 %8623
        %8625 = vrot.lane.b32.xlu0 %v8552, 16
        %v8626 = vpop.permute.xlu0 %8625
        %8627 = vrot.lane.b32.xlu0 %v8553, 16
        %v8628 = vpop.permute.xlu0 %8627
        %8629 = vrot.lane.b32.xlu0 %v8554, 16
        %v8630 = vpop.permute.xlu0 %8629
        %8631 = vrot.lane.b32.xlu0 %v8555, 16
        %v8632 = vpop.permute.xlu0 %8631
        %8633 = vrot.lane.b32.xlu0 %v8556, 16
        %v8634 = vpop.permute.xlu0 %8633
        %8635 = vrot.lane.b32.xlu0 %v8557, 16
        %v8636 = vpop.permute.xlu0 %8635
        %8637 = vrot.lane.b32.xlu0 %v8558, 16
        %v8638 = vpop.permute.xlu0 %8637
        %8639 = vrot.lane.b32.xlu0 %v8559, 16
        %v8640 = vpop.permute.xlu0 %8639
        %8641 = vrot.lane.b32.xlu0 %v8560, 16
        %v8642 = vpop.permute.xlu0 %8641
        %8643 = vrot.lane.b32.xlu0 %v8561, 16
        %v8644 = vpop.permute.xlu0 %8643
        %8645 = vrot.lane.b32.xlu0 %v8562, 16
        %v8646 = vpop.permute.xlu0 %8645
        %8647 = vrot.lane.b32.xlu0 %v8563, 16
        %v8648 = vpop.permute.xlu0 %8647
        %8649 = vrot.lane.b32.xlu0 %v8564, 16
        %v8650 = vpop.permute.xlu0 %8649
        %8651 = vrot.lane.b32.xlu0 %v8565, 16
        %v8652 = vpop.permute.xlu0 %8651
        %8653 = vrot.lane.b32.xlu0 %v8566, 16
        %v8654 = vpop.permute.xlu0 %8653
        %8655 = vrot.lane.b32.xlu0 %v8567, 16
        %v8656 = vpop.permute.xlu0 %8655
        %8657 = vrot.lane.b32.xlu0 %v8568, 16
        %v8658 = vpop.permute.xlu0 %8657
        %8659 = vrot.lane.b32.xlu0 %v8569, 16
        %v8660 = vpop.permute.xlu0 %8659
        %8661 = vrot.lane.b32.xlu0 %v8570, 16
        %v8662 = vpop.permute.xlu0 %8661
        %8663 = vrot.lane.b32.xlu0 %v8571, 16
        %v8664 = vpop.permute.xlu0 %8663
        %8665 = vrot.lane.b32.xlu0 %v8572, 16
        %v8666 = vpop.permute.xlu0 %8665
        %8667 = vrot.lane.b32.xlu0 %v8573, 16
        %v8668 = vpop.permute.xlu0 %8667
        %8669 = vrot.lane.b32.xlu0 %v8574, 16
        %v8670 = vpop.permute.xlu0 %8669
        %vm8703 = vcmask 195712
        %8704 = vst.msk [vmem:[#allocation3] sm:$0xff] %vm8703, %v8608
        %8705 = vst.msk [vmem:[#allocation3 + $0x8] sm:$0xff] %vm8703, %v8610
        %8706 = vst.msk [vmem:[#allocation3 + $0x10] sm:$0xff] %vm8703, %v8612
        %8707 = vst.msk [vmem:[#allocation3 + $0x18] sm:$0xff] %vm8703, %v8614
        %8708 = vst.msk [vmem:[#allocation3 + $0x20] sm:$0xff] %vm8703, %v8616
        %8709 = vst.msk [vmem:[#allocation3 + $0x28] sm:$0xff] %vm8703, %v8618
        %8710 = vst.msk [vmem:[#allocation3 + $0x30] sm:$0xff] %vm8703, %v8620
        %8711 = vst.msk [vmem:[#allocation3 + $0x38] sm:$0xff] %vm8703, %v8622
        %8712 = vst.msk [vmem:[#allocation3 + $0x40] sm:$0xff] %vm8703, %v8624
        %8713 = vst.msk [vmem:[#allocation3 + $0x48] sm:$0xff] %vm8703, %v8626
        %8714 = vst.msk [vmem:[#allocation3 + $0x50] sm:$0xff] %vm8703, %v8628
        %8715 = vst.msk [vmem:[#allocation3 + $0x58] sm:$0xff] %vm8703, %v8630
        %8716 = vst.msk [vmem:[#allocation3 + $0x60] sm:$0xff] %vm8703, %v8632
        %8717 = vst.msk [vmem:[#allocation3 + $0x68] sm:$0xff] %vm8703, %v8634
        %8718 = vst.msk [vmem:[#allocation3 + $0x70] sm:$0xff] %vm8703, %v8636
        %8719 = vst.msk [vmem:[#allocation3 + $0x78] sm:$0xff] %vm8703, %v8638
        %8720 = vst.msk [vmem:[#allocation3 + $0x80] sm:$0xff] %vm8703, %v8640
        %8721 = vst.msk [vmem:[#allocation3 + $0x88] sm:$0xff] %vm8703, %v8642
        %8722 = vst.msk [vmem:[#allocation3 + $0x90] sm:$0xff] %vm8703, %v8644
        %8723 = vst.msk [vmem:[#allocation3 + $0x98] sm:$0xff] %vm8703, %v8646
        %8724 = vst.msk [vmem:[#allocation3 + $0xa0] sm:$0xff] %vm8703, %v8648
        %8725 = vst.msk [vmem:[#allocation3 + $0xa8] sm:$0xff] %vm8703, %v8650
        %8726 = vst.msk [vmem:[#allocation3 + $0xb0] sm:$0xff] %vm8703, %v8652
        %8727 = vst.msk [vmem:[#allocation3 + $0xb8] sm:$0xff] %vm8703, %v8654
        %8728 = vst.msk [vmem:[#allocation3 + $0xc0] sm:$0xff] %vm8703, %v8656
        %8729 = vst.msk [vmem:[#allocation3 + $0xc8] sm:$0xff] %vm8703, %v8658
        %8730 = vst.msk [vmem:[#allocation3 + $0xd0] sm:$0xff] %vm8703, %v8660
        %8731 = vst.msk [vmem:[#allocation3 + $0xd8] sm:$0xff] %vm8703, %v8662
        %8732 = vst.msk [vmem:[#allocation3 + $0xe0] sm:$0xff] %vm8703, %v8664
        %8733 = vst.msk [vmem:[#allocation3 + $0xe8] sm:$0xff] %vm8703, %v8666
        %8734 = vst.msk [vmem:[#allocation3 + $0xf0] sm:$0xff] %vm8703, %v8668
        %8735 = vst.msk [vmem:[#allocation3 + $0xf8] sm:$0xff] %vm8703, %v8670
        %v8736 = vld [vmem:[%s1738] sm:$0xff]
        %v8737 = vld [vmem:[%s1738 + $0x8] sm:$0xff]
        %v8738 = vld [vmem:[%s1738 + $0x18] sm:$0xff]
        %v8739 = vld [vmem:[%s1738 + $0x20] sm:$0xff]
        %v8740 = vld [vmem:[%s1738 + $0x30] sm:$0xff]
        %v8741 = vld [vmem:[%s1738 + $0x38] sm:$0xff]
        %v8742 = vld [vmem:[%s1738 + $0x48] sm:$0xff]
        %v8743 = vld [vmem:[%s1738 + $0x50] sm:$0xff]
        %v8744 = vld [vmem:[%s1738 + $0x60] sm:$0xff]
        %v8745 = vld [vmem:[%s1738 + $0x68] sm:$0xff]
        %v8746 = vld [vmem:[%s1738 + $0x78] sm:$0xff]
        %v8747 = vld [vmem:[%s1738 + $0x80] sm:$0xff]
        %v8748 = vld [vmem:[%s1738 + $0x90] sm:$0xff]
        %v8749 = vld [vmem:[%s1738 + $0x98] sm:$0xff]
        %v8750 = vld [vmem:[%s1738 + $0xa8] sm:$0xff]
        %v8751 = vld [vmem:[%s1738 + $0xb0] sm:$0xff]
        %v8752 = vld [vmem:[%s1738 + $0xc0] sm:$0xff]
        %v8753 = vld [vmem:[%s1738 + $0xc8] sm:$0xff]
        %v8754 = vld [vmem:[%s1738 + $0xd8] sm:$0xff]
        %v8755 = vld [vmem:[%s1738 + $0xe0] sm:$0xff]
        %v8756 = vld [vmem:[%s1738 + $0xf0] sm:$0xff]
        %v8757 = vld [vmem:[%s1738 + $0xf8] sm:$0xff]
        %v8758 = vld [vmem:[%s1738 + $0x108] sm:$0xff]
        %v8759 = vld [vmem:[%s1738 + $0x110] sm:$0xff]
        %v8760 = vld [vmem:[%s1738 + $0x120] sm:$0xff]
        %v8761 = vld [vmem:[%s1738 + $0x128] sm:$0xff]
        %v8762 = vld [vmem:[%s1738 + $0x138] sm:$0xff]
        %v8763 = vld [vmem:[%s1738 + $0x140] sm:$0xff]
        %v8764 = vld [vmem:[%s1738 + $0x150] sm:$0xff]
        %v8765 = vld [vmem:[%s1738 + $0x158] sm:$0xff]
        %v8766 = vld [vmem:[%s1738 + $0x168] sm:$0xff]
        %v8767 = vld [vmem:[%s1738 + $0x170] sm:$0xff]
        %8800 = vrot.lane.b32.xlu0 %v8736, 24
        %v8801 = vpop.permute.xlu0 %8800
        %8802 = vrot.lane.b32.xlu0 %v8737, 24
        %v8803 = vpop.permute.xlu0 %8802
        %8804 = vrot.lane.b32.xlu0 %v8738, 24
        %v8805 = vpop.permute.xlu0 %8804
        %8806 = vrot.lane.b32.xlu0 %v8739, 24
        %v8807 = vpop.permute.xlu0 %8806
        %8808 = vrot.lane.b32.xlu0 %v8740, 24
        %v8809 = vpop.permute.xlu0 %8808
        %8810 = vrot.lane.b32.xlu0 %v8741, 24
        %v8811 = vpop.permute.xlu0 %8810
        %8812 = vrot.lane.b32.xlu0 %v8742, 24
        %v8813 = vpop.permute.xlu0 %8812
        %8814 = vrot.lane.b32.xlu0 %v8743, 24
        %v8815 = vpop.permute.xlu0 %8814
        %8816 = vrot.lane.b32.xlu0 %v8744, 24
        %v8817 = vpop.permute.xlu0 %8816
        %8818 = vrot.lane.b32.xlu0 %v8745, 24
        %v8819 = vpop.permute.xlu0 %8818
        %8820 = vrot.lane.b32.xlu0 %v8746, 24
        %v8821 = vpop.permute.xlu0 %8820
        %8822 = vrot.lane.b32.xlu0 %v8747, 24
        %v8823 = vpop.permute.xlu0 %8822
        %8824 = vrot.lane.b32.xlu0 %v8748, 24
        %v8825 = vpop.permute.xlu0 %8824
        %8826 = vrot.lane.b32.xlu0 %v8749, 24
        %v8827 = vpop.permute.xlu0 %8826
        %8828 = vrot.lane.b32.xlu0 %v8750, 24
        %v8829 = vpop.permute.xlu0 %8828
        %8830 = vrot.lane.b32.xlu0 %v8751, 24
        %v8831 = vpop.permute.xlu0 %8830
        %8832 = vrot.lane.b32.xlu0 %v8752, 24
        %v8833 = vpop.permute.xlu0 %8832
        %8834 = vrot.lane.b32.xlu0 %v8753, 24
        %v8835 = vpop.permute.xlu0 %8834
        %8836 = vrot.lane.b32.xlu0 %v8754, 24
        %v8837 = vpop.permute.xlu0 %8836
        %8838 = vrot.lane.b32.xlu0 %v8755, 24
        %v8839 = vpop.permute.xlu0 %8838
        %8840 = vrot.lane.b32.xlu0 %v8756, 24
        %v8841 = vpop.permute.xlu0 %8840
        %8842 = vrot.lane.b32.xlu0 %v8757, 24
        %v8843 = vpop.permute.xlu0 %8842
        %8844 = vrot.lane.b32.xlu0 %v8758, 24
        %v8845 = vpop.permute.xlu0 %8844
        %8846 = vrot.lane.b32.xlu0 %v8759, 24
        %v8847 = vpop.permute.xlu0 %8846
        %8848 = vrot.lane.b32.xlu0 %v8760, 24
        %v8849 = vpop.permute.xlu0 %8848
        %8850 = vrot.lane.b32.xlu0 %v8761, 24
        %v8851 = vpop.permute.xlu0 %8850
        %8852 = vrot.lane.b32.xlu0 %v8762, 24
        %v8853 = vpop.permute.xlu0 %8852
        %8854 = vrot.lane.b32.xlu0 %v8763, 24
        %v8855 = vpop.permute.xlu0 %8854
        %8856 = vrot.lane.b32.xlu0 %v8764, 24
        %v8857 = vpop.permute.xlu0 %8856
        %8858 = vrot.lane.b32.xlu0 %v8765, 24
        %v8859 = vpop.permute.xlu0 %8858
        %8860 = vrot.lane.b32.xlu0 %v8766, 24
        %v8861 = vpop.permute.xlu0 %8860
        %8862 = vrot.lane.b32.xlu0 %v8767, 24
        %v8863 = vpop.permute.xlu0 %8862
        %vm8896 = vcmask 261312
        %8897 = vst.msk [vmem:[#allocation3] sm:$0xff] %vm8896, %v8801
        %8898 = vst.msk [vmem:[#allocation3 + $0x8] sm:$0xff] %vm8896, %v8803
        %8899 = vst.msk [vmem:[#allocation3 + $0x10] sm:$0xff] %vm8896, %v8805
        %8900 = vst.msk [vmem:[#allocation3 + $0x18] sm:$0xff] %vm8896, %v8807
        %8901 = vst.msk [vmem:[#allocation3 + $0x20] sm:$0xff] %vm8896, %v8809
        %8902 = vst.msk [vmem:[#allocation3 + $0x28] sm:$0xff] %vm8896, %v8811
        %8903 = vst.msk [vmem:[#allocation3 + $0x30] sm:$0xff] %vm8896, %v8813
        %8904 = vst.msk [vmem:[#allocation3 + $0x38] sm:$0xff] %vm8896, %v8815
        %8905 = vst.msk [vmem:[#allocation3 + $0x40] sm:$0xff] %vm8896, %v8817
        %8906 = vst.msk [vmem:[#allocation3 + $0x48] sm:$0xff] %vm8896, %v8819
        %8907 = vst.msk [vmem:[#allocation3 + $0x50] sm:$0xff] %vm8896, %v8821
        %8908 = vst.msk [vmem:[#allocation3 + $0x58] sm:$0xff] %vm8896, %v8823
        %8909 = vst.msk [vmem:[#allocation3 + $0x60] sm:$0xff] %vm8896, %v8825
        %8910 = vst.msk [vmem:[#allocation3 + $0x68] sm:$0xff] %vm8896, %v8827
        %8911 = vst.msk [vmem:[#allocation3 + $0x70] sm:$0xff] %vm8896, %v8829
        %8912 = vst.msk [vmem:[#allocation3 + $0x78] sm:$0xff] %vm8896, %v8831
        %8913 = vst.msk [vmem:[#allocation3 + $0x80] sm:$0xff] %vm8896, %v8833
        %8914 = vst.msk [vmem:[#allocation3 + $0x88] sm:$0xff] %vm8896, %v8835
        %8915 = vst.msk [vmem:[#allocation3 + $0x90] sm:$0xff] %vm8896, %v8837
        %8916 = vst.msk [vmem:[#allocation3 + $0x98] sm:$0xff] %vm8896, %v8839
        %8917 = vst.msk [vmem:[#allocation3 + $0xa0] sm:$0xff] %vm8896, %v8841
        %8918 = vst.msk [vmem:[#allocation3 + $0xa8] sm:$0xff] %vm8896, %v8843
        %8919 = vst.msk [vmem:[#allocation3 + $0xb0] sm:$0xff] %vm8896, %v8845
        %8920 = vst.msk [vmem:[#allocation3 + $0xb8] sm:$0xff] %vm8896, %v8847
        %8921 = vst.msk [vmem:[#allocation3 + $0xc0] sm:$0xff] %vm8896, %v8849
        %8922 = vst.msk [vmem:[#allocation3 + $0xc8] sm:$0xff] %vm8896, %v8851
        %8923 = vst.msk [vmem:[#allocation3 + $0xd0] sm:$0xff] %vm8896, %v8853
        %8924 = vst.msk [vmem:[#allocation3 + $0xd8] sm:$0xff] %vm8896, %v8855
        %8925 = vst.msk [vmem:[#allocation3 + $0xe0] sm:$0xff] %vm8896, %v8857
        %8926 = vst.msk [vmem:[#allocation3 + $0xe8] sm:$0xff] %vm8896, %v8859
        %8927 = vst.msk [vmem:[#allocation3 + $0xf0] sm:$0xff] %vm8896, %v8861
        %8928 = vst.msk [vmem:[#allocation3 + $0xf8] sm:$0xff] %vm8896, %v8863
        %v8929 = vld [vmem:[%s1738 + $0x1] sm:$0xff]
        %v8930 = vld [vmem:[%s1738 + $0x9] sm:$0xff]
        %v8931 = vld [vmem:[%s1738 + $0x19] sm:$0xff]
        %v8932 = vld [vmem:[%s1738 + $0x21] sm:$0xff]
        %v8933 = vld [vmem:[%s1738 + $0x31] sm:$0xff]
        %v8934 = vld [vmem:[%s1738 + $0x39] sm:$0xff]
        %v8935 = vld [vmem:[%s1738 + $0x49] sm:$0xff]
        %v8936 = vld [vmem:[%s1738 + $0x51] sm:$0xff]
        %v8937 = vld [vmem:[%s1738 + $0x61] sm:$0xff]
        %v8938 = vld [vmem:[%s1738 + $0x69] sm:$0xff]
        %v8939 = vld [vmem:[%s1738 + $0x79] sm:$0xff]
        %v8940 = vld [vmem:[%s1738 + $0x81] sm:$0xff]
        %v8941 = vld [vmem:[%s1738 + $0x91] sm:$0xff]
        %v8942 = vld [vmem:[%s1738 + $0x99] sm:$0xff]
        %v8943 = vld [vmem:[%s1738 + $0xa9] sm:$0xff]
        %v8944 = vld [vmem:[%s1738 + $0xb1] sm:$0xff]
        %v8945 = vld [vmem:[%s1738 + $0xc1] sm:$0xff]
        %v8946 = vld [vmem:[%s1738 + $0xc9] sm:$0xff]
        %v8947 = vld [vmem:[%s1738 + $0xd9] sm:$0xff]
        %v8948 = vld [vmem:[%s1738 + $0xe1] sm:$0xff]
        %v8949 = vld [vmem:[%s1738 + $0xf1] sm:$0xff]
        %v8950 = vld [vmem:[%s1738 + $0xf9] sm:$0xff]
        %v8951 = vld [vmem:[%s1738 + $0x109] sm:$0xff]
        %v8952 = vld [vmem:[%s1738 + $0x111] sm:$0xff]
        %v8953 = vld [vmem:[%s1738 + $0x121] sm:$0xff]
        %v8954 = vld [vmem:[%s1738 + $0x129] sm:$0xff]
        %v8955 = vld [vmem:[%s1738 + $0x139] sm:$0xff]
        %v8956 = vld [vmem:[%s1738 + $0x141] sm:$0xff]
        %v8957 = vld [vmem:[%s1738 + $0x151] sm:$0xff]
        %v8958 = vld [vmem:[%s1738 + $0x159] sm:$0xff]
        %v8959 = vld [vmem:[%s1738 + $0x169] sm:$0xff]
        %v8960 = vld [vmem:[%s1738 + $0x171] sm:$0xff]
        %8993 = vrot.lane.b32.xlu0 %v8929, 32
        %v8994 = vpop.permute.xlu0 %8993
        %8995 = vrot.lane.b32.xlu0 %v8930, 32
        %v8996 = vpop.permute.xlu0 %8995
        %8997 = vrot.lane.b32.xlu0 %v8931, 32
        %v8998 = vpop.permute.xlu0 %8997
        %8999 = vrot.lane.b32.xlu0 %v8932, 32
        %v9000 = vpop.permute.xlu0 %8999
        %9001 = vrot.lane.b32.xlu0 %v8933, 32
        %v9002 = vpop.permute.xlu0 %9001
        %9003 = vrot.lane.b32.xlu0 %v8934, 32
        %v9004 = vpop.permute.xlu0 %9003
        %9005 = vrot.lane.b32.xlu0 %v8935, 32
        %v9006 = vpop.permute.xlu0 %9005
        %9007 = vrot.lane.b32.xlu0 %v8936, 32
        %v9008 = vpop.permute.xlu0 %9007
        %9009 = vrot.lane.b32.xlu0 %v8937, 32
        %v9010 = vpop.permute.xlu0 %9009
        %9011 = vrot.lane.b32.xlu0 %v8938, 32
        %v9012 = vpop.permute.xlu0 %9011
        %9013 = vrot.lane.b32.xlu0 %v8939, 32
        %v9014 = vpop.permute.xlu0 %9013
        %9015 = vrot.lane.b32.xlu0 %v8940, 32
        %v9016 = vpop.permute.xlu0 %9015
        %9017 = vrot.lane.b32.xlu0 %v8941, 32
        %v9018 = vpop.permute.xlu0 %9017
        %9019 = vrot.lane.b32.xlu0 %v8942, 32
        %v9020 = vpop.permute.xlu0 %9019
        %9021 = vrot.lane.b32.xlu0 %v8943, 32
        %v9022 = vpop.permute.xlu0 %9021
        %9023 = vrot.lane.b32.xlu0 %v8944, 32
        %v9024 = vpop.permute.xlu0 %9023
        %9025 = vrot.lane.b32.xlu0 %v8945, 32
        %v9026 = vpop.permute.xlu0 %9025
        %9027 = vrot.lane.b32.xlu0 %v8946, 32
        %v9028 = vpop.permute.xlu0 %9027
        %9029 = vrot.lane.b32.xlu0 %v8947, 32
        %v9030 = vpop.permute.xlu0 %9029
        %9031 = vrot.lane.b32.xlu0 %v8948, 32
        %v9032 = vpop.permute.xlu0 %9031
        %9033 = vrot.lane.b32.xlu0 %v8949, 32
        %v9034 = vpop.permute.xlu0 %9033
        %9035 = vrot.lane.b32.xlu0 %v8950, 32
        %v9036 = vpop.permute.xlu0 %9035
        %9037 = vrot.lane.b32.xlu0 %v8951, 32
        %v9038 = vpop.permute.xlu0 %9037
        %9039 = vrot.lane.b32.xlu0 %v8952, 32
        %v9040 = vpop.permute.xlu0 %9039
        %9041 = vrot.lane.b32.xlu0 %v8953, 32
        %v9042 = vpop.permute.xlu0 %9041
        %9043 = vrot.lane.b32.xlu0 %v8954, 32
        %v9044 = vpop.permute.xlu0 %9043
        %9045 = vrot.lane.b32.xlu0 %v8955, 32
        %v9046 = vpop.permute.xlu0 %9045
        %9047 = vrot.lane.b32.xlu0 %v8956, 32
        %v9048 = vpop.permute.xlu0 %9047
        %9049 = vrot.lane.b32.xlu0 %v8957, 32
        %v9050 = vpop.permute.xlu0 %9049
        %9051 = vrot.lane.b32.xlu0 %v8958, 32
        %v9052 = vpop.permute.xlu0 %9051
        %9053 = vrot.lane.b32.xlu0 %v8959, 32
        %v9054 = vpop.permute.xlu0 %9053
        %9055 = vrot.lane.b32.xlu0 %v8960, 32
        %v9056 = vpop.permute.xlu0 %9055
        %vm9089 = vcmask 326912
        %9090 = vst.msk [vmem:[#allocation3] sm:$0xff] %vm9089, %v8994
        %9091 = vst.msk [vmem:[#allocation3 + $0x8] sm:$0xff] %vm9089, %v8996
        %9092 = vst.msk [vmem:[#allocation3 + $0x10] sm:$0xff] %vm9089, %v8998
        %9093 = vst.msk [vmem:[#allocation3 + $0x18] sm:$0xff] %vm9089, %v9000
        %9094 = vst.msk [vmem:[#allocation3 + $0x20] sm:$0xff] %vm9089, %v9002
        %9095 = vst.msk [vmem:[#allocation3 + $0x28] sm:$0xff] %vm9089, %v9004
        %9096 = vst.msk [vmem:[#allocation3 + $0x30] sm:$0xff] %vm9089, %v9006
        %9097 = vst.msk [vmem:[#allocation3 + $0x38] sm:$0xff] %vm9089, %v9008
        %9098 = vst.msk [vmem:[#allocation3 + $0x40] sm:$0xff] %vm9089, %v9010
        %9099 = vst.msk [vmem:[#allocation3 + $0x48] sm:$0xff] %vm9089, %v9012
        %9100 = vst.msk [vmem:[#allocation3 + $0x50] sm:$0xff] %vm9089, %v9014
        %9101 = vst.msk [vmem:[#allocation3 + $0x58] sm:$0xff] %vm9089, %v9016
        %9102 = vst.msk [vmem:[#allocation3 + $0x60] sm:$0xff] %vm9089, %v9018
        %9103 = vst.msk [vmem:[#allocation3 + $0x68] sm:$0xff] %vm9089, %v9020
        %9104 = vst.msk [vmem:[#allocation3 + $0x70] sm:$0xff] %vm9089, %v9022
        %9105 = vst.msk [vmem:[#allocation3 + $0x78] sm:$0xff] %vm9089, %v9024
        %9106 = vst.msk [vmem:[#allocation3 + $0x80] sm:$0xff] %vm9089, %v9026
        %9107 = vst.msk [vmem:[#allocation3 + $0x88] sm:$0xff] %vm9089, %v9028
        %9108 = vst.msk [vmem:[#allocation3 + $0x90] sm:$0xff] %vm9089, %v9030
        %9109 = vst.msk [vmem:[#allocation3 + $0x98] sm:$0xff] %vm9089, %v9032
        %9110 = vst.msk [vmem:[#allocation3 + $0xa0] sm:$0xff] %vm9089, %v9034
        %9111 = vst.msk [vmem:[#allocation3 + $0xa8] sm:$0xff] %vm9089, %v9036
        %9112 = vst.msk [vmem:[#allocation3 + $0xb0] sm:$0xff] %vm9089, %v9038
        %9113 = vst.msk [vmem:[#allocation3 + $0xb8] sm:$0xff] %vm9089, %v9040
        %9114 = vst.msk [vmem:[#allocation3 + $0xc0] sm:$0xff] %vm9089, %v9042
        %9115 = vst.msk [vmem:[#allocation3 + $0xc8] sm:$0xff] %vm9089, %v9044
        %9116 = vst.msk [vmem:[#allocation3 + $0xd0] sm:$0xff] %vm9089, %v9046
        %9117 = vst.msk [vmem:[#allocation3 + $0xd8] sm:$0xff] %vm9089, %v9048
        %9118 = vst.msk [vmem:[#allocation3 + $0xe0] sm:$0xff] %vm9089, %v9050
        %9119 = vst.msk [vmem:[#allocation3 + $0xe8] sm:$0xff] %vm9089, %v9052
        %9120 = vst.msk [vmem:[#allocation3 + $0xf0] sm:$0xff] %vm9089, %v9054
        %9121 = vst.msk [vmem:[#allocation3 + $0xf8] sm:$0xff] %vm9089, %v9056
        %v9122 = vld [vmem:[%s1738 + $0x2] sm:$0xff]
        %v9123 = vld [vmem:[%s1738 + $0xa] sm:$0xff]
        %v9124 = vld [vmem:[%s1738 + $0x1a] sm:$0xff]
        %v9125 = vld [vmem:[%s1738 + $0x22] sm:$0xff]
        %v9126 = vld [vmem:[%s1738 + $0x32] sm:$0xff]
        %v9127 = vld [vmem:[%s1738 + $0x3a] sm:$0xff]
        %v9128 = vld [vmem:[%s1738 + $0x4a] sm:$0xff]
        %v9129 = vld [vmem:[%s1738 + $0x52] sm:$0xff]
        %v9130 = vld [vmem:[%s1738 + $0x62] sm:$0xff]
        %v9131 = vld [vmem:[%s1738 + $0x6a] sm:$0xff]
        %v9132 = vld [vmem:[%s1738 + $0x7a] sm:$0xff]
        %v9133 = vld [vmem:[%s1738 + $0x82] sm:$0xff]
        %v9134 = vld [vmem:[%s1738 + $0x92] sm:$0xff]
        %v9135 = vld [vmem:[%s1738 + $0x9a] sm:$0xff]
        %v9136 = vld [vmem:[%s1738 + $0xaa] sm:$0xff]
        %v9137 = vld [vmem:[%s1738 + $0xb2] sm:$0xff]
        %v9138 = vld [vmem:[%s1738 + $0xc2] sm:$0xff]
        %v9139 = vld [vmem:[%s1738 + $0xca] sm:$0xff]
        %v9140 = vld [vmem:[%s1738 + $0xda] sm:$0xff]
        %v9141 = vld [vmem:[%s1738 + $0xe2] sm:$0xff]
        %v9142 = vld [vmem:[%s1738 + $0xf2] sm:$0xff]
        %v9143 = vld [vmem:[%s1738 + $0xfa] sm:$0xff]
        %v9144 = vld [vmem:[%s1738 + $0x10a] sm:$0xff]
        %v9145 = vld [vmem:[%s1738 + $0x112] sm:$0xff]
        %v9146 = vld [vmem:[%s1738 + $0x122] sm:$0xff]
        %v9147 = vld [vmem:[%s1738 + $0x12a] sm:$0xff]
        %v9148 = vld [vmem:[%s1738 + $0x13a] sm:$0xff]
        %v9149 = vld [vmem:[%s1738 + $0x142] sm:$0xff]
        %v9150 = vld [vmem:[%s1738 + $0x152] sm:$0xff]
        %v9151 = vld [vmem:[%s1738 + $0x15a] sm:$0xff]
        %v9152 = vld [vmem:[%s1738 + $0x16a] sm:$0xff]
        %v9153 = vld [vmem:[%s1738 + $0x172] sm:$0xff]
        %9186 = vrot.lane.b32.xlu0 %v9122, 40
        %v9187 = vpop.permute.xlu0 %9186
        %9188 = vrot.lane.b32.xlu0 %v9123, 40
        %v9189 = vpop.permute.xlu0 %9188
        %9190 = vrot.lane.b32.xlu0 %v9124, 40
        %v9191 = vpop.permute.xlu0 %9190
        %9192 = vrot.lane.b32.xlu0 %v9125, 40
        %v9193 = vpop.permute.xlu0 %9192
        %9194 = vrot.lane.b32.xlu0 %v9126, 40
        %v9195 = vpop.permute.xlu0 %9194
        %9196 = vrot.lane.b32.xlu0 %v9127, 40
        %v9197 = vpop.permute.xlu0 %9196
        %9198 = vrot.lane.b32.xlu0 %v9128, 40
        %v9199 = vpop.permute.xlu0 %9198
        %9200 = vrot.lane.b32.xlu0 %v9129, 40
        %v9201 = vpop.permute.xlu0 %9200
        %9202 = vrot.lane.b32.xlu0 %v9130, 40
        %v9203 = vpop.permute.xlu0 %9202
        %9204 = vrot.lane.b32.xlu0 %v9131, 40
        %v9205 = vpop.permute.xlu0 %9204
        %9206 = vrot.lane.b32.xlu0 %v9132, 40
        %v9207 = vpop.permute.xlu0 %9206
        %9208 = vrot.lane.b32.xlu0 %v9133, 40
        %v9209 = vpop.permute.xlu0 %9208
        %9210 = vrot.lane.b32.xlu0 %v9134, 40
        %v9211 = vpop.permute.xlu0 %9210
        %9212 = vrot.lane.b32.xlu0 %v9135, 40
        %v9213 = vpop.permute.xlu0 %9212
        %9214 = vrot.lane.b32.xlu0 %v9136, 40
        %v9215 = vpop.permute.xlu0 %9214
        %9216 = vrot.lane.b32.xlu0 %v9137, 40
        %v9217 = vpop.permute.xlu0 %9216
        %9218 = vrot.lane.b32.xlu0 %v9138, 40
        %v9219 = vpop.permute.xlu0 %9218
        %9220 = vrot.lane.b32.xlu0 %v9139, 40
        %v9221 = vpop.permute.xlu0 %9220
        %9222 = vrot.lane.b32.xlu0 %v9140, 40
        %v9223 = vpop.permute.xlu0 %9222
        %9224 = vrot.lane.b32.xlu0 %v9141, 40
        %v9225 = vpop.permute.xlu0 %9224
        %9226 = vrot.lane.b32.xlu0 %v9142, 40
        %v9227 = vpop.permute.xlu0 %9226
        %9228 = vrot.lane.b32.xlu0 %v9143, 40
        %v9229 = vpop.permute.xlu0 %9228
        %9230 = vrot.lane.b32.xlu0 %v9144, 40
        %v9231 = vpop.permute.xlu0 %9230
        %9232 = vrot.lane.b32.xlu0 %v9145, 40
        %v9233 = vpop.permute.xlu0 %9232
        %9234 = vrot.lane.b32.xlu0 %v9146, 40
        %v9235 = vpop.permute.xlu0 %9234
        %9236 = vrot.lane.b32.xlu0 %v9147, 40
        %v9237 = vpop.permute.xlu0 %9236
        %9238 = vrot.lane.b32.xlu0 %v9148, 40
        %v9239 = vpop.permute.xlu0 %9238
        %9240 = vrot.lane.b32.xlu0 %v9149, 40
        %v9241 = vpop.permute.xlu0 %9240
        %9242 = vrot.lane.b32.xlu0 %v9150, 40
        %v9243 = vpop.permute.xlu0 %9242
        %9244 = vrot.lane.b32.xlu0 %v9151, 40
        %v9245 = vpop.permute.xlu0 %9244
        %9246 = vrot.lane.b32.xlu0 %v9152, 40
        %v9247 = vpop.permute.xlu0 %9246
        %9248 = vrot.lane.b32.xlu0 %v9153, 40
        %v9249 = vpop.permute.xlu0 %9248
        %vm9282 = vcmask 392512
        %9283 = vst.msk [vmem:[#allocation3] sm:$0xff] %vm9282, %v9187
        %9284 = vst.msk [vmem:[#allocation3 + $0x8] sm:$0xff] %vm9282, %v9189
        %9285 = vst.msk [vmem:[#allocation3 + $0x10] sm:$0xff] %vm9282, %v9191
        %9286 = vst.msk [vmem:[#allocation3 + $0x18] sm:$0xff] %vm9282, %v9193
        %9287 = vst.msk [vmem:[#allocation3 + $0x20] sm:$0xff] %vm9282, %v9195
        %9288 = vst.msk [vmem:[#allocation3 + $0x28] sm:$0xff] %vm9282, %v9197
        %9289 = vst.msk [vmem:[#allocation3 + $0x30] sm:$0xff] %vm9282, %v9199
        %9290 = vst.msk [vmem:[#allocation3 + $0x38] sm:$0xff] %vm9282, %v9201
        %9291 = vst.msk [vmem:[#allocation3 + $0x40] sm:$0xff] %vm9282, %v9203
        %9292 = vst.msk [vmem:[#allocation3 + $0x48] sm:$0xff] %vm9282, %v9205
        %9293 = vst.msk [vmem:[#allocation3 + $0x50] sm:$0xff] %vm9282, %v9207
        %9294 = vst.msk [vmem:[#allocation3 + $0x58] sm:$0xff] %vm9282, %v9209
        %9295 = vst.msk [vmem:[#allocation3 + $0x60] sm:$0xff] %vm9282, %v9211
        %9296 = vst.msk [vmem:[#allocation3 + $0x68] sm:$0xff] %vm9282, %v9213
        %9297 = vst.msk [vmem:[#allocation3 + $0x70] sm:$0xff] %vm9282, %v9215
        %9298 = vst.msk [vmem:[#allocation3 + $0x78] sm:$0xff] %vm9282, %v9217
        %9299 = vst.msk [vmem:[#allocation3 + $0x80] sm:$0xff] %vm9282, %v9219
        %9300 = vst.msk [vmem:[#allocation3 + $0x88] sm:$0xff] %vm9282, %v9221
        %9301 = vst.msk [vmem:[#allocation3 + $0x90] sm:$0xff] %vm9282, %v9223
        %9302 = vst.msk [vmem:[#allocation3 + $0x98] sm:$0xff] %vm9282, %v9225
        %9303 = vst.msk [vmem:[#allocation3 + $0xa0] sm:$0xff] %vm9282, %v9227
        %9304 = vst.msk [vmem:[#allocation3 + $0xa8] sm:$0xff] %vm9282, %v9229
        %9305 = vst.msk [vmem:[#allocation3 + $0xb0] sm:$0xff] %vm9282, %v9231
        %9306 = vst.msk [vmem:[#allocation3 + $0xb8] sm:$0xff] %vm9282, %v9233
        %9307 = vst.msk [vmem:[#allocation3 + $0xc0] sm:$0xff] %vm9282, %v9235
        %9308 = vst.msk [vmem:[#allocation3 + $0xc8] sm:$0xff] %vm9282, %v9237
        %9309 = vst.msk [vmem:[#allocation3 + $0xd0] sm:$0xff] %vm9282, %v9239
        %9310 = vst.msk [vmem:[#allocation3 + $0xd8] sm:$0xff] %vm9282, %v9241
        %9311 = vst.msk [vmem:[#allocation3 + $0xe0] sm:$0xff] %vm9282, %v9243
        %9312 = vst.msk [vmem:[#allocation3 + $0xe8] sm:$0xff] %vm9282, %v9245
        %9313 = vst.msk [vmem:[#allocation3 + $0xf0] sm:$0xff] %vm9282, %v9247
        %9314 = vst.msk [vmem:[#allocation3 + $0xf8] sm:$0xff] %vm9282, %v9249
        %v9315 = vld [vmem:[%s2800] sm:$0xff]
        %v9316 = vld [vmem:[%s2800 + $0x8] sm:$0xff]
        %v9317 = vld [vmem:[%s2800 + $0x18] sm:$0xff]
        %v9318 = vld [vmem:[%s2800 + $0x20] sm:$0xff]
        %v9319 = vld [vmem:[%s2800 + $0x30] sm:$0xff]
        %v9320 = vld [vmem:[%s2800 + $0x38] sm:$0xff]
        %v9321 = vld [vmem:[%s2800 + $0x48] sm:$0xff]
        %v9322 = vld [vmem:[%s2800 + $0x50] sm:$0xff]
        %v9323 = vld [vmem:[%s2800 + $0x60] sm:$0xff]
        %v9324 = vld [vmem:[%s2800 + $0x68] sm:$0xff]
        %v9325 = vld [vmem:[%s2800 + $0x78] sm:$0xff]
        %v9326 = vld [vmem:[%s2800 + $0x80] sm:$0xff]
        %v9327 = vld [vmem:[%s2800 + $0x90] sm:$0xff]
        %v9328 = vld [vmem:[%s2800 + $0x98] sm:$0xff]
        %v9329 = vld [vmem:[%s2800 + $0xa8] sm:$0xff]
        %v9330 = vld [vmem:[%s2800 + $0xb0] sm:$0xff]
        %v9331 = vld [vmem:[%s2800 + $0xc0] sm:$0xff]
        %v9332 = vld [vmem:[%s2800 + $0xc8] sm:$0xff]
        %v9333 = vld [vmem:[%s2800 + $0xd8] sm:$0xff]
        %v9334 = vld [vmem:[%s2800 + $0xe0] sm:$0xff]
        %v9335 = vld [vmem:[%s2800 + $0xf0] sm:$0xff]
        %v9336 = vld [vmem:[%s2800 + $0xf8] sm:$0xff]
        %v9337 = vld [vmem:[%s2800 + $0x108] sm:$0xff]
        %v9338 = vld [vmem:[%s2800 + $0x110] sm:$0xff]
        %v9339 = vld [vmem:[%s2800 + $0x120] sm:$0xff]
        %v9340 = vld [vmem:[%s2800 + $0x128] sm:$0xff]
        %v9341 = vld [vmem:[%s2800 + $0x138] sm:$0xff]
        %v9342 = vld [vmem:[%s2800 + $0x140] sm:$0xff]
        %v9343 = vld [vmem:[%s2800 + $0x150] sm:$0xff]
        %v9344 = vld [vmem:[%s2800 + $0x158] sm:$0xff]
        %v9345 = vld [vmem:[%s2800 + $0x168] sm:$0xff]
        %v9346 = vld [vmem:[%s2800 + $0x170] sm:$0xff]
        %9379 = vrot.lane.b32.xlu0 %v9315, 48
        %v9380 = vpop.permute.xlu0 %9379
        %9381 = vrot.lane.b32.xlu0 %v9316, 48
        %v9382 = vpop.permute.xlu0 %9381
        %9383 = vrot.lane.b32.xlu0 %v9317, 48
        %v9384 = vpop.permute.xlu0 %9383
        %9385 = vrot.lane.b32.xlu0 %v9318, 48
        %v9386 = vpop.permute.xlu0 %9385
        %9387 = vrot.lane.b32.xlu0 %v9319, 48
        %v9388 = vpop.permute.xlu0 %9387
        %9389 = vrot.lane.b32.xlu0 %v9320, 48
        %v9390 = vpop.permute.xlu0 %9389
        %9391 = vrot.lane.b32.xlu0 %v9321, 48
        %v9392 = vpop.permute.xlu0 %9391
        %9393 = vrot.lane.b32.xlu0 %v9322, 48
        %v9394 = vpop.permute.xlu0 %9393
        %9395 = vrot.lane.b32.xlu0 %v9323, 48
        %v9396 = vpop.permute.xlu0 %9395
        %9397 = vrot.lane.b32.xlu0 %v9324, 48
        %v9398 = vpop.permute.xlu0 %9397
        %9399 = vrot.lane.b32.xlu0 %v9325, 48
        %v9400 = vpop.permute.xlu0 %9399
        %9401 = vrot.lane.b32.xlu0 %v9326, 48
        %v9402 = vpop.permute.xlu0 %9401
        %9403 = vrot.lane.b32.xlu0 %v9327, 48
        %v9404 = vpop.permute.xlu0 %9403
        %9405 = vrot.lane.b32.xlu0 %v9328, 48
        %v9406 = vpop.permute.xlu0 %9405
        %9407 = vrot.lane.b32.xlu0 %v9329, 48
        %v9408 = vpop.permute.xlu0 %9407
        %9409 = vrot.lane.b32.xlu0 %v9330, 48
        %v9410 = vpop.permute.xlu0 %9409
        %9411 = vrot.lane.b32.xlu0 %v9331, 48
        %v9412 = vpop.permute.xlu0 %9411
        %9413 = vrot.lane.b32.xlu0 %v9332, 48
        %v9414 = vpop.permute.xlu0 %9413
        %9415 = vrot.lane.b32.xlu0 %v9333, 48
        %v9416 = vpop.permute.xlu0 %9415
        %9417 = vrot.lane.b32.xlu0 %v9334, 48
        %v9418 = vpop.permute.xlu0 %9417
        %9419 = vrot.lane.b32.xlu0 %v9335, 48
        %v9420 = vpop.permute.xlu0 %9419
        %9421 = vrot.lane.b32.xlu0 %v9336, 48
        %v9422 = vpop.permute.xlu0 %9421
        %9423 = vrot.lane.b32.xlu0 %v9337, 48
        %v9424 = vpop.permute.xlu0 %9423
        %9425 = vrot.lane.b32.xlu0 %v9338, 48
        %v9426 = vpop.permute.xlu0 %9425
        %9427 = vrot.lane.b32.xlu0 %v9339, 48
        %v9428 = vpop.permute.xlu0 %9427
        %9429 = vrot.lane.b32.xlu0 %v9340, 48
        %v9430 = vpop.permute.xlu0 %9429
        %9431 = vrot.lane.b32.xlu0 %v9341, 48
        %v9432 = vpop.permute.xlu0 %9431
        %9433 = vrot.lane.b32.xlu0 %v9342, 48
        %v9434 = vpop.permute.xlu0 %9433
        %9435 = vrot.lane.b32.xlu0 %v9343, 48
        %v9436 = vpop.permute.xlu0 %9435
        %9437 = vrot.lane.b32.xlu0 %v9344, 48
        %v9438 = vpop.permute.xlu0 %9437
        %9439 = vrot.lane.b32.xlu0 %v9345, 48
        %v9440 = vpop.permute.xlu0 %9439
        %9441 = vrot.lane.b32.xlu0 %v9346, 48
        %v9442 = vpop.permute.xlu0 %9441
        %vm9475 = vcmask 458112
        %9476 = vst.msk [vmem:[#allocation3] sm:$0xff] %vm9475, %v9380
        %9477 = vst.msk [vmem:[#allocation3 + $0x8] sm:$0xff] %vm9475, %v9382
        %9478 = vst.msk [vmem:[#allocation3 + $0x10] sm:$0xff] %vm9475, %v9384
        %9479 = vst.msk [vmem:[#allocation3 + $0x18] sm:$0xff] %vm9475, %v9386
        %9480 = vst.msk [vmem:[#allocation3 + $0x20] sm:$0xff] %vm9475, %v9388
        %9481 = vst.msk [vmem:[#allocation3 + $0x28] sm:$0xff] %vm9475, %v9390
        %9482 = vst.msk [vmem:[#allocation3 + $0x30] sm:$0xff] %vm9475, %v9392
        %9483 = vst.msk [vmem:[#allocation3 + $0x38] sm:$0xff] %vm9475, %v9394
        %9484 = vst.msk [vmem:[#allocation3 + $0x40] sm:$0xff] %vm9475, %v9396
        %9485 = vst.msk [vmem:[#allocation3 + $0x48] sm:$0xff] %vm9475, %v9398
        %9486 = vst.msk [vmem:[#allocation3 + $0x50] sm:$0xff] %vm9475, %v9400
        %9487 = vst.msk [vmem:[#allocation3 + $0x58] sm:$0xff] %vm9475, %v9402
        %9488 = vst.msk [vmem:[#allocation3 + $0x60] sm:$0xff] %vm9475, %v9404
        %9489 = vst.msk [vmem:[#allocation3 + $0x68] sm:$0xff] %vm9475, %v9406
        %9490 = vst.msk [vmem:[#allocation3 + $0x70] sm:$0xff] %vm9475, %v9408
        %9491 = vst.msk [vmem:[#allocation3 + $0x78] sm:$0xff] %vm9475, %v9410
        %9492 = vst.msk [vmem:[#allocation3 + $0x80] sm:$0xff] %vm9475, %v9412
        %9493 = vst.msk [vmem:[#allocation3 + $0x88] sm:$0xff] %vm9475, %v9414
        %9494 = vst.msk [vmem:[#allocation3 + $0x90] sm:$0xff] %vm9475, %v9416
        %9495 = vst.msk [vmem:[#allocation3 + $0x98] sm:$0xff] %vm9475, %v9418
        %9496 = vst.msk [vmem:[#allocation3 + $0xa0] sm:$0xff] %vm9475, %v9420
        %9497 = vst.msk [vmem:[#allocation3 + $0xa8] sm:$0xff] %vm9475, %v9422
        %9498 = vst.msk [vmem:[#allocation3 + $0xb0] sm:$0xff] %vm9475, %v9424
        %9499 = vst.msk [vmem:[#allocation3 + $0xb8] sm:$0xff] %vm9475, %v9426
        %9500 = vst.msk [vmem:[#allocation3 + $0xc0] sm:$0xff] %vm9475, %v9428
        %9501 = vst.msk [vmem:[#allocation3 + $0xc8] sm:$0xff] %vm9475, %v9430
        %9502 = vst.msk [vmem:[#allocation3 + $0xd0] sm:$0xff] %vm9475, %v9432
        %9503 = vst.msk [vmem:[#allocation3 + $0xd8] sm:$0xff] %vm9475, %v9434
        %9504 = vst.msk [vmem:[#allocation3 + $0xe0] sm:$0xff] %vm9475, %v9436
        %9505 = vst.msk [vmem:[#allocation3 + $0xe8] sm:$0xff] %vm9475, %v9438
        %9506 = vst.msk [vmem:[#allocation3 + $0xf0] sm:$0xff] %vm9475, %v9440
        %9507 = vst.msk [vmem:[#allocation3 + $0xf8] sm:$0xff] %vm9475, %v9442
        %v9508 = vld [vmem:[%s2800 + $0x1] sm:$0xff]
        %v9509 = vld [vmem:[%s2800 + $0x9] sm:$0xff]
        %v9510 = vld [vmem:[%s2800 + $0x19] sm:$0xff]
        %v9511 = vld [vmem:[%s2800 + $0x21] sm:$0xff]
        %v9512 = vld [vmem:[%s2800 + $0x31] sm:$0xff]
        %v9513 = vld [vmem:[%s2800 + $0x39] sm:$0xff]
        %v9514 = vld [vmem:[%s2800 + $0x49] sm:$0xff]
        %v9515 = vld [vmem:[%s2800 + $0x51] sm:$0xff]
        %v9516 = vld [vmem:[%s2800 + $0x61] sm:$0xff]
        %v9517 = vld [vmem:[%s2800 + $0x69] sm:$0xff]
        %v9518 = vld [vmem:[%s2800 + $0x79] sm:$0xff]
        %v9519 = vld [vmem:[%s2800 + $0x81] sm:$0xff]
        %v9520 = vld [vmem:[%s2800 + $0x91] sm:$0xff]
        %v9521 = vld [vmem:[%s2800 + $0x99] sm:$0xff]
        %v9522 = vld [vmem:[%s2800 + $0xa9] sm:$0xff]
        %v9523 = vld [vmem:[%s2800 + $0xb1] sm:$0xff]
        %v9524 = vld [vmem:[%s2800 + $0xc1] sm:$0xff]
        %v9525 = vld [vmem:[%s2800 + $0xc9] sm:$0xff]
        %v9526 = vld [vmem:[%s2800 + $0xd9] sm:$0xff]
        %v9527 = vld [vmem:[%s2800 + $0xe1] sm:$0xff]
        %v9528 = vld [vmem:[%s2800 + $0xf1] sm:$0xff]
        %v9529 = vld [vmem:[%s2800 + $0xf9] sm:$0xff]
        %v9530 = vld [vmem:[%s2800 + $0x109] sm:$0xff]
        %v9531 = vld [vmem:[%s2800 + $0x111] sm:$0xff]
        %v9532 = vld [vmem:[%s2800 + $0x121] sm:$0xff]
        %v9533 = vld [vmem:[%s2800 + $0x129] sm:$0xff]
        %v9534 = vld [vmem:[%s2800 + $0x139] sm:$0xff]
        %v9535 = vld [vmem:[%s2800 + $0x141] sm:$0xff]
        %v9536 = vld [vmem:[%s2800 + $0x151] sm:$0xff]
        %v9537 = vld [vmem:[%s2800 + $0x159] sm:$0xff]
        %v9538 = vld [vmem:[%s2800 + $0x169] sm:$0xff]
        %v9539 = vld [vmem:[%s2800 + $0x171] sm:$0xff]
        %9572 = vrot.lane.b32.xlu0 %v9508, 56
        %v9573 = vpop.permute.xlu0 %9572
        %9574 = vrot.lane.b32.xlu0 %v9509, 56
        %v9575 = vpop.permute.xlu0 %9574
        %9576 = vrot.lane.b32.xlu0 %v9510, 56
        %v9577 = vpop.permute.xlu0 %9576
        %9578 = vrot.lane.b32.xlu0 %v9511, 56
        %v9579 = vpop.permute.xlu0 %9578
        %9580 = vrot.lane.b32.xlu0 %v9512, 56
        %v9581 = vpop.permute.xlu0 %9580
        %9582 = vrot.lane.b32.xlu0 %v9513, 56
        %v9583 = vpop.permute.xlu0 %9582
        %9584 = vrot.lane.b32.xlu0 %v9514, 56
        %v9585 = vpop.permute.xlu0 %9584
        %9586 = vrot.lane.b32.xlu0 %v9515, 56
        %v9587 = vpop.permute.xlu0 %9586
        %9588 = vrot.lane.b32.xlu0 %v9516, 56
        %v9589 = vpop.permute.xlu0 %9588
        %9590 = vrot.lane.b32.xlu0 %v9517, 56
        %v9591 = vpop.permute.xlu0 %9590
        %9592 = vrot.lane.b32.xlu0 %v9518, 56
        %v9593 = vpop.permute.xlu0 %9592
        %9594 = vrot.lane.b32.xlu0 %v9519, 56
        %v9595 = vpop.permute.xlu0 %9594
        %9596 = vrot.lane.b32.xlu0 %v9520, 56
        %v9597 = vpop.permute.xlu0 %9596
        %9598 = vrot.lane.b32.xlu0 %v9521, 56
        %v9599 = vpop.permute.xlu0 %9598
        %9600 = vrot.lane.b32.xlu0 %v9522, 56
        %v9601 = vpop.permute.xlu0 %9600
        %9602 = vrot.lane.b32.xlu0 %v9523, 56
        %v9603 = vpop.permute.xlu0 %9602
        %9604 = vrot.lane.b32.xlu0 %v9524, 56
        %v9605 = vpop.permute.xlu0 %9604
        %9606 = vrot.lane.b32.xlu0 %v9525, 56
        %v9607 = vpop.permute.xlu0 %9606
        %9608 = vrot.lane.b32.xlu0 %v9526, 56
        %v9609 = vpop.permute.xlu0 %9608
        %9610 = vrot.lane.b32.xlu0 %v9527, 56
        %v9611 = vpop.permute.xlu0 %9610
        %9612 = vrot.lane.b32.xlu0 %v9528, 56
        %v9613 = vpop.permute.xlu0 %9612
        %9614 = vrot.lane.b32.xlu0 %v9529, 56
        %v9615 = vpop.permute.xlu0 %9614
        %9616 = vrot.lane.b32.xlu0 %v9530, 56
        %v9617 = vpop.permute.xlu0 %9616
        %9618 = vrot.lane.b32.xlu0 %v9531, 56
        %v9619 = vpop.permute.xlu0 %9618
        %9620 = vrot.lane.b32.xlu0 %v9532, 56
        %v9621 = vpop.permute.xlu0 %9620
        %9622 = vrot.lane.b32.xlu0 %v9533, 56
        %v9623 = vpop.permute.xlu0 %9622
        %9624 = vrot.lane.b32.xlu0 %v9534, 56
        %v9625 = vpop.permute.xlu0 %9624
        %9626 = vrot.lane.b32.xlu0 %v9535, 56
        %v9627 = vpop.permute.xlu0 %9626
        %9628 = vrot.lane.b32.xlu0 %v9536, 56
        %v9629 = vpop.permute.xlu0 %9628
        %9630 = vrot.lane.b32.xlu0 %v9537, 56
        %v9631 = vpop.permute.xlu0 %9630
        %9632 = vrot.lane.b32.xlu0 %v9538, 56
        %v9633 = vpop.permute.xlu0 %9632
        %9634 = vrot.lane.b32.xlu0 %v9539, 56
        %v9635 = vpop.permute.xlu0 %9634
        %vm9668 = vcmask 523712
        %9669 = vst.msk [vmem:[#allocation3] sm:$0xff] %vm9668, %v9573
        %9670 = vst.msk [vmem:[#allocation3 + $0x8] sm:$0xff] %vm9668, %v9575
        %9671 = vst.msk [vmem:[#allocation3 + $0x10] sm:$0xff] %vm9668, %v9577
        %9672 = vst.msk [vmem:[#allocation3 + $0x18] sm:$0xff] %vm9668, %v9579
        %9673 = vst.msk [vmem:[#allocation3 + $0x20] sm:$0xff] %vm9668, %v9581
        %9674 = vst.msk [vmem:[#allocation3 + $0x28] sm:$0xff] %vm9668, %v9583
        %9675 = vst.msk [vmem:[#allocation3 + $0x30] sm:$0xff] %vm9668, %v9585
        %9676 = vst.msk [vmem:[#allocation3 + $0x38] sm:$0xff] %vm9668, %v9587
        %9677 = vst.msk [vmem:[#allocation3 + $0x40] sm:$0xff] %vm9668, %v9589
        %9678 = vst.msk [vmem:[#allocation3 + $0x48] sm:$0xff] %vm9668, %v9591
        %9679 = vst.msk [vmem:[#allocation3 + $0x50] sm:$0xff] %vm9668, %v9593
        %9680 = vst.msk [vmem:[#allocation3 + $0x58] sm:$0xff] %vm9668, %v9595
        %9681 = vst.msk [vmem:[#allocation3 + $0x60] sm:$0xff] %vm9668, %v9597
        %9682 = vst.msk [vmem:[#allocation3 + $0x68] sm:$0xff] %vm9668, %v9599
        %9683 = vst.msk [vmem:[#allocation3 + $0x70] sm:$0xff] %vm9668, %v9601
        %9684 = vst.msk [vmem:[#allocation3 + $0x78] sm:$0xff] %vm9668, %v9603
        %9685 = vst.msk [vmem:[#allocation3 + $0x80] sm:$0xff] %vm9668, %v9605
        %9686 = vst.msk [vmem:[#allocation3 + $0x88] sm:$0xff] %vm9668, %v9607
        %9687 = vst.msk [vmem:[#allocation3 + $0x90] sm:$0xff] %vm9668, %v9609
        %9688 = vst.msk [vmem:[#allocation3 + $0x98] sm:$0xff] %vm9668, %v9611
        %9689 = vst.msk [vmem:[#allocation3 + $0xa0] sm:$0xff] %vm9668, %v9613
        %9690 = vst.msk [vmem:[#allocation3 + $0xa8] sm:$0xff] %vm9668, %v9615
        %9691 = vst.msk [vmem:[#allocation3 + $0xb0] sm:$0xff] %vm9668, %v9617
        %9692 = vst.msk [vmem:[#allocation3 + $0xb8] sm:$0xff] %vm9668, %v9619
        %9693 = vst.msk [vmem:[#allocation3 + $0xc0] sm:$0xff] %vm9668, %v9621
        %9694 = vst.msk [vmem:[#allocation3 + $0xc8] sm:$0xff] %vm9668, %v9623
        %9695 = vst.msk [vmem:[#allocation3 + $0xd0] sm:$0xff] %vm9668, %v9625
        %9696 = vst.msk [vmem:[#allocation3 + $0xd8] sm:$0xff] %vm9668, %v9627
        %9697 = vst.msk [vmem:[#allocation3 + $0xe0] sm:$0xff] %vm9668, %v9629
        %9698 = vst.msk [vmem:[#allocation3 + $0xe8] sm:$0xff] %vm9668, %v9631
        %9699 = vst.msk [vmem:[#allocation3 + $0xf0] sm:$0xff] %vm9668, %v9633
        %9700 = vst.msk [vmem:[#allocation3 + $0xf8] sm:$0xff] %vm9668, %v9635
        %v9701 = vld [vmem:[%s2800 + $0x2] sm:$0xff]
        %v9702 = vld [vmem:[%s2800 + $0xa] sm:$0xff]
        %v9703 = vld [vmem:[%s2800 + $0x1a] sm:$0xff]
        %v9704 = vld [vmem:[%s2800 + $0x22] sm:$0xff]
        %v9705 = vld [vmem:[%s2800 + $0x32] sm:$0xff]
        %v9706 = vld [vmem:[%s2800 + $0x3a] sm:$0xff]
        %v9707 = vld [vmem:[%s2800 + $0x4a] sm:$0xff]
        %v9708 = vld [vmem:[%s2800 + $0x52] sm:$0xff]
        %v9709 = vld [vmem:[%s2800 + $0x62] sm:$0xff]
        %v9710 = vld [vmem:[%s2800 + $0x6a] sm:$0xff]
        %v9711 = vld [vmem:[%s2800 + $0x7a] sm:$0xff]
        %v9712 = vld [vmem:[%s2800 + $0x82] sm:$0xff]
        %v9713 = vld [vmem:[%s2800 + $0x92] sm:$0xff]
        %v9714 = vld [vmem:[%s2800 + $0x9a] sm:$0xff]
        %v9715 = vld [vmem:[%s2800 + $0xaa] sm:$0xff]
        %v9716 = vld [vmem:[%s2800 + $0xb2] sm:$0xff]
        %v9717 = vld [vmem:[%s2800 + $0xc2] sm:$0xff]
        %v9718 = vld [vmem:[%s2800 + $0xca] sm:$0xff]
        %v9719 = vld [vmem:[%s2800 + $0xda] sm:$0xff]
        %v9720 = vld [vmem:[%s2800 + $0xe2] sm:$0xff]
        %v9721 = vld [vmem:[%s2800 + $0xf2] sm:$0xff]
        %v9722 = vld [vmem:[%s2800 + $0xfa] sm:$0xff]
        %v9723 = vld [vmem:[%s2800 + $0x10a] sm:$0xff]
        %v9724 = vld [vmem:[%s2800 + $0x112] sm:$0xff]
        %v9725 = vld [vmem:[%s2800 + $0x122] sm:$0xff]
        %v9726 = vld [vmem:[%s2800 + $0x12a] sm:$0xff]
        %v9727 = vld [vmem:[%s2800 + $0x13a] sm:$0xff]
        %v9728 = vld [vmem:[%s2800 + $0x142] sm:$0xff]
        %v9729 = vld [vmem:[%s2800 + $0x152] sm:$0xff]
        %v9730 = vld [vmem:[%s2800 + $0x15a] sm:$0xff]
        %v9731 = vld [vmem:[%s2800 + $0x16a] sm:$0xff]
        %v9732 = vld [vmem:[%s2800 + $0x172] sm:$0xff]
        %9765 = vrot.lane.b32.xlu0 %v9701, 64
        %v9766 = vpop.permute.xlu0 %9765
        %9767 = vrot.lane.b32.xlu0 %v9702, 64
        %v9768 = vpop.permute.xlu0 %9767
        %9769 = vrot.lane.b32.xlu0 %v9703, 64
        %v9770 = vpop.permute.xlu0 %9769
        %9771 = vrot.lane.b32.xlu0 %v9704, 64
        %v9772 = vpop.permute.xlu0 %9771
        %9773 = vrot.lane.b32.xlu0 %v9705, 64
        %v9774 = vpop.permute.xlu0 %9773
        %9775 = vrot.lane.b32.xlu0 %v9706, 64
        %v9776 = vpop.permute.xlu0 %9775
        %9777 = vrot.lane.b32.xlu0 %v9707, 64
        %v9778 = vpop.permute.xlu0 %9777
        %9779 = vrot.lane.b32.xlu0 %v9708, 64
        %v9780 = vpop.permute.xlu0 %9779
        %9781 = vrot.lane.b32.xlu0 %v9709, 64
        %v9782 = vpop.permute.xlu0 %9781
        %9783 = vrot.lane.b32.xlu0 %v9710, 64
        %v9784 = vpop.permute.xlu0 %9783
        %9785 = vrot.lane.b32.xlu0 %v9711, 64
        %v9786 = vpop.permute.xlu0 %9785
        %9787 = vrot.lane.b32.xlu0 %v9712, 64
        %v9788 = vpop.permute.xlu0 %9787
        %9789 = vrot.lane.b32.xlu0 %v9713, 64
        %v9790 = vpop.permute.xlu0 %9789
        %9791 = vrot.lane.b32.xlu0 %v9714, 64
        %v9792 = vpop.permute.xlu0 %9791
        %9793 = vrot.lane.b32.xlu0 %v9715, 64
        %v9794 = vpop.permute.xlu0 %9793
        %9795 = vrot.lane.b32.xlu0 %v9716, 64
        %v9796 = vpop.permute.xlu0 %9795
        %9797 = vrot.lane.b32.xlu0 %v9717, 64
        %v9798 = vpop.permute.xlu0 %9797
        %9799 = vrot.lane.b32.xlu0 %v9718, 64
        %v9800 = vpop.permute.xlu0 %9799
        %9801 = vrot.lane.b32.xlu0 %v9719, 64
        %v9802 = vpop.permute.xlu0 %9801
        %9803 = vrot.lane.b32.xlu0 %v9720, 64
        %v9804 = vpop.permute.xlu0 %9803
        %9805 = vrot.lane.b32.xlu0 %v9721, 64
        %v9806 = vpop.permute.xlu0 %9805
        %9807 = vrot.lane.b32.xlu0 %v9722, 64
        %v9808 = vpop.permute.xlu0 %9807
        %9809 = vrot.lane.b32.xlu0 %v9723, 64
        %v9810 = vpop.permute.xlu0 %9809
        %9811 = vrot.lane.b32.xlu0 %v9724, 64
        %v9812 = vpop.permute.xlu0 %9811
        %9813 = vrot.lane.b32.xlu0 %v9725, 64
        %v9814 = vpop.permute.xlu0 %9813
        %9815 = vrot.lane.b32.xlu0 %v9726, 64
        %v9816 = vpop.permute.xlu0 %9815
        %9817 = vrot.lane.b32.xlu0 %v9727, 64
        %v9818 = vpop.permute.xlu0 %9817
        %9819 = vrot.lane.b32.xlu0 %v9728, 64
        %v9820 = vpop.permute.xlu0 %9819
        %9821 = vrot.lane.b32.xlu0 %v9729, 64
        %v9822 = vpop.permute.xlu0 %9821
        %9823 = vrot.lane.b32.xlu0 %v9730, 64
        %v9824 = vpop.permute.xlu0 %9823
        %9825 = vrot.lane.b32.xlu0 %v9731, 64
        %v9826 = vpop.permute.xlu0 %9825
        %9827 = vrot.lane.b32.xlu0 %v9732, 64
        %v9828 = vpop.permute.xlu0 %9827
        %vm9861 = vcmask 589312
        %9862 = vst.msk [vmem:[#allocation3] sm:$0xff] %vm9861, %v9766
        %9863 = vst.msk [vmem:[#allocation3 + $0x8] sm:$0xff] %vm9861, %v9768
        %9864 = vst.msk [vmem:[#allocation3 + $0x10] sm:$0xff] %vm9861, %v9770
        %9865 = vst.msk [vmem:[#allocation3 + $0x18] sm:$0xff] %vm9861, %v9772
        %9866 = vst.msk [vmem:[#allocation3 + $0x20] sm:$0xff] %vm9861, %v9774
        %9867 = vst.msk [vmem:[#allocation3 + $0x28] sm:$0xff] %vm9861, %v9776
        %9868 = vst.msk [vmem:[#allocation3 + $0x30] sm:$0xff] %vm9861, %v9778
        %9869 = vst.msk [vmem:[#allocation3 + $0x38] sm:$0xff] %vm9861, %v9780
        %9870 = vst.msk [vmem:[#allocation3 + $0x40] sm:$0xff] %vm9861, %v9782
        %9871 = vst.msk [vmem:[#allocation3 + $0x48] sm:$0xff] %vm9861, %v9784
        %9872 = vst.msk [vmem:[#allocation3 + $0x50] sm:$0xff] %vm9861, %v9786
        %9873 = vst.msk [vmem:[#allocation3 + $0x58] sm:$0xff] %vm9861, %v9788
        %9874 = vst.msk [vmem:[#allocation3 + $0x60] sm:$0xff] %vm9861, %v9790
        %9875 = vst.msk [vmem:[#allocation3 + $0x68] sm:$0xff] %vm9861, %v9792
        %9876 = vst.msk [vmem:[#allocation3 + $0x70] sm:$0xff] %vm9861, %v9794
        %9877 = vst.msk [vmem:[#allocation3 + $0x78] sm:$0xff] %vm9861, %v9796
        %9878 = vst.msk [vmem:[#allocation3 + $0x80] sm:$0xff] %vm9861, %v9798
        %9879 = vst.msk [vmem:[#allocation3 + $0x88] sm:$0xff] %vm9861, %v9800
        %9880 = vst.msk [vmem:[#allocation3 + $0x90] sm:$0xff] %vm9861, %v9802
        %9881 = vst.msk [vmem:[#allocation3 + $0x98] sm:$0xff] %vm9861, %v9804
        %9882 = vst.msk [vmem:[#allocation3 + $0xa0] sm:$0xff] %vm9861, %v9806
        %9883 = vst.msk [vmem:[#allocation3 + $0xa8] sm:$0xff] %vm9861, %v9808
        %9884 = vst.msk [vmem:[#allocation3 + $0xb0] sm:$0xff] %vm9861, %v9810
        %9885 = vst.msk [vmem:[#allocation3 + $0xb8] sm:$0xff] %vm9861, %v9812
        %9886 = vst.msk [vmem:[#allocation3 + $0xc0] sm:$0xff] %vm9861, %v9814
        %9887 = vst.msk [vmem:[#allocation3 + $0xc8] sm:$0xff] %vm9861, %v9816
        %9888 = vst.msk [vmem:[#allocation3 + $0xd0] sm:$0xff] %vm9861, %v9818
        %9889 = vst.msk [vmem:[#allocation3 + $0xd8] sm:$0xff] %vm9861, %v9820
        %9890 = vst.msk [vmem:[#allocation3 + $0xe0] sm:$0xff] %vm9861, %v9822
        %9891 = vst.msk [vmem:[#allocation3 + $0xe8] sm:$0xff] %vm9861, %v9824
        %9892 = vst.msk [vmem:[#allocation3 + $0xf0] sm:$0xff] %vm9861, %v9826
        %9893 = vst.msk [vmem:[#allocation3 + $0xf8] sm:$0xff] %vm9861, %v9828
        %v9894 = vld [vmem:[#allocation3] sm:$0xff]
        %v9895 = vld [vmem:[#allocation3 + $0x8] sm:$0xff]
        %v9896 = vld [vmem:[#allocation3 + $0x10] sm:$0xff]
        %v9897 = vld [vmem:[#allocation3 + $0x18] sm:$0xff]
        %v9898 = vld [vmem:[#allocation3 + $0x20] sm:$0xff]
        %v9899 = vld [vmem:[#allocation3 + $0x28] sm:$0xff]
        %v9900 = vld [vmem:[#allocation3 + $0x30] sm:$0xff]
        %v9901 = vld [vmem:[#allocation3 + $0x38] sm:$0xff]
        %v9902 = vld [vmem:[#allocation3 + $0x40] sm:$0xff]
        %v9903 = vld [vmem:[#allocation3 + $0x48] sm:$0xff]
        %v9904 = vld [vmem:[#allocation3 + $0x50] sm:$0xff]
        %v9905 = vld [vmem:[#allocation3 + $0x58] sm:$0xff]
        %v9906 = vld [vmem:[#allocation3 + $0x60] sm:$0xff]
        %v9907 = vld [vmem:[#allocation3 + $0x68] sm:$0xff]
        %v9908 = vld [vmem:[#allocation3 + $0x70] sm:$0xff]
        %v9909 = vld [vmem:[#allocation3 + $0x78] sm:$0xff]
        %v9910 = vld [vmem:[#allocation3 + $0x80] sm:$0xff]
        %v9911 = vld [vmem:[#allocation3 + $0x88] sm:$0xff]
        %v9912 = vld [vmem:[#allocation3 + $0x90] sm:$0xff]
        %v9913 = vld [vmem:[#allocation3 + $0x98] sm:$0xff]
        %v9914 = vld [vmem:[#allocation3 + $0xa0] sm:$0xff]
        %v9915 = vld [vmem:[#allocation3 + $0xa8] sm:$0xff]
        %v9916 = vld [vmem:[#allocation3 + $0xb0] sm:$0xff]
        %v9917 = vld [vmem:[#allocation3 + $0xb8] sm:$0xff]
        %v9918 = vld [vmem:[#allocation3 + $0xc0] sm:$0xff]
        %v9919 = vld [vmem:[#allocation3 + $0xc8] sm:$0xff]
        %v9920 = vld [vmem:[#allocation3 + $0xd0] sm:$0xff]
        %v9921 = vld [vmem:[#allocation3 + $0xd8] sm:$0xff]
        %v9922 = vld [vmem:[#allocation3 + $0xe0] sm:$0xff]
        %v9923 = vld [vmem:[#allocation3 + $0xe8] sm:$0xff]
        %v9924 = vld [vmem:[#allocation3 + $0xf0] sm:$0xff]
        %v9925 = vld [vmem:[#allocation3 + $0xf8] sm:$0xff]
        %v9926 = vld [vmem:[%s5] sm:$0xff]
        %v9927 = vld [vmem:[%s15] sm:$0xff]
        %9929 = vset.pattern.permute.xlu0 0
        %9930 = vperm.xlu0 %9929, %v9927
        %v9931 = vpop.permute.xlu0 %9930
        %vm9933 = vcmask 588800
        %v9935 = vsel %vm9933, %v9926, 0
        %v9938 = vsel %vm9933, %v9894, 0
        %v9941 = vsel %vm9933, %v9895, 0
        %v9944 = vsel %vm9933, %v9896, 0
        %v9947 = vsel %vm9933, %v9897, 0
        %v9950 = vsel %vm9933, %v9898, 0
        %v9953 = vsel %vm9933, %v9899, 0
        %v9956 = vsel %vm9933, %v9900, 0
        %v9959 = vsel %vm9933, %v9901, 0
        %v9962 = vsel %vm9933, %v9902, 0
        %v9965 = vsel %vm9933, %v9903, 0
        %v9968 = vsel %vm9933, %v9904, 0
        %v9971 = vsel %vm9933, %v9905, 0
        %v9974 = vsel %vm9933, %v9906, 0
        %v9977 = vsel %vm9933, %v9907, 0
        %v9980 = vsel %vm9933, %v9908, 0
        %v9983 = vsel %vm9933, %v9909, 0
        %v9986 = vsel %vm9933, %v9910, 0
        %v9989 = vsel %vm9933, %v9911, 0
        %v9992 = vsel %vm9933, %v9912, 0
        %v9995 = vsel %vm9933, %v9913, 0
        %v9998 = vsel %vm9933, %v9914, 0
        %v10001 = vsel %vm9933, %v9915, 0
        %v10004 = vsel %vm9933, %v9916, 0
        %v10007 = vsel %vm9933, %v9917, 0
        %v10010 = vsel %vm9933, %v9918, 0
        %v10013 = vsel %vm9933, %v9919, 0
        %v10016 = vsel %vm9933, %v9920, 0
        %v10019 = vsel %vm9933, %v9921, 0
        %v10022 = vsel %vm9933, %v9922, 0
        %v10025 = vsel %vm9933, %v9923, 0
        %v10028 = vsel %vm9933, %v9924, 0
        %v10031 = vsel %vm9933, %v9925, 0
        %10033 = vmatpush.xpose.msra.mxu0 %v9983
        %10034 = vmatpush.xpose.msra.mxu0 %v9980
        %10035 = vmatpush.xpose.msra.mxu0 %v9977
        %10036 = vmatpush.xpose.msra.mxu0 %v9974
        %10037 = vmatpush.xpose.msra.mxu0 %v9971
        %10038 = vmatpush.xpose.msra.mxu0 %v9968
        %10039 = vmatpush.xpose.msra.mxu0 %v9965
        %10040 = vmatpush.xpose.msra.mxu0 %v9962
        %10041 = vmatpush.xpose.msra.mxu0 %v9959
        %10042 = vmatpush.xpose.msra.mxu0 %v9956
        %10043 = vmatpush.xpose.msra.mxu0 %v9953
        %10044 = vmatpush.xpose.msra.mxu0 %v9950
        %10045 = vmatpush.xpose.msra.mxu0 %v9947
        %10046 = vmatpush.xpose.msra.mxu0 %v9944
        %10047 = vmatpush.xpose.msra.mxu0 %v9941
        %10048 = vmatpush.xpose.msra.mxu0 %v9938
        %10049 = vmatmul.f32.gmra.mxu0 %v9935
        %v10050 = vpop.f32.mrf.mxu0
        %v10051 = vadd.f32 %v9931, %v10050
        %10052 = vdwg.mxu0
        %10053 = vmatpush.xpose.msra.mxu0 %v10031
        %10054 = vmatpush.xpose.msra.mxu0 %v10028
        %10055 = vmatpush.xpose.msra.mxu0 %v10025
        %10056 = vmatpush.xpose.msra.mxu0 %v10022
        %10057 = vmatpush.xpose.msra.mxu0 %v10019
        %10058 = vmatpush.xpose.msra.mxu0 %v10016
        %10059 = vmatpush.xpose.msra.mxu0 %v10013
        %10060 = vmatpush.xpose.msra.mxu0 %v10010
        %10061 = vmatpush.xpose.msra.mxu0 %v10007
        %10062 = vmatpush.xpose.msra.mxu0 %v10004
        %10063 = vmatpush.xpose.msra.mxu0 %v10001
        %10064 = vmatpush.xpose.msra.mxu0 %v9998
        %10065 = vmatpush.xpose.msra.mxu0 %v9995
        %10066 = vmatpush.xpose.msra.mxu0 %v9992
        %10067 = vmatpush.xpose.msra.mxu0 %v9989
        %10068 = vmatpush.xpose.msra.mxu0 %v9986
        %10069 = vmatmul.f32.gmra.mxu0 %v9935
        %v10070 = vpop.f32.mrf.mxu0
        %v10071 = vadd.f32 %v9931, %v10070
        %10072 = vdwg.mxu0
        %v10073 = vld [vmem:[%s6] sm:$0xff]
        %v10074 = vld [vmem:[%s16] sm:$0xff]
        %10076 = vset.pattern.permute.xlu0 0
        %10077 = vperm.xlu0 %10076, %v10074
        %v10078 = vpop.permute.xlu0 %10077
        %v10081 = vsel %vm703, %v10073, 0
        %v10084 = vsel %vm703, %v605, 0
        %v10087 = vsel %vm703, %v606, 0
        %v10090 = vsel %vm703, %v607, 0
        %v10093 = vsel %vm703, %v608, 0
        %v10096 = vsel %vm703, %v609, 0
        %v10099 = vsel %vm703, %v610, 0
        %v10102 = vsel %vm703, %v611, 0
        %v10105 = vsel %vm703, %v612, 0
        %v10108 = vsel %vm703, %v613, 0
        %v10111 = vsel %vm703, %v614, 0
        %v10114 = vsel %vm703, %v615, 0
        %v10117 = vsel %vm703, %v616, 0
        %v10120 = vsel %vm703, %v617, 0
        %v10123 = vsel %vm703, %v618, 0
        %v10126 = vsel %vm703, %v619, 0
        %v10129 = vsel %vm703, %v620, 0
        %v10132 = vsel %vm703, %v621, 0
        %v10135 = vsel %vm703, %v622, 0
        %v10138 = vsel %vm703, %v623, 0
        %v10141 = vsel %vm703, %v624, 0
        %v10144 = vsel %vm703, %v625, 0
        %v10147 = vsel %vm703, %v626, 0
        %v10150 = vsel %vm703, %v627, 0
        %v10153 = vsel %vm703, %v628, 0
        %v10156 = vsel %vm703, %v629, 0
        %v10159 = vsel %vm703, %v630, 0
        %v10162 = vsel %vm703, %v631, 0
        %v10165 = vsel %vm703, %v632, 0
        %v10168 = vsel %vm703, %v633, 0
        %v10171 = vsel %vm703, %v634, 0
        %v10174 = vsel %vm703, %v635, 0
        %v10177 = vsel %vm703, %v636, 0
        %10179 = vmatpush.xpose.msra.mxu0 %v10129
        %10180 = vmatpush.xpose.msra.mxu0 %v10126
        %10181 = vmatpush.xpose.msra.mxu0 %v10123
        %10182 = vmatpush.xpose.msra.mxu0 %v10120
        %10183 = vmatpush.xpose.msra.mxu0 %v10117
        %10184 = vmatpush.xpose.msra.mxu0 %v10114
        %10185 = vmatpush.xpose.msra.mxu0 %v10111
        %10186 = vmatpush.xpose.msra.mxu0 %v10108
        %10187 = vmatpush.xpose.msra.mxu0 %v10105
        %10188 = vmatpush.xpose.msra.mxu0 %v10102
        %10189 = vmatpush.xpose.msra.mxu0 %v10099
        %10190 = vmatpush.xpose.msra.mxu0 %v10096
        %10191 = vmatpush.xpose.msra.mxu0 %v10093
        %10192 = vmatpush.xpose.msra.mxu0 %v10090
        %10193 = vmatpush.xpose.msra.mxu0 %v10087
        %10194 = vmatpush.xpose.msra.mxu0 %v10084
        %10195 = vmatmul.f32.gmra.mxu0 %v10081
        %v10196 = vpop.f32.mrf.mxu0
        %v10197 = vadd.f32 %v10078, %v10196
        %10198 = vdwg.mxu0
        %10199 = vmatpush.xpose.msra.mxu0 %v10177
        %10200 = vmatpush.xpose.msra.mxu0 %v10174
        %10201 = vmatpush.xpose.msra.mxu0 %v10171
        %10202 = vmatpush.xpose.msra.mxu0 %v10168
        %10203 = vmatpush.xpose.msra.mxu0 %v10165
        %10204 = vmatpush.xpose.msra.mxu0 %v10162
        %10205 = vmatpush.xpose.msra.mxu0 %v10159
        %10206 = vmatpush.xpose.msra.mxu0 %v10156
        %10207 = vmatpush.xpose.msra.mxu0 %v10153
        %10208 = vmatpush.xpose.msra.mxu0 %v10150
        %10209 = vmatpush.xpose.msra.mxu0 %v10147
        %10210 = vmatpush.xpose.msra.mxu0 %v10144
        %10211 = vmatpush.xpose.msra.mxu0 %v10141
        %10212 = vmatpush.xpose.msra.mxu0 %v10138
        %10213 = vmatpush.xpose.msra.mxu0 %v10135
        %10214 = vmatpush.xpose.msra.mxu0 %v10132
        %10215 = vmatmul.f32.gmra.mxu0 %v10081
        %v10216 = vpop.f32.mrf.mxu0
        %v10217 = vadd.f32 %v10078, %v10216
        %10218 = vdwg.mxu0
        %v10219 = vadd.f32 %v10197, %v10051
        %v10220 = vadd.f32 %v10217, %v10071
        %v10221 = vmul.f32 %v10219, 0.70710677
        %v10222 = vmul.f32 %v10220, 0.70710677
        %10223 = vst [vmem:[%s587] sm:$0xff] %v10221
        %10224 = vst [vmem:[%s587 + $0x8] sm:$0xff] %v10222
        %s10225 = sand.u32 %s411, 1
        %s10226 = scalar_lea.sflag [#allocation5], %s10225
        %s10227 = sand.u32 %s411, 1
        %s10228 = smul.addr %s10227, 16
        %s10229 = scalar_lea.vmem [#allocation4], %s10228
        %s10230 = sand.u32 %s437, 1
        %s10231 = scalar_lea.sflag [#allocation7], %s10230
        %s10232 = sand.u32 %s437, 1
        %s10233 = smul.addr %s10232, 16
        %s10234 = scalar_lea.vmem [#allocation6], %s10233
        // Predicated region
        $region89: #{tpu_custom_call.1} parent=87 // pred_check
          %p10235 = pneg %p421
        $region90: #{tpu_custom_call.1} parent=87 // pred_check_branch
          %10237 = sbr.rel (%p10235) target = $region92
        $region91: #{tpu_custom_call.1} parent=87 // pred_region
          %10239 = vsyncadd %s10226, 0
          %s10240 = smul.addr %s36, 2
          %s10241 = smul.addr %s10240, 8
          %s10242 = scalar_lea.hbm %s17, %s10241
          %s10244 = sshll.u32 %s10229, 4
          %s10245 = int_to_ptr.vmem [resolvable:$true] %s10244
          %s10246 = sshll.u32 %s10242, 4
          %s10247 = int_to_ptr.hbm [resolvable:$true] %s10246
          %10249 = dma.vmem_to_hbm [thread:$0]  %s10245, 256, %s10247, %s10226
        $region92: #{tpu_custom_call.1} parent=87 // pred_fallthru
          _
        // Predicated region
        $region93: #{tpu_custom_call.1} parent=87 // pred_check
          %p10250 = pneg %p447
        $region94: #{tpu_custom_call.1} parent=87 // pred_check_branch
          %10252 = sbr.rel (%p10250) target = $region96
        $region95: #{tpu_custom_call.1} parent=87 // pred_region
          %10254 = vsyncadd %s10231, 0
          %s10255 = smul.addr %s36, 2
          %s10256 = smul.addr %s10255, 8
          %s10257 = scalar_lea.hbm %s18, %s10256
          %s10259 = sshll.u32 %s10234, 4
          %s10260 = int_to_ptr.vmem [resolvable:$true] %s10259
          %s10261 = sshll.u32 %s10257, 4
          %s10262 = int_to_ptr.hbm [resolvable:$true] %s10261
          %10264 = dma.vmem_to_hbm [thread:$0]  %s10260, 256, %s10262, %s10231
        $region96: #{tpu_custom_call.1} parent=87 // pred_fallthru
          _
      $region88: #{tpu_custom_call.1} parent=5 // pred_fallthru
        _
      %p10265 = scmp.le.s32.totalorder 2, %s31
      // Predicated region
      $region97: #{tpu_custom_call.1} parent=5 // pred_check
        %p10266 = pneg %p10265
      $region98: #{tpu_custom_call.1} parent=5 // pred_check_branch
        %10268 = sbr.rel (%p10266) target = $region100
      $region99: #{tpu_custom_call.1} parent=5 // pred_region
        %s10269 = ssub.s32 %s31, 2
        // Predicated region
        $region101: #{tpu_custom_call.1} parent=99 // pred_check
          %p10270 = pneg %p427
        $region102: #{tpu_custom_call.1} parent=99 // pred_check_branch
          %10272 = sbr.rel (%p10270) target = $region104
        $region103: #{tpu_custom_call.1} parent=99 // pred_region
          %s10273 = sand.u32 %s412, 1
          %s10274 = scalar_lea.sflag [#allocation5], %s10273
          %s10275 = sand.u32 %s412, 1
          %s10276 = smul.addr %s10275, 16
          %s10277 = scalar_lea.vmem [#allocation4], %s10276
          %10279 = dma.done %s10274, 256
        $region104: #{tpu_custom_call.1} parent=99 // pred_fallthru
          _
        // Predicated region
        $region105: #{tpu_custom_call.1} parent=99 // pred_check
          %p10280 = pneg %p453
        $region106: #{tpu_custom_call.1} parent=99 // pred_check_branch
          %10282 = sbr.rel (%p10280) target = $region108
        $region107: #{tpu_custom_call.1} parent=99 // pred_region
          %s10283 = sand.u32 %s438, 1
          %s10284 = scalar_lea.sflag [#allocation7], %s10283
          %s10285 = sand.u32 %s438, 1
          %s10286 = smul.addr %s10285, 16
          %s10287 = scalar_lea.vmem [#allocation6], %s10286
          %10289 = dma.done %s10284, 256
        $region108: #{tpu_custom_call.1} parent=99 // pred_fallthru
          _
      $region100: #{tpu_custom_call.1} parent=5 // pred_fallthru
        _
    $region6: #{tpu_custom_call.1} parent=1 // loop_footer
      %s35 = sadd.s32 1, %s31
    $region7: #{tpu_custom_call.1} parent=1 // loop_footer_branch
      %30 = sbr.rel target = $region3
    $region8: #{tpu_custom_call.1} parent=1 // loop_exit
      _
    %10290 = vsyncpa [#allocation5], 1
    %s10291 = scalar_lea.sflag [#allocation5], 1
    %10292 = vsyncpa %s10291, 1
    %10293 = vsyncpa [#allocation7], 1
    %s10294 = scalar_lea.sflag [#allocation7], 1
    %10295 = vsyncpa %s10294, 1

</llo_original>
